<compile_context>
chip_gen: v6e
topology: v6e:2x2x1
jax: 0.10.0
libtpu: 0.0.40
codegen_flags: <defaults>
</compile_context>

<pallas_src>
import jax
import jax.numpy as jnp
import numpy as np
from jax.experimental import pallas as pl
from jax.experimental.pallas import tpu as pltpu

FEAT_DIM = 768        # module hardcodes self.feat_dim = 768
EMB_DIM = 512         # module hardcodes self.emb_dim = 512
PROJ_DIM = 256        # default proj_dim
NUM_HEADS = 4
NUM_LABELED = 16
NUM_UNLABELED = 32
OVERCLUSTER = 3
NUM_OVER = NUM_UNLABELED * OVERCLUSTER       # 96
LAB_PAD = 128                                # labeled logits padded to one lane tile
CAT_DIM = NUM_HEADS * PROJ_DIM               # 1024
EPS = 1e-12                                  # F.normalize eps


def _l2_scale(sumsq):
    # 1 / max(||x||, EPS) == rsqrt(max(sumsq, EPS^2)); rsqrt goes to the EUP slot.
    return jax.lax.rsqrt(jnp.maximum(sumsq, EPS * EPS))


# ---------------------------- fused kernel ----------------------------
def fused_kernel(feats_ref, wproj_ref, bproj_ref, plab_ref,
                 wu_ref, bu_ref, pu_ref,
                 wo_ref, bo_ref, po_ref,
                 emb_ref, lab_ref, lu_ref, zu_ref, lo_ref, zo_ref):
    # proj_head: (B,768)bf16 @ (768,512)bf16 -> f32, + bias
    emb = jnp.dot(feats_ref[...], wproj_ref[...],
                  preferred_element_type=jnp.float32) + bproj_ref[...]
    emb_ref[...] = emb
    emb_bf = emb.astype(jnp.bfloat16)

    # labeled head: L2-normalize rows of emb, matmul with zero-padded prototypes
    ss = jnp.sum(emb * emb, axis=1, keepdims=True)
    embn = (emb * _l2_scale(ss)).astype(jnp.bfloat16)
    lab_ref[...] = jnp.dot(embn, plab_ref[...], preferred_element_type=jnp.float32)

    # One MultiHead block: fused N=H*256 projector matmul, per-head 256-wide
    # normalization, block-diagonal prototype matmul -> lane-dense (B, H*K) logits.
    def multihead(w_ref, b_ref, p_ref, z_out_ref, l_out_ref):
        z = jnp.dot(emb_bf, w_ref[...],
                    preferred_element_type=jnp.float32) + b_ref[...]   # (B, 1024)
        blocks = []
        for h in range(NUM_HEADS):
            zh = z[:, h * PROJ_DIM:(h + 1) * PROJ_DIM]
            ssh = jnp.sum(zh * zh, axis=1, keepdims=True)
            blocks.append(zh * _l2_scale(ssh))
        zn = jnp.concatenate(blocks, axis=-1)                          # (B, 1024)
        z_out_ref[...] = zn
        l_out_ref[...] = jnp.dot(zn.astype(jnp.bfloat16), p_ref[...],
                                 preferred_element_type=jnp.float32)   # (B, H*K)

    multihead(wu_ref, bu_ref, pu_ref, zu_ref, lu_ref)
    multihead(wo_ref, bo_ref, po_ref, zo_ref, lo_ref)


def _fused_call(feats_bf, kp):
    B = feats_bf.shape[0]
    flops = 2 * B * (FEAT_DIM * EMB_DIM + EMB_DIM * LAB_PAD
                     + 2 * EMB_DIM * CAT_DIM
                     + CAT_DIM * (NUM_HEADS * NUM_UNLABELED)
                     + CAT_DIM * (NUM_HEADS * NUM_OVER))
    bytes_in = 2 * (B * FEAT_DIM + FEAT_DIM * EMB_DIM + EMB_DIM * LAB_PAD
                    + 2 * EMB_DIM * CAT_DIM
                    + CAT_DIM * (NUM_HEADS * NUM_UNLABELED + NUM_HEADS * NUM_OVER)) \
        + 4 * (EMB_DIM + 2 * CAT_DIM)
    bytes_out = 4 * B * (EMB_DIM + LAB_PAD + NUM_HEADS * NUM_UNLABELED
                         + NUM_HEADS * NUM_OVER + 2 * CAT_DIM)

    def vmem():
        return pl.BlockSpec(memory_space=pltpu.MemorySpace.VMEM)

    return pl.pallas_call(
        fused_kernel,
        out_shape=(
            jax.ShapeDtypeStruct((B, EMB_DIM), jnp.float32),                   # text_embs
            jax.ShapeDtypeStruct((B, LAB_PAD), jnp.float32),                   # lab logits (padded)
            jax.ShapeDtypeStruct((B, NUM_HEADS * NUM_UNLABELED), jnp.float32), # unlab logits slab
            jax.ShapeDtypeStruct((B, CAT_DIM), jnp.float32),                   # unlab proj slab
            jax.ShapeDtypeStruct((B, NUM_HEADS * NUM_OVER), jnp.float32),      # over logits slab
            jax.ShapeDtypeStruct((B, CAT_DIM), jnp.float32),                   # over proj slab
        ),
        in_specs=[vmem() for _ in range(10)],
        out_specs=tuple(vmem() for _ in range(6)),
        compiler_params=pltpu.CompilerParams(vmem_limit_bytes=32 * 1024 * 1024),
        cost_estimate=pl.CostEstimate(
            flops=flops,
            transcendentals=B * (1 + 2 * NUM_HEADS),
            bytes_accessed=bytes_in + bytes_out),
    )(feats_bf, kp["w_proj"], kp["b_proj"], kp["p_lab"],
      kp["w_u"], kp["b_u"], kp["p_u"],
      kp["w_o"], kp["b_o"], kp["p_o"])


@jax.jit
def multihead_bert_forward(feats, kernel_params):
    B = feats.shape[0]
    emb, lab, lu, zu, lo, zo = _fused_call(feats.astype(jnp.bfloat16), kernel_params)

    def unslab(slab, k):
        # (B, H*k) lane-dense slab -> (H, B, k)
        return slab.reshape(B, NUM_HEADS, k).transpose(1, 0, 2)

    return {
        "text_embs": emb,
        "text_logits_lab": lab[:, :NUM_LABELED],
        "text_logits_unlab": unslab(lu, NUM_UNLABELED),
        "text_proj_feats_unlab": unslab(zu, PROJ_DIM),
        "text_logits_unlab_over": unslab(lo, NUM_OVER),
        "text_proj_feats_unlab_over": unslab(zo, PROJ_DIM),
    }


# ---------------------------- parameters ----------------------------
def _q(x):
    # quantize to the bf16 grid so kernel (bf16 weights) and f32 reference agree
    return x.astype(jnp.bfloat16).astype(jnp.float32)


def init_params(key):
    ks = jax.random.split(key, 10)
    s = 0.02
    raw = {
        "w_proj": _q(s * jax.random.normal(ks[0], (FEAT_DIM, EMB_DIM), jnp.float32)),
        "b_proj": s * jax.random.normal(ks[1], (EMB_DIM,), jnp.float32),
        # labeled prototypes: Linear(512 -> 16, no bias); NOT normalized in __init__
        "p_lab": _q(s * jax.random.normal(ks[2], (EMB_DIM, NUM_LABELED), jnp.float32)),
    }

    def make_mh(kw, kb, kp, k_protos):
        w = _q(s * jax.random.normal(kw, (NUM_HEADS, EMB_DIM, PROJ_DIM), jnp.float32))
        b = s * jax.random.normal(kb, (NUM_HEADS, 1, PROJ_DIM), jnp.float32)
        # Prototypes weight (K, 256) row-normalized in MultiHead.__init__; store transposed
        p = jax.random.normal(kp, (NUM_HEADS, k_protos, PROJ_DIM), jnp.float32)
        p = p / jnp.maximum(jnp.linalg.norm(p, axis=-1, keepdims=True), EPS)
        return {"w": w, "b": b, "p": _q(jnp.transpose(p, (0, 2, 1)))}  # (H, 256, K)

    raw["unlab"] = make_mh(ks[3], ks[4], ks[5], NUM_UNLABELED)
    raw["over"] = make_mh(ks[6], ks[7], ks[8], NUM_OVER)
    return raw


def pack_params(raw):
    """Pack per-head params into fused, bf16, lane-dense kernel inputs."""
    def block_diag(p):                      # (H, P, K) -> (H*P, H*K)
        H, P, K = p.shape
        out = jnp.zeros((H * P, H * K), p.dtype)
        for h in range(H):
            out = out.at[h * P:(h + 1) * P, h * K:(h + 1) * K].set(p[h])
        return out

    def pack_mh(mh):
        w_cat = jnp.transpose(mh["w"], (1, 0, 2)).reshape(EMB_DIM, CAT_DIM)
        b_cat = mh["b"].reshape(1, CAT_DIM)
        return (w_cat.astype(jnp.bfloat16),
                b_cat.astype(jnp.float32),
                block_diag(mh["p"]).astype(jnp.bfloat16))

    p_lab_pad = jnp.zeros((EMB_DIM, LAB_PAD), jnp.float32).at[:, :NUM_LABELED].set(raw["p_lab"])
    w_u, b_u, p_u = pack_mh(raw["unlab"])
    w_o, b_o, p_o = pack_mh(raw["over"])
    return {
        "w_proj": raw["w_proj"].astype(jnp.bfloat16),
        "b_proj": raw["b_proj"].reshape(1, EMB_DIM).astype(jnp.float32),
        "p_lab": p_lab_pad.astype(jnp.bfloat16),
        "w_u": w_u, "b_u": b_u, "p_u": p_u,
        "w_o": w_o, "b_o": b_o, "p_o": p_o,
    }


# ---------------------------- pure-JAX reference ----------------------------
def reference_forward(feats, raw):
    def l2n(x):
        return x / jnp.maximum(jnp.linalg.norm(x, axis=-1, keepdims=True), EPS)

    emb = feats @ raw["w_proj"] + raw["b_proj"]
    out = {"text_embs": emb, "text_logits_lab": l2n(emb) @ raw["p_lab"]}

    def mh(pack):
        z = jnp.einsum("bd,hdp->hbp", emb, pack["w"]) + pack["b"]
        zn = l2n(z)
        return jnp.einsum("hbp,hpk->hbk", zn, pack["p"]), zn

    lu, pu = mh(raw["unlab"])
    lo, po = mh(raw["over"])
    out.update({
        "text_logits_unlab": lu, "text_proj_feats_unlab": pu,
        "text_logits_unlab_over": lo, "text_proj_feats_unlab_over": po,
    })
    return out


if __name__ == "__main__":
    key = jax.random.PRNGKey(0)
    k_feat, k_par = jax.random.split(key)
    B = 8
    feats = jax.random.normal(k_feat, (B, FEAT_DIM), jnp.float32)  # pooled BERT features
    raw_params = init_params(k_par)
    kernel_params = pack_params(raw_params)

    out = multihead_bert_forward(feats, kernel_params)
    jax.block_until_ready(out)

    ref = reference_forward(feats, raw_params)
    for name in [
        "text_embs", "text_logits_lab",
        "text_logits_unlab", "text_proj_feats_unlab",
        "text_logits_unlab_over", "text_proj_feats_unlab_over",
    ]:
        assert out[name].shape == ref[name].shape, (name, out[name].shape, ref[name].shape)
        np.testing.assert_allclose(np.asarray(out[name]), np.asarray(ref[name]),
                                   rtol=2e-2, atol=2e-2)

    print("KERNEL_OK")
</pallas_src>

<mosaic_0001>
module attributes {stable_mosaic.version = 11 : i64} {
  func.func @fused_kernel(%arg0: memref<8x768xbf16, #tpu.memory_space<vmem>>, %arg1: memref<768x512xbf16, #tpu.memory_space<vmem>>, %arg2: memref<1x512xf32, #tpu.memory_space<vmem>>, %arg3: memref<512x128xbf16, #tpu.memory_space<vmem>>, %arg4: memref<512x1024xbf16, #tpu.memory_space<vmem>>, %arg5: memref<1x1024xf32, #tpu.memory_space<vmem>>, %arg6: memref<1024x128xbf16, #tpu.memory_space<vmem>>, %arg7: memref<512x1024xbf16, #tpu.memory_space<vmem>>, %arg8: memref<1x1024xf32, #tpu.memory_space<vmem>>, %arg9: memref<1024x384xbf16, #tpu.memory_space<vmem>>, %arg10: memref<8x512xf32, #tpu.memory_space<vmem>>, %arg11: memref<8x128xf32, #tpu.memory_space<vmem>>, %arg12: memref<8x128xf32, #tpu.memory_space<vmem>>, %arg13: memref<8x1024xf32, #tpu.memory_space<vmem>>, %arg14: memref<8x384xf32, #tpu.memory_space<vmem>>, %arg15: memref<8x1024xf32, #tpu.memory_space<vmem>>) attributes {dimension_semantics = [], scalar_prefetch = 0 : i64, scratch_operands = 0 : i64, tpu.core_type = #tpu.core_type<tc>} {
    %c0 = arith.constant 0 : index
    %c0_0 = arith.constant 0 : index
    %0 = vector.load %arg0[%c0, %c0_0] : memref<8x768xbf16, #tpu.memory_space<vmem>>, vector<8x768xbf16>
    %c0_1 = arith.constant 0 : index
    %c0_2 = arith.constant 0 : index
    %1 = vector.load %arg1[%c0_1, %c0_2] : memref<768x512xbf16, #tpu.memory_space<vmem>>, vector<768x512xbf16>
    %cst = arith.constant dense<0.000000e+00> : vector<8x512xf32>
    %2 = tpu.matmul %0, %1, %cst {dimension_numbers = #tpu.dot_dimension_numbers<[1], [0], [0], [1], [0, 0, 1, 1], [], []>} : vector<8x768xbf16>, vector<768x512xbf16>, vector<8x512xf32> -> vector<8x512xf32>
    %c0_3 = arith.constant 0 : index
    %c0_4 = arith.constant 0 : index
    %3 = vector.load %arg2[%c0_3, %c0_4] : memref<1x512xf32, #tpu.memory_space<vmem>>, vector<1x512xf32>
    %4 = vector.broadcast %3 : vector<1x512xf32> to vector<8x512xf32>
    %5 = arith.addf %2, %4 : vector<8x512xf32>
    %c0_5 = arith.constant 0 : index
    %c0_6 = arith.constant 0 : index
    %6 = vector.load %arg10[%c0_5, %c0_6] : memref<8x512xf32, #tpu.memory_space<vmem>>, vector<8x512xf32>
    tpu.vector_store %arg10[%c0_5, %c0_6], %5 {strides = array<i32>} : memref<8x512xf32, #tpu.memory_space<vmem>>, vector<8x512xf32>,
    %7 = arith.truncf %5 : vector<8x512xf32> to vector<8x512xbf16>
    %8 = arith.mulf %5, %5 : vector<8x512xf32>
    %cst_7 = arith.constant dense<0.000000e+00> : vector<8xf32>
    %9 = vector.multi_reduction <add>, %8, %cst_7 [1] : vector<8x512xf32> to vector<8xf32>
    %10 = vector.shape_cast %9 : vector<8xf32> to vector<8x1xf32>
    %cst_8 = arith.constant 1.000000e-24 : f32
    %11 = vector.broadcast %cst_8 : f32 to vector<8x1xf32>
    %12 = arith.maximumf %10, %11 : vector<8x1xf32>
    %13 = math.rsqrt %12 : vector<8x1xf32>
    %14 = vector.broadcast %13 : vector<8x1xf32> to vector<8x512xf32>
    %15 = arith.mulf %5, %14 : vector<8x512xf32>
    %16 = arith.truncf %15 : vector<8x512xf32> to vector<8x512xbf16>
    %c0_9 = arith.constant 0 : index
    %c0_10 = arith.constant 0 : index
    %17 = vector.load %arg3[%c0_9, %c0_10] : memref<512x128xbf16, #tpu.memory_space<vmem>>, vector<512x128xbf16>
    %cst_11 = arith.constant dense<0.000000e+00> : vector<8x128xf32>
    %18 = tpu.matmul %16, %17, %cst_11 {dimension_numbers = #tpu.dot_dimension_numbers<[1], [0], [0], [1], [0, 0, 1, 1], [], []>} : vector<8x512xbf16>, vector<512x128xbf16>, vector<8x128xf32> -> vector<8x128xf32>
    %c0_12 = arith.constant 0 : index
    %c0_13 = arith.constant 0 : index
    %19 = vector.load %arg11[%c0_12, %c0_13] : memref<8x128xf32, #tpu.memory_space<vmem>>, vector<8x128xf32>
    tpu.vector_store %arg11[%c0_12, %c0_13], %18 {strides = array<i32>} : memref<8x128xf32, #tpu.memory_space<vmem>>, vector<8x128xf32>,
    %c0_14 = arith.constant 0 : index
    %c0_15 = arith.constant 0 : index
    %20 = vector.load %arg4[%c0_14, %c0_15] : memref<512x1024xbf16, #tpu.memory_space<vmem>>, vector<512x1024xbf16>
    %cst_16 = arith.constant dense<0.000000e+00> : vector<8x1024xf32>
    %21 = tpu.matmul %7, %20, %cst_16 {dimension_numbers = #tpu.dot_dimension_numbers<[1], [0], [0], [1], [0, 0, 1, 1], [], []>} : vector<8x512xbf16>, vector<512x1024xbf16>, vector<8x1024xf32> -> vector<8x1024xf32>
    %c0_17 = arith.constant 0 : index
    %c0_18 = arith.constant 0 : index
    %22 = vector.load %arg5[%c0_17, %c0_18] : memref<1x1024xf32, #tpu.memory_space<vmem>>, vector<1x1024xf32>
    %23 = vector.broadcast %22 : vector<1x1024xf32> to vector<8x1024xf32>
    %24 = arith.addf %21, %23 : vector<8x1024xf32>
    %25 = vector.extract_strided_slice %24 {offsets = [0, 0], sizes = [8, 256], strides = [1, 1]} : vector<8x1024xf32> to vector<8x256xf32>
    %26 = arith.mulf %25, %25 : vector<8x256xf32>
    %cst_19 = arith.constant dense<0.000000e+00> : vector<8xf32>
    %27 = vector.multi_reduction <add>, %26, %cst_19 [1] : vector<8x256xf32> to vector<8xf32>
    %28 = vector.shape_cast %27 : vector<8xf32> to vector<8x1xf32>
    %cst_20 = arith.constant 1.000000e-24 : f32
    %29 = vector.broadcast %cst_20 : f32 to vector<8x1xf32>
    %30 = arith.maximumf %28, %29 : vector<8x1xf32>
    %31 = math.rsqrt %30 : vector<8x1xf32>
    %32 = vector.broadcast %31 : vector<8x1xf32> to vector<8x256xf32>
    %33 = arith.mulf %25, %32 : vector<8x256xf32>
    %34 = vector.extract_strided_slice %24 {offsets = [0, 256], sizes = [8, 256], strides = [1, 1]} : vector<8x1024xf32> to vector<8x256xf32>
    %35 = arith.mulf %34, %34 : vector<8x256xf32>
    %cst_21 = arith.constant dense<0.000000e+00> : vector<8xf32>
    %36 = vector.multi_reduction <add>, %35, %cst_21 [1] : vector<8x256xf32> to vector<8xf32>
    %37 = vector.shape_cast %36 : vector<8xf32> to vector<8x1xf32>
    %cst_22 = arith.constant 1.000000e-24 : f32
    %38 = vector.broadcast %cst_22 : f32 to vector<8x1xf32>
    %39 = arith.maximumf %37, %38 : vector<8x1xf32>
    %40 = math.rsqrt %39 : vector<8x1xf32>
    %41 = vector.broadcast %40 : vector<8x1xf32> to vector<8x256xf32>
    %42 = arith.mulf %34, %41 : vector<8x256xf32>
    %43 = vector.extract_strided_slice %24 {offsets = [0, 512], sizes = [8, 256], strides = [1, 1]} : vector<8x1024xf32> to vector<8x256xf32>
    %44 = arith.mulf %43, %43 : vector<8x256xf32>
    %cst_23 = arith.constant dense<0.000000e+00> : vector<8xf32>
    %45 = vector.multi_reduction <add>, %44, %cst_23 [1] : vector<8x256xf32> to vector<8xf32>
    %46 = vector.shape_cast %45 : vector<8xf32> to vector<8x1xf32>
    %cst_24 = arith.constant 1.000000e-24 : f32
    %47 = vector.broadcast %cst_24 : f32 to vector<8x1xf32>
    %48 = arith.maximumf %46, %47 : vector<8x1xf32>
    %49 = math.rsqrt %48 : vector<8x1xf32>
    %50 = vector.broadcast %49 : vector<8x1xf32> to vector<8x256xf32>
    %51 = arith.mulf %43, %50 : vector<8x256xf32>
    %52 = vector.extract_strided_slice %24 {offsets = [0, 768], sizes = [8, 256], strides = [1, 1]} : vector<8x1024xf32> to vector<8x256xf32>
    %53 = arith.mulf %52, %52 : vector<8x256xf32>
    %cst_25 = arith.constant dense<0.000000e+00> : vector<8xf32>
    %54 = vector.multi_reduction <add>, %53, %cst_25 [1] : vector<8x256xf32> to vector<8xf32>
    %55 = vector.shape_cast %54 : vector<8xf32> to vector<8x1xf32>
    %cst_26 = arith.constant 1.000000e-24 : f32
    %56 = vector.broadcast %cst_26 : f32 to vector<8x1xf32>
    %57 = arith.maximumf %55, %56 : vector<8x1xf32>
    %58 = math.rsqrt %57 : vector<8x1xf32>
    %59 = vector.broadcast %58 : vector<8x1xf32> to vector<8x256xf32>
    %60 = arith.mulf %52, %59 : vector<8x256xf32>
    %61 = tpu.concatenate %33, %42, %51, %60 in 1 : vector<8x256xf32>, vector<8x256xf32>, vector<8x256xf32>, vector<8x256xf32> -> vector<8x1024xf32>
    %c0_27 = arith.constant 0 : index
    %c0_28 = arith.constant 0 : index
    %62 = vector.load %arg13[%c0_27, %c0_28] : memref<8x1024xf32, #tpu.memory_space<vmem>>, vector<8x1024xf32>
    tpu.vector_store %arg13[%c0_27, %c0_28], %61 {strides = array<i32>} : memref<8x1024xf32, #tpu.memory_space<vmem>>, vector<8x1024xf32>,
    %63 = arith.truncf %61 : vector<8x1024xf32> to vector<8x1024xbf16>
    %c0_29 = arith.constant 0 : index
    %c0_30 = arith.constant 0 : index
    %64 = vector.load %arg6[%c0_29, %c0_30] : memref<1024x128xbf16, #tpu.memory_space<vmem>>, vector<1024x128xbf16>
    %cst_31 = arith.constant dense<0.000000e+00> : vector<8x128xf32>
    %65 = tpu.matmul %63, %64, %cst_31 {dimension_numbers = #tpu.dot_dimension_numbers<[1], [0], [0], [1], [0, 0, 1, 1], [], []>} : vector<8x1024xbf16>, vector<1024x128xbf16>, vector<8x128xf32> -> vector<8x128xf32>
    %c0_32 = arith.constant 0 : index
    %c0_33 = arith.constant 0 : index
    %66 = vector.load %arg12[%c0_32, %c0_33] : memref<8x128xf32, #tpu.memory_space<vmem>>, vector<8x128xf32>
    tpu.vector_store %arg12[%c0_32, %c0_33], %65 {strides = array<i32>} : memref<8x128xf32, #tpu.memory_space<vmem>>, vector<8x128xf32>,
    %c0_34 = arith.constant 0 : index
    %c0_35 = arith.constant 0 : index
    %67 = vector.load %arg7[%c0_34, %c0_35] : memref<512x1024xbf16, #tpu.memory_space<vmem>>, vector<512x1024xbf16>
    %cst_36 = arith.constant dense<0.000000e+00> : vector<8x1024xf32>
    %68 = tpu.matmul %7, %67, %cst_36 {dimension_numbers = #tpu.dot_dimension_numbers<[1], [0], [0], [1], [0, 0, 1, 1], [], []>} : vector<8x512xbf16>, vector<512x1024xbf16>, vector<8x1024xf32> -> vector<8x1024xf32>
    %c0_37 = arith.constant 0 : index
    %c0_38 = arith.constant 0 : index
    %69 = vector.load %arg8[%c0_37, %c0_38] : memref<1x1024xf32, #tpu.memory_space<vmem>>, vector<1x1024xf32>
    %70 = vector.broadcast %69 : vector<1x1024xf32> to vector<8x1024xf32>
    %71 = arith.addf %68, %70 : vector<8x1024xf32>
    %72 = vector.extract_strided_slice %71 {offsets = [0, 0], sizes = [8, 256], strides = [1, 1]} : vector<8x1024xf32> to vector<8x256xf32>
    %73 = arith.mulf %72, %72 : vector<8x256xf32>
    %cst_39 = arith.constant dense<0.000000e+00> : vector<8xf32>
    %74 = vector.multi_reduction <add>, %73, %cst_39 [1] : vector<8x256xf32> to vector<8xf32>
    %75 = vector.shape_cast %74 : vector<8xf32> to vector<8x1xf32>
    %cst_40 = arith.constant 1.000000e-24 : f32
    %76 = vector.broadcast %cst_40 : f32 to vector<8x1xf32>
    %77 = arith.maximumf %75, %76 : vector<8x1xf32>
    %78 = math.rsqrt %77 : vector<8x1xf32>
    %79 = vector.broadcast %78 : vector<8x1xf32> to vector<8x256xf32>
    %80 = arith.mulf %72, %79 : vector<8x256xf32>
    %81 = vector.extract_strided_slice %71 {offsets = [0, 256], sizes = [8, 256], strides = [1, 1]} : vector<8x1024xf32> to vector<8x256xf32>
    %82 = arith.mulf %81, %81 : vector<8x256xf32>
    %cst_41 = arith.constant dense<0.000000e+00> : vector<8xf32>
    %83 = vector.multi_reduction <add>, %82, %cst_41 [1] : vector<8x256xf32> to vector<8xf32>
    %84 = vector.shape_cast %83 : vector<8xf32> to vector<8x1xf32>
    %cst_42 = arith.constant 1.000000e-24 : f32
    %85 = vector.broadcast %cst_42 : f32 to vector<8x1xf32>
    %86 = arith.maximumf %84, %85 : vector<8x1xf32>
    %87 = math.rsqrt %86 : vector<8x1xf32>
    %88 = vector.broadcast %87 : vector<8x1xf32> to vector<8x256xf32>
    %89 = arith.mulf %81, %88 : vector<8x256xf32>
    %90 = vector.extract_strided_slice %71 {offsets = [0, 512], sizes = [8, 256], strides = [1, 1]} : vector<8x1024xf32> to vector<8x256xf32>
    %91 = arith.mulf %90, %90 : vector<8x256xf32>
    %cst_43 = arith.constant dense<0.000000e+00> : vector<8xf32>
    %92 = vector.multi_reduction <add>, %91, %cst_43 [1] : vector<8x256xf32> to vector<8xf32>
    %93 = vector.shape_cast %92 : vector<8xf32> to vector<8x1xf32>
    %cst_44 = arith.constant 1.000000e-24 : f32
    %94 = vector.broadcast %cst_44 : f32 to vector<8x1xf32>
    %95 = arith.maximumf %93, %94 : vector<8x1xf32>
    %96 = math.rsqrt %95 : vector<8x1xf32>
    %97 = vector.broadcast %96 : vector<8x1xf32> to vector<8x256xf32>
    %98 = arith.mulf %90, %97 : vector<8x256xf32>
    %99 = vector.extract_strided_slice %71 {offsets = [0, 768], sizes = [8, 256], strides = [1, 1]} : vector<8x1024xf32> to vector<8x256xf32>
    %100 = arith.mulf %99, %99 : vector<8x256xf32>
    %cst_45 = arith.constant dense<0.000000e+00> : vector<8xf32>
    %101 = vector.multi_reduction <add>, %100, %cst_45 [1] : vector<8x256xf32> to vector<8xf32>
    %102 = vector.shape_cast %101 : vector<8xf32> to vector<8x1xf32>
    %cst_46 = arith.constant 1.000000e-24 : f32
    %103 = vector.broadcast %cst_46 : f32 to vector<8x1xf32>
    %104 = arith.maximumf %102, %103 : vector<8x1xf32>
    %105 = math.rsqrt %104 : vector<8x1xf32>
    %106 = vector.broadcast %105 : vector<8x1xf32> to vector<8x256xf32>
    %107 = arith.mulf %99, %106 : vector<8x256xf32>
    %108 = tpu.concatenate %80, %89, %98, %107 in 1 : vector<8x256xf32>, vector<8x256xf32>, vector<8x256xf32>, vector<8x256xf32> -> vector<8x1024xf32>
    %c0_47 = arith.constant 0 : index
    %c0_48 = arith.constant 0 : index
    %109 = vector.load %arg15[%c0_47, %c0_48] : memref<8x1024xf32, #tpu.memory_space<vmem>>, vector<8x1024xf32>
    tpu.vector_store %arg15[%c0_47, %c0_48], %108 {strides = array<i32>} : memref<8x1024xf32, #tpu.memory_space<vmem>>, vector<8x1024xf32>,
    %110 = arith.truncf %108 : vector<8x1024xf32> to vector<8x1024xbf16>
    %c0_49 = arith.constant 0 : index
    %c0_50 = arith.constant 0 : index
    %111 = vector.load %arg9[%c0_49, %c0_50] : memref<1024x384xbf16, #tpu.memory_space<vmem>>, vector<1024x384xbf16>
    %cst_51 = arith.constant dense<0.000000e+00> : vector<8x384xf32>
    %112 = tpu.matmul %110, %111, %cst_51 {dimension_numbers = #tpu.dot_dimension_numbers<[1], [0], [0], [1], [0, 0, 1, 1], [], []>} : vector<8x1024xbf16>, vector<1024x384xbf16>, vector<8x384xf32> -> vector<8x384xf32>
    %c0_52 = arith.constant 0 : index
    %c0_53 = arith.constant 0 : index
    %113 = vector.load %arg14[%c0_52, %c0_53] : memref<8x384xf32, #tpu.memory_space<vmem>>, vector<8x384xf32>
    tpu.vector_store %arg14[%c0_52, %c0_53], %112 {strides = array<i32>} : memref<8x384xf32, #tpu.memory_space<vmem>>, vector<8x384xf32>,
    return
  }
}

</mosaic_0001>

<llo_original>
// kernel: multihead_bert_forward.1
$region0: #{multihead_bert_forward.1}
  #allocation0 [shape = 'u32[]', space=smem, size = 0x4, offset = 0x4, fixed_abs, tag = 'smem constant byte address 0x4 - core index']
  #allocation1 [shape = 'u32[144,128]{1,0:T(1,128)}', space=vmem, size = 0x12000, scoped, tag = 'internal scratch']
  %s0 = inlined_call_operand.vmem [shape: bf16[8,768], index: 0, kind: input, shape index: {}]
  %s1 = inlined_call_operand.hbm [shape: bf16[768,512], index: 1, kind: input, shape index: {}]
  %s2 = inlined_call_operand.vmem [shape: f32[1,512], index: 2, kind: input, shape index: {}]
  %s3 = inlined_call_operand.hbm [shape: bf16[512,128], index: 3, kind: input, shape index: {}]
  %s4 = inlined_call_operand.hbm [shape: bf16[512,1024], index: 4, kind: input, shape index: {}]
  %s5 = inlined_call_operand.vmem [shape: f32[1,1024], index: 5, kind: input, shape index: {}]
  %s6 = inlined_call_operand.hbm [shape: bf16[1024,128], index: 6, kind: input, shape index: {}]
  %s7 = inlined_call_operand.hbm [shape: bf16[512,1024], index: 7, kind: input, shape index: {}]
  %s8 = inlined_call_operand.vmem [shape: f32[1,1024], index: 8, kind: input, shape index: {}]
  %s9 = inlined_call_operand.hbm [shape: bf16[1024,384], index: 9, kind: input, shape index: {}]
  %s10 = inlined_call_operand.hbm [shape: f32[8,512], index: 10, kind: output, shape index: {0}]
  %s11 = inlined_call_operand.hbm [shape: f32[8,128], index: 11, kind: output, shape index: {1}]
  %s12 = inlined_call_operand.vmem [shape: f32[8,128], index: 12, kind: output, shape index: {2}]
  %s13 = inlined_call_operand.hbm [shape: f32[8,1024], index: 13, kind: output, shape index: {3}]
  %s14 = inlined_call_operand.vmem [shape: f32[8,384], index: 14, kind: output, shape index: {4}]
  %s15 = inlined_call_operand.hbm [shape: f32[8,1024], index: 15, kind: output, shape index: {5}]
  %16 = xla_tuple %s10, %s11, %s12, %s13, %s14, %s15
  %s17 = sld [smem:[#allocation0]]
  $region114: #{multihead_bert_forward.1} parent=0
    _
  %s19 = ssub.s32 1, %s17
  %s20 = scalar_select 0, %s19, %s17
  $region1: #{multihead_bert_forward.1} parent=0
    #allocation2 [shape = 'u8[786432]{0}', space=vmem, size = 0xc0000, scoped, tag = 'input window, operand 1, single buffered']
    #allocation3 [shape = 's32[1]{0}', space=sflag, size = 0x4, scoped, tag = 'scoped memory for multihead_bert_forward.1']
    #allocation4 [shape = 's32[1]{0}', space=sflag, size = 0x4, scoped, tag = 'scoped memory for multihead_bert_forward.1']
    #allocation5 [shape = 'u8[131072]{0}', space=vmem, size = 0x20000, scoped, tag = 'input window, operand 3, single buffered']
    #allocation6 [shape = 's32[1]{0}', space=sflag, size = 0x4, scoped, tag = 'scoped memory for multihead_bert_forward.1']
    #allocation7 [shape = 'u8[1048576]{0}', space=vmem, size = 0x100000, scoped, tag = 'input window, operand 4, single buffered']
    #allocation8 [shape = 'u8[262144]{0}', space=vmem, size = 0x40000, scoped, tag = 'input window, operand 6, single buffered']
    #allocation9 [shape = 's32[1]{0}', space=sflag, size = 0x4, scoped, tag = 'scoped memory for multihead_bert_forward.1']
    #allocation10 [shape = 'u8[1048576]{0}', space=vmem, size = 0x100000, scoped, tag = 'input window, operand 7, single buffered']
    #allocation11 [shape = 'u8[786432]{0}', space=vmem, size = 0xc0000, scoped, tag = 'input window, operand 9, single buffered']
    #allocation12 [shape = 's32[1]{0}', space=sflag, size = 0x4, scoped, tag = 'scoped memory for multihead_bert_forward.1']
    #allocation13 [shape = 'u8[16384]{0}', space=vmem, size = 0x4000, scoped, tag = 'output window, operand 0, single buffered']
    #allocation14 [shape = 'u8[4096]{0}', space=vmem, size = 0x1000, scoped, tag = 'output window, operand 1, single buffered']
    #allocation15 [shape = 's32[1]{0}', space=sflag, size = 0x4, scoped, tag = 'scoped memory for multihead_bert_forward.1']
    #allocation16 [shape = 'u8[32768]{0}', space=vmem, size = 0x8000, scoped, tag = 'output window, operand 3, single buffered']
    #allocation17 [shape = 'u8[32768]{0}', space=vmem, size = 0x8000, scoped, tag = 'output window, operand 5, single buffered']
    #allocation18 [shape = 's32[1]{0}', space=sflag, size = 0x4, scoped, tag = 'scoped memory for multihead_bert_forward.1']
    %21 = vsyncpa [#allocation3], 0
    %22 = vsyncpa [#allocation6], 0
    %23 = vsyncpa [#allocation9], 0
    %24 = vsyncpa [#allocation12], 0
    %25 = vsyncpa [#allocation4], 0
    %26 = vsyncpa [#allocation15], 0
    %27 = vsyncpa [#allocation18], 0
    // Predicated region
    $region2: #{multihead_bert_forward.1} parent=1 // pred_check
      _
    $region3: #{multihead_bert_forward.1} parent=1 // pred_check_branch
      %29 = sbr.rel (0) target = $region5
    $region4: #{multihead_bert_forward.1} parent=1 // pred_region
      _
    $region5: #{multihead_bert_forward.1} parent=1 // pred_fallthru
      _
    // Predicated region
    $region6: #{multihead_bert_forward.1} parent=1 // pred_check
      _
    $region7: #{multihead_bert_forward.1} parent=1 // pred_check_branch
      %31 = sbr.rel (0) target = $region9
    $region8: #{multihead_bert_forward.1} parent=1 // pred_region
      %s33 = ssub.s32 24576, 24576
      %34 = vsyncadd [#allocation3], %s33
      %s35 = sshll.u32 [#allocation2], 4
      %s36 = int_to_ptr.vmem [resolvable:$true] %s35
      %41 = dma.hbm_to_vmem [thread:$0]  %s1, 24576, %s36, [#allocation3], 256, 256, 16
    $region9: #{multihead_bert_forward.1} parent=1 // pred_fallthru
      _
    // Predicated region
    $region10: #{multihead_bert_forward.1} parent=1 // pred_check
      _
    $region11: #{multihead_bert_forward.1} parent=1 // pred_check_branch
      %43 = sbr.rel (0) target = $region13
    $region12: #{multihead_bert_forward.1} parent=1 // pred_region
      _
    $region13: #{multihead_bert_forward.1} parent=1 // pred_fallthru
      _
    // Predicated region
    $region14: #{multihead_bert_forward.1} parent=1 // pred_check
      _
    $region15: #{multihead_bert_forward.1} parent=1 // pred_check_branch
      %45 = sbr.rel (0) target = $region17
    $region16: #{multihead_bert_forward.1} parent=1 // pred_region
      %s47 = ssub.s32 4096, 4096
      %48 = vsyncadd [#allocation6], %s47
      %s49 = sshll.u32 [#allocation5], 4
      %s50 = int_to_ptr.vmem [resolvable:$true] %s49
      %55 = dma.hbm_to_vmem [thread:$0]  %s3, 4096, %s50, [#allocation6], 64, 64, 4
    $region17: #{multihead_bert_forward.1} parent=1 // pred_fallthru
      _
    // Predicated region
    $region18: #{multihead_bert_forward.1} parent=1 // pred_check
      _
    $region19: #{multihead_bert_forward.1} parent=1 // pred_check_branch
      %57 = sbr.rel (0) target = $region21
    $region20: #{multihead_bert_forward.1} parent=1 // pred_region
      %s59 = ssub.s32 32768, 32768
      %60 = vsyncadd [#allocation6], %s59
      %s61 = sshll.u32 [#allocation7], 4
      %s62 = int_to_ptr.vmem [resolvable:$true] %s61
      %67 = dma.hbm_to_vmem [thread:$0]  %s4, 32768, %s62, [#allocation6], 512, 512, 32
    $region21: #{multihead_bert_forward.1} parent=1 // pred_fallthru
      _
    // Predicated region
    $region22: #{multihead_bert_forward.1} parent=1 // pred_check
      _
    $region23: #{multihead_bert_forward.1} parent=1 // pred_check_branch
      %69 = sbr.rel (0) target = $region25
    $region24: #{multihead_bert_forward.1} parent=1 // pred_region
      _
    $region25: #{multihead_bert_forward.1} parent=1 // pred_fallthru
      _
    // Predicated region
    $region26: #{multihead_bert_forward.1} parent=1 // pred_check
      _
    $region27: #{multihead_bert_forward.1} parent=1 // pred_check_branch
      %71 = sbr.rel (0) target = $region29
    $region28: #{multihead_bert_forward.1} parent=1 // pred_region
      %s73 = ssub.s32 8192, 8192
      %74 = vsyncadd [#allocation9], %s73
      %s75 = sshll.u32 [#allocation8], 4
      %s76 = int_to_ptr.vmem [resolvable:$true] %s75
      %81 = dma.hbm_to_vmem [thread:$0]  %s6, 8192, %s76, [#allocation9], 64, 64, 4
    $region29: #{multihead_bert_forward.1} parent=1 // pred_fallthru
      _
    // Predicated region
    $region30: #{multihead_bert_forward.1} parent=1 // pred_check
      _
    $region31: #{multihead_bert_forward.1} parent=1 // pred_check_branch
      %83 = sbr.rel (0) target = $region33
    $region32: #{multihead_bert_forward.1} parent=1 // pred_region
      %s85 = ssub.s32 32768, 32768
      %86 = vsyncadd [#allocation9], %s85
      %s87 = sshll.u32 [#allocation10], 4
      %s88 = int_to_ptr.vmem [resolvable:$true] %s87
      %93 = dma.hbm_to_vmem [thread:$0]  %s7, 32768, %s88, [#allocation9], 512, 512, 32
    $region33: #{multihead_bert_forward.1} parent=1 // pred_fallthru
      _
    // Predicated region
    $region34: #{multihead_bert_forward.1} parent=1 // pred_check
      _
    $region35: #{multihead_bert_forward.1} parent=1 // pred_check_branch
      %95 = sbr.rel (0) target = $region37
    $region36: #{multihead_bert_forward.1} parent=1 // pred_region
      _
    $region37: #{multihead_bert_forward.1} parent=1 // pred_fallthru
      _
    // Predicated region
    $region38: #{multihead_bert_forward.1} parent=1 // pred_check
      _
    $region39: #{multihead_bert_forward.1} parent=1 // pred_check_branch
      %97 = sbr.rel (0) target = $region41
    $region40: #{multihead_bert_forward.1} parent=1 // pred_region
      %s99 = ssub.s32 24576, 24576
      %100 = vsyncadd [#allocation12], %s99
      %s101 = sshll.u32 [#allocation11], 4
      %s102 = int_to_ptr.vmem [resolvable:$true] %s101
      %107 = dma.hbm_to_vmem [thread:$0]  %s9, 24576, %s102, [#allocation12], 192, 192, 12
    $region41: #{multihead_bert_forward.1} parent=1 // pred_fallthru
      _
    // Predicated region
    $region42: #{multihead_bert_forward.1} parent=1 // pred_check
      _
    $region43: #{multihead_bert_forward.1} parent=1 // pred_check_branch
      %109 = sbr.rel (0) target = $region45
    $region44: #{multihead_bert_forward.1} parent=1 // pred_region
      %110 = dma.done [#allocation3], 24576
    $region45: #{multihead_bert_forward.1} parent=1 // pred_fallthru
      _
    // Predicated region
    $region46: #{multihead_bert_forward.1} parent=1 // pred_check
      _
    $region47: #{multihead_bert_forward.1} parent=1 // pred_check_branch
      %112 = sbr.rel (0) target = $region49
    $region48: #{multihead_bert_forward.1} parent=1 // pred_region
      %113 = dma.done [#allocation6], 4096
    $region49: #{multihead_bert_forward.1} parent=1 // pred_fallthru
      _
    // Predicated region
    $region50: #{multihead_bert_forward.1} parent=1 // pred_check
      _
    $region51: #{multihead_bert_forward.1} parent=1 // pred_check_branch
      %115 = sbr.rel (0) target = $region53
    $region52: #{multihead_bert_forward.1} parent=1 // pred_region
      %116 = dma.done [#allocation6], 32768
    $region53: #{multihead_bert_forward.1} parent=1 // pred_fallthru
      _
    // Predicated region
    $region54: #{multihead_bert_forward.1} parent=1 // pred_check
      _
    $region55: #{multihead_bert_forward.1} parent=1 // pred_check_branch
      %118 = sbr.rel (0) target = $region57
    $region56: #{multihead_bert_forward.1} parent=1 // pred_region
      %119 = dma.done [#allocation9], 8192
    $region57: #{multihead_bert_forward.1} parent=1 // pred_fallthru
      _
    // Predicated region
    $region58: #{multihead_bert_forward.1} parent=1 // pred_check
      _
    $region59: #{multihead_bert_forward.1} parent=1 // pred_check_branch
      %121 = sbr.rel (0) target = $region61
    $region60: #{multihead_bert_forward.1} parent=1 // pred_region
      %122 = dma.done [#allocation9], 32768
    $region61: #{multihead_bert_forward.1} parent=1 // pred_fallthru
      _
    // Predicated region
    $region62: #{multihead_bert_forward.1} parent=1 // pred_check
      _
    $region63: #{multihead_bert_forward.1} parent=1 // pred_check_branch
      %124 = sbr.rel (0) target = $region65
    $region64: #{multihead_bert_forward.1} parent=1 // pred_region
      %125 = dma.done [#allocation12], 24576
    $region65: #{multihead_bert_forward.1} parent=1 // pred_fallthru
      _
    %v127 = vld [vmem:[%s0] sm:$0xff]
    %v128 = vld [vmem:[%s0 + $0x8] sm:$0xff]
    %v129 = vld [vmem:[%s0 + $0x10] sm:$0xff]
    %v130 = vld [vmem:[#allocation2] sm:$0xff]
    %v131 = vld [vmem:[#allocation2 + $0x8] sm:$0xff]
    %v132 = vld [vmem:[#allocation2 + $0x10] sm:$0xff]
    %v133 = vld [vmem:[#allocation2 + $0x18] sm:$0xff]
    %v134 = vld [vmem:[#allocation2 + $0x20] sm:$0xff]
    %v135 = vld [vmem:[#allocation2 + $0x28] sm:$0xff]
    %v136 = vld [vmem:[#allocation2 + $0x30] sm:$0xff]
    %v137 = vld [vmem:[#allocation2 + $0x38] sm:$0xff]
    %v138 = vld [vmem:[#allocation2 + $0x40] sm:$0xff]
    %v139 = vld [vmem:[#allocation2 + $0x48] sm:$0xff]
    %v140 = vld [vmem:[#allocation2 + $0x50] sm:$0xff]
    %v141 = vld [vmem:[#allocation2 + $0x58] sm:$0xff]
    %v142 = vld [vmem:[#allocation2 + $0x60] sm:$0xff]
    %v143 = vld [vmem:[#allocation2 + $0x68] sm:$0xff]
    %v144 = vld [vmem:[#allocation2 + $0x70] sm:$0xff]
    %v145 = vld [vmem:[#allocation2 + $0x78] sm:$0xff]
    %v146 = vld [vmem:[#allocation2 + $0x80] sm:$0xff]
    %v147 = vld [vmem:[#allocation2 + $0x88] sm:$0xff]
    %v148 = vld [vmem:[#allocation2 + $0x90] sm:$0xff]
    %v149 = vld [vmem:[#allocation2 + $0x98] sm:$0xff]
    %v150 = vld [vmem:[#allocation2 + $0xa0] sm:$0xff]
    %v151 = vld [vmem:[#allocation2 + $0xa8] sm:$0xff]
    %v152 = vld [vmem:[#allocation2 + $0xb0] sm:$0xff]
    %v153 = vld [vmem:[#allocation2 + $0xb8] sm:$0xff]
    %v154 = vld [vmem:[#allocation2 + $0xc0] sm:$0xff]
    %v155 = vld [vmem:[#allocation2 + $0xc8] sm:$0xff]
    %v156 = vld [vmem:[#allocation2 + $0xd0] sm:$0xff]
    %v157 = vld [vmem:[#allocation2 + $0xd8] sm:$0xff]
    %v158 = vld [vmem:[#allocation2 + $0xe0] sm:$0xff]
    %v159 = vld [vmem:[#allocation2 + $0xe8] sm:$0xff]
    %v160 = vld [vmem:[#allocation2 + $0xf0] sm:$0xff]
    %v161 = vld [vmem:[#allocation2 + $0xf8] sm:$0xff]
    %v162 = vld [vmem:[#allocation2 + $0x100] sm:$0xff]
    %v163 = vld [vmem:[#allocation2 + $0x108] sm:$0xff]
    %v164 = vld [vmem:[#allocation2 + $0x110] sm:$0xff]
    %v165 = vld [vmem:[#allocation2 + $0x118] sm:$0xff]
    %v166 = vld [vmem:[#allocation2 + $0x120] sm:$0xff]
    %v167 = vld [vmem:[#allocation2 + $0x128] sm:$0xff]
    %v168 = vld [vmem:[#allocation2 + $0x130] sm:$0xff]
    %v169 = vld [vmem:[#allocation2 + $0x138] sm:$0xff]
    %v170 = vld [vmem:[#allocation2 + $0x140] sm:$0xff]
    %v171 = vld [vmem:[#allocation2 + $0x148] sm:$0xff]
    %v172 = vld [vmem:[#allocation2 + $0x150] sm:$0xff]
    %v173 = vld [vmem:[#allocation2 + $0x158] sm:$0xff]
    %v174 = vld [vmem:[#allocation2 + $0x160] sm:$0xff]
    %v175 = vld [vmem:[#allocation2 + $0x168] sm:$0xff]
    %v176 = vld [vmem:[#allocation2 + $0x170] sm:$0xff]
    %v177 = vld [vmem:[#allocation2 + $0x178] sm:$0xff]
    %v178 = vld [vmem:[#allocation2 + $0x180] sm:$0xff]
    %v179 = vld [vmem:[#allocation2 + $0x188] sm:$0xff]
    %v180 = vld [vmem:[#allocation2 + $0x190] sm:$0xff]
    %v181 = vld [vmem:[#allocation2 + $0x198] sm:$0xff]
    %v182 = vld [vmem:[#allocation2 + $0x1a0] sm:$0xff]
    %v183 = vld [vmem:[#allocation2 + $0x1a8] sm:$0xff]
    %v184 = vld [vmem:[#allocation2 + $0x1b0] sm:$0xff]
    %v185 = vld [vmem:[#allocation2 + $0x1b8] sm:$0xff]
    %v186 = vld [vmem:[#allocation2 + $0x1c0] sm:$0xff]
    %v187 = vld [vmem:[#allocation2 + $0x1c8] sm:$0xff]
    %v188 = vld [vmem:[#allocation2 + $0x1d0] sm:$0xff]
    %v189 = vld [vmem:[#allocation2 + $0x1d8] sm:$0xff]
    %v190 = vld [vmem:[#allocation2 + $0x1e0] sm:$0xff]
    %v191 = vld [vmem:[#allocation2 + $0x1e8] sm:$0xff]
    %v192 = vld [vmem:[#allocation2 + $0x1f0] sm:$0xff]
    %v193 = vld [vmem:[#allocation2 + $0x1f8] sm:$0xff]
    %v194 = vld [vmem:[#allocation2 + $0x200] sm:$0xff]
    %v195 = vld [vmem:[#allocation2 + $0x208] sm:$0xff]
    %v196 = vld [vmem:[#allocation2 + $0x210] sm:$0xff]
    %v197 = vld [vmem:[#allocation2 + $0x218] sm:$0xff]
    %v198 = vld [vmem:[#allocation2 + $0x220] sm:$0xff]
    %v199 = vld [vmem:[#allocation2 + $0x228] sm:$0xff]
    %v200 = vld [vmem:[#allocation2 + $0x230] sm:$0xff]
    %v201 = vld [vmem:[#allocation2 + $0x238] sm:$0xff]
    %v202 = vld [vmem:[#allocation2 + $0x240] sm:$0xff]
    %v203 = vld [vmem:[#allocation2 + $0x248] sm:$0xff]
    %v204 = vld [vmem:[#allocation2 + $0x250] sm:$0xff]
    %v205 = vld [vmem:[#allocation2 + $0x258] sm:$0xff]
    %v206 = vld [vmem:[#allocation2 + $0x260] sm:$0xff]
    %v207 = vld [vmem:[#allocation2 + $0x268] sm:$0xff]
    %v208 = vld [vmem:[#allocation2 + $0x270] sm:$0xff]
    %v209 = vld [vmem:[#allocation2 + $0x278] sm:$0xff]
    %v210 = vld [vmem:[#allocation2 + $0x280] sm:$0xff]
    %v211 = vld [vmem:[#allocation2 + $0x288] sm:$0xff]
    %v212 = vld [vmem:[#allocation2 + $0x290] sm:$0xff]
    %v213 = vld [vmem:[#allocation2 + $0x298] sm:$0xff]
    %v214 = vld [vmem:[#allocation2 + $0x2a0] sm:$0xff]
    %v215 = vld [vmem:[#allocation2 + $0x2a8] sm:$0xff]
    %v216 = vld [vmem:[#allocation2 + $0x2b0] sm:$0xff]
    %v217 = vld [vmem:[#allocation2 + $0x2b8] sm:$0xff]
    %v218 = vld [vmem:[#allocation2 + $0x2c0] sm:$0xff]
    %v219 = vld [vmem:[#allocation2 + $0x2c8] sm:$0xff]
    %v220 = vld [vmem:[#allocation2 + $0x2d0] sm:$0xff]
    %v221 = vld [vmem:[#allocation2 + $0x2d8] sm:$0xff]
    %v222 = vld [vmem:[#allocation2 + $0x2e0] sm:$0xff]
    %v223 = vld [vmem:[#allocation2 + $0x2e8] sm:$0xff]
    %v224 = vld [vmem:[#allocation2 + $0x2f0] sm:$0xff]
    %v225 = vld [vmem:[#allocation2 + $0x2f8] sm:$0xff]
    %v226 = vld [vmem:[#allocation2 + $0x300] sm:$0xff]
    %v227 = vld [vmem:[#allocation2 + $0x308] sm:$0xff]
    %v228 = vld [vmem:[#allocation2 + $0x310] sm:$0xff]
    %v229 = vld [vmem:[#allocation2 + $0x318] sm:$0xff]
    %v230 = vld [vmem:[#allocation2 + $0x320] sm:$0xff]
    %v231 = vld [vmem:[#allocation2 + $0x328] sm:$0xff]
    %v232 = vld [vmem:[#allocation2 + $0x330] sm:$0xff]
    %v233 = vld [vmem:[#allocation2 + $0x338] sm:$0xff]
    %v234 = vld [vmem:[#allocation2 + $0x340] sm:$0xff]
    %v235 = vld [vmem:[#allocation2 + $0x348] sm:$0xff]
    %v236 = vld [vmem:[#allocation2 + $0x350] sm:$0xff]
    %v237 = vld [vmem:[#allocation2 + $0x358] sm:$0xff]
    %v238 = vld [vmem:[#allocation2 + $0x360] sm:$0xff]
    %v239 = vld [vmem:[#allocation2 + $0x368] sm:$0xff]
    %v240 = vld [vmem:[#allocation2 + $0x370] sm:$0xff]
    %v241 = vld [vmem:[#allocation2 + $0x378] sm:$0xff]
    %v242 = vld [vmem:[#allocation2 + $0x380] sm:$0xff]
    %v243 = vld [vmem:[#allocation2 + $0x388] sm:$0xff]
    %v244 = vld [vmem:[#allocation2 + $0x390] sm:$0xff]
    %v245 = vld [vmem:[#allocation2 + $0x398] sm:$0xff]
    %v246 = vld [vmem:[#allocation2 + $0x3a0] sm:$0xff]
    %v247 = vld [vmem:[#allocation2 + $0x3a8] sm:$0xff]
    %v248 = vld [vmem:[#allocation2 + $0x3b0] sm:$0xff]
    %v249 = vld [vmem:[#allocation2 + $0x3b8] sm:$0xff]
    %v250 = vld [vmem:[#allocation2 + $0x3c0] sm:$0xff]
    %v251 = vld [vmem:[#allocation2 + $0x3c8] sm:$0xff]
    %v252 = vld [vmem:[#allocation2 + $0x3d0] sm:$0xff]
    %v253 = vld [vmem:[#allocation2 + $0x3d8] sm:$0xff]
    %v254 = vld [vmem:[#allocation2 + $0x3e0] sm:$0xff]
    %v255 = vld [vmem:[#allocation2 + $0x3e8] sm:$0xff]
    %v256 = vld [vmem:[#allocation2 + $0x3f0] sm:$0xff]
    %v257 = vld [vmem:[#allocation2 + $0x3f8] sm:$0xff]
    %v258 = vld [vmem:[#allocation2 + $0x400] sm:$0xff]
    %v259 = vld [vmem:[#allocation2 + $0x408] sm:$0xff]
    %v260 = vld [vmem:[#allocation2 + $0x410] sm:$0xff]
    %v261 = vld [vmem:[#allocation2 + $0x418] sm:$0xff]
    %v262 = vld [vmem:[#allocation2 + $0x420] sm:$0xff]
    %v263 = vld [vmem:[#allocation2 + $0x428] sm:$0xff]
    %v264 = vld [vmem:[#allocation2 + $0x430] sm:$0xff]
    %v265 = vld [vmem:[#allocation2 + $0x438] sm:$0xff]
    %v266 = vld [vmem:[#allocation2 + $0x440] sm:$0xff]
    %v267 = vld [vmem:[#allocation2 + $0x448] sm:$0xff]
    %v268 = vld [vmem:[#allocation2 + $0x450] sm:$0xff]
    %v269 = vld [vmem:[#allocation2 + $0x458] sm:$0xff]
    %v270 = vld [vmem:[#allocation2 + $0x460] sm:$0xff]
    %v271 = vld [vmem:[#allocation2 + $0x468] sm:$0xff]
    %v272 = vld [vmem:[#allocation2 + $0x470] sm:$0xff]
    %v273 = vld [vmem:[#allocation2 + $0x478] sm:$0xff]
    %v274 = vld [vmem:[#allocation2 + $0x480] sm:$0xff]
    %v275 = vld [vmem:[#allocation2 + $0x488] sm:$0xff]
    %v276 = vld [vmem:[#allocation2 + $0x490] sm:$0xff]
    %v277 = vld [vmem:[#allocation2 + $0x498] sm:$0xff]
    %v278 = vld [vmem:[#allocation2 + $0x4a0] sm:$0xff]
    %v279 = vld [vmem:[#allocation2 + $0x4a8] sm:$0xff]
    %v280 = vld [vmem:[#allocation2 + $0x4b0] sm:$0xff]
    %v281 = vld [vmem:[#allocation2 + $0x4b8] sm:$0xff]
    %v282 = vld [vmem:[#allocation2 + $0x4c0] sm:$0xff]
    %v283 = vld [vmem:[#allocation2 + $0x4c8] sm:$0xff]
    %v284 = vld [vmem:[#allocation2 + $0x4d0] sm:$0xff]
    %v285 = vld [vmem:[#allocation2 + $0x4d8] sm:$0xff]
    %v286 = vld [vmem:[#allocation2 + $0x4e0] sm:$0xff]
    %v287 = vld [vmem:[#allocation2 + $0x4e8] sm:$0xff]
    %v288 = vld [vmem:[#allocation2 + $0x4f0] sm:$0xff]
    %v289 = vld [vmem:[#allocation2 + $0x4f8] sm:$0xff]
    %v290 = vld [vmem:[#allocation2 + $0x500] sm:$0xff]
    %v291 = vld [vmem:[#allocation2 + $0x508] sm:$0xff]
    %v292 = vld [vmem:[#allocation2 + $0x510] sm:$0xff]
    %v293 = vld [vmem:[#allocation2 + $0x518] sm:$0xff]
    %v294 = vld [vmem:[#allocation2 + $0x520] sm:$0xff]
    %v295 = vld [vmem:[#allocation2 + $0x528] sm:$0xff]
    %v296 = vld [vmem:[#allocation2 + $0x530] sm:$0xff]
    %v297 = vld [vmem:[#allocation2 + $0x538] sm:$0xff]
    %v298 = vld [vmem:[#allocation2 + $0x540] sm:$0xff]
    %v299 = vld [vmem:[#allocation2 + $0x548] sm:$0xff]
    %v300 = vld [vmem:[#allocation2 + $0x550] sm:$0xff]
    %v301 = vld [vmem:[#allocation2 + $0x558] sm:$0xff]
    %v302 = vld [vmem:[#allocation2 + $0x560] sm:$0xff]
    %v303 = vld [vmem:[#allocation2 + $0x568] sm:$0xff]
    %v304 = vld [vmem:[#allocation2 + $0x570] sm:$0xff]
    %v305 = vld [vmem:[#allocation2 + $0x578] sm:$0xff]
    %v306 = vld [vmem:[#allocation2 + $0x580] sm:$0xff]
    %v307 = vld [vmem:[#allocation2 + $0x588] sm:$0xff]
    %v308 = vld [vmem:[#allocation2 + $0x590] sm:$0xff]
    %v309 = vld [vmem:[#allocation2 + $0x598] sm:$0xff]
    %v310 = vld [vmem:[#allocation2 + $0x5a0] sm:$0xff]
    %v311 = vld [vmem:[#allocation2 + $0x5a8] sm:$0xff]
    %v312 = vld [vmem:[#allocation2 + $0x5b0] sm:$0xff]
    %v313 = vld [vmem:[#allocation2 + $0x5b8] sm:$0xff]
    %v314 = vld [vmem:[#allocation2 + $0x5c0] sm:$0xff]
    %v315 = vld [vmem:[#allocation2 + $0x5c8] sm:$0xff]
    %v316 = vld [vmem:[#allocation2 + $0x5d0] sm:$0xff]
    %v317 = vld [vmem:[#allocation2 + $0x5d8] sm:$0xff]
    %v318 = vld [vmem:[#allocation2 + $0x5e0] sm:$0xff]
    %v319 = vld [vmem:[#allocation2 + $0x5e8] sm:$0xff]
    %v320 = vld [vmem:[#allocation2 + $0x5f0] sm:$0xff]
    %v321 = vld [vmem:[#allocation2 + $0x5f8] sm:$0xff]
    %v322 = vld [vmem:[%s2] sm:$0xf]
    %v324 = vlaneseq
    %v325 = vshrl.u32 %v324, 7
    %v326 = vsub.s32 0, %v325
    %v327 = vrot.slane %v322, %v326
    %v328 = vlaneseq
    %v329 = vshrl.u32 %v328, 7
    %v330 = vsub.s32 1, %v329
    %v331 = vrot.slane %v322, %v330
    %v332 = vlaneseq
    %v333 = vshrl.u32 %v332, 7
    %v334 = vsub.s32 2, %v333
    %v335 = vrot.slane %v322, %v334
    %v336 = vlaneseq
    %v337 = vshrl.u32 %v336, 7
    %v338 = vsub.s32 3, %v337
    %v339 = vrot.slane %v322, %v338
    %v347 = vunpack.c.l.b16 %v127
    %v348 = vunpack.c.h.b16 %v127
    %v349 = vunpack.c.l.b16 %v128
    %v350 = vunpack.c.h.b16 %v128
    %v351 = vunpack.c.l.b16 %v129
    %v352 = vunpack.c.h.b16 %v129
    %v353 = vpack.c.b16 %v347, %v347
    %v354 = vpack.c.b16 %v348, %v348
    %v355 = vpack.c.b16 %v349, %v349
    %v356 = vpack.c.b16 %v350, %v350
    %v357 = vpack.c.b16 %v351, %v351
    %v358 = vpack.c.b16 %v352, %v352
    %v557 = vunpack.c.l.b16 %v130
    %v558 = vunpack.c.h.b16 %v130
    %v559 = vunpack.c.l.b16 %v131
    %v560 = vunpack.c.h.b16 %v131
    %v561 = vunpack.c.l.b16 %v132
    %v562 = vunpack.c.h.b16 %v132
    %v563 = vunpack.c.l.b16 %v133
    %v564 = vunpack.c.h.b16 %v133
    %v565 = vunpack.c.l.b16 %v134
    %v566 = vunpack.c.h.b16 %v134
    %v567 = vunpack.c.l.b16 %v135
    %v568 = vunpack.c.h.b16 %v135
    %v569 = vunpack.c.l.b16 %v136
    %v570 = vunpack.c.h.b16 %v136
    %v571 = vunpack.c.l.b16 %v137
    %v572 = vunpack.c.h.b16 %v137
    %v573 = vunpack.c.l.b16 %v138
    %v574 = vunpack.c.h.b16 %v138
    %v575 = vunpack.c.l.b16 %v139
    %v576 = vunpack.c.h.b16 %v139
    %v577 = vunpack.c.l.b16 %v140
    %v578 = vunpack.c.h.b16 %v140
    %v579 = vunpack.c.l.b16 %v141
    %v580 = vunpack.c.h.b16 %v141
    %v581 = vunpack.c.l.b16 %v142
    %v582 = vunpack.c.h.b16 %v142
    %v583 = vunpack.c.l.b16 %v143
    %v584 = vunpack.c.h.b16 %v143
    %v585 = vunpack.c.l.b16 %v144
    %v586 = vunpack.c.h.b16 %v144
    %v587 = vunpack.c.l.b16 %v145
    %v588 = vunpack.c.h.b16 %v145
    %v589 = vunpack.c.l.b16 %v146
    %v590 = vunpack.c.h.b16 %v146
    %v591 = vunpack.c.l.b16 %v147
    %v592 = vunpack.c.h.b16 %v147
    %v593 = vunpack.c.l.b16 %v148
    %v594 = vunpack.c.h.b16 %v148
    %v595 = vunpack.c.l.b16 %v149
    %v596 = vunpack.c.h.b16 %v149
    %v597 = vunpack.c.l.b16 %v150
    %v598 = vunpack.c.h.b16 %v150
    %v599 = vunpack.c.l.b16 %v151
    %v600 = vunpack.c.h.b16 %v151
    %v601 = vunpack.c.l.b16 %v152
    %v602 = vunpack.c.h.b16 %v152
    %v603 = vunpack.c.l.b16 %v153
    %v604 = vunpack.c.h.b16 %v153
    %v605 = vunpack.c.l.b16 %v154
    %v606 = vunpack.c.h.b16 %v154
    %v607 = vunpack.c.l.b16 %v155
    %v608 = vunpack.c.h.b16 %v155
    %v609 = vunpack.c.l.b16 %v156
    %v610 = vunpack.c.h.b16 %v156
    %v611 = vunpack.c.l.b16 %v157
    %v612 = vunpack.c.h.b16 %v157
    %v613 = vunpack.c.l.b16 %v158
    %v614 = vunpack.c.h.b16 %v158
    %v615 = vunpack.c.l.b16 %v159
    %v616 = vunpack.c.h.b16 %v159
    %v617 = vunpack.c.l.b16 %v160
    %v618 = vunpack.c.h.b16 %v160
    %v619 = vunpack.c.l.b16 %v161
    %v620 = vunpack.c.h.b16 %v161
    %v621 = vunpack.c.l.b16 %v162
    %v622 = vunpack.c.h.b16 %v162
    %v623 = vunpack.c.l.b16 %v163
    %v624 = vunpack.c.h.b16 %v163
    %v625 = vunpack.c.l.b16 %v164
    %v626 = vunpack.c.h.b16 %v164
    %v627 = vunpack.c.l.b16 %v165
    %v628 = vunpack.c.h.b16 %v165
    %v629 = vunpack.c.l.b16 %v166
    %v630 = vunpack.c.h.b16 %v166
    %v631 = vunpack.c.l.b16 %v167
    %v632 = vunpack.c.h.b16 %v167
    %v633 = vunpack.c.l.b16 %v168
    %v634 = vunpack.c.h.b16 %v168
    %v635 = vunpack.c.l.b16 %v169
    %v636 = vunpack.c.h.b16 %v169
    %v637 = vunpack.c.l.b16 %v170
    %v638 = vunpack.c.h.b16 %v170
    %v639 = vunpack.c.l.b16 %v171
    %v640 = vunpack.c.h.b16 %v171
    %v641 = vunpack.c.l.b16 %v172
    %v642 = vunpack.c.h.b16 %v172
    %v643 = vunpack.c.l.b16 %v173
    %v644 = vunpack.c.h.b16 %v173
    %v645 = vunpack.c.l.b16 %v174
    %v646 = vunpack.c.h.b16 %v174
    %v647 = vunpack.c.l.b16 %v175
    %v648 = vunpack.c.h.b16 %v175
    %v649 = vunpack.c.l.b16 %v176
    %v650 = vunpack.c.h.b16 %v176
    %v651 = vunpack.c.l.b16 %v177
    %v652 = vunpack.c.h.b16 %v177
    %v653 = vunpack.c.l.b16 %v178
    %v654 = vunpack.c.h.b16 %v178
    %v655 = vunpack.c.l.b16 %v179
    %v656 = vunpack.c.h.b16 %v179
    %v657 = vunpack.c.l.b16 %v180
    %v658 = vunpack.c.h.b16 %v180
    %v659 = vunpack.c.l.b16 %v181
    %v660 = vunpack.c.h.b16 %v181
    %v661 = vunpack.c.l.b16 %v182
    %v662 = vunpack.c.h.b16 %v182
    %v663 = vunpack.c.l.b16 %v183
    %v664 = vunpack.c.h.b16 %v183
    %v665 = vunpack.c.l.b16 %v184
    %v666 = vunpack.c.h.b16 %v184
    %v667 = vunpack.c.l.b16 %v185
    %v668 = vunpack.c.h.b16 %v185
    %v669 = vunpack.c.l.b16 %v186
    %v670 = vunpack.c.h.b16 %v186
    %v671 = vunpack.c.l.b16 %v187
    %v672 = vunpack.c.h.b16 %v187
    %v673 = vunpack.c.l.b16 %v188
    %v674 = vunpack.c.h.b16 %v188
    %v675 = vunpack.c.l.b16 %v189
    %v676 = vunpack.c.h.b16 %v189
    %v677 = vunpack.c.l.b16 %v190
    %v678 = vunpack.c.h.b16 %v190
    %v679 = vunpack.c.l.b16 %v191
    %v680 = vunpack.c.h.b16 %v191
    %v681 = vunpack.c.l.b16 %v192
    %v682 = vunpack.c.h.b16 %v192
    %v683 = vunpack.c.l.b16 %v193
    %v684 = vunpack.c.h.b16 %v193
    %v685 = vunpack.c.l.b16 %v194
    %v686 = vunpack.c.h.b16 %v194
    %v687 = vunpack.c.l.b16 %v195
    %v688 = vunpack.c.h.b16 %v195
    %v689 = vunpack.c.l.b16 %v196
    %v690 = vunpack.c.h.b16 %v196
    %v691 = vunpack.c.l.b16 %v197
    %v692 = vunpack.c.h.b16 %v197
    %v693 = vunpack.c.l.b16 %v198
    %v694 = vunpack.c.h.b16 %v198
    %v695 = vunpack.c.l.b16 %v199
    %v696 = vunpack.c.h.b16 %v199
    %v697 = vunpack.c.l.b16 %v200
    %v698 = vunpack.c.h.b16 %v200
    %v699 = vunpack.c.l.b16 %v201
    %v700 = vunpack.c.h.b16 %v201
    %v701 = vunpack.c.l.b16 %v202
    %v702 = vunpack.c.h.b16 %v202
    %v703 = vunpack.c.l.b16 %v203
    %v704 = vunpack.c.h.b16 %v203
    %v705 = vunpack.c.l.b16 %v204
    %v706 = vunpack.c.h.b16 %v204
    %v707 = vunpack.c.l.b16 %v205
    %v708 = vunpack.c.h.b16 %v205
    %v709 = vunpack.c.l.b16 %v206
    %v710 = vunpack.c.h.b16 %v206
    %v711 = vunpack.c.l.b16 %v207
    %v712 = vunpack.c.h.b16 %v207
    %v713 = vunpack.c.l.b16 %v208
    %v714 = vunpack.c.h.b16 %v208
    %v715 = vunpack.c.l.b16 %v209
    %v716 = vunpack.c.h.b16 %v209
    %v717 = vunpack.c.l.b16 %v210
    %v718 = vunpack.c.h.b16 %v210
    %v719 = vunpack.c.l.b16 %v211
    %v720 = vunpack.c.h.b16 %v211
    %v721 = vunpack.c.l.b16 %v212
    %v722 = vunpack.c.h.b16 %v212
    %v723 = vunpack.c.l.b16 %v213
    %v724 = vunpack.c.h.b16 %v213
    %v725 = vunpack.c.l.b16 %v214
    %v726 = vunpack.c.h.b16 %v214
    %v727 = vunpack.c.l.b16 %v215
    %v728 = vunpack.c.h.b16 %v215
    %v729 = vunpack.c.l.b16 %v216
    %v730 = vunpack.c.h.b16 %v216
    %v731 = vunpack.c.l.b16 %v217
    %v732 = vunpack.c.h.b16 %v217
    %v733 = vunpack.c.l.b16 %v218
    %v734 = vunpack.c.h.b16 %v218
    %v735 = vunpack.c.l.b16 %v219
    %v736 = vunpack.c.h.b16 %v219
    %v737 = vunpack.c.l.b16 %v220
    %v738 = vunpack.c.h.b16 %v220
    %v739 = vunpack.c.l.b16 %v221
    %v740 = vunpack.c.h.b16 %v221
    %v741 = vunpack.c.l.b16 %v222
    %v742 = vunpack.c.h.b16 %v222
    %v743 = vunpack.c.l.b16 %v223
    %v744 = vunpack.c.h.b16 %v223
    %v745 = vunpack.c.l.b16 %v224
    %v746 = vunpack.c.h.b16 %v224
    %v747 = vunpack.c.l.b16 %v225
    %v748 = vunpack.c.h.b16 %v225
    %v749 = vunpack.c.l.b16 %v226
    %v750 = vunpack.c.h.b16 %v226
    %v751 = vunpack.c.l.b16 %v227
    %v752 = vunpack.c.h.b16 %v227
    %v753 = vunpack.c.l.b16 %v228
    %v754 = vunpack.c.h.b16 %v228
    %v755 = vunpack.c.l.b16 %v229
    %v756 = vunpack.c.h.b16 %v229
    %v757 = vunpack.c.l.b16 %v230
    %v758 = vunpack.c.h.b16 %v230
    %v759 = vunpack.c.l.b16 %v231
    %v760 = vunpack.c.h.b16 %v231
    %v761 = vunpack.c.l.b16 %v232
    %v762 = vunpack.c.h.b16 %v232
    %v763 = vunpack.c.l.b16 %v233
    %v764 = vunpack.c.h.b16 %v233
    %v765 = vunpack.c.l.b16 %v234
    %v766 = vunpack.c.h.b16 %v234
    %v767 = vunpack.c.l.b16 %v235
    %v768 = vunpack.c.h.b16 %v235
    %v769 = vunpack.c.l.b16 %v236
    %v770 = vunpack.c.h.b16 %v236
    %v771 = vunpack.c.l.b16 %v237
    %v772 = vunpack.c.h.b16 %v237
    %v773 = vunpack.c.l.b16 %v238
    %v774 = vunpack.c.h.b16 %v238
    %v775 = vunpack.c.l.b16 %v239
    %v776 = vunpack.c.h.b16 %v239
    %v777 = vunpack.c.l.b16 %v240
    %v778 = vunpack.c.h.b16 %v240
    %v779 = vunpack.c.l.b16 %v241
    %v780 = vunpack.c.h.b16 %v241
    %v781 = vunpack.c.l.b16 %v242
    %v782 = vunpack.c.h.b16 %v242
    %v783 = vunpack.c.l.b16 %v243
    %v784 = vunpack.c.h.b16 %v243
    %v785 = vunpack.c.l.b16 %v244
    %v786 = vunpack.c.h.b16 %v244
    %v787 = vunpack.c.l.b16 %v245
    %v788 = vunpack.c.h.b16 %v245
    %v789 = vunpack.c.l.b16 %v246
    %v790 = vunpack.c.h.b16 %v246
    %v791 = vunpack.c.l.b16 %v247
    %v792 = vunpack.c.h.b16 %v247
    %v793 = vunpack.c.l.b16 %v248
    %v794 = vunpack.c.h.b16 %v248
    %v795 = vunpack.c.l.b16 %v249
    %v796 = vunpack.c.h.b16 %v249
    %v797 = vunpack.c.l.b16 %v250
    %v798 = vunpack.c.h.b16 %v250
    %v799 = vunpack.c.l.b16 %v251
    %v800 = vunpack.c.h.b16 %v251
    %v801 = vunpack.c.l.b16 %v252
    %v802 = vunpack.c.h.b16 %v252
    %v803 = vunpack.c.l.b16 %v253
    %v804 = vunpack.c.h.b16 %v253
    %v805 = vunpack.c.l.b16 %v254
    %v806 = vunpack.c.h.b16 %v254
    %v807 = vunpack.c.l.b16 %v255
    %v808 = vunpack.c.h.b16 %v255
    %v809 = vunpack.c.l.b16 %v256
    %v810 = vunpack.c.h.b16 %v256
    %v811 = vunpack.c.l.b16 %v257
    %v812 = vunpack.c.h.b16 %v257
    %v813 = vunpack.c.l.b16 %v258
    %v814 = vunpack.c.h.b16 %v258
    %v815 = vunpack.c.l.b16 %v259
    %v816 = vunpack.c.h.b16 %v259
    %v817 = vunpack.c.l.b16 %v260
    %v818 = vunpack.c.h.b16 %v260
    %v819 = vunpack.c.l.b16 %v261
    %v820 = vunpack.c.h.b16 %v261
    %v821 = vunpack.c.l.b16 %v262
    %v822 = vunpack.c.h.b16 %v262
    %v823 = vunpack.c.l.b16 %v263
    %v824 = vunpack.c.h.b16 %v263
    %v825 = vunpack.c.l.b16 %v264
    %v826 = vunpack.c.h.b16 %v264
    %v827 = vunpack.c.l.b16 %v265
    %v828 = vunpack.c.h.b16 %v265
    %v829 = vunpack.c.l.b16 %v266
    %v830 = vunpack.c.h.b16 %v266
    %v831 = vunpack.c.l.b16 %v267
    %v832 = vunpack.c.h.b16 %v267
    %v833 = vunpack.c.l.b16 %v268
    %v834 = vunpack.c.h.b16 %v268
    %v835 = vunpack.c.l.b16 %v269
    %v836 = vunpack.c.h.b16 %v269
    %v837 = vunpack.c.l.b16 %v270
    %v838 = vunpack.c.h.b16 %v270
    %v839 = vunpack.c.l.b16 %v271
    %v840 = vunpack.c.h.b16 %v271
    %v841 = vunpack.c.l.b16 %v272
    %v842 = vunpack.c.h.b16 %v272
    %v843 = vunpack.c.l.b16 %v273
    %v844 = vunpack.c.h.b16 %v273
    %v845 = vunpack.c.l.b16 %v274
    %v846 = vunpack.c.h.b16 %v274
    %v847 = vunpack.c.l.b16 %v275
    %v848 = vunpack.c.h.b16 %v275
    %v849 = vunpack.c.l.b16 %v276
    %v850 = vunpack.c.h.b16 %v276
    %v851 = vunpack.c.l.b16 %v277
    %v852 = vunpack.c.h.b16 %v277
    %v853 = vunpack.c.l.b16 %v278
    %v854 = vunpack.c.h.b16 %v278
    %v855 = vunpack.c.l.b16 %v279
    %v856 = vunpack.c.h.b16 %v279
    %v857 = vunpack.c.l.b16 %v280
    %v858 = vunpack.c.h.b16 %v280
    %v859 = vunpack.c.l.b16 %v281
    %v860 = vunpack.c.h.b16 %v281
    %v861 = vunpack.c.l.b16 %v282
    %v862 = vunpack.c.h.b16 %v282
    %v863 = vunpack.c.l.b16 %v283
    %v864 = vunpack.c.h.b16 %v283
    %v865 = vunpack.c.l.b16 %v284
    %v866 = vunpack.c.h.b16 %v284
    %v867 = vunpack.c.l.b16 %v285
    %v868 = vunpack.c.h.b16 %v285
    %v869 = vunpack.c.l.b16 %v286
    %v870 = vunpack.c.h.b16 %v286
    %v871 = vunpack.c.l.b16 %v287
    %v872 = vunpack.c.h.b16 %v287
    %v873 = vunpack.c.l.b16 %v288
    %v874 = vunpack.c.h.b16 %v288
    %v875 = vunpack.c.l.b16 %v289
    %v876 = vunpack.c.h.b16 %v289
    %v877 = vunpack.c.l.b16 %v290
    %v878 = vunpack.c.h.b16 %v290
    %v879 = vunpack.c.l.b16 %v291
    %v880 = vunpack.c.h.b16 %v291
    %v881 = vunpack.c.l.b16 %v292
    %v882 = vunpack.c.h.b16 %v292
    %v883 = vunpack.c.l.b16 %v293
    %v884 = vunpack.c.h.b16 %v293
    %v885 = vunpack.c.l.b16 %v294
    %v886 = vunpack.c.h.b16 %v294
    %v887 = vunpack.c.l.b16 %v295
    %v888 = vunpack.c.h.b16 %v295
    %v889 = vunpack.c.l.b16 %v296
    %v890 = vunpack.c.h.b16 %v296
    %v891 = vunpack.c.l.b16 %v297
    %v892 = vunpack.c.h.b16 %v297
    %v893 = vunpack.c.l.b16 %v298
    %v894 = vunpack.c.h.b16 %v298
    %v895 = vunpack.c.l.b16 %v299
    %v896 = vunpack.c.h.b16 %v299
    %v897 = vunpack.c.l.b16 %v300
    %v898 = vunpack.c.h.b16 %v300
    %v899 = vunpack.c.l.b16 %v301
    %v900 = vunpack.c.h.b16 %v301
    %v901 = vunpack.c.l.b16 %v302
    %v902 = vunpack.c.h.b16 %v302
    %v903 = vunpack.c.l.b16 %v303
    %v904 = vunpack.c.h.b16 %v303
    %v905 = vunpack.c.l.b16 %v304
    %v906 = vunpack.c.h.b16 %v304
    %v907 = vunpack.c.l.b16 %v305
    %v908 = vunpack.c.h.b16 %v305
    %v909 = vunpack.c.l.b16 %v306
    %v910 = vunpack.c.h.b16 %v306
    %v911 = vunpack.c.l.b16 %v307
    %v912 = vunpack.c.h.b16 %v307
    %v913 = vunpack.c.l.b16 %v308
    %v914 = vunpack.c.h.b16 %v308
    %v915 = vunpack.c.l.b16 %v309
    %v916 = vunpack.c.h.b16 %v309
    %v917 = vunpack.c.l.b16 %v310
    %v918 = vunpack.c.h.b16 %v310
    %v919 = vunpack.c.l.b16 %v311
    %v920 = vunpack.c.h.b16 %v311
    %v921 = vunpack.c.l.b16 %v312
    %v922 = vunpack.c.h.b16 %v312
    %v923 = vunpack.c.l.b16 %v313
    %v924 = vunpack.c.h.b16 %v313
    %v925 = vunpack.c.l.b16 %v314
    %v926 = vunpack.c.h.b16 %v314
    %v927 = vunpack.c.l.b16 %v315
    %v928 = vunpack.c.h.b16 %v315
    %v929 = vunpack.c.l.b16 %v316
    %v930 = vunpack.c.h.b16 %v316
    %v931 = vunpack.c.l.b16 %v317
    %v932 = vunpack.c.h.b16 %v317
    %v933 = vunpack.c.l.b16 %v318
    %v934 = vunpack.c.h.b16 %v318
    %v935 = vunpack.c.l.b16 %v319
    %v936 = vunpack.c.h.b16 %v319
    %v937 = vunpack.c.l.b16 %v320
    %v938 = vunpack.c.h.b16 %v320
    %v939 = vunpack.c.l.b16 %v321
    %v940 = vunpack.c.h.b16 %v321
    %v941 = vpack.c.b16 %v561, %v557
    %v942 = vpack.c.b16 %v562, %v558
    %v943 = vpack.c.b16 %v563, %v559
    %v944 = vpack.c.b16 %v564, %v560
    %v945 = vpack.c.b16 %v569, %v565
    %v946 = vpack.c.b16 %v570, %v566
    %v947 = vpack.c.b16 %v571, %v567
    %v948 = vpack.c.b16 %v572, %v568
    %v949 = vpack.c.b16 %v577, %v573
    %v950 = vpack.c.b16 %v578, %v574
    %v951 = vpack.c.b16 %v579, %v575
    %v952 = vpack.c.b16 %v580, %v576
    %v953 = vpack.c.b16 %v585, %v581
    %v954 = vpack.c.b16 %v586, %v582
    %v955 = vpack.c.b16 %v587, %v583
    %v956 = vpack.c.b16 %v588, %v584
    %v957 = vpack.c.b16 %v593, %v589
    %v958 = vpack.c.b16 %v594, %v590
    %v959 = vpack.c.b16 %v595, %v591
    %v960 = vpack.c.b16 %v596, %v592
    %v961 = vpack.c.b16 %v601, %v597
    %v962 = vpack.c.b16 %v602, %v598
    %v963 = vpack.c.b16 %v603, %v599
    %v964 = vpack.c.b16 %v604, %v600
    %v965 = vpack.c.b16 %v609, %v605
    %v966 = vpack.c.b16 %v610, %v606
    %v967 = vpack.c.b16 %v611, %v607
    %v968 = vpack.c.b16 %v612, %v608
    %v969 = vpack.c.b16 %v617, %v613
    %v970 = vpack.c.b16 %v618, %v614
    %v971 = vpack.c.b16 %v619, %v615
    %v972 = vpack.c.b16 %v620, %v616
    %v973 = vpack.c.b16 %v625, %v621
    %v974 = vpack.c.b16 %v626, %v622
    %v975 = vpack.c.b16 %v627, %v623
    %v976 = vpack.c.b16 %v628, %v624
    %v977 = vpack.c.b16 %v633, %v629
    %v978 = vpack.c.b16 %v634, %v630
    %v979 = vpack.c.b16 %v635, %v631
    %v980 = vpack.c.b16 %v636, %v632
    %v981 = vpack.c.b16 %v641, %v637
    %v982 = vpack.c.b16 %v642, %v638
    %v983 = vpack.c.b16 %v643, %v639
    %v984 = vpack.c.b16 %v644, %v640
    %v985 = vpack.c.b16 %v649, %v645
    %v986 = vpack.c.b16 %v650, %v646
    %v987 = vpack.c.b16 %v651, %v647
    %v988 = vpack.c.b16 %v652, %v648
    %v989 = vpack.c.b16 %v657, %v653
    %v990 = vpack.c.b16 %v658, %v654
    %v991 = vpack.c.b16 %v659, %v655
    %v992 = vpack.c.b16 %v660, %v656
    %v993 = vpack.c.b16 %v665, %v661
    %v994 = vpack.c.b16 %v666, %v662
    %v995 = vpack.c.b16 %v667, %v663
    %v996 = vpack.c.b16 %v668, %v664
    %v997 = vpack.c.b16 %v673, %v669
    %v998 = vpack.c.b16 %v674, %v670
    %v999 = vpack.c.b16 %v675, %v671
    %v1000 = vpack.c.b16 %v676, %v672
    %v1001 = vpack.c.b16 %v681, %v677
    %v1002 = vpack.c.b16 %v682, %v678
    %v1003 = vpack.c.b16 %v683, %v679
    %v1004 = vpack.c.b16 %v684, %v680
    %v1005 = vpack.c.b16 %v689, %v685
    %v1006 = vpack.c.b16 %v690, %v686
    %v1007 = vpack.c.b16 %v691, %v687
    %v1008 = vpack.c.b16 %v692, %v688
    %v1009 = vpack.c.b16 %v697, %v693
    %v1010 = vpack.c.b16 %v698, %v694
    %v1011 = vpack.c.b16 %v699, %v695
    %v1012 = vpack.c.b16 %v700, %v696
    %v1013 = vpack.c.b16 %v705, %v701
    %v1014 = vpack.c.b16 %v706, %v702
    %v1015 = vpack.c.b16 %v707, %v703
    %v1016 = vpack.c.b16 %v708, %v704
    %v1017 = vpack.c.b16 %v713, %v709
    %v1018 = vpack.c.b16 %v714, %v710
    %v1019 = vpack.c.b16 %v715, %v711
    %v1020 = vpack.c.b16 %v716, %v712
    %v1021 = vpack.c.b16 %v721, %v717
    %v1022 = vpack.c.b16 %v722, %v718
    %v1023 = vpack.c.b16 %v723, %v719
    %v1024 = vpack.c.b16 %v724, %v720
    %v1025 = vpack.c.b16 %v729, %v725
    %v1026 = vpack.c.b16 %v730, %v726
    %v1027 = vpack.c.b16 %v731, %v727
    %v1028 = vpack.c.b16 %v732, %v728
    %v1029 = vpack.c.b16 %v737, %v733
    %v1030 = vpack.c.b16 %v738, %v734
    %v1031 = vpack.c.b16 %v739, %v735
    %v1032 = vpack.c.b16 %v740, %v736
    %v1033 = vpack.c.b16 %v745, %v741
    %v1034 = vpack.c.b16 %v746, %v742
    %v1035 = vpack.c.b16 %v747, %v743
    %v1036 = vpack.c.b16 %v748, %v744
    %v1037 = vpack.c.b16 %v753, %v749
    %v1038 = vpack.c.b16 %v754, %v750
    %v1039 = vpack.c.b16 %v755, %v751
    %v1040 = vpack.c.b16 %v756, %v752
    %v1041 = vpack.c.b16 %v761, %v757
    %v1042 = vpack.c.b16 %v762, %v758
    %v1043 = vpack.c.b16 %v763, %v759
    %v1044 = vpack.c.b16 %v764, %v760
    %v1045 = vpack.c.b16 %v769, %v765
    %v1046 = vpack.c.b16 %v770, %v766
    %v1047 = vpack.c.b16 %v771, %v767
    %v1048 = vpack.c.b16 %v772, %v768
    %v1049 = vpack.c.b16 %v777, %v773
    %v1050 = vpack.c.b16 %v778, %v774
    %v1051 = vpack.c.b16 %v779, %v775
    %v1052 = vpack.c.b16 %v780, %v776
    %v1053 = vpack.c.b16 %v785, %v781
    %v1054 = vpack.c.b16 %v786, %v782
    %v1055 = vpack.c.b16 %v787, %v783
    %v1056 = vpack.c.b16 %v788, %v784
    %v1057 = vpack.c.b16 %v793, %v789
    %v1058 = vpack.c.b16 %v794, %v790
    %v1059 = vpack.c.b16 %v795, %v791
    %v1060 = vpack.c.b16 %v796, %v792
    %v1061 = vpack.c.b16 %v801, %v797
    %v1062 = vpack.c.b16 %v802, %v798
    %v1063 = vpack.c.b16 %v803, %v799
    %v1064 = vpack.c.b16 %v804, %v800
    %v1065 = vpack.c.b16 %v809, %v805
    %v1066 = vpack.c.b16 %v810, %v806
    %v1067 = vpack.c.b16 %v811, %v807
    %v1068 = vpack.c.b16 %v812, %v808
    %v1069 = vpack.c.b16 %v817, %v813
    %v1070 = vpack.c.b16 %v818, %v814
    %v1071 = vpack.c.b16 %v819, %v815
    %v1072 = vpack.c.b16 %v820, %v816
    %v1073 = vpack.c.b16 %v825, %v821
    %v1074 = vpack.c.b16 %v826, %v822
    %v1075 = vpack.c.b16 %v827, %v823
    %v1076 = vpack.c.b16 %v828, %v824
    %v1077 = vpack.c.b16 %v833, %v829
    %v1078 = vpack.c.b16 %v834, %v830
    %v1079 = vpack.c.b16 %v835, %v831
    %v1080 = vpack.c.b16 %v836, %v832
    %v1081 = vpack.c.b16 %v841, %v837
    %v1082 = vpack.c.b16 %v842, %v838
    %v1083 = vpack.c.b16 %v843, %v839
    %v1084 = vpack.c.b16 %v844, %v840
    %v1085 = vpack.c.b16 %v849, %v845
    %v1086 = vpack.c.b16 %v850, %v846
    %v1087 = vpack.c.b16 %v851, %v847
    %v1088 = vpack.c.b16 %v852, %v848
    %v1089 = vpack.c.b16 %v857, %v853
    %v1090 = vpack.c.b16 %v858, %v854
    %v1091 = vpack.c.b16 %v859, %v855
    %v1092 = vpack.c.b16 %v860, %v856
    %v1093 = vpack.c.b16 %v865, %v861
    %v1094 = vpack.c.b16 %v866, %v862
    %v1095 = vpack.c.b16 %v867, %v863
    %v1096 = vpack.c.b16 %v868, %v864
    %v1097 = vpack.c.b16 %v873, %v869
    %v1098 = vpack.c.b16 %v874, %v870
    %v1099 = vpack.c.b16 %v875, %v871
    %v1100 = vpack.c.b16 %v876, %v872
    %v1101 = vpack.c.b16 %v881, %v877
    %v1102 = vpack.c.b16 %v882, %v878
    %v1103 = vpack.c.b16 %v883, %v879
    %v1104 = vpack.c.b16 %v884, %v880
    %v1105 = vpack.c.b16 %v889, %v885
    %v1106 = vpack.c.b16 %v890, %v886
    %v1107 = vpack.c.b16 %v891, %v887
    %v1108 = vpack.c.b16 %v892, %v888
    %v1109 = vpack.c.b16 %v897, %v893
    %v1110 = vpack.c.b16 %v898, %v894
    %v1111 = vpack.c.b16 %v899, %v895
    %v1112 = vpack.c.b16 %v900, %v896
    %v1113 = vpack.c.b16 %v905, %v901
    %v1114 = vpack.c.b16 %v906, %v902
    %v1115 = vpack.c.b16 %v907, %v903
    %v1116 = vpack.c.b16 %v908, %v904
    %v1117 = vpack.c.b16 %v913, %v909
    %v1118 = vpack.c.b16 %v914, %v910
    %v1119 = vpack.c.b16 %v915, %v911
    %v1120 = vpack.c.b16 %v916, %v912
    %v1121 = vpack.c.b16 %v921, %v917
    %v1122 = vpack.c.b16 %v922, %v918
    %v1123 = vpack.c.b16 %v923, %v919
    %v1124 = vpack.c.b16 %v924, %v920
    %v1125 = vpack.c.b16 %v929, %v925
    %v1126 = vpack.c.b16 %v930, %v926
    %v1127 = vpack.c.b16 %v931, %v927
    %v1128 = vpack.c.b16 %v932, %v928
    %v1129 = vpack.c.b16 %v937, %v933
    %v1130 = vpack.c.b16 %v938, %v934
    %v1131 = vpack.c.b16 %v939, %v935
    %v1132 = vpack.c.b16 %v940, %v936
    %1325 = vmatprep.subr.bf16.mxu0 %v970
    %1326 = vmatpush1.bf16.msra.mxu0 %v969
    %1327 = vmatprep.subr.bf16.mxu0 %v966
    %1328 = vmatpush1.bf16.msra.mxu0 %v965
    %1329 = vmatprep.subr.bf16.mxu0 %v962
    %1330 = vmatpush1.bf16.msra.mxu0 %v961
    %1331 = vmatprep.subr.bf16.mxu0 %v958
    %1332 = vmatpush1.bf16.msra.mxu0 %v957
    %1333 = vmatprep.subr.bf16.mxu0 %v954
    %1334 = vmatpush1.bf16.msra.mxu0 %v953
    %1335 = vmatprep.subr.bf16.mxu0 %v950
    %1336 = vmatpush1.bf16.msra.mxu0 %v949
    %1337 = vmatprep.subr.bf16.mxu0 %v946
    %1338 = vmatpush1.bf16.msra.mxu0 %v945
    %1339 = vmatprep.subr.bf16.mxu0 %v942
    %1340 = vmatpush1.bf16.msra.mxu0 %v941
    %1341 = vmatprep.subr.bf16.mxu0 %v1002
    %1342 = vmatpush2.bf16.msra.mxu0 %v1001
    %1343 = vmatprep.subr.bf16.mxu0 %v998
    %1344 = vmatpush2.bf16.msra.mxu0 %v997
    %1345 = vmatprep.subr.bf16.mxu0 %v994
    %1346 = vmatpush2.bf16.msra.mxu0 %v993
    %1347 = vmatprep.subr.bf16.mxu0 %v990
    %1348 = vmatpush2.bf16.msra.mxu0 %v989
    %1349 = vmatprep.subr.bf16.mxu0 %v986
    %1350 = vmatpush2.bf16.msra.mxu0 %v985
    %1351 = vmatprep.subr.bf16.mxu0 %v982
    %1352 = vmatpush2.bf16.msra.mxu0 %v981
    %1353 = vmatprep.subr.bf16.mxu0 %v978
    %1354 = vmatpush2.bf16.msra.mxu0 %v977
    %1355 = vmatprep.subr.bf16.mxu0 %v974
    %1356 = vmatpush2.bf16.msra.mxu0 %v973
    %1357 = vmatprep.mubr.bf16.mxu0 %v354
    %1358 = vmatmul.mubr.bf16.gmra.mxu0 %v353
    %v1359 = vpop.f32.mrf.mxu0
    %v1360 = vadd.f32 %v327, %v1359
    %v1361 = vpop.f32.mrf.mxu0
    %v1362 = vadd.f32 %v331, %v1361
    %v1363 = vpop.f32.mrf.mxu0
    %v1364 = vpop.f32.mrf.mxu0
    %1365 = vdwg.mxu0
    %1366 = vmatprep.subr.bf16.mxu0 %v1034
    %1367 = vmatpush1.bf16.msra.mxu0 %v1033
    %1368 = vmatprep.subr.bf16.mxu0 %v1030
    %1369 = vmatpush1.bf16.msra.mxu0 %v1029
    %1370 = vmatprep.subr.bf16.mxu0 %v1026
    %1371 = vmatpush1.bf16.msra.mxu0 %v1025
    %1372 = vmatprep.subr.bf16.mxu0 %v1022
    %1373 = vmatpush1.bf16.msra.mxu0 %v1021
    %1374 = vmatprep.subr.bf16.mxu0 %v1018
    %1375 = vmatpush1.bf16.msra.mxu0 %v1017
    %1376 = vmatprep.subr.bf16.mxu0 %v1014
    %1377 = vmatpush1.bf16.msra.mxu0 %v1013
    %1378 = vmatprep.subr.bf16.mxu0 %v1010
    %1379 = vmatpush1.bf16.msra.mxu0 %v1009
    %1380 = vmatprep.subr.bf16.mxu0 %v1006
    %1381 = vmatpush1.bf16.msra.mxu0 %v1005
    %1382 = vmatprep.subr.bf16.mxu0 %v1066
    %1383 = vmatpush2.bf16.msra.mxu0 %v1065
    %1384 = vmatprep.subr.bf16.mxu0 %v1062
    %1385 = vmatpush2.bf16.msra.mxu0 %v1061
    %1386 = vmatprep.subr.bf16.mxu0 %v1058
    %1387 = vmatpush2.bf16.msra.mxu0 %v1057
    %1388 = vmatprep.subr.bf16.mxu0 %v1054
    %1389 = vmatpush2.bf16.msra.mxu0 %v1053
    %1390 = vmatprep.subr.bf16.mxu0 %v1050
    %1391 = vmatpush2.bf16.msra.mxu0 %v1049
    %1392 = vmatprep.subr.bf16.mxu0 %v1046
    %1393 = vmatpush2.bf16.msra.mxu0 %v1045
    %1394 = vmatprep.subr.bf16.mxu0 %v1042
    %1395 = vmatpush2.bf16.msra.mxu0 %v1041
    %1396 = vmatprep.subr.bf16.mxu0 %v1038
    %1397 = vmatpush2.bf16.msra.mxu0 %v1037
    %1398 = vmatprep.mubr.bf16.mxu0 %v356
    %1399 = vmatmul.mubr.bf16.gmra.mxu0 %v355
    %v1400 = vpop.f32.mrf.mxu0
    %v1401 = vadd.f32 %v1360, %v1400
    %v1402 = vpop.f32.mrf.mxu0
    %v1403 = vadd.f32 %v1362, %v1402
    %v1404 = vpop.f32.mrf.mxu0
    %v1405 = vpop.f32.mrf.mxu0
    %1406 = vdwg.mxu0
    %1407 = vmatprep.subr.bf16.mxu0 %v1098
    %1408 = vmatpush1.bf16.msra.mxu0 %v1097
    %1409 = vmatprep.subr.bf16.mxu0 %v1094
    %1410 = vmatpush1.bf16.msra.mxu0 %v1093
    %1411 = vmatprep.subr.bf16.mxu0 %v1090
    %1412 = vmatpush1.bf16.msra.mxu0 %v1089
    %1413 = vmatprep.subr.bf16.mxu0 %v1086
    %1414 = vmatpush1.bf16.msra.mxu0 %v1085
    %1415 = vmatprep.subr.bf16.mxu0 %v1082
    %1416 = vmatpush1.bf16.msra.mxu0 %v1081
    %1417 = vmatprep.subr.bf16.mxu0 %v1078
    %1418 = vmatpush1.bf16.msra.mxu0 %v1077
    %1419 = vmatprep.subr.bf16.mxu0 %v1074
    %1420 = vmatpush1.bf16.msra.mxu0 %v1073
    %1421 = vmatprep.subr.bf16.mxu0 %v1070
    %1422 = vmatpush1.bf16.msra.mxu0 %v1069
    %1423 = vmatprep.subr.bf16.mxu0 %v1130
    %1424 = vmatpush2.bf16.msra.mxu0 %v1129
    %1425 = vmatprep.subr.bf16.mxu0 %v1126
    %1426 = vmatpush2.bf16.msra.mxu0 %v1125
    %1427 = vmatprep.subr.bf16.mxu0 %v1122
    %1428 = vmatpush2.bf16.msra.mxu0 %v1121
    %1429 = vmatprep.subr.bf16.mxu0 %v1118
    %1430 = vmatpush2.bf16.msra.mxu0 %v1117
    %1431 = vmatprep.subr.bf16.mxu0 %v1114
    %1432 = vmatpush2.bf16.msra.mxu0 %v1113
    %1433 = vmatprep.subr.bf16.mxu0 %v1110
    %1434 = vmatpush2.bf16.msra.mxu0 %v1109
    %1435 = vmatprep.subr.bf16.mxu0 %v1106
    %1436 = vmatpush2.bf16.msra.mxu0 %v1105
    %1437 = vmatprep.subr.bf16.mxu0 %v1102
    %1438 = vmatpush2.bf16.msra.mxu0 %v1101
    %1439 = vmatprep.mubr.bf16.mxu0 %v358
    %1440 = vmatmul.mubr.bf16.gmra.mxu0 %v357
    %v1441 = vpop.f32.mrf.mxu0
    %v1442 = vadd.f32 %v1401, %v1441
    %v1443 = vpop.f32.mrf.mxu0
    %v1444 = vadd.f32 %v1403, %v1443
    %v1445 = vpop.f32.mrf.mxu0
    %v1446 = vpop.f32.mrf.mxu0
    %1447 = vdwg.mxu0
    %1448 = vmatprep.subr.bf16.mxu0 %v972
    %1449 = vmatpush1.bf16.msra.mxu0 %v971
    %1450 = vmatprep.subr.bf16.mxu0 %v968
    %1451 = vmatpush1.bf16.msra.mxu0 %v967
    %1452 = vmatprep.subr.bf16.mxu0 %v964
    %1453 = vmatpush1.bf16.msra.mxu0 %v963
    %1454 = vmatprep.subr.bf16.mxu0 %v960
    %1455 = vmatpush1.bf16.msra.mxu0 %v959
    %1456 = vmatprep.subr.bf16.mxu0 %v956
    %1457 = vmatpush1.bf16.msra.mxu0 %v955
    %1458 = vmatprep.subr.bf16.mxu0 %v952
    %1459 = vmatpush1.bf16.msra.mxu0 %v951
    %1460 = vmatprep.subr.bf16.mxu0 %v948
    %1461 = vmatpush1.bf16.msra.mxu0 %v947
    %1462 = vmatprep.subr.bf16.mxu0 %v944
    %1463 = vmatpush1.bf16.msra.mxu0 %v943
    %1464 = vmatprep.subr.bf16.mxu0 %v1004
    %1465 = vmatpush2.bf16.msra.mxu0 %v1003
    %1466 = vmatprep.subr.bf16.mxu0 %v1000
    %1467 = vmatpush2.bf16.msra.mxu0 %v999
    %1468 = vmatprep.subr.bf16.mxu0 %v996
    %1469 = vmatpush2.bf16.msra.mxu0 %v995
    %1470 = vmatprep.subr.bf16.mxu0 %v992
    %1471 = vmatpush2.bf16.msra.mxu0 %v991
    %1472 = vmatprep.subr.bf16.mxu0 %v988
    %1473 = vmatpush2.bf16.msra.mxu0 %v987
    %1474 = vmatprep.subr.bf16.mxu0 %v984
    %1475 = vmatpush2.bf16.msra.mxu0 %v983
    %1476 = vmatprep.subr.bf16.mxu0 %v980
    %1477 = vmatpush2.bf16.msra.mxu0 %v979
    %1478 = vmatprep.subr.bf16.mxu0 %v976
    %1479 = vmatpush2.bf16.msra.mxu0 %v975
    %1480 = vmatprep.mubr.bf16.mxu0 %v354
    %1481 = vmatmul.mubr.bf16.gmra.mxu0 %v353
    %v1482 = vpop.f32.mrf.mxu0
    %v1483 = vadd.f32 %v335, %v1482
    %v1484 = vpop.f32.mrf.mxu0
    %v1485 = vadd.f32 %v339, %v1484
    %v1486 = vpop.f32.mrf.mxu0
    %v1487 = vpop.f32.mrf.mxu0
    %1488 = vdwg.mxu0
    %1489 = vmatprep.subr.bf16.mxu0 %v1036
    %1490 = vmatpush1.bf16.msra.mxu0 %v1035
    %1491 = vmatprep.subr.bf16.mxu0 %v1032
    %1492 = vmatpush1.bf16.msra.mxu0 %v1031
    %1493 = vmatprep.subr.bf16.mxu0 %v1028
    %1494 = vmatpush1.bf16.msra.mxu0 %v1027
    %1495 = vmatprep.subr.bf16.mxu0 %v1024
    %1496 = vmatpush1.bf16.msra.mxu0 %v1023
    %1497 = vmatprep.subr.bf16.mxu0 %v1020
    %1498 = vmatpush1.bf16.msra.mxu0 %v1019
    %1499 = vmatprep.subr.bf16.mxu0 %v1016
    %1500 = vmatpush1.bf16.msra.mxu0 %v1015
    %1501 = vmatprep.subr.bf16.mxu0 %v1012
    %1502 = vmatpush1.bf16.msra.mxu0 %v1011
    %1503 = vmatprep.subr.bf16.mxu0 %v1008
    %1504 = vmatpush1.bf16.msra.mxu0 %v1007
    %1505 = vmatprep.subr.bf16.mxu0 %v1068
    %1506 = vmatpush2.bf16.msra.mxu0 %v1067
    %1507 = vmatprep.subr.bf16.mxu0 %v1064
    %1508 = vmatpush2.bf16.msra.mxu0 %v1063
    %1509 = vmatprep.subr.bf16.mxu0 %v1060
    %1510 = vmatpush2.bf16.msra.mxu0 %v1059
    %1511 = vmatprep.subr.bf16.mxu0 %v1056
    %1512 = vmatpush2.bf16.msra.mxu0 %v1055
    %1513 = vmatprep.subr.bf16.mxu0 %v1052
    %1514 = vmatpush2.bf16.msra.mxu0 %v1051
    %1515 = vmatprep.subr.bf16.mxu0 %v1048
    %1516 = vmatpush2.bf16.msra.mxu0 %v1047
    %1517 = vmatprep.subr.bf16.mxu0 %v1044
    %1518 = vmatpush2.bf16.msra.mxu0 %v1043
    %1519 = vmatprep.subr.bf16.mxu0 %v1040
    %1520 = vmatpush2.bf16.msra.mxu0 %v1039
    %1521 = vmatprep.mubr.bf16.mxu0 %v356
    %1522 = vmatmul.mubr.bf16.gmra.mxu0 %v355
    %v1523 = vpop.f32.mrf.mxu0
    %v1524 = vadd.f32 %v1483, %v1523
    %v1525 = vpop.f32.mrf.mxu0
    %v1526 = vadd.f32 %v1485, %v1525
    %v1527 = vpop.f32.mrf.mxu0
    %v1528 = vpop.f32.mrf.mxu0
    %1529 = vdwg.mxu0
    %1530 = vmatprep.subr.bf16.mxu0 %v1100
    %1531 = vmatpush1.bf16.msra.mxu0 %v1099
    %1532 = vmatprep.subr.bf16.mxu0 %v1096
    %1533 = vmatpush1.bf16.msra.mxu0 %v1095
    %1534 = vmatprep.subr.bf16.mxu0 %v1092
    %1535 = vmatpush1.bf16.msra.mxu0 %v1091
    %1536 = vmatprep.subr.bf16.mxu0 %v1088
    %1537 = vmatpush1.bf16.msra.mxu0 %v1087
    %1538 = vmatprep.subr.bf16.mxu0 %v1084
    %1539 = vmatpush1.bf16.msra.mxu0 %v1083
    %1540 = vmatprep.subr.bf16.mxu0 %v1080
    %1541 = vmatpush1.bf16.msra.mxu0 %v1079
    %1542 = vmatprep.subr.bf16.mxu0 %v1076
    %1543 = vmatpush1.bf16.msra.mxu0 %v1075
    %1544 = vmatprep.subr.bf16.mxu0 %v1072
    %1545 = vmatpush1.bf16.msra.mxu0 %v1071
    %1546 = vmatprep.subr.bf16.mxu0 %v1132
    %1547 = vmatpush2.bf16.msra.mxu0 %v1131
    %1548 = vmatprep.subr.bf16.mxu0 %v1128
    %1549 = vmatpush2.bf16.msra.mxu0 %v1127
    %1550 = vmatprep.subr.bf16.mxu0 %v1124
    %1551 = vmatpush2.bf16.msra.mxu0 %v1123
    %1552 = vmatprep.subr.bf16.mxu0 %v1120
    %1553 = vmatpush2.bf16.msra.mxu0 %v1119
    %1554 = vmatprep.subr.bf16.mxu0 %v1116
    %1555 = vmatpush2.bf16.msra.mxu0 %v1115
    %1556 = vmatprep.subr.bf16.mxu0 %v1112
    %1557 = vmatpush2.bf16.msra.mxu0 %v1111
    %1558 = vmatprep.subr.bf16.mxu0 %v1108
    %1559 = vmatpush2.bf16.msra.mxu0 %v1107
    %1560 = vmatprep.subr.bf16.mxu0 %v1104
    %1561 = vmatpush2.bf16.msra.mxu0 %v1103
    %1562 = vmatprep.mubr.bf16.mxu0 %v358
    %1563 = vmatmul.mubr.bf16.gmra.mxu0 %v357
    %v1564 = vpop.f32.mrf.mxu0
    %v1565 = vadd.f32 %v1524, %v1564
    %v1566 = vpop.f32.mrf.mxu0
    %v1567 = vadd.f32 %v1526, %v1566
    %v1568 = vpop.f32.mrf.mxu0
    %v1569 = vpop.f32.mrf.mxu0
    %1570 = vdwg.mxu0
    %1571 = vst [vmem:[#allocation13] sm:$0xff] %v1442
    %1572 = vst [vmem:[#allocation13 + $0x8] sm:$0xff] %v1444
    %1573 = vst [vmem:[#allocation13 + $0x10] sm:$0xff] %v1565
    %1574 = vst [vmem:[#allocation13 + $0x18] sm:$0xff] %v1567
    %v1575 = vpack.c.bf16 %v1442, %v1442
    %v1576 = vpack.c.bf16 %v1444, %v1444
    %v1577 = vpack.c.bf16 %v1565, %v1565
    %v1578 = vpack.c.bf16 %v1567, %v1567
    %v1579 = vmul.f32 %v1442, %v1442
    %v1580 = vmul.f32 %v1444, %v1444
    %v1581 = vmul.f32 %v1565, %v1565
    %v1582 = vmul.f32 %v1567, %v1567
    %v1583 = vadd.f32 %v1579, %v1580
    %v1584 = vadd.f32 %v1583, %v1581
    %v1585 = vadd.f32 %v1584, %v1582
    %1586 = vadd.xlane.f32.xlu0 %v1585
    %v1587 = vpop.xlane.xlu0 %1586
    %v1588 = vmax.f32 %v1587, 1e-24
    %v1589 = vrsqrt.pop %v1588
    %v1590 = vmul.f32 %v1442, %v1589
    %v1591 = vmul.f32 %v1444, %v1589
    %v1592 = vmul.f32 %v1565, %v1589
    %v1593 = vmul.f32 %v1567, %v1589
    %v1594 = vpack.c.bf16 %v1590, %v1590
    %v1595 = vpack.c.bf16 %v1591, %v1591
    %v1596 = vpack.c.bf16 %v1592, %v1592
    %v1597 = vpack.c.bf16 %v1593, %v1593
    %v1598 = vld [vmem:[#allocation5] sm:$0xf]
    %v1599 = vld [vmem:[#allocation5 + $0x4] sm:$0xf]
    %v1600 = vld [vmem:[#allocation5 + $0x8] sm:$0xf]
    %v1601 = vld [vmem:[#allocation5 + $0xc] sm:$0xf]
    %v1602 = vld [vmem:[#allocation5 + $0x10] sm:$0xf]
    %v1603 = vld [vmem:[#allocation5 + $0x14] sm:$0xf]
    %v1604 = vld [vmem:[#allocation5 + $0x18] sm:$0xf]
    %v1605 = vld [vmem:[#allocation5 + $0x1c] sm:$0xf]
    %v1606 = vld [vmem:[#allocation5 + $0x20] sm:$0xf]
    %v1607 = vld [vmem:[#allocation5 + $0x24] sm:$0xf]
    %v1608 = vld [vmem:[#allocation5 + $0x28] sm:$0xf]
    %v1609 = vld [vmem:[#allocation5 + $0x2c] sm:$0xf]
    %v1610 = vld [vmem:[#allocation5 + $0x30] sm:$0xf]
    %v1611 = vld [vmem:[#allocation5 + $0x34] sm:$0xf]
    %v1612 = vld [vmem:[#allocation5 + $0x38] sm:$0xf]
    %v1613 = vld [vmem:[#allocation5 + $0x3c] sm:$0xf]
    %v1614 = vld [vmem:[#allocation5 + $0x40] sm:$0xf]
    %v1615 = vld [vmem:[#allocation5 + $0x44] sm:$0xf]
    %v1616 = vld [vmem:[#allocation5 + $0x48] sm:$0xf]
    %v1617 = vld [vmem:[#allocation5 + $0x4c] sm:$0xf]
    %v1618 = vld [vmem:[#allocation5 + $0x50] sm:$0xf]
    %v1619 = vld [vmem:[#allocation5 + $0x54] sm:$0xf]
    %v1620 = vld [vmem:[#allocation5 + $0x58] sm:$0xf]
    %v1621 = vld [vmem:[#allocation5 + $0x5c] sm:$0xf]
    %v1622 = vld [vmem:[#allocation5 + $0x60] sm:$0xf]
    %v1623 = vld [vmem:[#allocation5 + $0x64] sm:$0xf]
    %v1624 = vld [vmem:[#allocation5 + $0x68] sm:$0xf]
    %v1625 = vld [vmem:[#allocation5 + $0x6c] sm:$0xf]
    %v1626 = vld [vmem:[#allocation5 + $0x70] sm:$0xf]
    %v1627 = vld [vmem:[#allocation5 + $0x74] sm:$0xf]
    %v1628 = vld [vmem:[#allocation5 + $0x78] sm:$0xf]
    %v1629 = vld [vmem:[#allocation5 + $0x7c] sm:$0xf]
    %v1630 = vld [vmem:[#allocation5 + $0x80] sm:$0xf]
    %v1631 = vld [vmem:[#allocation5 + $0x84] sm:$0xf]
    %v1632 = vld [vmem:[#allocation5 + $0x88] sm:$0xf]
    %v1633 = vld [vmem:[#allocation5 + $0x8c] sm:$0xf]
    %v1634 = vld [vmem:[#allocation5 + $0x90] sm:$0xf]
    %v1635 = vld [vmem:[#allocation5 + $0x94] sm:$0xf]
    %v1636 = vld [vmem:[#allocation5 + $0x98] sm:$0xf]
    %v1637 = vld [vmem:[#allocation5 + $0x9c] sm:$0xf]
    %v1638 = vld [vmem:[#allocation5 + $0xa0] sm:$0xf]
    %v1639 = vld [vmem:[#allocation5 + $0xa4] sm:$0xf]
    %v1640 = vld [vmem:[#allocation5 + $0xa8] sm:$0xf]
    %v1641 = vld [vmem:[#allocation5 + $0xac] sm:$0xf]
    %v1642 = vld [vmem:[#allocation5 + $0xb0] sm:$0xf]
    %v1643 = vld [vmem:[#allocation5 + $0xb4] sm:$0xf]
    %v1644 = vld [vmem:[#allocation5 + $0xb8] sm:$0xf]
    %v1645 = vld [vmem:[#allocation5 + $0xbc] sm:$0xf]
    %v1646 = vld [vmem:[#allocation5 + $0xc0] sm:$0xf]
    %v1647 = vld [vmem:[#allocation5 + $0xc4] sm:$0xf]
    %v1648 = vld [vmem:[#allocation5 + $0xc8] sm:$0xf]
    %v1649 = vld [vmem:[#allocation5 + $0xcc] sm:$0xf]
    %v1650 = vld [vmem:[#allocation5 + $0xd0] sm:$0xf]
    %v1651 = vld [vmem:[#allocation5 + $0xd4] sm:$0xf]
    %v1652 = vld [vmem:[#allocation5 + $0xd8] sm:$0xf]
    %v1653 = vld [vmem:[#allocation5 + $0xdc] sm:$0xf]
    %v1654 = vld [vmem:[#allocation5 + $0xe0] sm:$0xf]
    %v1655 = vld [vmem:[#allocation5 + $0xe4] sm:$0xf]
    %v1656 = vld [vmem:[#allocation5 + $0xe8] sm:$0xf]
    %v1657 = vld [vmem:[#allocation5 + $0xec] sm:$0xf]
    %v1658 = vld [vmem:[#allocation5 + $0xf0] sm:$0xf]
    %v1659 = vld [vmem:[#allocation5 + $0xf4] sm:$0xf]
    %v1660 = vld [vmem:[#allocation5 + $0xf8] sm:$0xf]
    %v1661 = vld [vmem:[#allocation5 + $0xfc] sm:$0xf]
    %v1726 = vunpack.c.l.b16 %v1598
    %v1727 = vunpack.c.l.b16 %v1599
    %v1728 = vunpack.c.l.b16 %v1600
    %v1729 = vunpack.c.l.b16 %v1601
    %v1730 = vunpack.c.l.b16 %v1602
    %v1731 = vunpack.c.l.b16 %v1603
    %v1732 = vunpack.c.l.b16 %v1604
    %v1733 = vunpack.c.l.b16 %v1605
    %v1734 = vunpack.c.l.b16 %v1606
    %v1735 = vunpack.c.l.b16 %v1607
    %v1736 = vunpack.c.l.b16 %v1608
    %v1737 = vunpack.c.l.b16 %v1609
    %v1738 = vunpack.c.l.b16 %v1610
    %v1739 = vunpack.c.l.b16 %v1611
    %v1740 = vunpack.c.l.b16 %v1612
    %v1741 = vunpack.c.l.b16 %v1613
    %v1742 = vunpack.c.l.b16 %v1614
    %v1743 = vunpack.c.l.b16 %v1615
    %v1744 = vunpack.c.l.b16 %v1616
    %v1745 = vunpack.c.l.b16 %v1617
    %v1746 = vunpack.c.l.b16 %v1618
    %v1747 = vunpack.c.l.b16 %v1619
    %v1748 = vunpack.c.l.b16 %v1620
    %v1749 = vunpack.c.l.b16 %v1621
    %v1750 = vunpack.c.l.b16 %v1622
    %v1751 = vunpack.c.l.b16 %v1623
    %v1752 = vunpack.c.l.b16 %v1624
    %v1753 = vunpack.c.l.b16 %v1625
    %v1754 = vunpack.c.l.b16 %v1626
    %v1755 = vunpack.c.l.b16 %v1627
    %v1756 = vunpack.c.l.b16 %v1628
    %v1757 = vunpack.c.l.b16 %v1629
    %v1758 = vunpack.c.l.b16 %v1630
    %v1759 = vunpack.c.l.b16 %v1631
    %v1760 = vunpack.c.l.b16 %v1632
    %v1761 = vunpack.c.l.b16 %v1633
    %v1762 = vunpack.c.l.b16 %v1634
    %v1763 = vunpack.c.l.b16 %v1635
    %v1764 = vunpack.c.l.b16 %v1636
    %v1765 = vunpack.c.l.b16 %v1637
    %v1766 = vunpack.c.l.b16 %v1638
    %v1767 = vunpack.c.l.b16 %v1639
    %v1768 = vunpack.c.l.b16 %v1640
    %v1769 = vunpack.c.l.b16 %v1641
    %v1770 = vunpack.c.l.b16 %v1642
    %v1771 = vunpack.c.l.b16 %v1643
    %v1772 = vunpack.c.l.b16 %v1644
    %v1773 = vunpack.c.l.b16 %v1645
    %v1774 = vunpack.c.l.b16 %v1646
    %v1775 = vunpack.c.l.b16 %v1647
    %v1776 = vunpack.c.l.b16 %v1648
    %v1777 = vunpack.c.l.b16 %v1649
    %v1778 = vunpack.c.l.b16 %v1650
    %v1779 = vunpack.c.l.b16 %v1651
    %v1780 = vunpack.c.l.b16 %v1652
    %v1781 = vunpack.c.l.b16 %v1653
    %v1782 = vunpack.c.l.b16 %v1654
    %v1783 = vunpack.c.l.b16 %v1655
    %v1784 = vunpack.c.l.b16 %v1656
    %v1785 = vunpack.c.l.b16 %v1657
    %v1786 = vunpack.c.l.b16 %v1658
    %v1787 = vunpack.c.l.b16 %v1659
    %v1788 = vunpack.c.l.b16 %v1660
    %v1789 = vunpack.c.l.b16 %v1661
    %v1790 = vpack.c.b16 %v1727, %v1726
    %v1791 = vpack.c.b16 %v1729, %v1728
    %v1792 = vpack.c.b16 %v1731, %v1730
    %v1793 = vpack.c.b16 %v1733, %v1732
    %v1794 = vpack.c.b16 %v1735, %v1734
    %v1795 = vpack.c.b16 %v1737, %v1736
    %v1796 = vpack.c.b16 %v1739, %v1738
    %v1797 = vpack.c.b16 %v1741, %v1740
    %v1798 = vpack.c.b16 %v1743, %v1742
    %v1799 = vpack.c.b16 %v1745, %v1744
    %v1800 = vpack.c.b16 %v1747, %v1746
    %v1801 = vpack.c.b16 %v1749, %v1748
    %v1802 = vpack.c.b16 %v1751, %v1750
    %v1803 = vpack.c.b16 %v1753, %v1752
    %v1804 = vpack.c.b16 %v1755, %v1754
    %v1805 = vpack.c.b16 %v1757, %v1756
    %v1806 = vpack.c.b16 %v1759, %v1758
    %v1807 = vpack.c.b16 %v1761, %v1760
    %v1808 = vpack.c.b16 %v1763, %v1762
    %v1809 = vpack.c.b16 %v1765, %v1764
    %v1810 = vpack.c.b16 %v1767, %v1766
    %v1811 = vpack.c.b16 %v1769, %v1768
    %v1812 = vpack.c.b16 %v1771, %v1770
    %v1813 = vpack.c.b16 %v1773, %v1772
    %v1814 = vpack.c.b16 %v1775, %v1774
    %v1815 = vpack.c.b16 %v1777, %v1776
    %v1816 = vpack.c.b16 %v1779, %v1778
    %v1817 = vpack.c.b16 %v1781, %v1780
    %v1818 = vpack.c.b16 %v1783, %v1782
    %v1819 = vpack.c.b16 %v1785, %v1784
    %v1820 = vpack.c.b16 %v1787, %v1786
    %v1821 = vpack.c.b16 %v1789, %v1788
    %1854 = vmatprep.subr.bf16.mxu0 0
    %1855 = vmatpush1.bf16.msra.mxu0 %v1797
    %1856 = vmatprep.subr.bf16.mxu0 0
    %1857 = vmatpush1.bf16.msra.mxu0 %v1796
    %1858 = vmatprep.subr.bf16.mxu0 0
    %1859 = vmatpush1.bf16.msra.mxu0 %v1795
    %1860 = vmatprep.subr.bf16.mxu0 0
    %1861 = vmatpush1.bf16.msra.mxu0 %v1794
    %1862 = vmatprep.subr.bf16.mxu0 0
    %1863 = vmatpush1.bf16.msra.mxu0 %v1793
    %1864 = vmatprep.subr.bf16.mxu0 0
    %1865 = vmatpush1.bf16.msra.mxu0 %v1792
    %1866 = vmatprep.subr.bf16.mxu0 0
    %1867 = vmatpush1.bf16.msra.mxu0 %v1791
    %1868 = vmatprep.subr.bf16.mxu0 0
    %1869 = vmatpush1.bf16.msra.mxu0 %v1790
    %1870 = vmatprep.subr.bf16.mxu0 0
    %1871 = vmatpush2.bf16.msra.mxu0 %v1805
    %1872 = vmatprep.subr.bf16.mxu0 0
    %1873 = vmatpush2.bf16.msra.mxu0 %v1804
    %1874 = vmatprep.subr.bf16.mxu0 0
    %1875 = vmatpush2.bf16.msra.mxu0 %v1803
    %1876 = vmatprep.subr.bf16.mxu0 0
    %1877 = vmatpush2.bf16.msra.mxu0 %v1802
    %1878 = vmatprep.subr.bf16.mxu0 0
    %1879 = vmatpush2.bf16.msra.mxu0 %v1801
    %1880 = vmatprep.subr.bf16.mxu0 0
    %1881 = vmatpush2.bf16.msra.mxu0 %v1800
    %1882 = vmatprep.subr.bf16.mxu0 0
    %1883 = vmatpush2.bf16.msra.mxu0 %v1799
    %1884 = vmatprep.subr.bf16.mxu0 0
    %1885 = vmatpush2.bf16.msra.mxu0 %v1798
    %1886 = vmatprep.mubr.bf16.mxu0 %v1595
    %1887 = vmatmul.mubr.bf16.gmra.mxu0 %v1594
    %v1888 = vpop.f32.mrf.mxu0
    %v1889 = vadd.f32 0.0, %v1888
    %v1890 = vpop.f32.mrf.mxu0
    %v1891 = vpop.f32.mrf.mxu0
    %v1892 = vpop.f32.mrf.mxu0
    %1893 = vdwg.mxu0
    %1894 = vmatprep.subr.bf16.mxu0 0
    %1895 = vmatpush1.bf16.msra.mxu0 %v1813
    %1896 = vmatprep.subr.bf16.mxu0 0
    %1897 = vmatpush1.bf16.msra.mxu0 %v1812
    %1898 = vmatprep.subr.bf16.mxu0 0
    %1899 = vmatpush1.bf16.msra.mxu0 %v1811
    %1900 = vmatprep.subr.bf16.mxu0 0
    %1901 = vmatpush1.bf16.msra.mxu0 %v1810
    %1902 = vmatprep.subr.bf16.mxu0 0
    %1903 = vmatpush1.bf16.msra.mxu0 %v1809
    %1904 = vmatprep.subr.bf16.mxu0 0
    %1905 = vmatpush1.bf16.msra.mxu0 %v1808
    %1906 = vmatprep.subr.bf16.mxu0 0
    %1907 = vmatpush1.bf16.msra.mxu0 %v1807
    %1908 = vmatprep.subr.bf16.mxu0 0
    %1909 = vmatpush1.bf16.msra.mxu0 %v1806
    %1910 = vmatprep.subr.bf16.mxu0 0
    %1911 = vmatpush2.bf16.msra.mxu0 %v1821
    %1912 = vmatprep.subr.bf16.mxu0 0
    %1913 = vmatpush2.bf16.msra.mxu0 %v1820
    %1914 = vmatprep.subr.bf16.mxu0 0
    %1915 = vmatpush2.bf16.msra.mxu0 %v1819
    %1916 = vmatprep.subr.bf16.mxu0 0
    %1917 = vmatpush2.bf16.msra.mxu0 %v1818
    %1918 = vmatprep.subr.bf16.mxu0 0
    %1919 = vmatpush2.bf16.msra.mxu0 %v1817
    %1920 = vmatprep.subr.bf16.mxu0 0
    %1921 = vmatpush2.bf16.msra.mxu0 %v1816
    %1922 = vmatprep.subr.bf16.mxu0 0
    %1923 = vmatpush2.bf16.msra.mxu0 %v1815
    %1924 = vmatprep.subr.bf16.mxu0 0
    %1925 = vmatpush2.bf16.msra.mxu0 %v1814
    %1926 = vmatprep.mubr.bf16.mxu0 %v1597
    %1927 = vmatmul.mubr.bf16.gmra.mxu0 %v1596
    %v1928 = vpop.f32.mrf.mxu0
    %v1929 = vadd.f32 %v1889, %v1928
    %v1930 = vpop.f32.mrf.mxu0
    %v1931 = vpop.f32.mrf.mxu0
    %v1932 = vpop.f32.mrf.mxu0
    %1933 = vdwg.mxu0
    %1934 = vst [vmem:[#allocation14] sm:$0xff] %v1929
    %v1935 = vld [vmem:[#allocation7] sm:$0xff]
    %v1936 = vld [vmem:[#allocation7 + $0x8] sm:$0xff]
    %v1937 = vld [vmem:[#allocation7 + $0x10] sm:$0xff]
    %v1938 = vld [vmem:[#allocation7 + $0x18] sm:$0xff]
    %v1939 = vld [vmem:[#allocation7 + $0x20] sm:$0xff]
    %v1940 = vld [vmem:[#allocation7 + $0x28] sm:$0xff]
    %v1941 = vld [vmem:[#allocation7 + $0x30] sm:$0xff]
    %v1942 = vld [vmem:[#allocation7 + $0x38] sm:$0xff]
    %v1943 = vld [vmem:[#allocation7 + $0x40] sm:$0xff]
    %v1944 = vld [vmem:[#allocation7 + $0x48] sm:$0xff]
    %v1945 = vld [vmem:[#allocation7 + $0x50] sm:$0xff]
    %v1946 = vld [vmem:[#allocation7 + $0x58] sm:$0xff]
    %v1947 = vld [vmem:[#allocation7 + $0x60] sm:$0xff]
    %v1948 = vld [vmem:[#allocation7 + $0x68] sm:$0xff]
    %v1949 = vld [vmem:[#allocation7 + $0x70] sm:$0xff]
    %v1950 = vld [vmem:[#allocation7 + $0x78] sm:$0xff]
    %v1951 = vld [vmem:[#allocation7 + $0x80] sm:$0xff]
    %v1952 = vld [vmem:[#allocation7 + $0x88] sm:$0xff]
    %v1953 = vld [vmem:[#allocation7 + $0x90] sm:$0xff]
    %v1954 = vld [vmem:[#allocation7 + $0x98] sm:$0xff]
    %v1955 = vld [vmem:[#allocation7 + $0xa0] sm:$0xff]
    %v1956 = vld [vmem:[#allocation7 + $0xa8] sm:$0xff]
    %v1957 = vld [vmem:[#allocation7 + $0xb0] sm:$0xff]
    %v1958 = vld [vmem:[#allocation7 + $0xb8] sm:$0xff]
    %v1959 = vld [vmem:[#allocation7 + $0xc0] sm:$0xff]
    %v1960 = vld [vmem:[#allocation7 + $0xc8] sm:$0xff]
    %v1961 = vld [vmem:[#allocation7 + $0xd0] sm:$0xff]
    %v1962 = vld [vmem:[#allocation7 + $0xd8] sm:$0xff]
    %v1963 = vld [vmem:[#allocation7 + $0xe0] sm:$0xff]
    %v1964 = vld [vmem:[#allocation7 + $0xe8] sm:$0xff]
    %v1965 = vld [vmem:[#allocation7 + $0xf0] sm:$0xff]
    %v1966 = vld [vmem:[#allocation7 + $0xf8] sm:$0xff]
    %v1967 = vld [vmem:[#allocation7 + $0x100] sm:$0xff]
    %v1968 = vld [vmem:[#allocation7 + $0x108] sm:$0xff]
    %v1969 = vld [vmem:[#allocation7 + $0x110] sm:$0xff]
    %v1970 = vld [vmem:[#allocation7 + $0x118] sm:$0xff]
    %v1971 = vld [vmem:[#allocation7 + $0x120] sm:$0xff]
    %v1972 = vld [vmem:[#allocation7 + $0x128] sm:$0xff]
    %v1973 = vld [vmem:[#allocation7 + $0x130] sm:$0xff]
    %v1974 = vld [vmem:[#allocation7 + $0x138] sm:$0xff]
    %v1975 = vld [vmem:[#allocation7 + $0x140] sm:$0xff]
    %v1976 = vld [vmem:[#allocation7 + $0x148] sm:$0xff]
    %v1977 = vld [vmem:[#allocation7 + $0x150] sm:$0xff]
    %v1978 = vld [vmem:[#allocation7 + $0x158] sm:$0xff]
    %v1979 = vld [vmem:[#allocation7 + $0x160] sm:$0xff]
    %v1980 = vld [vmem:[#allocation7 + $0x168] sm:$0xff]
    %v1981 = vld [vmem:[#allocation7 + $0x170] sm:$0xff]
    %v1982 = vld [vmem:[#allocation7 + $0x178] sm:$0xff]
    %v1983 = vld [vmem:[#allocation7 + $0x180] sm:$0xff]
    %v1984 = vld [vmem:[#allocation7 + $0x188] sm:$0xff]
    %v1985 = vld [vmem:[#allocation7 + $0x190] sm:$0xff]
    %v1986 = vld [vmem:[#allocation7 + $0x198] sm:$0xff]
    %v1987 = vld [vmem:[#allocation7 + $0x1a0] sm:$0xff]
    %v1988 = vld [vmem:[#allocation7 + $0x1a8] sm:$0xff]
    %v1989 = vld [vmem:[#allocation7 + $0x1b0] sm:$0xff]
    %v1990 = vld [vmem:[#allocation7 + $0x1b8] sm:$0xff]
    %v1991 = vld [vmem:[#allocation7 + $0x1c0] sm:$0xff]
    %v1992 = vld [vmem:[#allocation7 + $0x1c8] sm:$0xff]
    %v1993 = vld [vmem:[#allocation7 + $0x1d0] sm:$0xff]
    %v1994 = vld [vmem:[#allocation7 + $0x1d8] sm:$0xff]
    %v1995 = vld [vmem:[#allocation7 + $0x1e0] sm:$0xff]
    %v1996 = vld [vmem:[#allocation7 + $0x1e8] sm:$0xff]
    %v1997 = vld [vmem:[#allocation7 + $0x1f0] sm:$0xff]
    %v1998 = vld [vmem:[#allocation7 + $0x1f8] sm:$0xff]
    %v1999 = vld [vmem:[#allocation7 + $0x200] sm:$0xff]
    %v2000 = vld [vmem:[#allocation7 + $0x208] sm:$0xff]
    %v2001 = vld [vmem:[#allocation7 + $0x210] sm:$0xff]
    %v2002 = vld [vmem:[#allocation7 + $0x218] sm:$0xff]
    %v2003 = vld [vmem:[#allocation7 + $0x220] sm:$0xff]
    %v2004 = vld [vmem:[#allocation7 + $0x228] sm:$0xff]
    %v2005 = vld [vmem:[#allocation7 + $0x230] sm:$0xff]
    %v2006 = vld [vmem:[#allocation7 + $0x238] sm:$0xff]
    %v2007 = vld [vmem:[#allocation7 + $0x240] sm:$0xff]
    %v2008 = vld [vmem:[#allocation7 + $0x248] sm:$0xff]
    %v2009 = vld [vmem:[#allocation7 + $0x250] sm:$0xff]
    %v2010 = vld [vmem:[#allocation7 + $0x258] sm:$0xff]
    %v2011 = vld [vmem:[#allocation7 + $0x260] sm:$0xff]
    %v2012 = vld [vmem:[#allocation7 + $0x268] sm:$0xff]
    %v2013 = vld [vmem:[#allocation7 + $0x270] sm:$0xff]
    %v2014 = vld [vmem:[#allocation7 + $0x278] sm:$0xff]
    %v2015 = vld [vmem:[#allocation7 + $0x280] sm:$0xff]
    %v2016 = vld [vmem:[#allocation7 + $0x288] sm:$0xff]
    %v2017 = vld [vmem:[#allocation7 + $0x290] sm:$0xff]
    %v2018 = vld [vmem:[#allocation7 + $0x298] sm:$0xff]
    %v2019 = vld [vmem:[#allocation7 + $0x2a0] sm:$0xff]
    %v2020 = vld [vmem:[#allocation7 + $0x2a8] sm:$0xff]
    %v2021 = vld [vmem:[#allocation7 + $0x2b0] sm:$0xff]
    %v2022 = vld [vmem:[#allocation7 + $0x2b8] sm:$0xff]
    %v2023 = vld [vmem:[#allocation7 + $0x2c0] sm:$0xff]
    %v2024 = vld [vmem:[#allocation7 + $0x2c8] sm:$0xff]
    %v2025 = vld [vmem:[#allocation7 + $0x2d0] sm:$0xff]
    %v2026 = vld [vmem:[#allocation7 + $0x2d8] sm:$0xff]
    %v2027 = vld [vmem:[#allocation7 + $0x2e0] sm:$0xff]
    %v2028 = vld [vmem:[#allocation7 + $0x2e8] sm:$0xff]
    %v2029 = vld [vmem:[#allocation7 + $0x2f0] sm:$0xff]
    %v2030 = vld [vmem:[#allocation7 + $0x2f8] sm:$0xff]
    %v2031 = vld [vmem:[#allocation7 + $0x300] sm:$0xff]
    %v2032 = vld [vmem:[#allocation7 + $0x308] sm:$0xff]
    %v2033 = vld [vmem:[#allocation7 + $0x310] sm:$0xff]
    %v2034 = vld [vmem:[#allocation7 + $0x318] sm:$0xff]
    %v2035 = vld [vmem:[#allocation7 + $0x320] sm:$0xff]
    %v2036 = vld [vmem:[#allocation7 + $0x328] sm:$0xff]
    %v2037 = vld [vmem:[#allocation7 + $0x330] sm:$0xff]
    %v2038 = vld [vmem:[#allocation7 + $0x338] sm:$0xff]
    %v2039 = vld [vmem:[#allocation7 + $0x340] sm:$0xff]
    %v2040 = vld [vmem:[#allocation7 + $0x348] sm:$0xff]
    %v2041 = vld [vmem:[#allocation7 + $0x350] sm:$0xff]
    %v2042 = vld [vmem:[#allocation7 + $0x358] sm:$0xff]
    %v2043 = vld [vmem:[#allocation7 + $0x360] sm:$0xff]
    %v2044 = vld [vmem:[#allocation7 + $0x368] sm:$0xff]
    %v2045 = vld [vmem:[#allocation7 + $0x370] sm:$0xff]
    %v2046 = vld [vmem:[#allocation7 + $0x378] sm:$0xff]
    %v2047 = vld [vmem:[#allocation7 + $0x380] sm:$0xff]
    %v2048 = vld [vmem:[#allocation7 + $0x388] sm:$0xff]
    %v2049 = vld [vmem:[#allocation7 + $0x390] sm:$0xff]
    %v2050 = vld [vmem:[#allocation7 + $0x398] sm:$0xff]
    %v2051 = vld [vmem:[#allocation7 + $0x3a0] sm:$0xff]
    %v2052 = vld [vmem:[#allocation7 + $0x3a8] sm:$0xff]
    %v2053 = vld [vmem:[#allocation7 + $0x3b0] sm:$0xff]
    %v2054 = vld [vmem:[#allocation7 + $0x3b8] sm:$0xff]
    %v2055 = vld [vmem:[#allocation7 + $0x3c0] sm:$0xff]
    %v2056 = vld [vmem:[#allocation7 + $0x3c8] sm:$0xff]
    %v2057 = vld [vmem:[#allocation7 + $0x3d0] sm:$0xff]
    %v2058 = vld [vmem:[#allocation7 + $0x3d8] sm:$0xff]
    %v2059 = vld [vmem:[#allocation7 + $0x3e0] sm:$0xff]
    %v2060 = vld [vmem:[#allocation7 + $0x3e8] sm:$0xff]
    %v2061 = vld [vmem:[#allocation7 + $0x3f0] sm:$0xff]
    %v2062 = vld [vmem:[#allocation7 + $0x3f8] sm:$0xff]
    %v2063 = vld [vmem:[#allocation7 + $0x400] sm:$0xff]
    %v2064 = vld [vmem:[#allocation7 + $0x408] sm:$0xff]
    %v2065 = vld [vmem:[#allocation7 + $0x410] sm:$0xff]
    %v2066 = vld [vmem:[#allocation7 + $0x418] sm:$0xff]
    %v2067 = vld [vmem:[#allocation7 + $0x420] sm:$0xff]
    %v2068 = vld [vmem:[#allocation7 + $0x428] sm:$0xff]
    %v2069 = vld [vmem:[#allocation7 + $0x430] sm:$0xff]
    %v2070 = vld [vmem:[#allocation7 + $0x438] sm:$0xff]
    %v2071 = vld [vmem:[#allocation7 + $0x440] sm:$0xff]
    %v2072 = vld [vmem:[#allocation7 + $0x448] sm:$0xff]
    %v2073 = vld [vmem:[#allocation7 + $0x450] sm:$0xff]
    %v2074 = vld [vmem:[#allocation7 + $0x458] sm:$0xff]
    %v2075 = vld [vmem:[#allocation7 + $0x460] sm:$0xff]
    %v2076 = vld [vmem:[#allocation7 + $0x468] sm:$0xff]
    %v2077 = vld [vmem:[#allocation7 + $0x470] sm:$0xff]
    %v2078 = vld [vmem:[#allocation7 + $0x478] sm:$0xff]
    %v2079 = vld [vmem:[#allocation7 + $0x480] sm:$0xff]
    %v2080 = vld [vmem:[#allocation7 + $0x488] sm:$0xff]
    %v2081 = vld [vmem:[#allocation7 + $0x490] sm:$0xff]
    %v2082 = vld [vmem:[#allocation7 + $0x498] sm:$0xff]
    %v2083 = vld [vmem:[#allocation7 + $0x4a0] sm:$0xff]
    %v2084 = vld [vmem:[#allocation7 + $0x4a8] sm:$0xff]
    %v2085 = vld [vmem:[#allocation7 + $0x4b0] sm:$0xff]
    %v2086 = vld [vmem:[#allocation7 + $0x4b8] sm:$0xff]
    %v2087 = vld [vmem:[#allocation7 + $0x4c0] sm:$0xff]
    %v2088 = vld [vmem:[#allocation7 + $0x4c8] sm:$0xff]
    %v2089 = vld [vmem:[#allocation7 + $0x4d0] sm:$0xff]
    %v2090 = vld [vmem:[#allocation7 + $0x4d8] sm:$0xff]
    %v2091 = vld [vmem:[#allocation7 + $0x4e0] sm:$0xff]
    %v2092 = vld [vmem:[#allocation7 + $0x4e8] sm:$0xff]
    %v2093 = vld [vmem:[#allocation7 + $0x4f0] sm:$0xff]
    %v2094 = vld [vmem:[#allocation7 + $0x4f8] sm:$0xff]
    %v2095 = vld [vmem:[#allocation7 + $0x500] sm:$0xff]
    %v2096 = vld [vmem:[#allocation7 + $0x508] sm:$0xff]
    %v2097 = vld [vmem:[#allocation7 + $0x510] sm:$0xff]
    %v2098 = vld [vmem:[#allocation7 + $0x518] sm:$0xff]
    %v2099 = vld [vmem:[#allocation7 + $0x520] sm:$0xff]
    %v2100 = vld [vmem:[#allocation7 + $0x528] sm:$0xff]
    %v2101 = vld [vmem:[#allocation7 + $0x530] sm:$0xff]
    %v2102 = vld [vmem:[#allocation7 + $0x538] sm:$0xff]
    %v2103 = vld [vmem:[#allocation7 + $0x540] sm:$0xff]
    %v2104 = vld [vmem:[#allocation7 + $0x548] sm:$0xff]
    %v2105 = vld [vmem:[#allocation7 + $0x550] sm:$0xff]
    %v2106 = vld [vmem:[#allocation7 + $0x558] sm:$0xff]
    %v2107 = vld [vmem:[#allocation7 + $0x560] sm:$0xff]
    %v2108 = vld [vmem:[#allocation7 + $0x568] sm:$0xff]
    %v2109 = vld [vmem:[#allocation7 + $0x570] sm:$0xff]
    %v2110 = vld [vmem:[#allocation7 + $0x578] sm:$0xff]
    %v2111 = vld [vmem:[#allocation7 + $0x580] sm:$0xff]
    %v2112 = vld [vmem:[#allocation7 + $0x588] sm:$0xff]
    %v2113 = vld [vmem:[#allocation7 + $0x590] sm:$0xff]
    %v2114 = vld [vmem:[#allocation7 + $0x598] sm:$0xff]
    %v2115 = vld [vmem:[#allocation7 + $0x5a0] sm:$0xff]
    %v2116 = vld [vmem:[#allocation7 + $0x5a8] sm:$0xff]
    %v2117 = vld [vmem:[#allocation7 + $0x5b0] sm:$0xff]
    %v2118 = vld [vmem:[#allocation7 + $0x5b8] sm:$0xff]
    %v2119 = vld [vmem:[#allocation7 + $0x5c0] sm:$0xff]
    %v2120 = vld [vmem:[#allocation7 + $0x5c8] sm:$0xff]
    %v2121 = vld [vmem:[#allocation7 + $0x5d0] sm:$0xff]
    %v2122 = vld [vmem:[#allocation7 + $0x5d8] sm:$0xff]
    %v2123 = vld [vmem:[#allocation7 + $0x5e0] sm:$0xff]
    %v2124 = vld [vmem:[#allocation7 + $0x5e8] sm:$0xff]
    %v2125 = vld [vmem:[#allocation7 + $0x5f0] sm:$0xff]
    %v2126 = vld [vmem:[#allocation7 + $0x5f8] sm:$0xff]
    %v2127 = vld [vmem:[#allocation7 + $0x600] sm:$0xff]
    %v2128 = vld [vmem:[#allocation7 + $0x608] sm:$0xff]
    %v2129 = vld [vmem:[#allocation7 + $0x610] sm:$0xff]
    %v2130 = vld [vmem:[#allocation7 + $0x618] sm:$0xff]
    %v2131 = vld [vmem:[#allocation7 + $0x620] sm:$0xff]
    %v2132 = vld [vmem:[#allocation7 + $0x628] sm:$0xff]
    %v2133 = vld [vmem:[#allocation7 + $0x630] sm:$0xff]
    %v2134 = vld [vmem:[#allocation7 + $0x638] sm:$0xff]
    %v2135 = vld [vmem:[#allocation7 + $0x640] sm:$0xff]
    %v2136 = vld [vmem:[#allocation7 + $0x648] sm:$0xff]
    %v2137 = vld [vmem:[#allocation7 + $0x650] sm:$0xff]
    %v2138 = vld [vmem:[#allocation7 + $0x658] sm:$0xff]
    %v2139 = vld [vmem:[#allocation7 + $0x660] sm:$0xff]
    %v2140 = vld [vmem:[#allocation7 + $0x668] sm:$0xff]
    %v2141 = vld [vmem:[#allocation7 + $0x670] sm:$0xff]
    %v2142 = vld [vmem:[#allocation7 + $0x678] sm:$0xff]
    %v2143 = vld [vmem:[#allocation7 + $0x680] sm:$0xff]
    %v2144 = vld [vmem:[#allocation7 + $0x688] sm:$0xff]
    %v2145 = vld [vmem:[#allocation7 + $0x690] sm:$0xff]
    %v2146 = vld [vmem:[#allocation7 + $0x698] sm:$0xff]
    %v2147 = vld [vmem:[#allocation7 + $0x6a0] sm:$0xff]
    %v2148 = vld [vmem:[#allocation7 + $0x6a8] sm:$0xff]
    %v2149 = vld [vmem:[#allocation7 + $0x6b0] sm:$0xff]
    %v2150 = vld [vmem:[#allocation7 + $0x6b8] sm:$0xff]
    %v2151 = vld [vmem:[#allocation7 + $0x6c0] sm:$0xff]
    %v2152 = vld [vmem:[#allocation7 + $0x6c8] sm:$0xff]
    %v2153 = vld [vmem:[#allocation7 + $0x6d0] sm:$0xff]
    %v2154 = vld [vmem:[#allocation7 + $0x6d8] sm:$0xff]
    %v2155 = vld [vmem:[#allocation7 + $0x6e0] sm:$0xff]
    %v2156 = vld [vmem:[#allocation7 + $0x6e8] sm:$0xff]
    %v2157 = vld [vmem:[#allocation7 + $0x6f0] sm:$0xff]
    %v2158 = vld [vmem:[#allocation7 + $0x6f8] sm:$0xff]
    %v2159 = vld [vmem:[#allocation7 + $0x700] sm:$0xff]
    %v2160 = vld [vmem:[#allocation7 + $0x708] sm:$0xff]
    %v2161 = vld [vmem:[#allocation7 + $0x710] sm:$0xff]
    %v2162 = vld [vmem:[#allocation7 + $0x718] sm:$0xff]
    %v2163 = vld [vmem:[#allocation7 + $0x720] sm:$0xff]
    %v2164 = vld [vmem:[#allocation7 + $0x728] sm:$0xff]
    %v2165 = vld [vmem:[#allocation7 + $0x730] sm:$0xff]
    %v2166 = vld [vmem:[#allocation7 + $0x738] sm:$0xff]
    %v2167 = vld [vmem:[#allocation7 + $0x740] sm:$0xff]
    %v2168 = vld [vmem:[#allocation7 + $0x748] sm:$0xff]
    %v2169 = vld [vmem:[#allocation7 + $0x750] sm:$0xff]
    %v2170 = vld [vmem:[#allocation7 + $0x758] sm:$0xff]
    %v2171 = vld [vmem:[#allocation7 + $0x760] sm:$0xff]
    %v2172 = vld [vmem:[#allocation7 + $0x768] sm:$0xff]
    %v2173 = vld [vmem:[#allocation7 + $0x770] sm:$0xff]
    %v2174 = vld [vmem:[#allocation7 + $0x778] sm:$0xff]
    %v2175 = vld [vmem:[#allocation7 + $0x780] sm:$0xff]
    %v2176 = vld [vmem:[#allocation7 + $0x788] sm:$0xff]
    %v2177 = vld [vmem:[#allocation7 + $0x790] sm:$0xff]
    %v2178 = vld [vmem:[#allocation7 + $0x798] sm:$0xff]
    %v2179 = vld [vmem:[#allocation7 + $0x7a0] sm:$0xff]
    %v2180 = vld [vmem:[#allocation7 + $0x7a8] sm:$0xff]
    %v2181 = vld [vmem:[#allocation7 + $0x7b0] sm:$0xff]
    %v2182 = vld [vmem:[#allocation7 + $0x7b8] sm:$0xff]
    %v2183 = vld [vmem:[#allocation7 + $0x7c0] sm:$0xff]
    %v2184 = vld [vmem:[#allocation7 + $0x7c8] sm:$0xff]
    %v2185 = vld [vmem:[#allocation7 + $0x7d0] sm:$0xff]
    %v2186 = vld [vmem:[#allocation7 + $0x7d8] sm:$0xff]
    %v2187 = vld [vmem:[#allocation7 + $0x7e0] sm:$0xff]
    %v2188 = vld [vmem:[#allocation7 + $0x7e8] sm:$0xff]
    %v2189 = vld [vmem:[#allocation7 + $0x7f0] sm:$0xff]
    %v2190 = vld [vmem:[#allocation7 + $0x7f8] sm:$0xff]
    %v2191 = vld [vmem:[%s5] sm:$0xff]
    %v2193 = vlaneseq
    %v2194 = vshrl.u32 %v2193, 7
    %v2195 = vsub.s32 0, %v2194
    %v2196 = vrot.slane %v2191, %v2195
    %v2197 = vlaneseq
    %v2198 = vshrl.u32 %v2197, 7
    %v2199 = vsub.s32 1, %v2198
    %v2200 = vrot.slane %v2191, %v2199
    %v2201 = vlaneseq
    %v2202 = vshrl.u32 %v2201, 7
    %v2203 = vsub.s32 2, %v2202
    %v2204 = vrot.slane %v2191, %v2203
    %v2205 = vlaneseq
    %v2206 = vshrl.u32 %v2205, 7
    %v2207 = vsub.s32 3, %v2206
    %v2208 = vrot.slane %v2191, %v2207
    %v2209 = vlaneseq
    %v2210 = vshrl.u32 %v2209, 7
    %v2211 = vsub.s32 4, %v2210
    %v2212 = vrot.slane %v2191, %v2211
    %v2213 = vlaneseq
    %v2214 = vshrl.u32 %v2213, 7
    %v2215 = vsub.s32 5, %v2214
    %v2216 = vrot.slane %v2191, %v2215
    %v2217 = vlaneseq
    %v2218 = vshrl.u32 %v2217, 7
    %v2219 = vsub.s32 6, %v2218
    %v2220 = vrot.slane %v2191, %v2219
    %v2221 = vlaneseq
    %v2222 = vshrl.u32 %v2221, 7
    %v2223 = vsub.s32 7, %v2222
    %v2224 = vrot.slane %v2191, %v2223
    %v2489 = vunpack.c.l.b16 %v1935
    %v2490 = vunpack.c.h.b16 %v1935
    %v2491 = vunpack.c.l.b16 %v1936
    %v2492 = vunpack.c.h.b16 %v1936
    %v2493 = vunpack.c.l.b16 %v1937
    %v2494 = vunpack.c.h.b16 %v1937
    %v2495 = vunpack.c.l.b16 %v1938
    %v2496 = vunpack.c.h.b16 %v1938
    %v2497 = vunpack.c.l.b16 %v1939
    %v2498 = vunpack.c.h.b16 %v1939
    %v2499 = vunpack.c.l.b16 %v1940
    %v2500 = vunpack.c.h.b16 %v1940
    %v2501 = vunpack.c.l.b16 %v1941
    %v2502 = vunpack.c.h.b16 %v1941
    %v2503 = vunpack.c.l.b16 %v1942
    %v2504 = vunpack.c.h.b16 %v1942
    %v2505 = vunpack.c.l.b16 %v1943
    %v2506 = vunpack.c.h.b16 %v1943
    %v2507 = vunpack.c.l.b16 %v1944
    %v2508 = vunpack.c.h.b16 %v1944
    %v2509 = vunpack.c.l.b16 %v1945
    %v2510 = vunpack.c.h.b16 %v1945
    %v2511 = vunpack.c.l.b16 %v1946
    %v2512 = vunpack.c.h.b16 %v1946
    %v2513 = vunpack.c.l.b16 %v1947
    %v2514 = vunpack.c.h.b16 %v1947
    %v2515 = vunpack.c.l.b16 %v1948
    %v2516 = vunpack.c.h.b16 %v1948
    %v2517 = vunpack.c.l.b16 %v1949
    %v2518 = vunpack.c.h.b16 %v1949
    %v2519 = vunpack.c.l.b16 %v1950
    %v2520 = vunpack.c.h.b16 %v1950
    %v2521 = vunpack.c.l.b16 %v1951
    %v2522 = vunpack.c.h.b16 %v1951
    %v2523 = vunpack.c.l.b16 %v1952
    %v2524 = vunpack.c.h.b16 %v1952
    %v2525 = vunpack.c.l.b16 %v1953
    %v2526 = vunpack.c.h.b16 %v1953
    %v2527 = vunpack.c.l.b16 %v1954
    %v2528 = vunpack.c.h.b16 %v1954
    %v2529 = vunpack.c.l.b16 %v1955
    %v2530 = vunpack.c.h.b16 %v1955
    %v2531 = vunpack.c.l.b16 %v1956
    %v2532 = vunpack.c.h.b16 %v1956
    %v2533 = vunpack.c.l.b16 %v1957
    %v2534 = vunpack.c.h.b16 %v1957
    %v2535 = vunpack.c.l.b16 %v1958
    %v2536 = vunpack.c.h.b16 %v1958
    %v2537 = vunpack.c.l.b16 %v1959
    %v2538 = vunpack.c.h.b16 %v1959
    %v2539 = vunpack.c.l.b16 %v1960
    %v2540 = vunpack.c.h.b16 %v1960
    %v2541 = vunpack.c.l.b16 %v1961
    %v2542 = vunpack.c.h.b16 %v1961
    %v2543 = vunpack.c.l.b16 %v1962
    %v2544 = vunpack.c.h.b16 %v1962
    %v2545 = vunpack.c.l.b16 %v1963
    %v2546 = vunpack.c.h.b16 %v1963
    %v2547 = vunpack.c.l.b16 %v1964
    %v2548 = vunpack.c.h.b16 %v1964
    %v2549 = vunpack.c.l.b16 %v1965
    %v2550 = vunpack.c.h.b16 %v1965
    %v2551 = vunpack.c.l.b16 %v1966
    %v2552 = vunpack.c.h.b16 %v1966
    %v2553 = vunpack.c.l.b16 %v1967
    %v2554 = vunpack.c.h.b16 %v1967
    %v2555 = vunpack.c.l.b16 %v1968
    %v2556 = vunpack.c.h.b16 %v1968
    %v2557 = vunpack.c.l.b16 %v1969
    %v2558 = vunpack.c.h.b16 %v1969
    %v2559 = vunpack.c.l.b16 %v1970
    %v2560 = vunpack.c.h.b16 %v1970
    %v2561 = vunpack.c.l.b16 %v1971
    %v2562 = vunpack.c.h.b16 %v1971
    %v2563 = vunpack.c.l.b16 %v1972
    %v2564 = vunpack.c.h.b16 %v1972
    %v2565 = vunpack.c.l.b16 %v1973
    %v2566 = vunpack.c.h.b16 %v1973
    %v2567 = vunpack.c.l.b16 %v1974
    %v2568 = vunpack.c.h.b16 %v1974
    %v2569 = vunpack.c.l.b16 %v1975
    %v2570 = vunpack.c.h.b16 %v1975
    %v2571 = vunpack.c.l.b16 %v1976
    %v2572 = vunpack.c.h.b16 %v1976
    %v2573 = vunpack.c.l.b16 %v1977
    %v2574 = vunpack.c.h.b16 %v1977
    %v2575 = vunpack.c.l.b16 %v1978
    %v2576 = vunpack.c.h.b16 %v1978
    %v2577 = vunpack.c.l.b16 %v1979
    %v2578 = vunpack.c.h.b16 %v1979
    %v2579 = vunpack.c.l.b16 %v1980
    %v2580 = vunpack.c.h.b16 %v1980
    %v2581 = vunpack.c.l.b16 %v1981
    %v2582 = vunpack.c.h.b16 %v1981
    %v2583 = vunpack.c.l.b16 %v1982
    %v2584 = vunpack.c.h.b16 %v1982
    %v2585 = vunpack.c.l.b16 %v1983
    %v2586 = vunpack.c.h.b16 %v1983
    %v2587 = vunpack.c.l.b16 %v1984
    %v2588 = vunpack.c.h.b16 %v1984
    %v2589 = vunpack.c.l.b16 %v1985
    %v2590 = vunpack.c.h.b16 %v1985
    %v2591 = vunpack.c.l.b16 %v1986
    %v2592 = vunpack.c.h.b16 %v1986
    %v2593 = vunpack.c.l.b16 %v1987
    %v2594 = vunpack.c.h.b16 %v1987
    %v2595 = vunpack.c.l.b16 %v1988
    %v2596 = vunpack.c.h.b16 %v1988
    %v2597 = vunpack.c.l.b16 %v1989
    %v2598 = vunpack.c.h.b16 %v1989
    %v2599 = vunpack.c.l.b16 %v1990
    %v2600 = vunpack.c.h.b16 %v1990
    %v2601 = vunpack.c.l.b16 %v1991
    %v2602 = vunpack.c.h.b16 %v1991
    %v2603 = vunpack.c.l.b16 %v1992
    %v2604 = vunpack.c.h.b16 %v1992
    %v2605 = vunpack.c.l.b16 %v1993
    %v2606 = vunpack.c.h.b16 %v1993
    %v2607 = vunpack.c.l.b16 %v1994
    %v2608 = vunpack.c.h.b16 %v1994
    %v2609 = vunpack.c.l.b16 %v1995
    %v2610 = vunpack.c.h.b16 %v1995
    %v2611 = vunpack.c.l.b16 %v1996
    %v2612 = vunpack.c.h.b16 %v1996
    %v2613 = vunpack.c.l.b16 %v1997
    %v2614 = vunpack.c.h.b16 %v1997
    %v2615 = vunpack.c.l.b16 %v1998
    %v2616 = vunpack.c.h.b16 %v1998
    %v2617 = vunpack.c.l.b16 %v1999
    %v2618 = vunpack.c.h.b16 %v1999
    %v2619 = vunpack.c.l.b16 %v2000
    %v2620 = vunpack.c.h.b16 %v2000
    %v2621 = vunpack.c.l.b16 %v2001
    %v2622 = vunpack.c.h.b16 %v2001
    %v2623 = vunpack.c.l.b16 %v2002
    %v2624 = vunpack.c.h.b16 %v2002
    %v2625 = vunpack.c.l.b16 %v2003
    %v2626 = vunpack.c.h.b16 %v2003
    %v2627 = vunpack.c.l.b16 %v2004
    %v2628 = vunpack.c.h.b16 %v2004
    %v2629 = vunpack.c.l.b16 %v2005
    %v2630 = vunpack.c.h.b16 %v2005
    %v2631 = vunpack.c.l.b16 %v2006
    %v2632 = vunpack.c.h.b16 %v2006
    %v2633 = vunpack.c.l.b16 %v2007
    %v2634 = vunpack.c.h.b16 %v2007
    %v2635 = vunpack.c.l.b16 %v2008
    %v2636 = vunpack.c.h.b16 %v2008
    %v2637 = vunpack.c.l.b16 %v2009
    %v2638 = vunpack.c.h.b16 %v2009
    %v2639 = vunpack.c.l.b16 %v2010
    %v2640 = vunpack.c.h.b16 %v2010
    %v2641 = vunpack.c.l.b16 %v2011
    %v2642 = vunpack.c.h.b16 %v2011
    %v2643 = vunpack.c.l.b16 %v2012
    %v2644 = vunpack.c.h.b16 %v2012
    %v2645 = vunpack.c.l.b16 %v2013
    %v2646 = vunpack.c.h.b16 %v2013
    %v2647 = vunpack.c.l.b16 %v2014
    %v2648 = vunpack.c.h.b16 %v2014
    %v2649 = vunpack.c.l.b16 %v2015
    %v2650 = vunpack.c.h.b16 %v2015
    %v2651 = vunpack.c.l.b16 %v2016
    %v2652 = vunpack.c.h.b16 %v2016
    %v2653 = vunpack.c.l.b16 %v2017
    %v2654 = vunpack.c.h.b16 %v2017
    %v2655 = vunpack.c.l.b16 %v2018
    %v2656 = vunpack.c.h.b16 %v2018
    %v2657 = vunpack.c.l.b16 %v2019
    %v2658 = vunpack.c.h.b16 %v2019
    %v2659 = vunpack.c.l.b16 %v2020
    %v2660 = vunpack.c.h.b16 %v2020
    %v2661 = vunpack.c.l.b16 %v2021
    %v2662 = vunpack.c.h.b16 %v2021
    %v2663 = vunpack.c.l.b16 %v2022
    %v2664 = vunpack.c.h.b16 %v2022
    %v2665 = vunpack.c.l.b16 %v2023
    %v2666 = vunpack.c.h.b16 %v2023
    %v2667 = vunpack.c.l.b16 %v2024
    %v2668 = vunpack.c.h.b16 %v2024
    %v2669 = vunpack.c.l.b16 %v2025
    %v2670 = vunpack.c.h.b16 %v2025
    %v2671 = vunpack.c.l.b16 %v2026
    %v2672 = vunpack.c.h.b16 %v2026
    %v2673 = vunpack.c.l.b16 %v2027
    %v2674 = vunpack.c.h.b16 %v2027
    %v2675 = vunpack.c.l.b16 %v2028
    %v2676 = vunpack.c.h.b16 %v2028
    %v2677 = vunpack.c.l.b16 %v2029
    %v2678 = vunpack.c.h.b16 %v2029
    %v2679 = vunpack.c.l.b16 %v2030
    %v2680 = vunpack.c.h.b16 %v2030
    %v2681 = vunpack.c.l.b16 %v2031
    %v2682 = vunpack.c.h.b16 %v2031
    %v2683 = vunpack.c.l.b16 %v2032
    %v2684 = vunpack.c.h.b16 %v2032
    %v2685 = vunpack.c.l.b16 %v2033
    %v2686 = vunpack.c.h.b16 %v2033
    %v2687 = vunpack.c.l.b16 %v2034
    %v2688 = vunpack.c.h.b16 %v2034
    %v2689 = vunpack.c.l.b16 %v2035
    %v2690 = vunpack.c.h.b16 %v2035
    %v2691 = vunpack.c.l.b16 %v2036
    %v2692 = vunpack.c.h.b16 %v2036
    %v2693 = vunpack.c.l.b16 %v2037
    %v2694 = vunpack.c.h.b16 %v2037
    %v2695 = vunpack.c.l.b16 %v2038
    %v2696 = vunpack.c.h.b16 %v2038
    %v2697 = vunpack.c.l.b16 %v2039
    %v2698 = vunpack.c.h.b16 %v2039
    %v2699 = vunpack.c.l.b16 %v2040
    %v2700 = vunpack.c.h.b16 %v2040
    %v2701 = vunpack.c.l.b16 %v2041
    %v2702 = vunpack.c.h.b16 %v2041
    %v2703 = vunpack.c.l.b16 %v2042
    %v2704 = vunpack.c.h.b16 %v2042
    %v2705 = vunpack.c.l.b16 %v2043
    %v2706 = vunpack.c.h.b16 %v2043
    %v2707 = vunpack.c.l.b16 %v2044
    %v2708 = vunpack.c.h.b16 %v2044
    %v2709 = vunpack.c.l.b16 %v2045
    %v2710 = vunpack.c.h.b16 %v2045
    %v2711 = vunpack.c.l.b16 %v2046
    %v2712 = vunpack.c.h.b16 %v2046
    %v2713 = vunpack.c.l.b16 %v2047
    %v2714 = vunpack.c.h.b16 %v2047
    %v2715 = vunpack.c.l.b16 %v2048
    %v2716 = vunpack.c.h.b16 %v2048
    %v2717 = vunpack.c.l.b16 %v2049
    %v2718 = vunpack.c.h.b16 %v2049
    %v2719 = vunpack.c.l.b16 %v2050
    %v2720 = vunpack.c.h.b16 %v2050
    %v2721 = vunpack.c.l.b16 %v2051
    %v2722 = vunpack.c.h.b16 %v2051
    %v2723 = vunpack.c.l.b16 %v2052
    %v2724 = vunpack.c.h.b16 %v2052
    %v2725 = vunpack.c.l.b16 %v2053
    %v2726 = vunpack.c.h.b16 %v2053
    %v2727 = vunpack.c.l.b16 %v2054
    %v2728 = vunpack.c.h.b16 %v2054
    %v2729 = vunpack.c.l.b16 %v2055
    %v2730 = vunpack.c.h.b16 %v2055
    %v2731 = vunpack.c.l.b16 %v2056
    %v2732 = vunpack.c.h.b16 %v2056
    %v2733 = vunpack.c.l.b16 %v2057
    %v2734 = vunpack.c.h.b16 %v2057
    %v2735 = vunpack.c.l.b16 %v2058
    %v2736 = vunpack.c.h.b16 %v2058
    %v2737 = vunpack.c.l.b16 %v2059
    %v2738 = vunpack.c.h.b16 %v2059
    %v2739 = vunpack.c.l.b16 %v2060
    %v2740 = vunpack.c.h.b16 %v2060
    %v2741 = vunpack.c.l.b16 %v2061
    %v2742 = vunpack.c.h.b16 %v2061
    %v2743 = vunpack.c.l.b16 %v2062
    %v2744 = vunpack.c.h.b16 %v2062
    %v2745 = vunpack.c.l.b16 %v2063
    %v2746 = vunpack.c.h.b16 %v2063
    %v2747 = vunpack.c.l.b16 %v2064
    %v2748 = vunpack.c.h.b16 %v2064
    %v2749 = vunpack.c.l.b16 %v2065
    %v2750 = vunpack.c.h.b16 %v2065
    %v2751 = vunpack.c.l.b16 %v2066
    %v2752 = vunpack.c.h.b16 %v2066
    %v2753 = vunpack.c.l.b16 %v2067
    %v2754 = vunpack.c.h.b16 %v2067
    %v2755 = vunpack.c.l.b16 %v2068
    %v2756 = vunpack.c.h.b16 %v2068
    %v2757 = vunpack.c.l.b16 %v2069
    %v2758 = vunpack.c.h.b16 %v2069
    %v2759 = vunpack.c.l.b16 %v2070
    %v2760 = vunpack.c.h.b16 %v2070
    %v2761 = vunpack.c.l.b16 %v2071
    %v2762 = vunpack.c.h.b16 %v2071
    %v2763 = vunpack.c.l.b16 %v2072
    %v2764 = vunpack.c.h.b16 %v2072
    %v2765 = vunpack.c.l.b16 %v2073
    %v2766 = vunpack.c.h.b16 %v2073
    %v2767 = vunpack.c.l.b16 %v2074
    %v2768 = vunpack.c.h.b16 %v2074
    %v2769 = vunpack.c.l.b16 %v2075
    %v2770 = vunpack.c.h.b16 %v2075
    %v2771 = vunpack.c.l.b16 %v2076
    %v2772 = vunpack.c.h.b16 %v2076
    %v2773 = vunpack.c.l.b16 %v2077
    %v2774 = vunpack.c.h.b16 %v2077
    %v2775 = vunpack.c.l.b16 %v2078
    %v2776 = vunpack.c.h.b16 %v2078
    %v2777 = vunpack.c.l.b16 %v2079
    %v2778 = vunpack.c.h.b16 %v2079
    %v2779 = vunpack.c.l.b16 %v2080
    %v2780 = vunpack.c.h.b16 %v2080
    %v2781 = vunpack.c.l.b16 %v2081
    %v2782 = vunpack.c.h.b16 %v2081
    %v2783 = vunpack.c.l.b16 %v2082
    %v2784 = vunpack.c.h.b16 %v2082
    %v2785 = vunpack.c.l.b16 %v2083
    %v2786 = vunpack.c.h.b16 %v2083
    %v2787 = vunpack.c.l.b16 %v2084
    %v2788 = vunpack.c.h.b16 %v2084
    %v2789 = vunpack.c.l.b16 %v2085
    %v2790 = vunpack.c.h.b16 %v2085
    %v2791 = vunpack.c.l.b16 %v2086
    %v2792 = vunpack.c.h.b16 %v2086
    %v2793 = vunpack.c.l.b16 %v2087
    %v2794 = vunpack.c.h.b16 %v2087
    %v2795 = vunpack.c.l.b16 %v2088
    %v2796 = vunpack.c.h.b16 %v2088
    %v2797 = vunpack.c.l.b16 %v2089
    %v2798 = vunpack.c.h.b16 %v2089
    %v2799 = vunpack.c.l.b16 %v2090
    %v2800 = vunpack.c.h.b16 %v2090
    %v2801 = vunpack.c.l.b16 %v2091
    %v2802 = vunpack.c.h.b16 %v2091
    %v2803 = vunpack.c.l.b16 %v2092
    %v2804 = vunpack.c.h.b16 %v2092
    %v2805 = vunpack.c.l.b16 %v2093
    %v2806 = vunpack.c.h.b16 %v2093
    %v2807 = vunpack.c.l.b16 %v2094
    %v2808 = vunpack.c.h.b16 %v2094
    %v2809 = vunpack.c.l.b16 %v2095
    %v2810 = vunpack.c.h.b16 %v2095
    %v2811 = vunpack.c.l.b16 %v2096
    %v2812 = vunpack.c.h.b16 %v2096
    %v2813 = vunpack.c.l.b16 %v2097
    %v2814 = vunpack.c.h.b16 %v2097
    %v2815 = vunpack.c.l.b16 %v2098
    %v2816 = vunpack.c.h.b16 %v2098
    %v2817 = vunpack.c.l.b16 %v2099
    %v2818 = vunpack.c.h.b16 %v2099
    %v2819 = vunpack.c.l.b16 %v2100
    %v2820 = vunpack.c.h.b16 %v2100
    %v2821 = vunpack.c.l.b16 %v2101
    %v2822 = vunpack.c.h.b16 %v2101
    %v2823 = vunpack.c.l.b16 %v2102
    %v2824 = vunpack.c.h.b16 %v2102
    %v2825 = vunpack.c.l.b16 %v2103
    %v2826 = vunpack.c.h.b16 %v2103
    %v2827 = vunpack.c.l.b16 %v2104
    %v2828 = vunpack.c.h.b16 %v2104
    %v2829 = vunpack.c.l.b16 %v2105
    %v2830 = vunpack.c.h.b16 %v2105
    %v2831 = vunpack.c.l.b16 %v2106
    %v2832 = vunpack.c.h.b16 %v2106
    %v2833 = vunpack.c.l.b16 %v2107
    %v2834 = vunpack.c.h.b16 %v2107
    %v2835 = vunpack.c.l.b16 %v2108
    %v2836 = vunpack.c.h.b16 %v2108
    %v2837 = vunpack.c.l.b16 %v2109
    %v2838 = vunpack.c.h.b16 %v2109
    %v2839 = vunpack.c.l.b16 %v2110
    %v2840 = vunpack.c.h.b16 %v2110
    %v2841 = vunpack.c.l.b16 %v2111
    %v2842 = vunpack.c.h.b16 %v2111
    %v2843 = vunpack.c.l.b16 %v2112
    %v2844 = vunpack.c.h.b16 %v2112
    %v2845 = vunpack.c.l.b16 %v2113
    %v2846 = vunpack.c.h.b16 %v2113
    %v2847 = vunpack.c.l.b16 %v2114
    %v2848 = vunpack.c.h.b16 %v2114
    %v2849 = vunpack.c.l.b16 %v2115
    %v2850 = vunpack.c.h.b16 %v2115
    %v2851 = vunpack.c.l.b16 %v2116
    %v2852 = vunpack.c.h.b16 %v2116
    %v2853 = vunpack.c.l.b16 %v2117
    %v2854 = vunpack.c.h.b16 %v2117
    %v2855 = vunpack.c.l.b16 %v2118
    %v2856 = vunpack.c.h.b16 %v2118
    %v2857 = vunpack.c.l.b16 %v2119
    %v2858 = vunpack.c.h.b16 %v2119
    %v2859 = vunpack.c.l.b16 %v2120
    %v2860 = vunpack.c.h.b16 %v2120
    %v2861 = vunpack.c.l.b16 %v2121
    %v2862 = vunpack.c.h.b16 %v2121
    %v2863 = vunpack.c.l.b16 %v2122
    %v2864 = vunpack.c.h.b16 %v2122
    %v2865 = vunpack.c.l.b16 %v2123
    %v2866 = vunpack.c.h.b16 %v2123
    %v2867 = vunpack.c.l.b16 %v2124
    %v2868 = vunpack.c.h.b16 %v2124
    %v2869 = vunpack.c.l.b16 %v2125
    %v2870 = vunpack.c.h.b16 %v2125
    %v2871 = vunpack.c.l.b16 %v2126
    %v2872 = vunpack.c.h.b16 %v2126
    %v2873 = vunpack.c.l.b16 %v2127
    %v2874 = vunpack.c.h.b16 %v2127
    %v2875 = vunpack.c.l.b16 %v2128
    %v2876 = vunpack.c.h.b16 %v2128
    %v2877 = vunpack.c.l.b16 %v2129
    %v2878 = vunpack.c.h.b16 %v2129
    %v2879 = vunpack.c.l.b16 %v2130
    %v2880 = vunpack.c.h.b16 %v2130
    %v2881 = vunpack.c.l.b16 %v2131
    %v2882 = vunpack.c.h.b16 %v2131
    %v2883 = vunpack.c.l.b16 %v2132
    %v2884 = vunpack.c.h.b16 %v2132
    %v2885 = vunpack.c.l.b16 %v2133
    %v2886 = vunpack.c.h.b16 %v2133
    %v2887 = vunpack.c.l.b16 %v2134
    %v2888 = vunpack.c.h.b16 %v2134
    %v2889 = vunpack.c.l.b16 %v2135
    %v2890 = vunpack.c.h.b16 %v2135
    %v2891 = vunpack.c.l.b16 %v2136
    %v2892 = vunpack.c.h.b16 %v2136
    %v2893 = vunpack.c.l.b16 %v2137
    %v2894 = vunpack.c.h.b16 %v2137
    %v2895 = vunpack.c.l.b16 %v2138
    %v2896 = vunpack.c.h.b16 %v2138
    %v2897 = vunpack.c.l.b16 %v2139
    %v2898 = vunpack.c.h.b16 %v2139
    %v2899 = vunpack.c.l.b16 %v2140
    %v2900 = vunpack.c.h.b16 %v2140
    %v2901 = vunpack.c.l.b16 %v2141
    %v2902 = vunpack.c.h.b16 %v2141
    %v2903 = vunpack.c.l.b16 %v2142
    %v2904 = vunpack.c.h.b16 %v2142
    %v2905 = vunpack.c.l.b16 %v2143
    %v2906 = vunpack.c.h.b16 %v2143
    %v2907 = vunpack.c.l.b16 %v2144
    %v2908 = vunpack.c.h.b16 %v2144
    %v2909 = vunpack.c.l.b16 %v2145
    %v2910 = vunpack.c.h.b16 %v2145
    %v2911 = vunpack.c.l.b16 %v2146
    %v2912 = vunpack.c.h.b16 %v2146
    %v2913 = vunpack.c.l.b16 %v2147
    %v2914 = vunpack.c.h.b16 %v2147
    %v2915 = vunpack.c.l.b16 %v2148
    %v2916 = vunpack.c.h.b16 %v2148
    %v2917 = vunpack.c.l.b16 %v2149
    %v2918 = vunpack.c.h.b16 %v2149
    %v2919 = vunpack.c.l.b16 %v2150
    %v2920 = vunpack.c.h.b16 %v2150
    %v2921 = vunpack.c.l.b16 %v2151
    %v2922 = vunpack.c.h.b16 %v2151
    %v2923 = vunpack.c.l.b16 %v2152
    %v2924 = vunpack.c.h.b16 %v2152
    %v2925 = vunpack.c.l.b16 %v2153
    %v2926 = vunpack.c.h.b16 %v2153
    %v2927 = vunpack.c.l.b16 %v2154
    %v2928 = vunpack.c.h.b16 %v2154
    %v2929 = vunpack.c.l.b16 %v2155
    %v2930 = vunpack.c.h.b16 %v2155
    %v2931 = vunpack.c.l.b16 %v2156
    %v2932 = vunpack.c.h.b16 %v2156
    %v2933 = vunpack.c.l.b16 %v2157
    %v2934 = vunpack.c.h.b16 %v2157
    %v2935 = vunpack.c.l.b16 %v2158
    %v2936 = vunpack.c.h.b16 %v2158
    %v2937 = vunpack.c.l.b16 %v2159
    %v2938 = vunpack.c.h.b16 %v2159
    %v2939 = vunpack.c.l.b16 %v2160
    %v2940 = vunpack.c.h.b16 %v2160
    %v2941 = vunpack.c.l.b16 %v2161
    %v2942 = vunpack.c.h.b16 %v2161
    %v2943 = vunpack.c.l.b16 %v2162
    %v2944 = vunpack.c.h.b16 %v2162
    %v2945 = vunpack.c.l.b16 %v2163
    %v2946 = vunpack.c.h.b16 %v2163
    %v2947 = vunpack.c.l.b16 %v2164
    %v2948 = vunpack.c.h.b16 %v2164
    %v2949 = vunpack.c.l.b16 %v2165
    %v2950 = vunpack.c.h.b16 %v2165
    %v2951 = vunpack.c.l.b16 %v2166
    %v2952 = vunpack.c.h.b16 %v2166
    %v2953 = vunpack.c.l.b16 %v2167
    %v2954 = vunpack.c.h.b16 %v2167
    %v2955 = vunpack.c.l.b16 %v2168
    %v2956 = vunpack.c.h.b16 %v2168
    %v2957 = vunpack.c.l.b16 %v2169
    %v2958 = vunpack.c.h.b16 %v2169
    %v2959 = vunpack.c.l.b16 %v2170
    %v2960 = vunpack.c.h.b16 %v2170
    %v2961 = vunpack.c.l.b16 %v2171
    %v2962 = vunpack.c.h.b16 %v2171
    %v2963 = vunpack.c.l.b16 %v2172
    %v2964 = vunpack.c.h.b16 %v2172
    %v2965 = vunpack.c.l.b16 %v2173
    %v2966 = vunpack.c.h.b16 %v2173
    %v2967 = vunpack.c.l.b16 %v2174
    %v2968 = vunpack.c.h.b16 %v2174
    %v2969 = vunpack.c.l.b16 %v2175
    %v2970 = vunpack.c.h.b16 %v2175
    %v2971 = vunpack.c.l.b16 %v2176
    %v2972 = vunpack.c.h.b16 %v2176
    %v2973 = vunpack.c.l.b16 %v2177
    %v2974 = vunpack.c.h.b16 %v2177
    %v2975 = vunpack.c.l.b16 %v2178
    %v2976 = vunpack.c.h.b16 %v2178
    %v2977 = vunpack.c.l.b16 %v2179
    %v2978 = vunpack.c.h.b16 %v2179
    %v2979 = vunpack.c.l.b16 %v2180
    %v2980 = vunpack.c.h.b16 %v2180
    %v2981 = vunpack.c.l.b16 %v2181
    %v2982 = vunpack.c.h.b16 %v2181
    %v2983 = vunpack.c.l.b16 %v2182
    %v2984 = vunpack.c.h.b16 %v2182
    %v2985 = vunpack.c.l.b16 %v2183
    %v2986 = vunpack.c.h.b16 %v2183
    %v2987 = vunpack.c.l.b16 %v2184
    %v2988 = vunpack.c.h.b16 %v2184
    %v2989 = vunpack.c.l.b16 %v2185
    %v2990 = vunpack.c.h.b16 %v2185
    %v2991 = vunpack.c.l.b16 %v2186
    %v2992 = vunpack.c.h.b16 %v2186
    %v2993 = vunpack.c.l.b16 %v2187
    %v2994 = vunpack.c.h.b16 %v2187
    %v2995 = vunpack.c.l.b16 %v2188
    %v2996 = vunpack.c.h.b16 %v2188
    %v2997 = vunpack.c.l.b16 %v2189
    %v2998 = vunpack.c.h.b16 %v2189
    %v2999 = vunpack.c.l.b16 %v2190
    %v3000 = vunpack.c.h.b16 %v2190
    %v3001 = vpack.c.b16 %v2497, %v2489
    %v3002 = vpack.c.b16 %v2498, %v2490
    %v3003 = vpack.c.b16 %v2499, %v2491
    %v3004 = vpack.c.b16 %v2500, %v2492
    %v3005 = vpack.c.b16 %v2501, %v2493
    %v3006 = vpack.c.b16 %v2502, %v2494
    %v3007 = vpack.c.b16 %v2503, %v2495
    %v3008 = vpack.c.b16 %v2504, %v2496
    %v3009 = vpack.c.b16 %v2513, %v2505
    %v3010 = vpack.c.b16 %v2514, %v2506
    %v3011 = vpack.c.b16 %v2515, %v2507
    %v3012 = vpack.c.b16 %v2516, %v2508
    %v3013 = vpack.c.b16 %v2517, %v2509
    %v3014 = vpack.c.b16 %v2518, %v2510
    %v3015 = vpack.c.b16 %v2519, %v2511
    %v3016 = vpack.c.b16 %v2520, %v2512
    %v3017 = vpack.c.b16 %v2529, %v2521
    %v3018 = vpack.c.b16 %v2530, %v2522
    %v3019 = vpack.c.b16 %v2531, %v2523
    %v3020 = vpack.c.b16 %v2532, %v2524
    %v3021 = vpack.c.b16 %v2533, %v2525
    %v3022 = vpack.c.b16 %v2534, %v2526
    %v3023 = vpack.c.b16 %v2535, %v2527
    %v3024 = vpack.c.b16 %v2536, %v2528
    %v3025 = vpack.c.b16 %v2545, %v2537
    %v3026 = vpack.c.b16 %v2546, %v2538
    %v3027 = vpack.c.b16 %v2547, %v2539
    %v3028 = vpack.c.b16 %v2548, %v2540
    %v3029 = vpack.c.b16 %v2549, %v2541
    %v3030 = vpack.c.b16 %v2550, %v2542
    %v3031 = vpack.c.b16 %v2551, %v2543
    %v3032 = vpack.c.b16 %v2552, %v2544
    %v3033 = vpack.c.b16 %v2561, %v2553
    %v3034 = vpack.c.b16 %v2562, %v2554
    %v3035 = vpack.c.b16 %v2563, %v2555
    %v3036 = vpack.c.b16 %v2564, %v2556
    %v3037 = vpack.c.b16 %v2565, %v2557
    %v3038 = vpack.c.b16 %v2566, %v2558
    %v3039 = vpack.c.b16 %v2567, %v2559
    %v3040 = vpack.c.b16 %v2568, %v2560
    %v3041 = vpack.c.b16 %v2577, %v2569
    %v3042 = vpack.c.b16 %v2578, %v2570
    %v3043 = vpack.c.b16 %v2579, %v2571
    %v3044 = vpack.c.b16 %v2580, %v2572
    %v3045 = vpack.c.b16 %v2581, %v2573
    %v3046 = vpack.c.b16 %v2582, %v2574
    %v3047 = vpack.c.b16 %v2583, %v2575
    %v3048 = vpack.c.b16 %v2584, %v2576
    %v3049 = vpack.c.b16 %v2593, %v2585
    %v3050 = vpack.c.b16 %v2594, %v2586
    %v3051 = vpack.c.b16 %v2595, %v2587
    %v3052 = vpack.c.b16 %v2596, %v2588
    %v3053 = vpack.c.b16 %v2597, %v2589
    %v3054 = vpack.c.b16 %v2598, %v2590
    %v3055 = vpack.c.b16 %v2599, %v2591
    %v3056 = vpack.c.b16 %v2600, %v2592
    %v3057 = vpack.c.b16 %v2609, %v2601
    %v3058 = vpack.c.b16 %v2610, %v2602
    %v3059 = vpack.c.b16 %v2611, %v2603
    %v3060 = vpack.c.b16 %v2612, %v2604
    %v3061 = vpack.c.b16 %v2613, %v2605
    %v3062 = vpack.c.b16 %v2614, %v2606
    %v3063 = vpack.c.b16 %v2615, %v2607
    %v3064 = vpack.c.b16 %v2616, %v2608
    %v3065 = vpack.c.b16 %v2625, %v2617
    %v3066 = vpack.c.b16 %v2626, %v2618
    %v3067 = vpack.c.b16 %v2627, %v2619
    %v3068 = vpack.c.b16 %v2628, %v2620
    %v3069 = vpack.c.b16 %v2629, %v2621
    %v3070 = vpack.c.b16 %v2630, %v2622
    %v3071 = vpack.c.b16 %v2631, %v2623
    %v3072 = vpack.c.b16 %v2632, %v2624
    %v3073 = vpack.c.b16 %v2641, %v2633
    %v3074 = vpack.c.b16 %v2642, %v2634
    %v3075 = vpack.c.b16 %v2643, %v2635
    %v3076 = vpack.c.b16 %v2644, %v2636
    %v3077 = vpack.c.b16 %v2645, %v2637
    %v3078 = vpack.c.b16 %v2646, %v2638
    %v3079 = vpack.c.b16 %v2647, %v2639
    %v3080 = vpack.c.b16 %v2648, %v2640
    %v3081 = vpack.c.b16 %v2657, %v2649
    %v3082 = vpack.c.b16 %v2658, %v2650
    %v3083 = vpack.c.b16 %v2659, %v2651
    %v3084 = vpack.c.b16 %v2660, %v2652
    %v3085 = vpack.c.b16 %v2661, %v2653
    %v3086 = vpack.c.b16 %v2662, %v2654
    %v3087 = vpack.c.b16 %v2663, %v2655
    %v3088 = vpack.c.b16 %v2664, %v2656
    %v3089 = vpack.c.b16 %v2673, %v2665
    %v3090 = vpack.c.b16 %v2674, %v2666
    %v3091 = vpack.c.b16 %v2675, %v2667
    %v3092 = vpack.c.b16 %v2676, %v2668
    %v3093 = vpack.c.b16 %v2677, %v2669
    %v3094 = vpack.c.b16 %v2678, %v2670
    %v3095 = vpack.c.b16 %v2679, %v2671
    %v3096 = vpack.c.b16 %v2680, %v2672
    %v3097 = vpack.c.b16 %v2689, %v2681
    %v3098 = vpack.c.b16 %v2690, %v2682
    %v3099 = vpack.c.b16 %v2691, %v2683
    %v3100 = vpack.c.b16 %v2692, %v2684
    %v3101 = vpack.c.b16 %v2693, %v2685
    %v3102 = vpack.c.b16 %v2694, %v2686
    %v3103 = vpack.c.b16 %v2695, %v2687
    %v3104 = vpack.c.b16 %v2696, %v2688
    %v3105 = vpack.c.b16 %v2705, %v2697
    %v3106 = vpack.c.b16 %v2706, %v2698
    %v3107 = vpack.c.b16 %v2707, %v2699
    %v3108 = vpack.c.b16 %v2708, %v2700
    %v3109 = vpack.c.b16 %v2709, %v2701
    %v3110 = vpack.c.b16 %v2710, %v2702
    %v3111 = vpack.c.b16 %v2711, %v2703
    %v3112 = vpack.c.b16 %v2712, %v2704
    %v3113 = vpack.c.b16 %v2721, %v2713
    %v3114 = vpack.c.b16 %v2722, %v2714
    %v3115 = vpack.c.b16 %v2723, %v2715
    %v3116 = vpack.c.b16 %v2724, %v2716
    %v3117 = vpack.c.b16 %v2725, %v2717
    %v3118 = vpack.c.b16 %v2726, %v2718
    %v3119 = vpack.c.b16 %v2727, %v2719
    %v3120 = vpack.c.b16 %v2728, %v2720
    %v3121 = vpack.c.b16 %v2737, %v2729
    %v3122 = vpack.c.b16 %v2738, %v2730
    %v3123 = vpack.c.b16 %v2739, %v2731
    %v3124 = vpack.c.b16 %v2740, %v2732
    %v3125 = vpack.c.b16 %v2741, %v2733
    %v3126 = vpack.c.b16 %v2742, %v2734
    %v3127 = vpack.c.b16 %v2743, %v2735
    %v3128 = vpack.c.b16 %v2744, %v2736
    %v3129 = vpack.c.b16 %v2753, %v2745
    %v3130 = vpack.c.b16 %v2754, %v2746
    %v3131 = vpack.c.b16 %v2755, %v2747
    %v3132 = vpack.c.b16 %v2756, %v2748
    %v3133 = vpack.c.b16 %v2757, %v2749
    %v3134 = vpack.c.b16 %v2758, %v2750
    %v3135 = vpack.c.b16 %v2759, %v2751
    %v3136 = vpack.c.b16 %v2760, %v2752
    %v3137 = vpack.c.b16 %v2769, %v2761
    %v3138 = vpack.c.b16 %v2770, %v2762
    %v3139 = vpack.c.b16 %v2771, %v2763
    %v3140 = vpack.c.b16 %v2772, %v2764
    %v3141 = vpack.c.b16 %v2773, %v2765
    %v3142 = vpack.c.b16 %v2774, %v2766
    %v3143 = vpack.c.b16 %v2775, %v2767
    %v3144 = vpack.c.b16 %v2776, %v2768
    %v3145 = vpack.c.b16 %v2785, %v2777
    %v3146 = vpack.c.b16 %v2786, %v2778
    %v3147 = vpack.c.b16 %v2787, %v2779
    %v3148 = vpack.c.b16 %v2788, %v2780
    %v3149 = vpack.c.b16 %v2789, %v2781
    %v3150 = vpack.c.b16 %v2790, %v2782
    %v3151 = vpack.c.b16 %v2791, %v2783
    %v3152 = vpack.c.b16 %v2792, %v2784
    %v3153 = vpack.c.b16 %v2801, %v2793
    %v3154 = vpack.c.b16 %v2802, %v2794
    %v3155 = vpack.c.b16 %v2803, %v2795
    %v3156 = vpack.c.b16 %v2804, %v2796
    %v3157 = vpack.c.b16 %v2805, %v2797
    %v3158 = vpack.c.b16 %v2806, %v2798
    %v3159 = vpack.c.b16 %v2807, %v2799
    %v3160 = vpack.c.b16 %v2808, %v2800
    %v3161 = vpack.c.b16 %v2817, %v2809
    %v3162 = vpack.c.b16 %v2818, %v2810
    %v3163 = vpack.c.b16 %v2819, %v2811
    %v3164 = vpack.c.b16 %v2820, %v2812
    %v3165 = vpack.c.b16 %v2821, %v2813
    %v3166 = vpack.c.b16 %v2822, %v2814
    %v3167 = vpack.c.b16 %v2823, %v2815
    %v3168 = vpack.c.b16 %v2824, %v2816
    %v3169 = vpack.c.b16 %v2833, %v2825
    %v3170 = vpack.c.b16 %v2834, %v2826
    %v3171 = vpack.c.b16 %v2835, %v2827
    %v3172 = vpack.c.b16 %v2836, %v2828
    %v3173 = vpack.c.b16 %v2837, %v2829
    %v3174 = vpack.c.b16 %v2838, %v2830
    %v3175 = vpack.c.b16 %v2839, %v2831
    %v3176 = vpack.c.b16 %v2840, %v2832
    %v3177 = vpack.c.b16 %v2849, %v2841
    %v3178 = vpack.c.b16 %v2850, %v2842
    %v3179 = vpack.c.b16 %v2851, %v2843
    %v3180 = vpack.c.b16 %v2852, %v2844
    %v3181 = vpack.c.b16 %v2853, %v2845
    %v3182 = vpack.c.b16 %v2854, %v2846
    %v3183 = vpack.c.b16 %v2855, %v2847
    %v3184 = vpack.c.b16 %v2856, %v2848
    %v3185 = vpack.c.b16 %v2865, %v2857
    %v3186 = vpack.c.b16 %v2866, %v2858
    %v3187 = vpack.c.b16 %v2867, %v2859
    %v3188 = vpack.c.b16 %v2868, %v2860
    %v3189 = vpack.c.b16 %v2869, %v2861
    %v3190 = vpack.c.b16 %v2870, %v2862
    %v3191 = vpack.c.b16 %v2871, %v2863
    %v3192 = vpack.c.b16 %v2872, %v2864
    %v3193 = vpack.c.b16 %v2881, %v2873
    %v3194 = vpack.c.b16 %v2882, %v2874
    %v3195 = vpack.c.b16 %v2883, %v2875
    %v3196 = vpack.c.b16 %v2884, %v2876
    %v3197 = vpack.c.b16 %v2885, %v2877
    %v3198 = vpack.c.b16 %v2886, %v2878
    %v3199 = vpack.c.b16 %v2887, %v2879
    %v3200 = vpack.c.b16 %v2888, %v2880
    %v3201 = vpack.c.b16 %v2897, %v2889
    %v3202 = vpack.c.b16 %v2898, %v2890
    %v3203 = vpack.c.b16 %v2899, %v2891
    %v3204 = vpack.c.b16 %v2900, %v2892
    %v3205 = vpack.c.b16 %v2901, %v2893
    %v3206 = vpack.c.b16 %v2902, %v2894
    %v3207 = vpack.c.b16 %v2903, %v2895
    %v3208 = vpack.c.b16 %v2904, %v2896
    %v3209 = vpack.c.b16 %v2913, %v2905
    %v3210 = vpack.c.b16 %v2914, %v2906
    %v3211 = vpack.c.b16 %v2915, %v2907
    %v3212 = vpack.c.b16 %v2916, %v2908
    %v3213 = vpack.c.b16 %v2917, %v2909
    %v3214 = vpack.c.b16 %v2918, %v2910
    %v3215 = vpack.c.b16 %v2919, %v2911
    %v3216 = vpack.c.b16 %v2920, %v2912
    %v3217 = vpack.c.b16 %v2929, %v2921
    %v3218 = vpack.c.b16 %v2930, %v2922
    %v3219 = vpack.c.b16 %v2931, %v2923
    %v3220 = vpack.c.b16 %v2932, %v2924
    %v3221 = vpack.c.b16 %v2933, %v2925
    %v3222 = vpack.c.b16 %v2934, %v2926
    %v3223 = vpack.c.b16 %v2935, %v2927
    %v3224 = vpack.c.b16 %v2936, %v2928
    %v3225 = vpack.c.b16 %v2945, %v2937
    %v3226 = vpack.c.b16 %v2946, %v2938
    %v3227 = vpack.c.b16 %v2947, %v2939
    %v3228 = vpack.c.b16 %v2948, %v2940
    %v3229 = vpack.c.b16 %v2949, %v2941
    %v3230 = vpack.c.b16 %v2950, %v2942
    %v3231 = vpack.c.b16 %v2951, %v2943
    %v3232 = vpack.c.b16 %v2952, %v2944
    %v3233 = vpack.c.b16 %v2961, %v2953
    %v3234 = vpack.c.b16 %v2962, %v2954
    %v3235 = vpack.c.b16 %v2963, %v2955
    %v3236 = vpack.c.b16 %v2964, %v2956
    %v3237 = vpack.c.b16 %v2965, %v2957
    %v3238 = vpack.c.b16 %v2966, %v2958
    %v3239 = vpack.c.b16 %v2967, %v2959
    %v3240 = vpack.c.b16 %v2968, %v2960
    %v3241 = vpack.c.b16 %v2977, %v2969
    %v3242 = vpack.c.b16 %v2978, %v2970
    %v3243 = vpack.c.b16 %v2979, %v2971
    %v3244 = vpack.c.b16 %v2980, %v2972
    %v3245 = vpack.c.b16 %v2981, %v2973
    %v3246 = vpack.c.b16 %v2982, %v2974
    %v3247 = vpack.c.b16 %v2983, %v2975
    %v3248 = vpack.c.b16 %v2984, %v2976
    %v3249 = vpack.c.b16 %v2993, %v2985
    %v3250 = vpack.c.b16 %v2994, %v2986
    %v3251 = vpack.c.b16 %v2995, %v2987
    %v3252 = vpack.c.b16 %v2996, %v2988
    %v3253 = vpack.c.b16 %v2997, %v2989
    %v3254 = vpack.c.b16 %v2998, %v2990
    %v3255 = vpack.c.b16 %v2999, %v2991
    %v3256 = vpack.c.b16 %v3000, %v2992
    %3513 = vmatprep.subr.bf16.mxu0 %v3058
    %3514 = vmatpush1.bf16.msra.mxu0 %v3057
    %3515 = vmatprep.subr.bf16.mxu0 %v3050
    %3516 = vmatpush1.bf16.msra.mxu0 %v3049
    %3517 = vmatprep.subr.bf16.mxu0 %v3042
    %3518 = vmatpush1.bf16.msra.mxu0 %v3041
    %3519 = vmatprep.subr.bf16.mxu0 %v3034
    %3520 = vmatpush1.bf16.msra.mxu0 %v3033
    %3521 = vmatprep.subr.bf16.mxu0 %v3026
    %3522 = vmatpush1.bf16.msra.mxu0 %v3025
    %3523 = vmatprep.subr.bf16.mxu0 %v3018
    %3524 = vmatpush1.bf16.msra.mxu0 %v3017
    %3525 = vmatprep.subr.bf16.mxu0 %v3010
    %3526 = vmatpush1.bf16.msra.mxu0 %v3009
    %3527 = vmatprep.subr.bf16.mxu0 %v3002
    %3528 = vmatpush1.bf16.msra.mxu0 %v3001
    %3529 = vmatprep.subr.bf16.mxu0 %v3122
    %3530 = vmatpush2.bf16.msra.mxu0 %v3121
    %3531 = vmatprep.subr.bf16.mxu0 %v3114
    %3532 = vmatpush2.bf16.msra.mxu0 %v3113
    %3533 = vmatprep.subr.bf16.mxu0 %v3106
    %3534 = vmatpush2.bf16.msra.mxu0 %v3105
    %3535 = vmatprep.subr.bf16.mxu0 %v3098
    %3536 = vmatpush2.bf16.msra.mxu0 %v3097
    %3537 = vmatprep.subr.bf16.mxu0 %v3090
    %3538 = vmatpush2.bf16.msra.mxu0 %v3089
    %3539 = vmatprep.subr.bf16.mxu0 %v3082
    %3540 = vmatpush2.bf16.msra.mxu0 %v3081
    %3541 = vmatprep.subr.bf16.mxu0 %v3074
    %3542 = vmatpush2.bf16.msra.mxu0 %v3073
    %3543 = vmatprep.subr.bf16.mxu0 %v3066
    %3544 = vmatpush2.bf16.msra.mxu0 %v3065
    %3545 = vmatprep.mubr.bf16.mxu0 %v1576
    %3546 = vmatmul.mubr.bf16.gmra.mxu0 %v1575
    %v3547 = vpop.f32.mrf.mxu0
    %v3548 = vadd.f32 %v2196, %v3547
    %v3549 = vpop.f32.mrf.mxu0
    %v3550 = vadd.f32 %v2200, %v3549
    %v3551 = vpop.f32.mrf.mxu0
    %v3552 = vpop.f32.mrf.mxu0
    %3553 = vdwg.mxu0
    %3554 = vmatprep.subr.bf16.mxu0 %v3186
    %3555 = vmatpush1.bf16.msra.mxu0 %v3185
    %3556 = vmatprep.subr.bf16.mxu0 %v3178
    %3557 = vmatpush1.bf16.msra.mxu0 %v3177
    %3558 = vmatprep.subr.bf16.mxu0 %v3170
    %3559 = vmatpush1.bf16.msra.mxu0 %v3169
    %3560 = vmatprep.subr.bf16.mxu0 %v3162
    %3561 = vmatpush1.bf16.msra.mxu0 %v3161
    %3562 = vmatprep.subr.bf16.mxu0 %v3154
    %3563 = vmatpush1.bf16.msra.mxu0 %v3153
    %3564 = vmatprep.subr.bf16.mxu0 %v3146
    %3565 = vmatpush1.bf16.msra.mxu0 %v3145
    %3566 = vmatprep.subr.bf16.mxu0 %v3138
    %3567 = vmatpush1.bf16.msra.mxu0 %v3137
    %3568 = vmatprep.subr.bf16.mxu0 %v3130
    %3569 = vmatpush1.bf16.msra.mxu0 %v3129
    %3570 = vmatprep.subr.bf16.mxu0 %v3250
    %3571 = vmatpush2.bf16.msra.mxu0 %v3249
    %3572 = vmatprep.subr.bf16.mxu0 %v3242
    %3573 = vmatpush2.bf16.msra.mxu0 %v3241
    %3574 = vmatprep.subr.bf16.mxu0 %v3234
    %3575 = vmatpush2.bf16.msra.mxu0 %v3233
    %3576 = vmatprep.subr.bf16.mxu0 %v3226
    %3577 = vmatpush2.bf16.msra.mxu0 %v3225
    %3578 = vmatprep.subr.bf16.mxu0 %v3218
    %3579 = vmatpush2.bf16.msra.mxu0 %v3217
    %3580 = vmatprep.subr.bf16.mxu0 %v3210
    %3581 = vmatpush2.bf16.msra.mxu0 %v3209
    %3582 = vmatprep.subr.bf16.mxu0 %v3202
    %3583 = vmatpush2.bf16.msra.mxu0 %v3201
    %3584 = vmatprep.subr.bf16.mxu0 %v3194
    %3585 = vmatpush2.bf16.msra.mxu0 %v3193
    %3586 = vmatprep.mubr.bf16.mxu0 %v1578
    %3587 = vmatmul.mubr.bf16.gmra.mxu0 %v1577
    %v3588 = vpop.f32.mrf.mxu0
    %v3589 = vadd.f32 %v3548, %v3588
    %v3590 = vpop.f32.mrf.mxu0
    %v3591 = vadd.f32 %v3550, %v3590
    %v3592 = vpop.f32.mrf.mxu0
    %v3593 = vpop.f32.mrf.mxu0
    %3594 = vdwg.mxu0
    %3595 = vmatprep.subr.bf16.mxu0 %v3060
    %3596 = vmatpush1.bf16.msra.mxu0 %v3059
    %3597 = vmatprep.subr.bf16.mxu0 %v3052
    %3598 = vmatpush1.bf16.msra.mxu0 %v3051
    %3599 = vmatprep.subr.bf16.mxu0 %v3044
    %3600 = vmatpush1.bf16.msra.mxu0 %v3043
    %3601 = vmatprep.subr.bf16.mxu0 %v3036
    %3602 = vmatpush1.bf16.msra.mxu0 %v3035
    %3603 = vmatprep.subr.bf16.mxu0 %v3028
    %3604 = vmatpush1.bf16.msra.mxu0 %v3027
    %3605 = vmatprep.subr.bf16.mxu0 %v3020
    %3606 = vmatpush1.bf16.msra.mxu0 %v3019
    %3607 = vmatprep.subr.bf16.mxu0 %v3012
    %3608 = vmatpush1.bf16.msra.mxu0 %v3011
    %3609 = vmatprep.subr.bf16.mxu0 %v3004
    %3610 = vmatpush1.bf16.msra.mxu0 %v3003
    %3611 = vmatprep.subr.bf16.mxu0 %v3124
    %3612 = vmatpush2.bf16.msra.mxu0 %v3123
    %3613 = vmatprep.subr.bf16.mxu0 %v3116
    %3614 = vmatpush2.bf16.msra.mxu0 %v3115
    %3615 = vmatprep.subr.bf16.mxu0 %v3108
    %3616 = vmatpush2.bf16.msra.mxu0 %v3107
    %3617 = vmatprep.subr.bf16.mxu0 %v3100
    %3618 = vmatpush2.bf16.msra.mxu0 %v3099
    %3619 = vmatprep.subr.bf16.mxu0 %v3092
    %3620 = vmatpush2.bf16.msra.mxu0 %v3091
    %3621 = vmatprep.subr.bf16.mxu0 %v3084
    %3622 = vmatpush2.bf16.msra.mxu0 %v3083
    %3623 = vmatprep.subr.bf16.mxu0 %v3076
    %3624 = vmatpush2.bf16.msra.mxu0 %v3075
    %3625 = vmatprep.subr.bf16.mxu0 %v3068
    %3626 = vmatpush2.bf16.msra.mxu0 %v3067
    %3627 = vmatprep.mubr.bf16.mxu0 %v1576
    %3628 = vmatmul.mubr.bf16.gmra.mxu0 %v1575
    %v3629 = vpop.f32.mrf.mxu0
    %v3630 = vadd.f32 %v2204, %v3629
    %v3631 = vpop.f32.mrf.mxu0
    %v3632 = vadd.f32 %v2208, %v3631
    %v3633 = vpop.f32.mrf.mxu0
    %v3634 = vpop.f32.mrf.mxu0
    %3635 = vdwg.mxu0
    %3636 = vmatprep.subr.bf16.mxu0 %v3188
    %3637 = vmatpush1.bf16.msra.mxu0 %v3187
    %3638 = vmatprep.subr.bf16.mxu0 %v3180
    %3639 = vmatpush1.bf16.msra.mxu0 %v3179
    %3640 = vmatprep.subr.bf16.mxu0 %v3172
    %3641 = vmatpush1.bf16.msra.mxu0 %v3171
    %3642 = vmatprep.subr.bf16.mxu0 %v3164
    %3643 = vmatpush1.bf16.msra.mxu0 %v3163
    %3644 = vmatprep.subr.bf16.mxu0 %v3156
    %3645 = vmatpush1.bf16.msra.mxu0 %v3155
    %3646 = vmatprep.subr.bf16.mxu0 %v3148
    %3647 = vmatpush1.bf16.msra.mxu0 %v3147
    %3648 = vmatprep.subr.bf16.mxu0 %v3140
    %3649 = vmatpush1.bf16.msra.mxu0 %v3139
    %3650 = vmatprep.subr.bf16.mxu0 %v3132
    %3651 = vmatpush1.bf16.msra.mxu0 %v3131
    %3652 = vmatprep.subr.bf16.mxu0 %v3252
    %3653 = vmatpush2.bf16.msra.mxu0 %v3251
    %3654 = vmatprep.subr.bf16.mxu0 %v3244
    %3655 = vmatpush2.bf16.msra.mxu0 %v3243
    %3656 = vmatprep.subr.bf16.mxu0 %v3236
    %3657 = vmatpush2.bf16.msra.mxu0 %v3235
    %3658 = vmatprep.subr.bf16.mxu0 %v3228
    %3659 = vmatpush2.bf16.msra.mxu0 %v3227
    %3660 = vmatprep.subr.bf16.mxu0 %v3220
    %3661 = vmatpush2.bf16.msra.mxu0 %v3219
    %3662 = vmatprep.subr.bf16.mxu0 %v3212
    %3663 = vmatpush2.bf16.msra.mxu0 %v3211
    %3664 = vmatprep.subr.bf16.mxu0 %v3204
    %3665 = vmatpush2.bf16.msra.mxu0 %v3203
    %3666 = vmatprep.subr.bf16.mxu0 %v3196
    %3667 = vmatpush2.bf16.msra.mxu0 %v3195
    %3668 = vmatprep.mubr.bf16.mxu0 %v1578
    %3669 = vmatmul.mubr.bf16.gmra.mxu0 %v1577
    %v3670 = vpop.f32.mrf.mxu0
    %v3671 = vadd.f32 %v3630, %v3670
    %v3672 = vpop.f32.mrf.mxu0
    %v3673 = vadd.f32 %v3632, %v3672
    %v3674 = vpop.f32.mrf.mxu0
    %v3675 = vpop.f32.mrf.mxu0
    %3676 = vdwg.mxu0
    %3677 = vmatprep.subr.bf16.mxu0 %v3062
    %3678 = vmatpush1.bf16.msra.mxu0 %v3061
    %3679 = vmatprep.subr.bf16.mxu0 %v3054
    %3680 = vmatpush1.bf16.msra.mxu0 %v3053
    %3681 = vmatprep.subr.bf16.mxu0 %v3046
    %3682 = vmatpush1.bf16.msra.mxu0 %v3045
    %3683 = vmatprep.subr.bf16.mxu0 %v3038
    %3684 = vmatpush1.bf16.msra.mxu0 %v3037
    %3685 = vmatprep.subr.bf16.mxu0 %v3030
    %3686 = vmatpush1.bf16.msra.mxu0 %v3029
    %3687 = vmatprep.subr.bf16.mxu0 %v3022
    %3688 = vmatpush1.bf16.msra.mxu0 %v3021
    %3689 = vmatprep.subr.bf16.mxu0 %v3014
    %3690 = vmatpush1.bf16.msra.mxu0 %v3013
    %3691 = vmatprep.subr.bf16.mxu0 %v3006
    %3692 = vmatpush1.bf16.msra.mxu0 %v3005
    %3693 = vmatprep.subr.bf16.mxu0 %v3126
    %3694 = vmatpush2.bf16.msra.mxu0 %v3125
    %3695 = vmatprep.subr.bf16.mxu0 %v3118
    %3696 = vmatpush2.bf16.msra.mxu0 %v3117
    %3697 = vmatprep.subr.bf16.mxu0 %v3110
    %3698 = vmatpush2.bf16.msra.mxu0 %v3109
    %3699 = vmatprep.subr.bf16.mxu0 %v3102
    %3700 = vmatpush2.bf16.msra.mxu0 %v3101
    %3701 = vmatprep.subr.bf16.mxu0 %v3094
    %3702 = vmatpush2.bf16.msra.mxu0 %v3093
    %3703 = vmatprep.subr.bf16.mxu0 %v3086
    %3704 = vmatpush2.bf16.msra.mxu0 %v3085
    %3705 = vmatprep.subr.bf16.mxu0 %v3078
    %3706 = vmatpush2.bf16.msra.mxu0 %v3077
    %3707 = vmatprep.subr.bf16.mxu0 %v3070
    %3708 = vmatpush2.bf16.msra.mxu0 %v3069
    %3709 = vmatprep.mubr.bf16.mxu0 %v1576
    %3710 = vmatmul.mubr.bf16.gmra.mxu0 %v1575
    %v3711 = vpop.f32.mrf.mxu0
    %v3712 = vadd.f32 %v2212, %v3711
    %v3713 = vpop.f32.mrf.mxu0
    %v3714 = vadd.f32 %v2216, %v3713
    %v3715 = vpop.f32.mrf.mxu0
    %v3716 = vpop.f32.mrf.mxu0
    %3717 = vdwg.mxu0
    %3718 = vmatprep.subr.bf16.mxu0 %v3190
    %3719 = vmatpush1.bf16.msra.mxu0 %v3189
    %3720 = vmatprep.subr.bf16.mxu0 %v3182
    %3721 = vmatpush1.bf16.msra.mxu0 %v3181
    %3722 = vmatprep.subr.bf16.mxu0 %v3174
    %3723 = vmatpush1.bf16.msra.mxu0 %v3173
    %3724 = vmatprep.subr.bf16.mxu0 %v3166
    %3725 = vmatpush1.bf16.msra.mxu0 %v3165
    %3726 = vmatprep.subr.bf16.mxu0 %v3158
    %3727 = vmatpush1.bf16.msra.mxu0 %v3157
    %3728 = vmatprep.subr.bf16.mxu0 %v3150
    %3729 = vmatpush1.bf16.msra.mxu0 %v3149
    %3730 = vmatprep.subr.bf16.mxu0 %v3142
    %3731 = vmatpush1.bf16.msra.mxu0 %v3141
    %3732 = vmatprep.subr.bf16.mxu0 %v3134
    %3733 = vmatpush1.bf16.msra.mxu0 %v3133
    %3734 = vmatprep.subr.bf16.mxu0 %v3254
    %3735 = vmatpush2.bf16.msra.mxu0 %v3253
    %3736 = vmatprep.subr.bf16.mxu0 %v3246
    %3737 = vmatpush2.bf16.msra.mxu0 %v3245
    %3738 = vmatprep.subr.bf16.mxu0 %v3238
    %3739 = vmatpush2.bf16.msra.mxu0 %v3237
    %3740 = vmatprep.subr.bf16.mxu0 %v3230
    %3741 = vmatpush2.bf16.msra.mxu0 %v3229
    %3742 = vmatprep.subr.bf16.mxu0 %v3222
    %3743 = vmatpush2.bf16.msra.mxu0 %v3221
    %3744 = vmatprep.subr.bf16.mxu0 %v3214
    %3745 = vmatpush2.bf16.msra.mxu0 %v3213
    %3746 = vmatprep.subr.bf16.mxu0 %v3206
    %3747 = vmatpush2.bf16.msra.mxu0 %v3205
    %3748 = vmatprep.subr.bf16.mxu0 %v3198
    %3749 = vmatpush2.bf16.msra.mxu0 %v3197
    %3750 = vmatprep.mubr.bf16.mxu0 %v1578
    %3751 = vmatmul.mubr.bf16.gmra.mxu0 %v1577
    %v3752 = vpop.f32.mrf.mxu0
    %v3753 = vadd.f32 %v3712, %v3752
    %v3754 = vpop.f32.mrf.mxu0
    %v3755 = vadd.f32 %v3714, %v3754
    %v3756 = vpop.f32.mrf.mxu0
    %v3757 = vpop.f32.mrf.mxu0
    %3758 = vdwg.mxu0
    %3759 = vmatprep.subr.bf16.mxu0 %v3064
    %3760 = vmatpush1.bf16.msra.mxu0 %v3063
    %3761 = vmatprep.subr.bf16.mxu0 %v3056
    %3762 = vmatpush1.bf16.msra.mxu0 %v3055
    %3763 = vmatprep.subr.bf16.mxu0 %v3048
    %3764 = vmatpush1.bf16.msra.mxu0 %v3047
    %3765 = vmatprep.subr.bf16.mxu0 %v3040
    %3766 = vmatpush1.bf16.msra.mxu0 %v3039
    %3767 = vmatprep.subr.bf16.mxu0 %v3032
    %3768 = vmatpush1.bf16.msra.mxu0 %v3031
    %3769 = vmatprep.subr.bf16.mxu0 %v3024
    %3770 = vmatpush1.bf16.msra.mxu0 %v3023
    %3771 = vmatprep.subr.bf16.mxu0 %v3016
    %3772 = vmatpush1.bf16.msra.mxu0 %v3015
    %3773 = vmatprep.subr.bf16.mxu0 %v3008
    %3774 = vmatpush1.bf16.msra.mxu0 %v3007
    %3775 = vmatprep.subr.bf16.mxu0 %v3128
    %3776 = vmatpush2.bf16.msra.mxu0 %v3127
    %3777 = vmatprep.subr.bf16.mxu0 %v3120
    %3778 = vmatpush2.bf16.msra.mxu0 %v3119
    %3779 = vmatprep.subr.bf16.mxu0 %v3112
    %3780 = vmatpush2.bf16.msra.mxu0 %v3111
    %3781 = vmatprep.subr.bf16.mxu0 %v3104
    %3782 = vmatpush2.bf16.msra.mxu0 %v3103
    %3783 = vmatprep.subr.bf16.mxu0 %v3096
    %3784 = vmatpush2.bf16.msra.mxu0 %v3095
    %3785 = vmatprep.subr.bf16.mxu0 %v3088
    %3786 = vmatpush2.bf16.msra.mxu0 %v3087
    %3787 = vmatprep.subr.bf16.mxu0 %v3080
    %3788 = vmatpush2.bf16.msra.mxu0 %v3079
    %3789 = vmatprep.subr.bf16.mxu0 %v3072
    %3790 = vmatpush2.bf16.msra.mxu0 %v3071
    %3791 = vmatprep.mubr.bf16.mxu0 %v1576
    %3792 = vmatmul.mubr.bf16.gmra.mxu0 %v1575
    %v3793 = vpop.f32.mrf.mxu0
    %v3794 = vadd.f32 %v2220, %v3793
    %v3795 = vpop.f32.mrf.mxu0
    %v3796 = vadd.f32 %v2224, %v3795
    %v3797 = vpop.f32.mrf.mxu0
    %v3798 = vpop.f32.mrf.mxu0
    %3799 = vdwg.mxu0
    %3800 = vmatprep.subr.bf16.mxu0 %v3192
    %3801 = vmatpush1.bf16.msra.mxu0 %v3191
    %3802 = vmatprep.subr.bf16.mxu0 %v3184
    %3803 = vmatpush1.bf16.msra.mxu0 %v3183
    %3804 = vmatprep.subr.bf16.mxu0 %v3176
    %3805 = vmatpush1.bf16.msra.mxu0 %v3175
    %3806 = vmatprep.subr.bf16.mxu0 %v3168
    %3807 = vmatpush1.bf16.msra.mxu0 %v3167
    %3808 = vmatprep.subr.bf16.mxu0 %v3160
    %3809 = vmatpush1.bf16.msra.mxu0 %v3159
    %3810 = vmatprep.subr.bf16.mxu0 %v3152
    %3811 = vmatpush1.bf16.msra.mxu0 %v3151
    %3812 = vmatprep.subr.bf16.mxu0 %v3144
    %3813 = vmatpush1.bf16.msra.mxu0 %v3143
    %3814 = vmatprep.subr.bf16.mxu0 %v3136
    %3815 = vmatpush1.bf16.msra.mxu0 %v3135
    %3816 = vmatprep.subr.bf16.mxu0 %v3256
    %3817 = vmatpush2.bf16.msra.mxu0 %v3255
    %3818 = vmatprep.subr.bf16.mxu0 %v3248
    %3819 = vmatpush2.bf16.msra.mxu0 %v3247
    %3820 = vmatprep.subr.bf16.mxu0 %v3240
    %3821 = vmatpush2.bf16.msra.mxu0 %v3239
    %3822 = vmatprep.subr.bf16.mxu0 %v3232
    %3823 = vmatpush2.bf16.msra.mxu0 %v3231
    %3824 = vmatprep.subr.bf16.mxu0 %v3224
    %3825 = vmatpush2.bf16.msra.mxu0 %v3223
    %3826 = vmatprep.subr.bf16.mxu0 %v3216
    %3827 = vmatpush2.bf16.msra.mxu0 %v3215
    %3828 = vmatprep.subr.bf16.mxu0 %v3208
    %3829 = vmatpush2.bf16.msra.mxu0 %v3207
    %3830 = vmatprep.subr.bf16.mxu0 %v3200
    %3831 = vmatpush2.bf16.msra.mxu0 %v3199
    %3832 = vmatprep.mubr.bf16.mxu0 %v1578
    %3833 = vmatmul.mubr.bf16.gmra.mxu0 %v1577
    %v3834 = vpop.f32.mrf.mxu0
    %v3835 = vadd.f32 %v3794, %v3834
    %v3836 = vpop.f32.mrf.mxu0
    %v3837 = vadd.f32 %v3796, %v3836
    %v3838 = vpop.f32.mrf.mxu0
    %v3839 = vpop.f32.mrf.mxu0
    %3840 = vdwg.mxu0
    %v3841 = vmul.f32 %v3589, %v3589
    %v3842 = vmul.f32 %v3591, %v3591
    %v3843 = vadd.f32 %v3841, %v3842
    %3844 = vadd.xlane.f32.xlu0 %v3843
    %v3845 = vpop.xlane.xlu0 %3844
    %v3846 = vmax.f32 %v3845, 1e-24
    %v3847 = vrsqrt.pop %v3846
    %v3848 = vmul.f32 %v3589, %v3847
    %v3849 = vmul.f32 %v3591, %v3847
    %v3850 = vmul.f32 %v3671, %v3671
    %v3851 = vmul.f32 %v3673, %v3673
    %v3852 = vadd.f32 %v3850, %v3851
    %3853 = vadd.xlane.f32.xlu0 %v3852
    %v3854 = vpop.xlane.xlu0 %3853
    %v3855 = vmax.f32 %v3854, 1e-24
    %v3856 = vrsqrt.pop %v3855
    %v3857 = vmul.f32 %v3671, %v3856
    %v3858 = vmul.f32 %v3673, %v3856
    %v3859 = vmul.f32 %v3753, %v3753
    %v3860 = vmul.f32 %v3755, %v3755
    %v3861 = vadd.f32 %v3859, %v3860
    %3862 = vadd.xlane.f32.xlu0 %v3861
    %v3863 = vpop.xlane.xlu0 %3862
    %v3864 = vmax.f32 %v3863, 1e-24
    %v3865 = vrsqrt.pop %v3864
    %v3866 = vmul.f32 %v3753, %v3865
    %v3867 = vmul.f32 %v3755, %v3865
    %v3868 = vmul.f32 %v3835, %v3835
    %v3869 = vmul.f32 %v3837, %v3837
    %v3870 = vadd.f32 %v3868, %v3869
    %3871 = vadd.xlane.f32.xlu0 %v3870
    %v3872 = vpop.xlane.xlu0 %3871
    %v3873 = vmax.f32 %v3872, 1e-24
    %v3874 = vrsqrt.pop %v3873
    %v3875 = vmul.f32 %v3835, %v3874
    %v3876 = vmul.f32 %v3837, %v3874
    %3877 = vst [vmem:[#allocation16] sm:$0xff] %v3848
    %3878 = vst [vmem:[#allocation16 + $0x8] sm:$0xff] %v3849
    %3879 = vst [vmem:[#allocation16 + $0x10] sm:$0xff] %v3857
    %3880 = vst [vmem:[#allocation16 + $0x18] sm:$0xff] %v3858
    %3881 = vst [vmem:[#allocation16 + $0x20] sm:$0xff] %v3866
    %3882 = vst [vmem:[#allocation16 + $0x28] sm:$0xff] %v3867
    %3883 = vst [vmem:[#allocation16 + $0x30] sm:$0xff] %v3875
    %3884 = vst [vmem:[#allocation16 + $0x38] sm:$0xff] %v3876
    %v3885 = vpack.c.bf16 %v3848, %v3848
    %v3886 = vpack.c.bf16 %v3849, %v3849
    %v3887 = vpack.c.bf16 %v3857, %v3857
    %v3888 = vpack.c.bf16 %v3858, %v3858
    %v3889 = vpack.c.bf16 %v3866, %v3866
    %v3890 = vpack.c.bf16 %v3867, %v3867
    %v3891 = vpack.c.bf16 %v3875, %v3875
    %v3892 = vpack.c.bf16 %v3876, %v3876
    %v3893 = vld [vmem:[#allocation8] sm:$0xf]
    %v3894 = vld [vmem:[#allocation8 + $0x4] sm:$0xf]
    %v3895 = vld [vmem:[#allocation8 + $0x8] sm:$0xf]
    %v3896 = vld [vmem:[#allocation8 + $0xc] sm:$0xf]
    %v3897 = vld [vmem:[#allocation8 + $0x10] sm:$0xf]
    %v3898 = vld [vmem:[#allocation8 + $0x14] sm:$0xf]
    %v3899 = vld [vmem:[#allocation8 + $0x18] sm:$0xf]
    %v3900 = vld [vmem:[#allocation8 + $0x1c] sm:$0xf]
    %v3901 = vld [vmem:[#allocation8 + $0x20] sm:$0xf]
    %v3902 = vld [vmem:[#allocation8 + $0x24] sm:$0xf]
    %v3903 = vld [vmem:[#allocation8 + $0x28] sm:$0xf]
    %v3904 = vld [vmem:[#allocation8 + $0x2c] sm:$0xf]
    %v3905 = vld [vmem:[#allocation8 + $0x30] sm:$0xf]
    %v3906 = vld [vmem:[#allocation8 + $0x34] sm:$0xf]
    %v3907 = vld [vmem:[#allocation8 + $0x38] sm:$0xf]
    %v3908 = vld [vmem:[#allocation8 + $0x3c] sm:$0xf]
    %v3909 = vld [vmem:[#allocation8 + $0x40] sm:$0xf]
    %v3910 = vld [vmem:[#allocation8 + $0x44] sm:$0xf]
    %v3911 = vld [vmem:[#allocation8 + $0x48] sm:$0xf]
    %v3912 = vld [vmem:[#allocation8 + $0x4c] sm:$0xf]
    %v3913 = vld [vmem:[#allocation8 + $0x50] sm:$0xf]
    %v3914 = vld [vmem:[#allocation8 + $0x54] sm:$0xf]
    %v3915 = vld [vmem:[#allocation8 + $0x58] sm:$0xf]
    %v3916 = vld [vmem:[#allocation8 + $0x5c] sm:$0xf]
    %v3917 = vld [vmem:[#allocation8 + $0x60] sm:$0xf]
    %v3918 = vld [vmem:[#allocation8 + $0x64] sm:$0xf]
    %v3919 = vld [vmem:[#allocation8 + $0x68] sm:$0xf]
    %v3920 = vld [vmem:[#allocation8 + $0x6c] sm:$0xf]
    %v3921 = vld [vmem:[#allocation8 + $0x70] sm:$0xf]
    %v3922 = vld [vmem:[#allocation8 + $0x74] sm:$0xf]
    %v3923 = vld [vmem:[#allocation8 + $0x78] sm:$0xf]
    %v3924 = vld [vmem:[#allocation8 + $0x7c] sm:$0xf]
    %v3925 = vld [vmem:[#allocation8 + $0x80] sm:$0xf]
    %v3926 = vld [vmem:[#allocation8 + $0x84] sm:$0xf]
    %v3927 = vld [vmem:[#allocation8 + $0x88] sm:$0xf]
    %v3928 = vld [vmem:[#allocation8 + $0x8c] sm:$0xf]
    %v3929 = vld [vmem:[#allocation8 + $0x90] sm:$0xf]
    %v3930 = vld [vmem:[#allocation8 + $0x94] sm:$0xf]
    %v3931 = vld [vmem:[#allocation8 + $0x98] sm:$0xf]
    %v3932 = vld [vmem:[#allocation8 + $0x9c] sm:$0xf]
    %v3933 = vld [vmem:[#allocation8 + $0xa0] sm:$0xf]
    %v3934 = vld [vmem:[#allocation8 + $0xa4] sm:$0xf]
    %v3935 = vld [vmem:[#allocation8 + $0xa8] sm:$0xf]
    %v3936 = vld [vmem:[#allocation8 + $0xac] sm:$0xf]
    %v3937 = vld [vmem:[#allocation8 + $0xb0] sm:$0xf]
    %v3938 = vld [vmem:[#allocation8 + $0xb4] sm:$0xf]
    %v3939 = vld [vmem:[#allocation8 + $0xb8] sm:$0xf]
    %v3940 = vld [vmem:[#allocation8 + $0xbc] sm:$0xf]
    %v3941 = vld [vmem:[#allocation8 + $0xc0] sm:$0xf]
    %v3942 = vld [vmem:[#allocation8 + $0xc4] sm:$0xf]
    %v3943 = vld [vmem:[#allocation8 + $0xc8] sm:$0xf]
    %v3944 = vld [vmem:[#allocation8 + $0xcc] sm:$0xf]
    %v3945 = vld [vmem:[#allocation8 + $0xd0] sm:$0xf]
    %v3946 = vld [vmem:[#allocation8 + $0xd4] sm:$0xf]
    %v3947 = vld [vmem:[#allocation8 + $0xd8] sm:$0xf]
    %v3948 = vld [vmem:[#allocation8 + $0xdc] sm:$0xf]
    %v3949 = vld [vmem:[#allocation8 + $0xe0] sm:$0xf]
    %v3950 = vld [vmem:[#allocation8 + $0xe4] sm:$0xf]
    %v3951 = vld [vmem:[#allocation8 + $0xe8] sm:$0xf]
    %v3952 = vld [vmem:[#allocation8 + $0xec] sm:$0xf]
    %v3953 = vld [vmem:[#allocation8 + $0xf0] sm:$0xf]
    %v3954 = vld [vmem:[#allocation8 + $0xf4] sm:$0xf]
    %v3955 = vld [vmem:[#allocation8 + $0xf8] sm:$0xf]
    %v3956 = vld [vmem:[#allocation8 + $0xfc] sm:$0xf]
    %v3957 = vld [vmem:[#allocation8 + $0x100] sm:$0xf]
    %v3958 = vld [vmem:[#allocation8 + $0x104] sm:$0xf]
    %v3959 = vld [vmem:[#allocation8 + $0x108] sm:$0xf]
    %v3960 = vld [vmem:[#allocation8 + $0x10c] sm:$0xf]
    %v3961 = vld [vmem:[#allocation8 + $0x110] sm:$0xf]
    %v3962 = vld [vmem:[#allocation8 + $0x114] sm:$0xf]
    %v3963 = vld [vmem:[#allocation8 + $0x118] sm:$0xf]
    %v3964 = vld [vmem:[#allocation8 + $0x11c] sm:$0xf]
    %v3965 = vld [vmem:[#allocation8 + $0x120] sm:$0xf]
    %v3966 = vld [vmem:[#allocation8 + $0x124] sm:$0xf]
    %v3967 = vld [vmem:[#allocation8 + $0x128] sm:$0xf]
    %v3968 = vld [vmem:[#allocation8 + $0x12c] sm:$0xf]
    %v3969 = vld [vmem:[#allocation8 + $0x130] sm:$0xf]
    %v3970 = vld [vmem:[#allocation8 + $0x134] sm:$0xf]
    %v3971 = vld [vmem:[#allocation8 + $0x138] sm:$0xf]
    %v3972 = vld [vmem:[#allocation8 + $0x13c] sm:$0xf]
    %v3973 = vld [vmem:[#allocation8 + $0x140] sm:$0xf]
    %v3974 = vld [vmem:[#allocation8 + $0x144] sm:$0xf]
    %v3975 = vld [vmem:[#allocation8 + $0x148] sm:$0xf]
    %v3976 = vld [vmem:[#allocation8 + $0x14c] sm:$0xf]
    %v3977 = vld [vmem:[#allocation8 + $0x150] sm:$0xf]
    %v3978 = vld [vmem:[#allocation8 + $0x154] sm:$0xf]
    %v3979 = vld [vmem:[#allocation8 + $0x158] sm:$0xf]
    %v3980 = vld [vmem:[#allocation8 + $0x15c] sm:$0xf]
    %v3981 = vld [vmem:[#allocation8 + $0x160] sm:$0xf]
    %v3982 = vld [vmem:[#allocation8 + $0x164] sm:$0xf]
    %v3983 = vld [vmem:[#allocation8 + $0x168] sm:$0xf]
    %v3984 = vld [vmem:[#allocation8 + $0x16c] sm:$0xf]
    %v3985 = vld [vmem:[#allocation8 + $0x170] sm:$0xf]
    %v3986 = vld [vmem:[#allocation8 + $0x174] sm:$0xf]
    %v3987 = vld [vmem:[#allocation8 + $0x178] sm:$0xf]
    %v3988 = vld [vmem:[#allocation8 + $0x17c] sm:$0xf]
    %v3989 = vld [vmem:[#allocation8 + $0x180] sm:$0xf]
    %v3990 = vld [vmem:[#allocation8 + $0x184] sm:$0xf]
    %v3991 = vld [vmem:[#allocation8 + $0x188] sm:$0xf]
    %v3992 = vld [vmem:[#allocation8 + $0x18c] sm:$0xf]
    %v3993 = vld [vmem:[#allocation8 + $0x190] sm:$0xf]
    %v3994 = vld [vmem:[#allocation8 + $0x194] sm:$0xf]
    %v3995 = vld [vmem:[#allocation8 + $0x198] sm:$0xf]
    %v3996 = vld [vmem:[#allocation8 + $0x19c] sm:$0xf]
    %v3997 = vld [vmem:[#allocation8 + $0x1a0] sm:$0xf]
    %v3998 = vld [vmem:[#allocation8 + $0x1a4] sm:$0xf]
    %v3999 = vld [vmem:[#allocation8 + $0x1a8] sm:$0xf]
    %v4000 = vld [vmem:[#allocation8 + $0x1ac] sm:$0xf]
    %v4001 = vld [vmem:[#allocation8 + $0x1b0] sm:$0xf]
    %v4002 = vld [vmem:[#allocation8 + $0x1b4] sm:$0xf]
    %v4003 = vld [vmem:[#allocation8 + $0x1b8] sm:$0xf]
    %v4004 = vld [vmem:[#allocation8 + $0x1bc] sm:$0xf]
    %v4005 = vld [vmem:[#allocation8 + $0x1c0] sm:$0xf]
    %v4006 = vld [vmem:[#allocation8 + $0x1c4] sm:$0xf]
    %v4007 = vld [vmem:[#allocation8 + $0x1c8] sm:$0xf]
    %v4008 = vld [vmem:[#allocation8 + $0x1cc] sm:$0xf]
    %v4009 = vld [vmem:[#allocation8 + $0x1d0] sm:$0xf]
    %v4010 = vld [vmem:[#allocation8 + $0x1d4] sm:$0xf]
    %v4011 = vld [vmem:[#allocation8 + $0x1d8] sm:$0xf]
    %v4012 = vld [vmem:[#allocation8 + $0x1dc] sm:$0xf]
    %v4013 = vld [vmem:[#allocation8 + $0x1e0] sm:$0xf]
    %v4014 = vld [vmem:[#allocation8 + $0x1e4] sm:$0xf]
    %v4015 = vld [vmem:[#allocation8 + $0x1e8] sm:$0xf]
    %v4016 = vld [vmem:[#allocation8 + $0x1ec] sm:$0xf]
    %v4017 = vld [vmem:[#allocation8 + $0x1f0] sm:$0xf]
    %v4018 = vld [vmem:[#allocation8 + $0x1f4] sm:$0xf]
    %v4019 = vld [vmem:[#allocation8 + $0x1f8] sm:$0xf]
    %v4020 = vld [vmem:[#allocation8 + $0x1fc] sm:$0xf]
    %v4149 = vunpack.c.l.b16 %v3893
    %v4150 = vunpack.c.l.b16 %v3894
    %v4151 = vunpack.c.l.b16 %v3895
    %v4152 = vunpack.c.l.b16 %v3896
    %v4153 = vunpack.c.l.b16 %v3897
    %v4154 = vunpack.c.l.b16 %v3898
    %v4155 = vunpack.c.l.b16 %v3899
    %v4156 = vunpack.c.l.b16 %v3900
    %v4157 = vunpack.c.l.b16 %v3901
    %v4158 = vunpack.c.l.b16 %v3902
    %v4159 = vunpack.c.l.b16 %v3903
    %v4160 = vunpack.c.l.b16 %v3904
    %v4161 = vunpack.c.l.b16 %v3905
    %v4162 = vunpack.c.l.b16 %v3906
    %v4163 = vunpack.c.l.b16 %v3907
    %v4164 = vunpack.c.l.b16 %v3908
    %v4165 = vunpack.c.l.b16 %v3909
    %v4166 = vunpack.c.l.b16 %v3910
    %v4167 = vunpack.c.l.b16 %v3911
    %v4168 = vunpack.c.l.b16 %v3912
    %v4169 = vunpack.c.l.b16 %v3913
    %v4170 = vunpack.c.l.b16 %v3914
    %v4171 = vunpack.c.l.b16 %v3915
    %v4172 = vunpack.c.l.b16 %v3916
    %v4173 = vunpack.c.l.b16 %v3917
    %v4174 = vunpack.c.l.b16 %v3918
    %v4175 = vunpack.c.l.b16 %v3919
    %v4176 = vunpack.c.l.b16 %v3920
    %v4177 = vunpack.c.l.b16 %v3921
    %v4178 = vunpack.c.l.b16 %v3922
    %v4179 = vunpack.c.l.b16 %v3923
    %v4180 = vunpack.c.l.b16 %v3924
    %v4181 = vunpack.c.l.b16 %v3925
    %v4182 = vunpack.c.l.b16 %v3926
    %v4183 = vunpack.c.l.b16 %v3927
    %v4184 = vunpack.c.l.b16 %v3928
    %v4185 = vunpack.c.l.b16 %v3929
    %v4186 = vunpack.c.l.b16 %v3930
    %v4187 = vunpack.c.l.b16 %v3931
    %v4188 = vunpack.c.l.b16 %v3932
    %v4189 = vunpack.c.l.b16 %v3933
    %v4190 = vunpack.c.l.b16 %v3934
    %v4191 = vunpack.c.l.b16 %v3935
    %v4192 = vunpack.c.l.b16 %v3936
    %v4193 = vunpack.c.l.b16 %v3937
    %v4194 = vunpack.c.l.b16 %v3938
    %v4195 = vunpack.c.l.b16 %v3939
    %v4196 = vunpack.c.l.b16 %v3940
    %v4197 = vunpack.c.l.b16 %v3941
    %v4198 = vunpack.c.l.b16 %v3942
    %v4199 = vunpack.c.l.b16 %v3943
    %v4200 = vunpack.c.l.b16 %v3944
    %v4201 = vunpack.c.l.b16 %v3945
    %v4202 = vunpack.c.l.b16 %v3946
    %v4203 = vunpack.c.l.b16 %v3947
    %v4204 = vunpack.c.l.b16 %v3948
    %v4205 = vunpack.c.l.b16 %v3949
    %v4206 = vunpack.c.l.b16 %v3950
    %v4207 = vunpack.c.l.b16 %v3951
    %v4208 = vunpack.c.l.b16 %v3952
    %v4209 = vunpack.c.l.b16 %v3953
    %v4210 = vunpack.c.l.b16 %v3954
    %v4211 = vunpack.c.l.b16 %v3955
    %v4212 = vunpack.c.l.b16 %v3956
    %v4213 = vunpack.c.l.b16 %v3957
    %v4214 = vunpack.c.l.b16 %v3958
    %v4215 = vunpack.c.l.b16 %v3959
    %v4216 = vunpack.c.l.b16 %v3960
    %v4217 = vunpack.c.l.b16 %v3961
    %v4218 = vunpack.c.l.b16 %v3962
    %v4219 = vunpack.c.l.b16 %v3963
    %v4220 = vunpack.c.l.b16 %v3964
    %v4221 = vunpack.c.l.b16 %v3965
    %v4222 = vunpack.c.l.b16 %v3966
    %v4223 = vunpack.c.l.b16 %v3967
    %v4224 = vunpack.c.l.b16 %v3968
    %v4225 = vunpack.c.l.b16 %v3969
    %v4226 = vunpack.c.l.b16 %v3970
    %v4227 = vunpack.c.l.b16 %v3971
    %v4228 = vunpack.c.l.b16 %v3972
    %v4229 = vunpack.c.l.b16 %v3973
    %v4230 = vunpack.c.l.b16 %v3974
    %v4231 = vunpack.c.l.b16 %v3975
    %v4232 = vunpack.c.l.b16 %v3976
    %v4233 = vunpack.c.l.b16 %v3977
    %v4234 = vunpack.c.l.b16 %v3978
    %v4235 = vunpack.c.l.b16 %v3979
    %v4236 = vunpack.c.l.b16 %v3980
    %v4237 = vunpack.c.l.b16 %v3981
    %v4238 = vunpack.c.l.b16 %v3982
    %v4239 = vunpack.c.l.b16 %v3983
    %v4240 = vunpack.c.l.b16 %v3984
    %v4241 = vunpack.c.l.b16 %v3985
    %v4242 = vunpack.c.l.b16 %v3986
    %v4243 = vunpack.c.l.b16 %v3987
    %v4244 = vunpack.c.l.b16 %v3988
    %v4245 = vunpack.c.l.b16 %v3989
    %v4246 = vunpack.c.l.b16 %v3990
    %v4247 = vunpack.c.l.b16 %v3991
    %v4248 = vunpack.c.l.b16 %v3992
    %v4249 = vunpack.c.l.b16 %v3993
    %v4250 = vunpack.c.l.b16 %v3994
    %v4251 = vunpack.c.l.b16 %v3995
    %v4252 = vunpack.c.l.b16 %v3996
    %v4253 = vunpack.c.l.b16 %v3997
    %v4254 = vunpack.c.l.b16 %v3998
    %v4255 = vunpack.c.l.b16 %v3999
    %v4256 = vunpack.c.l.b16 %v4000
    %v4257 = vunpack.c.l.b16 %v4001
    %v4258 = vunpack.c.l.b16 %v4002
    %v4259 = vunpack.c.l.b16 %v4003
    %v4260 = vunpack.c.l.b16 %v4004
    %v4261 = vunpack.c.l.b16 %v4005
    %v4262 = vunpack.c.l.b16 %v4006
    %v4263 = vunpack.c.l.b16 %v4007
    %v4264 = vunpack.c.l.b16 %v4008
    %v4265 = vunpack.c.l.b16 %v4009
    %v4266 = vunpack.c.l.b16 %v4010
    %v4267 = vunpack.c.l.b16 %v4011
    %v4268 = vunpack.c.l.b16 %v4012
    %v4269 = vunpack.c.l.b16 %v4013
    %v4270 = vunpack.c.l.b16 %v4014
    %v4271 = vunpack.c.l.b16 %v4015
    %v4272 = vunpack.c.l.b16 %v4016
    %v4273 = vunpack.c.l.b16 %v4017
    %v4274 = vunpack.c.l.b16 %v4018
    %v4275 = vunpack.c.l.b16 %v4019
    %v4276 = vunpack.c.l.b16 %v4020
    %v4277 = vpack.c.b16 %v4150, %v4149
    %v4278 = vpack.c.b16 %v4152, %v4151
    %v4279 = vpack.c.b16 %v4154, %v4153
    %v4280 = vpack.c.b16 %v4156, %v4155
    %v4281 = vpack.c.b16 %v4158, %v4157
    %v4282 = vpack.c.b16 %v4160, %v4159
    %v4283 = vpack.c.b16 %v4162, %v4161
    %v4284 = vpack.c.b16 %v4164, %v4163
    %v4285 = vpack.c.b16 %v4166, %v4165
    %v4286 = vpack.c.b16 %v4168, %v4167
    %v4287 = vpack.c.b16 %v4170, %v4169
    %v4288 = vpack.c.b16 %v4172, %v4171
    %v4289 = vpack.c.b16 %v4174, %v4173
    %v4290 = vpack.c.b16 %v4176, %v4175
    %v4291 = vpack.c.b16 %v4178, %v4177
    %v4292 = vpack.c.b16 %v4180, %v4179
    %v4293 = vpack.c.b16 %v4182, %v4181
    %v4294 = vpack.c.b16 %v4184, %v4183
    %v4295 = vpack.c.b16 %v4186, %v4185
    %v4296 = vpack.c.b16 %v4188, %v4187
    %v4297 = vpack.c.b16 %v4190, %v4189
    %v4298 = vpack.c.b16 %v4192, %v4191
    %v4299 = vpack.c.b16 %v4194, %v4193
    %v4300 = vpack.c.b16 %v4196, %v4195
    %v4301 = vpack.c.b16 %v4198, %v4197
    %v4302 = vpack.c.b16 %v4200, %v4199
    %v4303 = vpack.c.b16 %v4202, %v4201
    %v4304 = vpack.c.b16 %v4204, %v4203
    %v4305 = vpack.c.b16 %v4206, %v4205
    %v4306 = vpack.c.b16 %v4208, %v4207
    %v4307 = vpack.c.b16 %v4210, %v4209
    %v4308 = vpack.c.b16 %v4212, %v4211
    %v4309 = vpack.c.b16 %v4214, %v4213
    %v4310 = vpack.c.b16 %v4216, %v4215
    %v4311 = vpack.c.b16 %v4218, %v4217
    %v4312 = vpack.c.b16 %v4220, %v4219
    %v4313 = vpack.c.b16 %v4222, %v4221
    %v4314 = vpack.c.b16 %v4224, %v4223
    %v4315 = vpack.c.b16 %v4226, %v4225
    %v4316 = vpack.c.b16 %v4228, %v4227
    %v4317 = vpack.c.b16 %v4230, %v4229
    %v4318 = vpack.c.b16 %v4232, %v4231
    %v4319 = vpack.c.b16 %v4234, %v4233
    %v4320 = vpack.c.b16 %v4236, %v4235
    %v4321 = vpack.c.b16 %v4238, %v4237
    %v4322 = vpack.c.b16 %v4240, %v4239
    %v4323 = vpack.c.b16 %v4242, %v4241
    %v4324 = vpack.c.b16 %v4244, %v4243
    %v4325 = vpack.c.b16 %v4246, %v4245
    %v4326 = vpack.c.b16 %v4248, %v4247
    %v4327 = vpack.c.b16 %v4250, %v4249
    %v4328 = vpack.c.b16 %v4252, %v4251
    %v4329 = vpack.c.b16 %v4254, %v4253
    %v4330 = vpack.c.b16 %v4256, %v4255
    %v4331 = vpack.c.b16 %v4258, %v4257
    %v4332 = vpack.c.b16 %v4260, %v4259
    %v4333 = vpack.c.b16 %v4262, %v4261
    %v4334 = vpack.c.b16 %v4264, %v4263
    %v4335 = vpack.c.b16 %v4266, %v4265
    %v4336 = vpack.c.b16 %v4268, %v4267
    %v4337 = vpack.c.b16 %v4270, %v4269
    %v4338 = vpack.c.b16 %v4272, %v4271
    %v4339 = vpack.c.b16 %v4274, %v4273
    %v4340 = vpack.c.b16 %v4276, %v4275
    %4405 = vmatprep.subr.bf16.mxu0 0
    %4406 = vmatpush1.bf16.msra.mxu0 %v4284
    %4407 = vmatprep.subr.bf16.mxu0 0
    %4408 = vmatpush1.bf16.msra.mxu0 %v4283
    %4409 = vmatprep.subr.bf16.mxu0 0
    %4410 = vmatpush1.bf16.msra.mxu0 %v4282
    %4411 = vmatprep.subr.bf16.mxu0 0
    %4412 = vmatpush1.bf16.msra.mxu0 %v4281
    %4413 = vmatprep.subr.bf16.mxu0 0
    %4414 = vmatpush1.bf16.msra.mxu0 %v4280
    %4415 = vmatprep.subr.bf16.mxu0 0
    %4416 = vmatpush1.bf16.msra.mxu0 %v4279
    %4417 = vmatprep.subr.bf16.mxu0 0
    %4418 = vmatpush1.bf16.msra.mxu0 %v4278
    %4419 = vmatprep.subr.bf16.mxu0 0
    %4420 = vmatpush1.bf16.msra.mxu0 %v4277
    %4421 = vmatprep.subr.bf16.mxu0 0
    %4422 = vmatpush2.bf16.msra.mxu0 %v4292
    %4423 = vmatprep.subr.bf16.mxu0 0
    %4424 = vmatpush2.bf16.msra.mxu0 %v4291
    %4425 = vmatprep.subr.bf16.mxu0 0
    %4426 = vmatpush2.bf16.msra.mxu0 %v4290
    %4427 = vmatprep.subr.bf16.mxu0 0
    %4428 = vmatpush2.bf16.msra.mxu0 %v4289
    %4429 = vmatprep.subr.bf16.mxu0 0
    %4430 = vmatpush2.bf16.msra.mxu0 %v4288
    %4431 = vmatprep.subr.bf16.mxu0 0
    %4432 = vmatpush2.bf16.msra.mxu0 %v4287
    %4433 = vmatprep.subr.bf16.mxu0 0
    %4434 = vmatpush2.bf16.msra.mxu0 %v4286
    %4435 = vmatprep.subr.bf16.mxu0 0
    %4436 = vmatpush2.bf16.msra.mxu0 %v4285
    %4437 = vmatprep.mubr.bf16.mxu0 %v3886
    %4438 = vmatmul.mubr.bf16.gmra.mxu0 %v3885
    %v4439 = vpop.f32.mrf.mxu0
    %v4440 = vadd.f32 0.0, %v4439
    %v4441 = vpop.f32.mrf.mxu0
    %v4442 = vpop.f32.mrf.mxu0
    %v4443 = vpop.f32.mrf.mxu0
    %4444 = vdwg.mxu0
    %4445 = vmatprep.subr.bf16.mxu0 0
    %4446 = vmatpush1.bf16.msra.mxu0 %v4300
    %4447 = vmatprep.subr.bf16.mxu0 0
    %4448 = vmatpush1.bf16.msra.mxu0 %v4299
    %4449 = vmatprep.subr.bf16.mxu0 0
    %4450 = vmatpush1.bf16.msra.mxu0 %v4298
    %4451 = vmatprep.subr.bf16.mxu0 0
    %4452 = vmatpush1.bf16.msra.mxu0 %v4297
    %4453 = vmatprep.subr.bf16.mxu0 0
    %4454 = vmatpush1.bf16.msra.mxu0 %v4296
    %4455 = vmatprep.subr.bf16.mxu0 0
    %4456 = vmatpush1.bf16.msra.mxu0 %v4295
    %4457 = vmatprep.subr.bf16.mxu0 0
    %4458 = vmatpush1.bf16.msra.mxu0 %v4294
    %4459 = vmatprep.subr.bf16.mxu0 0
    %4460 = vmatpush1.bf16.msra.mxu0 %v4293
    %4461 = vmatprep.subr.bf16.mxu0 0
    %4462 = vmatpush2.bf16.msra.mxu0 %v4308
    %4463 = vmatprep.subr.bf16.mxu0 0
    %4464 = vmatpush2.bf16.msra.mxu0 %v4307
    %4465 = vmatprep.subr.bf16.mxu0 0
    %4466 = vmatpush2.bf16.msra.mxu0 %v4306
    %4467 = vmatprep.subr.bf16.mxu0 0
    %4468 = vmatpush2.bf16.msra.mxu0 %v4305
    %4469 = vmatprep.subr.bf16.mxu0 0
    %4470 = vmatpush2.bf16.msra.mxu0 %v4304
    %4471 = vmatprep.subr.bf16.mxu0 0
    %4472 = vmatpush2.bf16.msra.mxu0 %v4303
    %4473 = vmatprep.subr.bf16.mxu0 0
    %4474 = vmatpush2.bf16.msra.mxu0 %v4302
    %4475 = vmatprep.subr.bf16.mxu0 0
    %4476 = vmatpush2.bf16.msra.mxu0 %v4301
    %4477 = vmatprep.mubr.bf16.mxu0 %v3888
    %4478 = vmatmul.mubr.bf16.gmra.mxu0 %v3887
    %v4479 = vpop.f32.mrf.mxu0
    %v4480 = vadd.f32 %v4440, %v4479
    %v4481 = vpop.f32.mrf.mxu0
    %v4482 = vpop.f32.mrf.mxu0
    %v4483 = vpop.f32.mrf.mxu0
    %4484 = vdwg.mxu0
    %4485 = vmatprep.subr.bf16.mxu0 0
    %4486 = vmatpush1.bf16.msra.mxu0 %v4316
    %4487 = vmatprep.subr.bf16.mxu0 0
    %4488 = vmatpush1.bf16.msra.mxu0 %v4315
    %4489 = vmatprep.subr.bf16.mxu0 0
    %4490 = vmatpush1.bf16.msra.mxu0 %v4314
    %4491 = vmatprep.subr.bf16.mxu0 0
    %4492 = vmatpush1.bf16.msra.mxu0 %v4313
    %4493 = vmatprep.subr.bf16.mxu0 0
    %4494 = vmatpush1.bf16.msra.mxu0 %v4312
    %4495 = vmatprep.subr.bf16.mxu0 0
    %4496 = vmatpush1.bf16.msra.mxu0 %v4311
    %4497 = vmatprep.subr.bf16.mxu0 0
    %4498 = vmatpush1.bf16.msra.mxu0 %v4310
    %4499 = vmatprep.subr.bf16.mxu0 0
    %4500 = vmatpush1.bf16.msra.mxu0 %v4309
    %4501 = vmatprep.subr.bf16.mxu0 0
    %4502 = vmatpush2.bf16.msra.mxu0 %v4324
    %4503 = vmatprep.subr.bf16.mxu0 0
    %4504 = vmatpush2.bf16.msra.mxu0 %v4323
    %4505 = vmatprep.subr.bf16.mxu0 0
    %4506 = vmatpush2.bf16.msra.mxu0 %v4322
    %4507 = vmatprep.subr.bf16.mxu0 0
    %4508 = vmatpush2.bf16.msra.mxu0 %v4321
    %4509 = vmatprep.subr.bf16.mxu0 0
    %4510 = vmatpush2.bf16.msra.mxu0 %v4320
    %4511 = vmatprep.subr.bf16.mxu0 0
    %4512 = vmatpush2.bf16.msra.mxu0 %v4319
    %4513 = vmatprep.subr.bf16.mxu0 0
    %4514 = vmatpush2.bf16.msra.mxu0 %v4318
    %4515 = vmatprep.subr.bf16.mxu0 0
    %4516 = vmatpush2.bf16.msra.mxu0 %v4317
    %4517 = vmatprep.mubr.bf16.mxu0 %v3890
    %4518 = vmatmul.mubr.bf16.gmra.mxu0 %v3889
    %v4519 = vpop.f32.mrf.mxu0
    %v4520 = vadd.f32 %v4480, %v4519
    %v4521 = vpop.f32.mrf.mxu0
    %v4522 = vpop.f32.mrf.mxu0
    %v4523 = vpop.f32.mrf.mxu0
    %4524 = vdwg.mxu0
    %4525 = vmatprep.subr.bf16.mxu0 0
    %4526 = vmatpush1.bf16.msra.mxu0 %v4332
    %4527 = vmatprep.subr.bf16.mxu0 0
    %4528 = vmatpush1.bf16.msra.mxu0 %v4331
    %4529 = vmatprep.subr.bf16.mxu0 0
    %4530 = vmatpush1.bf16.msra.mxu0 %v4330
    %4531 = vmatprep.subr.bf16.mxu0 0
    %4532 = vmatpush1.bf16.msra.mxu0 %v4329
    %4533 = vmatprep.subr.bf16.mxu0 0
    %4534 = vmatpush1.bf16.msra.mxu0 %v4328
    %4535 = vmatprep.subr.bf16.mxu0 0
    %4536 = vmatpush1.bf16.msra.mxu0 %v4327
    %4537 = vmatprep.subr.bf16.mxu0 0
    %4538 = vmatpush1.bf16.msra.mxu0 %v4326
    %4539 = vmatprep.subr.bf16.mxu0 0
    %4540 = vmatpush1.bf16.msra.mxu0 %v4325
    %4541 = vmatprep.subr.bf16.mxu0 0
    %4542 = vmatpush2.bf16.msra.mxu0 %v4340
    %4543 = vmatprep.subr.bf16.mxu0 0
    %4544 = vmatpush2.bf16.msra.mxu0 %v4339
    %4545 = vmatprep.subr.bf16.mxu0 0
    %4546 = vmatpush2.bf16.msra.mxu0 %v4338
    %4547 = vmatprep.subr.bf16.mxu0 0
    %4548 = vmatpush2.bf16.msra.mxu0 %v4337
    %4549 = vmatprep.subr.bf16.mxu0 0
    %4550 = vmatpush2.bf16.msra.mxu0 %v4336
    %4551 = vmatprep.subr.bf16.mxu0 0
    %4552 = vmatpush2.bf16.msra.mxu0 %v4335
    %4553 = vmatprep.subr.bf16.mxu0 0
    %4554 = vmatpush2.bf16.msra.mxu0 %v4334
    %4555 = vmatprep.subr.bf16.mxu0 0
    %4556 = vmatpush2.bf16.msra.mxu0 %v4333
    %4557 = vmatprep.mubr.bf16.mxu0 %v3892
    %4558 = vmatmul.mubr.bf16.gmra.mxu0 %v3891
    %v4559 = vpop.f32.mrf.mxu0
    %v4560 = vadd.f32 %v4520, %v4559
    %v4561 = vpop.f32.mrf.mxu0
    %v4562 = vpop.f32.mrf.mxu0
    %v4563 = vpop.f32.mrf.mxu0
    %4564 = vdwg.mxu0
    %4565 = vst [vmem:[%s12] sm:$0xff] %v4560
    %v4566 = vld [vmem:[#allocation10] sm:$0xff]
    %v4567 = vld [vmem:[#allocation10 + $0x8] sm:$0xff]
    %v4568 = vld [vmem:[#allocation10 + $0x10] sm:$0xff]
    %v4569 = vld [vmem:[#allocation10 + $0x18] sm:$0xff]
    %v4570 = vld [vmem:[#allocation10 + $0x20] sm:$0xff]
    %v4571 = vld [vmem:[#allocation10 + $0x28] sm:$0xff]
    %v4572 = vld [vmem:[#allocation10 + $0x30] sm:$0xff]
    %v4573 = vld [vmem:[#allocation10 + $0x38] sm:$0xff]
    %v4574 = vld [vmem:[#allocation10 + $0x40] sm:$0xff]
    %v4575 = vld [vmem:[#allocation10 + $0x48] sm:$0xff]
    %v4576 = vld [vmem:[#allocation10 + $0x50] sm:$0xff]
    %v4577 = vld [vmem:[#allocation10 + $0x58] sm:$0xff]
    %v4578 = vld [vmem:[#allocation10 + $0x60] sm:$0xff]
    %v4579 = vld [vmem:[#allocation10 + $0x68] sm:$0xff]
    %v4580 = vld [vmem:[#allocation10 + $0x70] sm:$0xff]
    %v4581 = vld [vmem:[#allocation10 + $0x78] sm:$0xff]
    %v4582 = vld [vmem:[#allocation10 + $0x80] sm:$0xff]
    %v4583 = vld [vmem:[#allocation10 + $0x88] sm:$0xff]
    %v4584 = vld [vmem:[#allocation10 + $0x90] sm:$0xff]
    %v4585 = vld [vmem:[#allocation10 + $0x98] sm:$0xff]
    %v4586 = vld [vmem:[#allocation10 + $0xa0] sm:$0xff]
    %v4587 = vld [vmem:[#allocation10 + $0xa8] sm:$0xff]
    %v4588 = vld [vmem:[#allocation10 + $0xb0] sm:$0xff]
    %v4589 = vld [vmem:[#allocation10 + $0xb8] sm:$0xff]
    %v4590 = vld [vmem:[#allocation10 + $0xc0] sm:$0xff]
    %v4591 = vld [vmem:[#allocation10 + $0xc8] sm:$0xff]
    %v4592 = vld [vmem:[#allocation10 + $0xd0] sm:$0xff]
    %v4593 = vld [vmem:[#allocation10 + $0xd8] sm:$0xff]
    %v4594 = vld [vmem:[#allocation10 + $0xe0] sm:$0xff]
    %v4595 = vld [vmem:[#allocation10 + $0xe8] sm:$0xff]
    %v4596 = vld [vmem:[#allocation10 + $0xf0] sm:$0xff]
    %v4597 = vld [vmem:[#allocation10 + $0xf8] sm:$0xff]
    %v4598 = vld [vmem:[#allocation10 + $0x100] sm:$0xff]
    %v4599 = vld [vmem:[#allocation10 + $0x108] sm:$0xff]
    %v4600 = vld [vmem:[#allocation10 + $0x110] sm:$0xff]
    %v4601 = vld [vmem:[#allocation10 + $0x118] sm:$0xff]
    %v4602 = vld [vmem:[#allocation10 + $0x120] sm:$0xff]
    %v4603 = vld [vmem:[#allocation10 + $0x128] sm:$0xff]
    %v4604 = vld [vmem:[#allocation10 + $0x130] sm:$0xff]
    %v4605 = vld [vmem:[#allocation10 + $0x138] sm:$0xff]
    %v4606 = vld [vmem:[#allocation10 + $0x140] sm:$0xff]
    %v4607 = vld [vmem:[#allocation10 + $0x148] sm:$0xff]
    %v4608 = vld [vmem:[#allocation10 + $0x150] sm:$0xff]
    %v4609 = vld [vmem:[#allocation10 + $0x158] sm:$0xff]
    %v4610 = vld [vmem:[#allocation10 + $0x160] sm:$0xff]
    %v4611 = vld [vmem:[#allocation10 + $0x168] sm:$0xff]
    %v4612 = vld [vmem:[#allocation10 + $0x170] sm:$0xff]
    %v4613 = vld [vmem:[#allocation10 + $0x178] sm:$0xff]
    %v4614 = vld [vmem:[#allocation10 + $0x180] sm:$0xff]
    %v4615 = vld [vmem:[#allocation10 + $0x188] sm:$0xff]
    %v4616 = vld [vmem:[#allocation10 + $0x190] sm:$0xff]
    %v4617 = vld [vmem:[#allocation10 + $0x198] sm:$0xff]
    %v4618 = vld [vmem:[#allocation10 + $0x1a0] sm:$0xff]
    %v4619 = vld [vmem:[#allocation10 + $0x1a8] sm:$0xff]
    %v4620 = vld [vmem:[#allocation10 + $0x1b0] sm:$0xff]
    %v4621 = vld [vmem:[#allocation10 + $0x1b8] sm:$0xff]
    %v4622 = vld [vmem:[#allocation10 + $0x1c0] sm:$0xff]
    %v4623 = vld [vmem:[#allocation10 + $0x1c8] sm:$0xff]
    %v4624 = vld [vmem:[#allocation10 + $0x1d0] sm:$0xff]
    %v4625 = vld [vmem:[#allocation10 + $0x1d8] sm:$0xff]
    %v4626 = vld [vmem:[#allocation10 + $0x1e0] sm:$0xff]
    %v4627 = vld [vmem:[#allocation10 + $0x1e8] sm:$0xff]
    %v4628 = vld [vmem:[#allocation10 + $0x1f0] sm:$0xff]
    %v4629 = vld [vmem:[#allocation10 + $0x1f8] sm:$0xff]
    %v4630 = vld [vmem:[#allocation10 + $0x200] sm:$0xff]
    %v4631 = vld [vmem:[#allocation10 + $0x208] sm:$0xff]
    %v4632 = vld [vmem:[#allocation10 + $0x210] sm:$0xff]
    %v4633 = vld [vmem:[#allocation10 + $0x218] sm:$0xff]
    %v4634 = vld [vmem:[#allocation10 + $0x220] sm:$0xff]
    %v4635 = vld [vmem:[#allocation10 + $0x228] sm:$0xff]
    %v4636 = vld [vmem:[#allocation10 + $0x230] sm:$0xff]
    %v4637 = vld [vmem:[#allocation10 + $0x238] sm:$0xff]
    %v4638 = vld [vmem:[#allocation10 + $0x240] sm:$0xff]
    %v4639 = vld [vmem:[#allocation10 + $0x248] sm:$0xff]
    %v4640 = vld [vmem:[#allocation10 + $0x250] sm:$0xff]
    %v4641 = vld [vmem:[#allocation10 + $0x258] sm:$0xff]
    %v4642 = vld [vmem:[#allocation10 + $0x260] sm:$0xff]
    %v4643 = vld [vmem:[#allocation10 + $0x268] sm:$0xff]
    %v4644 = vld [vmem:[#allocation10 + $0x270] sm:$0xff]
    %v4645 = vld [vmem:[#allocation10 + $0x278] sm:$0xff]
    %v4646 = vld [vmem:[#allocation10 + $0x280] sm:$0xff]
    %v4647 = vld [vmem:[#allocation10 + $0x288] sm:$0xff]
    %v4648 = vld [vmem:[#allocation10 + $0x290] sm:$0xff]
    %v4649 = vld [vmem:[#allocation10 + $0x298] sm:$0xff]
    %v4650 = vld [vmem:[#allocation10 + $0x2a0] sm:$0xff]
    %v4651 = vld [vmem:[#allocation10 + $0x2a8] sm:$0xff]
    %v4652 = vld [vmem:[#allocation10 + $0x2b0] sm:$0xff]
    %v4653 = vld [vmem:[#allocation10 + $0x2b8] sm:$0xff]
    %v4654 = vld [vmem:[#allocation10 + $0x2c0] sm:$0xff]
    %v4655 = vld [vmem:[#allocation10 + $0x2c8] sm:$0xff]
    %v4656 = vld [vmem:[#allocation10 + $0x2d0] sm:$0xff]
    %v4657 = vld [vmem:[#allocation10 + $0x2d8] sm:$0xff]
    %v4658 = vld [vmem:[#allocation10 + $0x2e0] sm:$0xff]
    %v4659 = vld [vmem:[#allocation10 + $0x2e8] sm:$0xff]
    %v4660 = vld [vmem:[#allocation10 + $0x2f0] sm:$0xff]
    %v4661 = vld [vmem:[#allocation10 + $0x2f8] sm:$0xff]
    %v4662 = vld [vmem:[#allocation10 + $0x300] sm:$0xff]
    %v4663 = vld [vmem:[#allocation10 + $0x308] sm:$0xff]
    %v4664 = vld [vmem:[#allocation10 + $0x310] sm:$0xff]
    %v4665 = vld [vmem:[#allocation10 + $0x318] sm:$0xff]
    %v4666 = vld [vmem:[#allocation10 + $0x320] sm:$0xff]
    %v4667 = vld [vmem:[#allocation10 + $0x328] sm:$0xff]
    %v4668 = vld [vmem:[#allocation10 + $0x330] sm:$0xff]
    %v4669 = vld [vmem:[#allocation10 + $0x338] sm:$0xff]
    %v4670 = vld [vmem:[#allocation10 + $0x340] sm:$0xff]
    %v4671 = vld [vmem:[#allocation10 + $0x348] sm:$0xff]
    %v4672 = vld [vmem:[#allocation10 + $0x350] sm:$0xff]
    %v4673 = vld [vmem:[#allocation10 + $0x358] sm:$0xff]
    %v4674 = vld [vmem:[#allocation10 + $0x360] sm:$0xff]
    %v4675 = vld [vmem:[#allocation10 + $0x368] sm:$0xff]
    %v4676 = vld [vmem:[#allocation10 + $0x370] sm:$0xff]
    %v4677 = vld [vmem:[#allocation10 + $0x378] sm:$0xff]
    %v4678 = vld [vmem:[#allocation10 + $0x380] sm:$0xff]
    %v4679 = vld [vmem:[#allocation10 + $0x388] sm:$0xff]
    %v4680 = vld [vmem:[#allocation10 + $0x390] sm:$0xff]
    %v4681 = vld [vmem:[#allocation10 + $0x398] sm:$0xff]
    %v4682 = vld [vmem:[#allocation10 + $0x3a0] sm:$0xff]
    %v4683 = vld [vmem:[#allocation10 + $0x3a8] sm:$0xff]
    %v4684 = vld [vmem:[#allocation10 + $0x3b0] sm:$0xff]
    %v4685 = vld [vmem:[#allocation10 + $0x3b8] sm:$0xff]
    %v4686 = vld [vmem:[#allocation10 + $0x3c0] sm:$0xff]
    %v4687 = vld [vmem:[#allocation10 + $0x3c8] sm:$0xff]
    %v4688 = vld [vmem:[#allocation10 + $0x3d0] sm:$0xff]
    %v4689 = vld [vmem:[#allocation10 + $0x3d8] sm:$0xff]
    %v4690 = vld [vmem:[#allocation10 + $0x3e0] sm:$0xff]
    %v4691 = vld [vmem:[#allocation10 + $0x3e8] sm:$0xff]
    %v4692 = vld [vmem:[#allocation10 + $0x3f0] sm:$0xff]
    %v4693 = vld [vmem:[#allocation10 + $0x3f8] sm:$0xff]
    %v4694 = vld [vmem:[#allocation10 + $0x400] sm:$0xff]
    %v4695 = vld [vmem:[#allocation10 + $0x408] sm:$0xff]
    %v4696 = vld [vmem:[#allocation10 + $0x410] sm:$0xff]
    %v4697 = vld [vmem:[#allocation10 + $0x418] sm:$0xff]
    %v4698 = vld [vmem:[#allocation10 + $0x420] sm:$0xff]
    %v4699 = vld [vmem:[#allocation10 + $0x428] sm:$0xff]
    %v4700 = vld [vmem:[#allocation10 + $0x430] sm:$0xff]
    %v4701 = vld [vmem:[#allocation10 + $0x438] sm:$0xff]
    %v4702 = vld [vmem:[#allocation10 + $0x440] sm:$0xff]
    %v4703 = vld [vmem:[#allocation10 + $0x448] sm:$0xff]
    %v4704 = vld [vmem:[#allocation10 + $0x450] sm:$0xff]
    %v4705 = vld [vmem:[#allocation10 + $0x458] sm:$0xff]
    %v4706 = vld [vmem:[#allocation10 + $0x460] sm:$0xff]
    %v4707 = vld [vmem:[#allocation10 + $0x468] sm:$0xff]
    %v4708 = vld [vmem:[#allocation10 + $0x470] sm:$0xff]
    %v4709 = vld [vmem:[#allocation10 + $0x478] sm:$0xff]
    %v4710 = vld [vmem:[#allocation10 + $0x480] sm:$0xff]
    %v4711 = vld [vmem:[#allocation10 + $0x488] sm:$0xff]
    %v4712 = vld [vmem:[#allocation10 + $0x490] sm:$0xff]
    %v4713 = vld [vmem:[#allocation10 + $0x498] sm:$0xff]
    %v4714 = vld [vmem:[#allocation10 + $0x4a0] sm:$0xff]
    %v4715 = vld [vmem:[#allocation10 + $0x4a8] sm:$0xff]
    %v4716 = vld [vmem:[#allocation10 + $0x4b0] sm:$0xff]
    %v4717 = vld [vmem:[#allocation10 + $0x4b8] sm:$0xff]
    %v4718 = vld [vmem:[#allocation10 + $0x4c0] sm:$0xff]
    %v4719 = vld [vmem:[#allocation10 + $0x4c8] sm:$0xff]
    %v4720 = vld [vmem:[#allocation10 + $0x4d0] sm:$0xff]
    %v4721 = vld [vmem:[#allocation10 + $0x4d8] sm:$0xff]
    %v4722 = vld [vmem:[#allocation10 + $0x4e0] sm:$0xff]
    %v4723 = vld [vmem:[#allocation10 + $0x4e8] sm:$0xff]
    %v4724 = vld [vmem:[#allocation10 + $0x4f0] sm:$0xff]
    %v4725 = vld [vmem:[#allocation10 + $0x4f8] sm:$0xff]
    %v4726 = vld [vmem:[#allocation10 + $0x500] sm:$0xff]
    %v4727 = vld [vmem:[#allocation10 + $0x508] sm:$0xff]
    %v4728 = vld [vmem:[#allocation10 + $0x510] sm:$0xff]
    %v4729 = vld [vmem:[#allocation10 + $0x518] sm:$0xff]
    %v4730 = vld [vmem:[#allocation10 + $0x520] sm:$0xff]
    %v4731 = vld [vmem:[#allocation10 + $0x528] sm:$0xff]
    %v4732 = vld [vmem:[#allocation10 + $0x530] sm:$0xff]
    %v4733 = vld [vmem:[#allocation10 + $0x538] sm:$0xff]
    %v4734 = vld [vmem:[#allocation10 + $0x540] sm:$0xff]
    %v4735 = vld [vmem:[#allocation10 + $0x548] sm:$0xff]
    %v4736 = vld [vmem:[#allocation10 + $0x550] sm:$0xff]
    %v4737 = vld [vmem:[#allocation10 + $0x558] sm:$0xff]
    %v4738 = vld [vmem:[#allocation10 + $0x560] sm:$0xff]
    %v4739 = vld [vmem:[#allocation10 + $0x568] sm:$0xff]
    %v4740 = vld [vmem:[#allocation10 + $0x570] sm:$0xff]
    %v4741 = vld [vmem:[#allocation10 + $0x578] sm:$0xff]
    %v4742 = vld [vmem:[#allocation10 + $0x580] sm:$0xff]
    %v4743 = vld [vmem:[#allocation10 + $0x588] sm:$0xff]
    %v4744 = vld [vmem:[#allocation10 + $0x590] sm:$0xff]
    %v4745 = vld [vmem:[#allocation10 + $0x598] sm:$0xff]
    %v4746 = vld [vmem:[#allocation10 + $0x5a0] sm:$0xff]
    %v4747 = vld [vmem:[#allocation10 + $0x5a8] sm:$0xff]
    %v4748 = vld [vmem:[#allocation10 + $0x5b0] sm:$0xff]
    %v4749 = vld [vmem:[#allocation10 + $0x5b8] sm:$0xff]
    %v4750 = vld [vmem:[#allocation10 + $0x5c0] sm:$0xff]
    %v4751 = vld [vmem:[#allocation10 + $0x5c8] sm:$0xff]
    %v4752 = vld [vmem:[#allocation10 + $0x5d0] sm:$0xff]
    %v4753 = vld [vmem:[#allocation10 + $0x5d8] sm:$0xff]
    %v4754 = vld [vmem:[#allocation10 + $0x5e0] sm:$0xff]
    %v4755 = vld [vmem:[#allocation10 + $0x5e8] sm:$0xff]
    %v4756 = vld [vmem:[#allocation10 + $0x5f0] sm:$0xff]
    %v4757 = vld [vmem:[#allocation10 + $0x5f8] sm:$0xff]
    %v4758 = vld [vmem:[#allocation10 + $0x600] sm:$0xff]
    %v4759 = vld [vmem:[#allocation10 + $0x608] sm:$0xff]
    %v4760 = vld [vmem:[#allocation10 + $0x610] sm:$0xff]
    %v4761 = vld [vmem:[#allocation10 + $0x618] sm:$0xff]
    %v4762 = vld [vmem:[#allocation10 + $0x620] sm:$0xff]
    %v4763 = vld [vmem:[#allocation10 + $0x628] sm:$0xff]
    %v4764 = vld [vmem:[#allocation10 + $0x630] sm:$0xff]
    %v4765 = vld [vmem:[#allocation10 + $0x638] sm:$0xff]
    %v4766 = vld [vmem:[#allocation10 + $0x640] sm:$0xff]
    %v4767 = vld [vmem:[#allocation10 + $0x648] sm:$0xff]
    %v4768 = vld [vmem:[#allocation10 + $0x650] sm:$0xff]
    %v4769 = vld [vmem:[#allocation10 + $0x658] sm:$0xff]
    %v4770 = vld [vmem:[#allocation10 + $0x660] sm:$0xff]
    %v4771 = vld [vmem:[#allocation10 + $0x668] sm:$0xff]
    %v4772 = vld [vmem:[#allocation10 + $0x670] sm:$0xff]
    %v4773 = vld [vmem:[#allocation10 + $0x678] sm:$0xff]
    %v4774 = vld [vmem:[#allocation10 + $0x680] sm:$0xff]
    %v4775 = vld [vmem:[#allocation10 + $0x688] sm:$0xff]
    %v4776 = vld [vmem:[#allocation10 + $0x690] sm:$0xff]
    %v4777 = vld [vmem:[#allocation10 + $0x698] sm:$0xff]
    %v4778 = vld [vmem:[#allocation10 + $0x6a0] sm:$0xff]
    %v4779 = vld [vmem:[#allocation10 + $0x6a8] sm:$0xff]
    %v4780 = vld [vmem:[#allocation10 + $0x6b0] sm:$0xff]
    %v4781 = vld [vmem:[#allocation10 + $0x6b8] sm:$0xff]
    %v4782 = vld [vmem:[#allocation10 + $0x6c0] sm:$0xff]
    %v4783 = vld [vmem:[#allocation10 + $0x6c8] sm:$0xff]
    %v4784 = vld [vmem:[#allocation10 + $0x6d0] sm:$0xff]
    %v4785 = vld [vmem:[#allocation10 + $0x6d8] sm:$0xff]
    %v4786 = vld [vmem:[#allocation10 + $0x6e0] sm:$0xff]
    %v4787 = vld [vmem:[#allocation10 + $0x6e8] sm:$0xff]
    %v4788 = vld [vmem:[#allocation10 + $0x6f0] sm:$0xff]
    %v4789 = vld [vmem:[#allocation10 + $0x6f8] sm:$0xff]
    %v4790 = vld [vmem:[#allocation10 + $0x700] sm:$0xff]
    %v4791 = vld [vmem:[#allocation10 + $0x708] sm:$0xff]
    %v4792 = vld [vmem:[#allocation10 + $0x710] sm:$0xff]
    %v4793 = vld [vmem:[#allocation10 + $0x718] sm:$0xff]
    %v4794 = vld [vmem:[#allocation10 + $0x720] sm:$0xff]
    %v4795 = vld [vmem:[#allocation10 + $0x728] sm:$0xff]
    %v4796 = vld [vmem:[#allocation10 + $0x730] sm:$0xff]
    %v4797 = vld [vmem:[#allocation10 + $0x738] sm:$0xff]
    %v4798 = vld [vmem:[#allocation10 + $0x740] sm:$0xff]
    %v4799 = vld [vmem:[#allocation10 + $0x748] sm:$0xff]
    %v4800 = vld [vmem:[#allocation10 + $0x750] sm:$0xff]
    %v4801 = vld [vmem:[#allocation10 + $0x758] sm:$0xff]
    %v4802 = vld [vmem:[#allocation10 + $0x760] sm:$0xff]
    %v4803 = vld [vmem:[#allocation10 + $0x768] sm:$0xff]
    %v4804 = vld [vmem:[#allocation10 + $0x770] sm:$0xff]
    %v4805 = vld [vmem:[#allocation10 + $0x778] sm:$0xff]
    %v4806 = vld [vmem:[#allocation10 + $0x780] sm:$0xff]
    %v4807 = vld [vmem:[#allocation10 + $0x788] sm:$0xff]
    %v4808 = vld [vmem:[#allocation10 + $0x790] sm:$0xff]
    %v4809 = vld [vmem:[#allocation10 + $0x798] sm:$0xff]
    %v4810 = vld [vmem:[#allocation10 + $0x7a0] sm:$0xff]
    %v4811 = vld [vmem:[#allocation10 + $0x7a8] sm:$0xff]
    %v4812 = vld [vmem:[#allocation10 + $0x7b0] sm:$0xff]
    %v4813 = vld [vmem:[#allocation10 + $0x7b8] sm:$0xff]
    %v4814 = vld [vmem:[#allocation10 + $0x7c0] sm:$0xff]
    %v4815 = vld [vmem:[#allocation10 + $0x7c8] sm:$0xff]
    %v4816 = vld [vmem:[#allocation10 + $0x7d0] sm:$0xff]
    %v4817 = vld [vmem:[#allocation10 + $0x7d8] sm:$0xff]
    %v4818 = vld [vmem:[#allocation10 + $0x7e0] sm:$0xff]
    %v4819 = vld [vmem:[#allocation10 + $0x7e8] sm:$0xff]
    %v4820 = vld [vmem:[#allocation10 + $0x7f0] sm:$0xff]
    %v4821 = vld [vmem:[#allocation10 + $0x7f8] sm:$0xff]
    %v4822 = vld [vmem:[%s8] sm:$0xff]
    %v4824 = vlaneseq
    %v4825 = vshrl.u32 %v4824, 7
    %v4826 = vsub.s32 0, %v4825
    %v4827 = vrot.slane %v4822, %v4826
    %v4828 = vlaneseq
    %v4829 = vshrl.u32 %v4828, 7
    %v4830 = vsub.s32 1, %v4829
    %v4831 = vrot.slane %v4822, %v4830
    %v4832 = vlaneseq
    %v4833 = vshrl.u32 %v4832, 7
    %v4834 = vsub.s32 2, %v4833
    %v4835 = vrot.slane %v4822, %v4834
    %v4836 = vlaneseq
    %v4837 = vshrl.u32 %v4836, 7
    %v4838 = vsub.s32 3, %v4837
    %v4839 = vrot.slane %v4822, %v4838
    %v4840 = vlaneseq
    %v4841 = vshrl.u32 %v4840, 7
    %v4842 = vsub.s32 4, %v4841
    %v4843 = vrot.slane %v4822, %v4842
    %v4844 = vlaneseq
    %v4845 = vshrl.u32 %v4844, 7
    %v4846 = vsub.s32 5, %v4845
    %v4847 = vrot.slane %v4822, %v4846
    %v4848 = vlaneseq
    %v4849 = vshrl.u32 %v4848, 7
    %v4850 = vsub.s32 6, %v4849
    %v4851 = vrot.slane %v4822, %v4850
    %v4852 = vlaneseq
    %v4853 = vshrl.u32 %v4852, 7
    %v4854 = vsub.s32 7, %v4853
    %v4855 = vrot.slane %v4822, %v4854
    %v5120 = vunpack.c.l.b16 %v4566
    %v5121 = vunpack.c.h.b16 %v4566
    %v5122 = vunpack.c.l.b16 %v4567
    %v5123 = vunpack.c.h.b16 %v4567
    %v5124 = vunpack.c.l.b16 %v4568
    %v5125 = vunpack.c.h.b16 %v4568
    %v5126 = vunpack.c.l.b16 %v4569
    %v5127 = vunpack.c.h.b16 %v4569
    %v5128 = vunpack.c.l.b16 %v4570
    %v5129 = vunpack.c.h.b16 %v4570
    %v5130 = vunpack.c.l.b16 %v4571
    %v5131 = vunpack.c.h.b16 %v4571
    %v5132 = vunpack.c.l.b16 %v4572
    %v5133 = vunpack.c.h.b16 %v4572
    %v5134 = vunpack.c.l.b16 %v4573
    %v5135 = vunpack.c.h.b16 %v4573
    %v5136 = vunpack.c.l.b16 %v4574
    %v5137 = vunpack.c.h.b16 %v4574
    %v5138 = vunpack.c.l.b16 %v4575
    %v5139 = vunpack.c.h.b16 %v4575
    %v5140 = vunpack.c.l.b16 %v4576
    %v5141 = vunpack.c.h.b16 %v4576
    %v5142 = vunpack.c.l.b16 %v4577
    %v5143 = vunpack.c.h.b16 %v4577
    %v5144 = vunpack.c.l.b16 %v4578
    %v5145 = vunpack.c.h.b16 %v4578
    %v5146 = vunpack.c.l.b16 %v4579
    %v5147 = vunpack.c.h.b16 %v4579
    %v5148 = vunpack.c.l.b16 %v4580
    %v5149 = vunpack.c.h.b16 %v4580
    %v5150 = vunpack.c.l.b16 %v4581
    %v5151 = vunpack.c.h.b16 %v4581
    %v5152 = vunpack.c.l.b16 %v4582
    %v5153 = vunpack.c.h.b16 %v4582
    %v5154 = vunpack.c.l.b16 %v4583
    %v5155 = vunpack.c.h.b16 %v4583
    %v5156 = vunpack.c.l.b16 %v4584
    %v5157 = vunpack.c.h.b16 %v4584
    %v5158 = vunpack.c.l.b16 %v4585
    %v5159 = vunpack.c.h.b16 %v4585
    %v5160 = vunpack.c.l.b16 %v4586
    %v5161 = vunpack.c.h.b16 %v4586
    %v5162 = vunpack.c.l.b16 %v4587
    %v5163 = vunpack.c.h.b16 %v4587
    %v5164 = vunpack.c.l.b16 %v4588
    %v5165 = vunpack.c.h.b16 %v4588
    %v5166 = vunpack.c.l.b16 %v4589
    %v5167 = vunpack.c.h.b16 %v4589
    %v5168 = vunpack.c.l.b16 %v4590
    %v5169 = vunpack.c.h.b16 %v4590
    %v5170 = vunpack.c.l.b16 %v4591
    %v5171 = vunpack.c.h.b16 %v4591
    %v5172 = vunpack.c.l.b16 %v4592
    %v5173 = vunpack.c.h.b16 %v4592
    %v5174 = vunpack.c.l.b16 %v4593
    %v5175 = vunpack.c.h.b16 %v4593
    %v5176 = vunpack.c.l.b16 %v4594
    %v5177 = vunpack.c.h.b16 %v4594
    %v5178 = vunpack.c.l.b16 %v4595
    %v5179 = vunpack.c.h.b16 %v4595
    %v5180 = vunpack.c.l.b16 %v4596
    %v5181 = vunpack.c.h.b16 %v4596
    %v5182 = vunpack.c.l.b16 %v4597
    %v5183 = vunpack.c.h.b16 %v4597
    %v5184 = vunpack.c.l.b16 %v4598
    %v5185 = vunpack.c.h.b16 %v4598
    %v5186 = vunpack.c.l.b16 %v4599
    %v5187 = vunpack.c.h.b16 %v4599
    %v5188 = vunpack.c.l.b16 %v4600
    %v5189 = vunpack.c.h.b16 %v4600
    %v5190 = vunpack.c.l.b16 %v4601
    %v5191 = vunpack.c.h.b16 %v4601
    %v5192 = vunpack.c.l.b16 %v4602
    %v5193 = vunpack.c.h.b16 %v4602
    %v5194 = vunpack.c.l.b16 %v4603
    %v5195 = vunpack.c.h.b16 %v4603
    %v5196 = vunpack.c.l.b16 %v4604
    %v5197 = vunpack.c.h.b16 %v4604
    %v5198 = vunpack.c.l.b16 %v4605
    %v5199 = vunpack.c.h.b16 %v4605
    %v5200 = vunpack.c.l.b16 %v4606
    %v5201 = vunpack.c.h.b16 %v4606
    %v5202 = vunpack.c.l.b16 %v4607
    %v5203 = vunpack.c.h.b16 %v4607
    %v5204 = vunpack.c.l.b16 %v4608
    %v5205 = vunpack.c.h.b16 %v4608
    %v5206 = vunpack.c.l.b16 %v4609
    %v5207 = vunpack.c.h.b16 %v4609
    %v5208 = vunpack.c.l.b16 %v4610
    %v5209 = vunpack.c.h.b16 %v4610
    %v5210 = vunpack.c.l.b16 %v4611
    %v5211 = vunpack.c.h.b16 %v4611
    %v5212 = vunpack.c.l.b16 %v4612
    %v5213 = vunpack.c.h.b16 %v4612
    %v5214 = vunpack.c.l.b16 %v4613
    %v5215 = vunpack.c.h.b16 %v4613
    %v5216 = vunpack.c.l.b16 %v4614
    %v5217 = vunpack.c.h.b16 %v4614
    %v5218 = vunpack.c.l.b16 %v4615
    %v5219 = vunpack.c.h.b16 %v4615
    %v5220 = vunpack.c.l.b16 %v4616
    %v5221 = vunpack.c.h.b16 %v4616
    %v5222 = vunpack.c.l.b16 %v4617
    %v5223 = vunpack.c.h.b16 %v4617
    %v5224 = vunpack.c.l.b16 %v4618
    %v5225 = vunpack.c.h.b16 %v4618
    %v5226 = vunpack.c.l.b16 %v4619
    %v5227 = vunpack.c.h.b16 %v4619
    %v5228 = vunpack.c.l.b16 %v4620
    %v5229 = vunpack.c.h.b16 %v4620
    %v5230 = vunpack.c.l.b16 %v4621
    %v5231 = vunpack.c.h.b16 %v4621
    %v5232 = vunpack.c.l.b16 %v4622
    %v5233 = vunpack.c.h.b16 %v4622
    %v5234 = vunpack.c.l.b16 %v4623
    %v5235 = vunpack.c.h.b16 %v4623
    %v5236 = vunpack.c.l.b16 %v4624
    %v5237 = vunpack.c.h.b16 %v4624
    %v5238 = vunpack.c.l.b16 %v4625
    %v5239 = vunpack.c.h.b16 %v4625
    %v5240 = vunpack.c.l.b16 %v4626
    %v5241 = vunpack.c.h.b16 %v4626
    %v5242 = vunpack.c.l.b16 %v4627
    %v5243 = vunpack.c.h.b16 %v4627
    %v5244 = vunpack.c.l.b16 %v4628
    %v5245 = vunpack.c.h.b16 %v4628
    %v5246 = vunpack.c.l.b16 %v4629
    %v5247 = vunpack.c.h.b16 %v4629
    %v5248 = vunpack.c.l.b16 %v4630
    %v5249 = vunpack.c.h.b16 %v4630
    %v5250 = vunpack.c.l.b16 %v4631
    %v5251 = vunpack.c.h.b16 %v4631
    %v5252 = vunpack.c.l.b16 %v4632
    %v5253 = vunpack.c.h.b16 %v4632
    %v5254 = vunpack.c.l.b16 %v4633
    %v5255 = vunpack.c.h.b16 %v4633
    %v5256 = vunpack.c.l.b16 %v4634
    %v5257 = vunpack.c.h.b16 %v4634
    %v5258 = vunpack.c.l.b16 %v4635
    %v5259 = vunpack.c.h.b16 %v4635
    %v5260 = vunpack.c.l.b16 %v4636
    %v5261 = vunpack.c.h.b16 %v4636
    %v5262 = vunpack.c.l.b16 %v4637
    %v5263 = vunpack.c.h.b16 %v4637
    %v5264 = vunpack.c.l.b16 %v4638
    %v5265 = vunpack.c.h.b16 %v4638
    %v5266 = vunpack.c.l.b16 %v4639
    %v5267 = vunpack.c.h.b16 %v4639
    %v5268 = vunpack.c.l.b16 %v4640
    %v5269 = vunpack.c.h.b16 %v4640
    %v5270 = vunpack.c.l.b16 %v4641
    %v5271 = vunpack.c.h.b16 %v4641
    %v5272 = vunpack.c.l.b16 %v4642
    %v5273 = vunpack.c.h.b16 %v4642
    %v5274 = vunpack.c.l.b16 %v4643
    %v5275 = vunpack.c.h.b16 %v4643
    %v5276 = vunpack.c.l.b16 %v4644
    %v5277 = vunpack.c.h.b16 %v4644
    %v5278 = vunpack.c.l.b16 %v4645
    %v5279 = vunpack.c.h.b16 %v4645
    %v5280 = vunpack.c.l.b16 %v4646
    %v5281 = vunpack.c.h.b16 %v4646
    %v5282 = vunpack.c.l.b16 %v4647
    %v5283 = vunpack.c.h.b16 %v4647
    %v5284 = vunpack.c.l.b16 %v4648
    %v5285 = vunpack.c.h.b16 %v4648
    %v5286 = vunpack.c.l.b16 %v4649
    %v5287 = vunpack.c.h.b16 %v4649
    %v5288 = vunpack.c.l.b16 %v4650
    %v5289 = vunpack.c.h.b16 %v4650
    %v5290 = vunpack.c.l.b16 %v4651
    %v5291 = vunpack.c.h.b16 %v4651
    %v5292 = vunpack.c.l.b16 %v4652
    %v5293 = vunpack.c.h.b16 %v4652
    %v5294 = vunpack.c.l.b16 %v4653
    %v5295 = vunpack.c.h.b16 %v4653
    %v5296 = vunpack.c.l.b16 %v4654
    %v5297 = vunpack.c.h.b16 %v4654
    %v5298 = vunpack.c.l.b16 %v4655
    %v5299 = vunpack.c.h.b16 %v4655
    %v5300 = vunpack.c.l.b16 %v4656
    %v5301 = vunpack.c.h.b16 %v4656
    %v5302 = vunpack.c.l.b16 %v4657
    %v5303 = vunpack.c.h.b16 %v4657
    %v5304 = vunpack.c.l.b16 %v4658
    %v5305 = vunpack.c.h.b16 %v4658
    %v5306 = vunpack.c.l.b16 %v4659
    %v5307 = vunpack.c.h.b16 %v4659
    %v5308 = vunpack.c.l.b16 %v4660
    %v5309 = vunpack.c.h.b16 %v4660
    %v5310 = vunpack.c.l.b16 %v4661
    %v5311 = vunpack.c.h.b16 %v4661
    %v5312 = vunpack.c.l.b16 %v4662
    %v5313 = vunpack.c.h.b16 %v4662
    %v5314 = vunpack.c.l.b16 %v4663
    %v5315 = vunpack.c.h.b16 %v4663
    %v5316 = vunpack.c.l.b16 %v4664
    %v5317 = vunpack.c.h.b16 %v4664
    %v5318 = vunpack.c.l.b16 %v4665
    %v5319 = vunpack.c.h.b16 %v4665
    %v5320 = vunpack.c.l.b16 %v4666
    %v5321 = vunpack.c.h.b16 %v4666
    %v5322 = vunpack.c.l.b16 %v4667
    %v5323 = vunpack.c.h.b16 %v4667
    %v5324 = vunpack.c.l.b16 %v4668
    %v5325 = vunpack.c.h.b16 %v4668
    %v5326 = vunpack.c.l.b16 %v4669
    %v5327 = vunpack.c.h.b16 %v4669
    %v5328 = vunpack.c.l.b16 %v4670
    %v5329 = vunpack.c.h.b16 %v4670
    %v5330 = vunpack.c.l.b16 %v4671
    %v5331 = vunpack.c.h.b16 %v4671
    %v5332 = vunpack.c.l.b16 %v4672
    %v5333 = vunpack.c.h.b16 %v4672
    %v5334 = vunpack.c.l.b16 %v4673
    %v5335 = vunpack.c.h.b16 %v4673
    %v5336 = vunpack.c.l.b16 %v4674
    %v5337 = vunpack.c.h.b16 %v4674
    %v5338 = vunpack.c.l.b16 %v4675
    %v5339 = vunpack.c.h.b16 %v4675
    %v5340 = vunpack.c.l.b16 %v4676
    %v5341 = vunpack.c.h.b16 %v4676
    %v5342 = vunpack.c.l.b16 %v4677
    %v5343 = vunpack.c.h.b16 %v4677
    %v5344 = vunpack.c.l.b16 %v4678
    %v5345 = vunpack.c.h.b16 %v4678
    %v5346 = vunpack.c.l.b16 %v4679
    %v5347 = vunpack.c.h.b16 %v4679
    %v5348 = vunpack.c.l.b16 %v4680
    %v5349 = vunpack.c.h.b16 %v4680
    %v5350 = vunpack.c.l.b16 %v4681
    %v5351 = vunpack.c.h.b16 %v4681
    %v5352 = vunpack.c.l.b16 %v4682
    %v5353 = vunpack.c.h.b16 %v4682
    %v5354 = vunpack.c.l.b16 %v4683
    %v5355 = vunpack.c.h.b16 %v4683
    %v5356 = vunpack.c.l.b16 %v4684
    %v5357 = vunpack.c.h.b16 %v4684
    %v5358 = vunpack.c.l.b16 %v4685
    %v5359 = vunpack.c.h.b16 %v4685
    %v5360 = vunpack.c.l.b16 %v4686
    %v5361 = vunpack.c.h.b16 %v4686
    %v5362 = vunpack.c.l.b16 %v4687
    %v5363 = vunpack.c.h.b16 %v4687
    %v5364 = vunpack.c.l.b16 %v4688
    %v5365 = vunpack.c.h.b16 %v4688
    %v5366 = vunpack.c.l.b16 %v4689
    %v5367 = vunpack.c.h.b16 %v4689
    %v5368 = vunpack.c.l.b16 %v4690
    %v5369 = vunpack.c.h.b16 %v4690
    %v5370 = vunpack.c.l.b16 %v4691
    %v5371 = vunpack.c.h.b16 %v4691
    %v5372 = vunpack.c.l.b16 %v4692
    %v5373 = vunpack.c.h.b16 %v4692
    %v5374 = vunpack.c.l.b16 %v4693
    %v5375 = vunpack.c.h.b16 %v4693
    %v5376 = vunpack.c.l.b16 %v4694
    %v5377 = vunpack.c.h.b16 %v4694
    %v5378 = vunpack.c.l.b16 %v4695
    %v5379 = vunpack.c.h.b16 %v4695
    %v5380 = vunpack.c.l.b16 %v4696
    %v5381 = vunpack.c.h.b16 %v4696
    %v5382 = vunpack.c.l.b16 %v4697
    %v5383 = vunpack.c.h.b16 %v4697
    %v5384 = vunpack.c.l.b16 %v4698
    %v5385 = vunpack.c.h.b16 %v4698
    %v5386 = vunpack.c.l.b16 %v4699
    %v5387 = vunpack.c.h.b16 %v4699
    %v5388 = vunpack.c.l.b16 %v4700
    %v5389 = vunpack.c.h.b16 %v4700
    %v5390 = vunpack.c.l.b16 %v4701
    %v5391 = vunpack.c.h.b16 %v4701
    %v5392 = vunpack.c.l.b16 %v4702
    %v5393 = vunpack.c.h.b16 %v4702
    %v5394 = vunpack.c.l.b16 %v4703
    %v5395 = vunpack.c.h.b16 %v4703
    %v5396 = vunpack.c.l.b16 %v4704
    %v5397 = vunpack.c.h.b16 %v4704
    %v5398 = vunpack.c.l.b16 %v4705
    %v5399 = vunpack.c.h.b16 %v4705
    %v5400 = vunpack.c.l.b16 %v4706
    %v5401 = vunpack.c.h.b16 %v4706
    %v5402 = vunpack.c.l.b16 %v4707
    %v5403 = vunpack.c.h.b16 %v4707
    %v5404 = vunpack.c.l.b16 %v4708
    %v5405 = vunpack.c.h.b16 %v4708
    %v5406 = vunpack.c.l.b16 %v4709
    %v5407 = vunpack.c.h.b16 %v4709
    %v5408 = vunpack.c.l.b16 %v4710
    %v5409 = vunpack.c.h.b16 %v4710
    %v5410 = vunpack.c.l.b16 %v4711
    %v5411 = vunpack.c.h.b16 %v4711
    %v5412 = vunpack.c.l.b16 %v4712
    %v5413 = vunpack.c.h.b16 %v4712
    %v5414 = vunpack.c.l.b16 %v4713
    %v5415 = vunpack.c.h.b16 %v4713
    %v5416 = vunpack.c.l.b16 %v4714
    %v5417 = vunpack.c.h.b16 %v4714
    %v5418 = vunpack.c.l.b16 %v4715
    %v5419 = vunpack.c.h.b16 %v4715
    %v5420 = vunpack.c.l.b16 %v4716
    %v5421 = vunpack.c.h.b16 %v4716
    %v5422 = vunpack.c.l.b16 %v4717
    %v5423 = vunpack.c.h.b16 %v4717
    %v5424 = vunpack.c.l.b16 %v4718
    %v5425 = vunpack.c.h.b16 %v4718
    %v5426 = vunpack.c.l.b16 %v4719
    %v5427 = vunpack.c.h.b16 %v4719
    %v5428 = vunpack.c.l.b16 %v4720
    %v5429 = vunpack.c.h.b16 %v4720
    %v5430 = vunpack.c.l.b16 %v4721
    %v5431 = vunpack.c.h.b16 %v4721
    %v5432 = vunpack.c.l.b16 %v4722
    %v5433 = vunpack.c.h.b16 %v4722
    %v5434 = vunpack.c.l.b16 %v4723
    %v5435 = vunpack.c.h.b16 %v4723
    %v5436 = vunpack.c.l.b16 %v4724
    %v5437 = vunpack.c.h.b16 %v4724
    %v5438 = vunpack.c.l.b16 %v4725
    %v5439 = vunpack.c.h.b16 %v4725
    %v5440 = vunpack.c.l.b16 %v4726
    %v5441 = vunpack.c.h.b16 %v4726
    %v5442 = vunpack.c.l.b16 %v4727
    %v5443 = vunpack.c.h.b16 %v4727
    %v5444 = vunpack.c.l.b16 %v4728
    %v5445 = vunpack.c.h.b16 %v4728
    %v5446 = vunpack.c.l.b16 %v4729
    %v5447 = vunpack.c.h.b16 %v4729
    %v5448 = vunpack.c.l.b16 %v4730
    %v5449 = vunpack.c.h.b16 %v4730
    %v5450 = vunpack.c.l.b16 %v4731
    %v5451 = vunpack.c.h.b16 %v4731
    %v5452 = vunpack.c.l.b16 %v4732
    %v5453 = vunpack.c.h.b16 %v4732
    %v5454 = vunpack.c.l.b16 %v4733
    %v5455 = vunpack.c.h.b16 %v4733
    %v5456 = vunpack.c.l.b16 %v4734
    %v5457 = vunpack.c.h.b16 %v4734
    %v5458 = vunpack.c.l.b16 %v4735
    %v5459 = vunpack.c.h.b16 %v4735
    %v5460 = vunpack.c.l.b16 %v4736
    %v5461 = vunpack.c.h.b16 %v4736
    %v5462 = vunpack.c.l.b16 %v4737
    %v5463 = vunpack.c.h.b16 %v4737
    %v5464 = vunpack.c.l.b16 %v4738
    %v5465 = vunpack.c.h.b16 %v4738
    %v5466 = vunpack.c.l.b16 %v4739
    %v5467 = vunpack.c.h.b16 %v4739
    %v5468 = vunpack.c.l.b16 %v4740
    %v5469 = vunpack.c.h.b16 %v4740
    %v5470 = vunpack.c.l.b16 %v4741
    %v5471 = vunpack.c.h.b16 %v4741
    %v5472 = vunpack.c.l.b16 %v4742
    %v5473 = vunpack.c.h.b16 %v4742
    %v5474 = vunpack.c.l.b16 %v4743
    %v5475 = vunpack.c.h.b16 %v4743
    %v5476 = vunpack.c.l.b16 %v4744
    %v5477 = vunpack.c.h.b16 %v4744
    %v5478 = vunpack.c.l.b16 %v4745
    %v5479 = vunpack.c.h.b16 %v4745
    %v5480 = vunpack.c.l.b16 %v4746
    %v5481 = vunpack.c.h.b16 %v4746
    %v5482 = vunpack.c.l.b16 %v4747
    %v5483 = vunpack.c.h.b16 %v4747
    %v5484 = vunpack.c.l.b16 %v4748
    %v5485 = vunpack.c.h.b16 %v4748
    %v5486 = vunpack.c.l.b16 %v4749
    %v5487 = vunpack.c.h.b16 %v4749
    %v5488 = vunpack.c.l.b16 %v4750
    %v5489 = vunpack.c.h.b16 %v4750
    %v5490 = vunpack.c.l.b16 %v4751
    %v5491 = vunpack.c.h.b16 %v4751
    %v5492 = vunpack.c.l.b16 %v4752
    %v5493 = vunpack.c.h.b16 %v4752
    %v5494 = vunpack.c.l.b16 %v4753
    %v5495 = vunpack.c.h.b16 %v4753
    %v5496 = vunpack.c.l.b16 %v4754
    %v5497 = vunpack.c.h.b16 %v4754
    %v5498 = vunpack.c.l.b16 %v4755
    %v5499 = vunpack.c.h.b16 %v4755
    %v5500 = vunpack.c.l.b16 %v4756
    %v5501 = vunpack.c.h.b16 %v4756
    %v5502 = vunpack.c.l.b16 %v4757
    %v5503 = vunpack.c.h.b16 %v4757
    %v5504 = vunpack.c.l.b16 %v4758
    %v5505 = vunpack.c.h.b16 %v4758
    %v5506 = vunpack.c.l.b16 %v4759
    %v5507 = vunpack.c.h.b16 %v4759
    %v5508 = vunpack.c.l.b16 %v4760
    %v5509 = vunpack.c.h.b16 %v4760
    %v5510 = vunpack.c.l.b16 %v4761
    %v5511 = vunpack.c.h.b16 %v4761
    %v5512 = vunpack.c.l.b16 %v4762
    %v5513 = vunpack.c.h.b16 %v4762
    %v5514 = vunpack.c.l.b16 %v4763
    %v5515 = vunpack.c.h.b16 %v4763
    %v5516 = vunpack.c.l.b16 %v4764
    %v5517 = vunpack.c.h.b16 %v4764
    %v5518 = vunpack.c.l.b16 %v4765
    %v5519 = vunpack.c.h.b16 %v4765
    %v5520 = vunpack.c.l.b16 %v4766
    %v5521 = vunpack.c.h.b16 %v4766
    %v5522 = vunpack.c.l.b16 %v4767
    %v5523 = vunpack.c.h.b16 %v4767
    %v5524 = vunpack.c.l.b16 %v4768
    %v5525 = vunpack.c.h.b16 %v4768
    %v5526 = vunpack.c.l.b16 %v4769
    %v5527 = vunpack.c.h.b16 %v4769
    %v5528 = vunpack.c.l.b16 %v4770
    %v5529 = vunpack.c.h.b16 %v4770
    %v5530 = vunpack.c.l.b16 %v4771
    %v5531 = vunpack.c.h.b16 %v4771
    %v5532 = vunpack.c.l.b16 %v4772
    %v5533 = vunpack.c.h.b16 %v4772
    %v5534 = vunpack.c.l.b16 %v4773
    %v5535 = vunpack.c.h.b16 %v4773
    %v5536 = vunpack.c.l.b16 %v4774
    %v5537 = vunpack.c.h.b16 %v4774
    %v5538 = vunpack.c.l.b16 %v4775
    %v5539 = vunpack.c.h.b16 %v4775
    %v5540 = vunpack.c.l.b16 %v4776
    %v5541 = vunpack.c.h.b16 %v4776
    %v5542 = vunpack.c.l.b16 %v4777
    %v5543 = vunpack.c.h.b16 %v4777
    %v5544 = vunpack.c.l.b16 %v4778
    %v5545 = vunpack.c.h.b16 %v4778
    %v5546 = vunpack.c.l.b16 %v4779
    %v5547 = vunpack.c.h.b16 %v4779
    %v5548 = vunpack.c.l.b16 %v4780
    %v5549 = vunpack.c.h.b16 %v4780
    %v5550 = vunpack.c.l.b16 %v4781
    %v5551 = vunpack.c.h.b16 %v4781
    %v5552 = vunpack.c.l.b16 %v4782
    %v5553 = vunpack.c.h.b16 %v4782
    %v5554 = vunpack.c.l.b16 %v4783
    %v5555 = vunpack.c.h.b16 %v4783
    %v5556 = vunpack.c.l.b16 %v4784
    %v5557 = vunpack.c.h.b16 %v4784
    %v5558 = vunpack.c.l.b16 %v4785
    %v5559 = vunpack.c.h.b16 %v4785
    %v5560 = vunpack.c.l.b16 %v4786
    %v5561 = vunpack.c.h.b16 %v4786
    %v5562 = vunpack.c.l.b16 %v4787
    %v5563 = vunpack.c.h.b16 %v4787
    %v5564 = vunpack.c.l.b16 %v4788
    %v5565 = vunpack.c.h.b16 %v4788
    %v5566 = vunpack.c.l.b16 %v4789
    %v5567 = vunpack.c.h.b16 %v4789
    %v5568 = vunpack.c.l.b16 %v4790
    %v5569 = vunpack.c.h.b16 %v4790
    %v5570 = vunpack.c.l.b16 %v4791
    %v5571 = vunpack.c.h.b16 %v4791
    %v5572 = vunpack.c.l.b16 %v4792
    %v5573 = vunpack.c.h.b16 %v4792
    %v5574 = vunpack.c.l.b16 %v4793
    %v5575 = vunpack.c.h.b16 %v4793
    %v5576 = vunpack.c.l.b16 %v4794
    %v5577 = vunpack.c.h.b16 %v4794
    %v5578 = vunpack.c.l.b16 %v4795
    %v5579 = vunpack.c.h.b16 %v4795
    %v5580 = vunpack.c.l.b16 %v4796
    %v5581 = vunpack.c.h.b16 %v4796
    %v5582 = vunpack.c.l.b16 %v4797
    %v5583 = vunpack.c.h.b16 %v4797
    %v5584 = vunpack.c.l.b16 %v4798
    %v5585 = vunpack.c.h.b16 %v4798
    %v5586 = vunpack.c.l.b16 %v4799
    %v5587 = vunpack.c.h.b16 %v4799
    %v5588 = vunpack.c.l.b16 %v4800
    %v5589 = vunpack.c.h.b16 %v4800
    %v5590 = vunpack.c.l.b16 %v4801
    %v5591 = vunpack.c.h.b16 %v4801
    %v5592 = vunpack.c.l.b16 %v4802
    %v5593 = vunpack.c.h.b16 %v4802
    %v5594 = vunpack.c.l.b16 %v4803
    %v5595 = vunpack.c.h.b16 %v4803
    %v5596 = vunpack.c.l.b16 %v4804
    %v5597 = vunpack.c.h.b16 %v4804
    %v5598 = vunpack.c.l.b16 %v4805
    %v5599 = vunpack.c.h.b16 %v4805
    %v5600 = vunpack.c.l.b16 %v4806
    %v5601 = vunpack.c.h.b16 %v4806
    %v5602 = vunpack.c.l.b16 %v4807
    %v5603 = vunpack.c.h.b16 %v4807
    %v5604 = vunpack.c.l.b16 %v4808
    %v5605 = vunpack.c.h.b16 %v4808
    %v5606 = vunpack.c.l.b16 %v4809
    %v5607 = vunpack.c.h.b16 %v4809
    %v5608 = vunpack.c.l.b16 %v4810
    %v5609 = vunpack.c.h.b16 %v4810
    %v5610 = vunpack.c.l.b16 %v4811
    %v5611 = vunpack.c.h.b16 %v4811
    %v5612 = vunpack.c.l.b16 %v4812
    %v5613 = vunpack.c.h.b16 %v4812
    %v5614 = vunpack.c.l.b16 %v4813
    %v5615 = vunpack.c.h.b16 %v4813
    %v5616 = vunpack.c.l.b16 %v4814
    %v5617 = vunpack.c.h.b16 %v4814
    %v5618 = vunpack.c.l.b16 %v4815
    %v5619 = vunpack.c.h.b16 %v4815
    %v5620 = vunpack.c.l.b16 %v4816
    %v5621 = vunpack.c.h.b16 %v4816
    %v5622 = vunpack.c.l.b16 %v4817
    %v5623 = vunpack.c.h.b16 %v4817
    %v5624 = vunpack.c.l.b16 %v4818
    %v5625 = vunpack.c.h.b16 %v4818
    %v5626 = vunpack.c.l.b16 %v4819
    %v5627 = vunpack.c.h.b16 %v4819
    %v5628 = vunpack.c.l.b16 %v4820
    %v5629 = vunpack.c.h.b16 %v4820
    %v5630 = vunpack.c.l.b16 %v4821
    %v5631 = vunpack.c.h.b16 %v4821
    %v5632 = vpack.c.b16 %v5128, %v5120
    %v5633 = vpack.c.b16 %v5129, %v5121
    %v5634 = vpack.c.b16 %v5130, %v5122
    %v5635 = vpack.c.b16 %v5131, %v5123
    %v5636 = vpack.c.b16 %v5132, %v5124
    %v5637 = vpack.c.b16 %v5133, %v5125
    %v5638 = vpack.c.b16 %v5134, %v5126
    %v5639 = vpack.c.b16 %v5135, %v5127
    %v5640 = vpack.c.b16 %v5144, %v5136
    %v5641 = vpack.c.b16 %v5145, %v5137
    %v5642 = vpack.c.b16 %v5146, %v5138
    %v5643 = vpack.c.b16 %v5147, %v5139
    %v5644 = vpack.c.b16 %v5148, %v5140
    %v5645 = vpack.c.b16 %v5149, %v5141
    %v5646 = vpack.c.b16 %v5150, %v5142
    %v5647 = vpack.c.b16 %v5151, %v5143
    %v5648 = vpack.c.b16 %v5160, %v5152
    %v5649 = vpack.c.b16 %v5161, %v5153
    %v5650 = vpack.c.b16 %v5162, %v5154
    %v5651 = vpack.c.b16 %v5163, %v5155
    %v5652 = vpack.c.b16 %v5164, %v5156
    %v5653 = vpack.c.b16 %v5165, %v5157
    %v5654 = vpack.c.b16 %v5166, %v5158
    %v5655 = vpack.c.b16 %v5167, %v5159
    %v5656 = vpack.c.b16 %v5176, %v5168
    %v5657 = vpack.c.b16 %v5177, %v5169
    %v5658 = vpack.c.b16 %v5178, %v5170
    %v5659 = vpack.c.b16 %v5179, %v5171
    %v5660 = vpack.c.b16 %v5180, %v5172
    %v5661 = vpack.c.b16 %v5181, %v5173
    %v5662 = vpack.c.b16 %v5182, %v5174
    %v5663 = vpack.c.b16 %v5183, %v5175
    %v5664 = vpack.c.b16 %v5192, %v5184
    %v5665 = vpack.c.b16 %v5193, %v5185
    %v5666 = vpack.c.b16 %v5194, %v5186
    %v5667 = vpack.c.b16 %v5195, %v5187
    %v5668 = vpack.c.b16 %v5196, %v5188
    %v5669 = vpack.c.b16 %v5197, %v5189
    %v5670 = vpack.c.b16 %v5198, %v5190
    %v5671 = vpack.c.b16 %v5199, %v5191
    %v5672 = vpack.c.b16 %v5208, %v5200
    %v5673 = vpack.c.b16 %v5209, %v5201
    %v5674 = vpack.c.b16 %v5210, %v5202
    %v5675 = vpack.c.b16 %v5211, %v5203
    %v5676 = vpack.c.b16 %v5212, %v5204
    %v5677 = vpack.c.b16 %v5213, %v5205
    %v5678 = vpack.c.b16 %v5214, %v5206
    %v5679 = vpack.c.b16 %v5215, %v5207
    %v5680 = vpack.c.b16 %v5224, %v5216
    %v5681 = vpack.c.b16 %v5225, %v5217
    %v5682 = vpack.c.b16 %v5226, %v5218
    %v5683 = vpack.c.b16 %v5227, %v5219
    %v5684 = vpack.c.b16 %v5228, %v5220
    %v5685 = vpack.c.b16 %v5229, %v5221
    %v5686 = vpack.c.b16 %v5230, %v5222
    %v5687 = vpack.c.b16 %v5231, %v5223
    %v5688 = vpack.c.b16 %v5240, %v5232
    %v5689 = vpack.c.b16 %v5241, %v5233
    %v5690 = vpack.c.b16 %v5242, %v5234
    %v5691 = vpack.c.b16 %v5243, %v5235
    %v5692 = vpack.c.b16 %v5244, %v5236
    %v5693 = vpack.c.b16 %v5245, %v5237
    %v5694 = vpack.c.b16 %v5246, %v5238
    %v5695 = vpack.c.b16 %v5247, %v5239
    %v5696 = vpack.c.b16 %v5256, %v5248
    %v5697 = vpack.c.b16 %v5257, %v5249
    %v5698 = vpack.c.b16 %v5258, %v5250
    %v5699 = vpack.c.b16 %v5259, %v5251
    %v5700 = vpack.c.b16 %v5260, %v5252
    %v5701 = vpack.c.b16 %v5261, %v5253
    %v5702 = vpack.c.b16 %v5262, %v5254
    %v5703 = vpack.c.b16 %v5263, %v5255
    %v5704 = vpack.c.b16 %v5272, %v5264
    %v5705 = vpack.c.b16 %v5273, %v5265
    %v5706 = vpack.c.b16 %v5274, %v5266
    %v5707 = vpack.c.b16 %v5275, %v5267
    %v5708 = vpack.c.b16 %v5276, %v5268
    %v5709 = vpack.c.b16 %v5277, %v5269
    %v5710 = vpack.c.b16 %v5278, %v5270
    %v5711 = vpack.c.b16 %v5279, %v5271
    %v5712 = vpack.c.b16 %v5288, %v5280
    %v5713 = vpack.c.b16 %v5289, %v5281
    %v5714 = vpack.c.b16 %v5290, %v5282
    %v5715 = vpack.c.b16 %v5291, %v5283
    %v5716 = vpack.c.b16 %v5292, %v5284
    %v5717 = vpack.c.b16 %v5293, %v5285
    %v5718 = vpack.c.b16 %v5294, %v5286
    %v5719 = vpack.c.b16 %v5295, %v5287
    %v5720 = vpack.c.b16 %v5304, %v5296
    %v5721 = vpack.c.b16 %v5305, %v5297
    %v5722 = vpack.c.b16 %v5306, %v5298
    %v5723 = vpack.c.b16 %v5307, %v5299
    %v5724 = vpack.c.b16 %v5308, %v5300
    %v5725 = vpack.c.b16 %v5309, %v5301
    %v5726 = vpack.c.b16 %v5310, %v5302
    %v5727 = vpack.c.b16 %v5311, %v5303
    %v5728 = vpack.c.b16 %v5320, %v5312
    %v5729 = vpack.c.b16 %v5321, %v5313
    %v5730 = vpack.c.b16 %v5322, %v5314
    %v5731 = vpack.c.b16 %v5323, %v5315
    %v5732 = vpack.c.b16 %v5324, %v5316
    %v5733 = vpack.c.b16 %v5325, %v5317
    %v5734 = vpack.c.b16 %v5326, %v5318
    %v5735 = vpack.c.b16 %v5327, %v5319
    %v5736 = vpack.c.b16 %v5336, %v5328
    %v5737 = vpack.c.b16 %v5337, %v5329
    %v5738 = vpack.c.b16 %v5338, %v5330
    %v5739 = vpack.c.b16 %v5339, %v5331
    %v5740 = vpack.c.b16 %v5340, %v5332
    %v5741 = vpack.c.b16 %v5341, %v5333
    %v5742 = vpack.c.b16 %v5342, %v5334
    %v5743 = vpack.c.b16 %v5343, %v5335
    %v5744 = vpack.c.b16 %v5352, %v5344
    %v5745 = vpack.c.b16 %v5353, %v5345
    %v5746 = vpack.c.b16 %v5354, %v5346
    %v5747 = vpack.c.b16 %v5355, %v5347
    %v5748 = vpack.c.b16 %v5356, %v5348
    %v5749 = vpack.c.b16 %v5357, %v5349
    %v5750 = vpack.c.b16 %v5358, %v5350
    %v5751 = vpack.c.b16 %v5359, %v5351
    %v5752 = vpack.c.b16 %v5368, %v5360
    %v5753 = vpack.c.b16 %v5369, %v5361
    %v5754 = vpack.c.b16 %v5370, %v5362
    %v5755 = vpack.c.b16 %v5371, %v5363
    %v5756 = vpack.c.b16 %v5372, %v5364
    %v5757 = vpack.c.b16 %v5373, %v5365
    %v5758 = vpack.c.b16 %v5374, %v5366
    %v5759 = vpack.c.b16 %v5375, %v5367
    %v5760 = vpack.c.b16 %v5384, %v5376
    %v5761 = vpack.c.b16 %v5385, %v5377
    %v5762 = vpack.c.b16 %v5386, %v5378
    %v5763 = vpack.c.b16 %v5387, %v5379
    %v5764 = vpack.c.b16 %v5388, %v5380
    %v5765 = vpack.c.b16 %v5389, %v5381
    %v5766 = vpack.c.b16 %v5390, %v5382
    %v5767 = vpack.c.b16 %v5391, %v5383
    %v5768 = vpack.c.b16 %v5400, %v5392
    %v5769 = vpack.c.b16 %v5401, %v5393
    %v5770 = vpack.c.b16 %v5402, %v5394
    %v5771 = vpack.c.b16 %v5403, %v5395
    %v5772 = vpack.c.b16 %v5404, %v5396
    %v5773 = vpack.c.b16 %v5405, %v5397
    %v5774 = vpack.c.b16 %v5406, %v5398
    %v5775 = vpack.c.b16 %v5407, %v5399
    %v5776 = vpack.c.b16 %v5416, %v5408
    %v5777 = vpack.c.b16 %v5417, %v5409
    %v5778 = vpack.c.b16 %v5418, %v5410
    %v5779 = vpack.c.b16 %v5419, %v5411
    %v5780 = vpack.c.b16 %v5420, %v5412
    %v5781 = vpack.c.b16 %v5421, %v5413
    %v5782 = vpack.c.b16 %v5422, %v5414
    %v5783 = vpack.c.b16 %v5423, %v5415
    %v5784 = vpack.c.b16 %v5432, %v5424
    %v5785 = vpack.c.b16 %v5433, %v5425
    %v5786 = vpack.c.b16 %v5434, %v5426
    %v5787 = vpack.c.b16 %v5435, %v5427
    %v5788 = vpack.c.b16 %v5436, %v5428
    %v5789 = vpack.c.b16 %v5437, %v5429
    %v5790 = vpack.c.b16 %v5438, %v5430
    %v5791 = vpack.c.b16 %v5439, %v5431
    %v5792 = vpack.c.b16 %v5448, %v5440
    %v5793 = vpack.c.b16 %v5449, %v5441
    %v5794 = vpack.c.b16 %v5450, %v5442
    %v5795 = vpack.c.b16 %v5451, %v5443
    %v5796 = vpack.c.b16 %v5452, %v5444
    %v5797 = vpack.c.b16 %v5453, %v5445
    %v5798 = vpack.c.b16 %v5454, %v5446
    %v5799 = vpack.c.b16 %v5455, %v5447
    %v5800 = vpack.c.b16 %v5464, %v5456
    %v5801 = vpack.c.b16 %v5465, %v5457
    %v5802 = vpack.c.b16 %v5466, %v5458
    %v5803 = vpack.c.b16 %v5467, %v5459
    %v5804 = vpack.c.b16 %v5468, %v5460
    %v5805 = vpack.c.b16 %v5469, %v5461
    %v5806 = vpack.c.b16 %v5470, %v5462
    %v5807 = vpack.c.b16 %v5471, %v5463
    %v5808 = vpack.c.b16 %v5480, %v5472
    %v5809 = vpack.c.b16 %v5481, %v5473
    %v5810 = vpack.c.b16 %v5482, %v5474
    %v5811 = vpack.c.b16 %v5483, %v5475
    %v5812 = vpack.c.b16 %v5484, %v5476
    %v5813 = vpack.c.b16 %v5485, %v5477
    %v5814 = vpack.c.b16 %v5486, %v5478
    %v5815 = vpack.c.b16 %v5487, %v5479
    %v5816 = vpack.c.b16 %v5496, %v5488
    %v5817 = vpack.c.b16 %v5497, %v5489
    %v5818 = vpack.c.b16 %v5498, %v5490
    %v5819 = vpack.c.b16 %v5499, %v5491
    %v5820 = vpack.c.b16 %v5500, %v5492
    %v5821 = vpack.c.b16 %v5501, %v5493
    %v5822 = vpack.c.b16 %v5502, %v5494
    %v5823 = vpack.c.b16 %v5503, %v5495
    %v5824 = vpack.c.b16 %v5512, %v5504
    %v5825 = vpack.c.b16 %v5513, %v5505
    %v5826 = vpack.c.b16 %v5514, %v5506
    %v5827 = vpack.c.b16 %v5515, %v5507
    %v5828 = vpack.c.b16 %v5516, %v5508
    %v5829 = vpack.c.b16 %v5517, %v5509
    %v5830 = vpack.c.b16 %v5518, %v5510
    %v5831 = vpack.c.b16 %v5519, %v5511
    %v5832 = vpack.c.b16 %v5528, %v5520
    %v5833 = vpack.c.b16 %v5529, %v5521
    %v5834 = vpack.c.b16 %v5530, %v5522
    %v5835 = vpack.c.b16 %v5531, %v5523
    %v5836 = vpack.c.b16 %v5532, %v5524
    %v5837 = vpack.c.b16 %v5533, %v5525
    %v5838 = vpack.c.b16 %v5534, %v5526
    %v5839 = vpack.c.b16 %v5535, %v5527
    %v5840 = vpack.c.b16 %v5544, %v5536
    %v5841 = vpack.c.b16 %v5545, %v5537
    %v5842 = vpack.c.b16 %v5546, %v5538
    %v5843 = vpack.c.b16 %v5547, %v5539
    %v5844 = vpack.c.b16 %v5548, %v5540
    %v5845 = vpack.c.b16 %v5549, %v5541
    %v5846 = vpack.c.b16 %v5550, %v5542
    %v5847 = vpack.c.b16 %v5551, %v5543
    %v5848 = vpack.c.b16 %v5560, %v5552
    %v5849 = vpack.c.b16 %v5561, %v5553
    %v5850 = vpack.c.b16 %v5562, %v5554
    %v5851 = vpack.c.b16 %v5563, %v5555
    %v5852 = vpack.c.b16 %v5564, %v5556
    %v5853 = vpack.c.b16 %v5565, %v5557
    %v5854 = vpack.c.b16 %v5566, %v5558
    %v5855 = vpack.c.b16 %v5567, %v5559
    %v5856 = vpack.c.b16 %v5576, %v5568
    %v5857 = vpack.c.b16 %v5577, %v5569
    %v5858 = vpack.c.b16 %v5578, %v5570
    %v5859 = vpack.c.b16 %v5579, %v5571
    %v5860 = vpack.c.b16 %v5580, %v5572
    %v5861 = vpack.c.b16 %v5581, %v5573
    %v5862 = vpack.c.b16 %v5582, %v5574
    %v5863 = vpack.c.b16 %v5583, %v5575
    %v5864 = vpack.c.b16 %v5592, %v5584
    %v5865 = vpack.c.b16 %v5593, %v5585
    %v5866 = vpack.c.b16 %v5594, %v5586
    %v5867 = vpack.c.b16 %v5595, %v5587
    %v5868 = vpack.c.b16 %v5596, %v5588
    %v5869 = vpack.c.b16 %v5597, %v5589
    %v5870 = vpack.c.b16 %v5598, %v5590
    %v5871 = vpack.c.b16 %v5599, %v5591
    %v5872 = vpack.c.b16 %v5608, %v5600
    %v5873 = vpack.c.b16 %v5609, %v5601
    %v5874 = vpack.c.b16 %v5610, %v5602
    %v5875 = vpack.c.b16 %v5611, %v5603
    %v5876 = vpack.c.b16 %v5612, %v5604
    %v5877 = vpack.c.b16 %v5613, %v5605
    %v5878 = vpack.c.b16 %v5614, %v5606
    %v5879 = vpack.c.b16 %v5615, %v5607
    %v5880 = vpack.c.b16 %v5624, %v5616
    %v5881 = vpack.c.b16 %v5625, %v5617
    %v5882 = vpack.c.b16 %v5626, %v5618
    %v5883 = vpack.c.b16 %v5627, %v5619
    %v5884 = vpack.c.b16 %v5628, %v5620
    %v5885 = vpack.c.b16 %v5629, %v5621
    %v5886 = vpack.c.b16 %v5630, %v5622
    %v5887 = vpack.c.b16 %v5631, %v5623
    %6144 = vmatprep.subr.bf16.mxu0 %v5689
    %6145 = vmatpush1.bf16.msra.mxu0 %v5688
    %6146 = vmatprep.subr.bf16.mxu0 %v5681
    %6147 = vmatpush1.bf16.msra.mxu0 %v5680
    %6148 = vmatprep.subr.bf16.mxu0 %v5673
    %6149 = vmatpush1.bf16.msra.mxu0 %v5672
    %6150 = vmatprep.subr.bf16.mxu0 %v5665
    %6151 = vmatpush1.bf16.msra.mxu0 %v5664
    %6152 = vmatprep.subr.bf16.mxu0 %v5657
    %6153 = vmatpush1.bf16.msra.mxu0 %v5656
    %6154 = vmatprep.subr.bf16.mxu0 %v5649
    %6155 = vmatpush1.bf16.msra.mxu0 %v5648
    %6156 = vmatprep.subr.bf16.mxu0 %v5641
    %6157 = vmatpush1.bf16.msra.mxu0 %v5640
    %6158 = vmatprep.subr.bf16.mxu0 %v5633
    %6159 = vmatpush1.bf16.msra.mxu0 %v5632
    %6160 = vmatprep.subr.bf16.mxu0 %v5753
    %6161 = vmatpush2.bf16.msra.mxu0 %v5752
    %6162 = vmatprep.subr.bf16.mxu0 %v5745
    %6163 = vmatpush2.bf16.msra.mxu0 %v5744
    %6164 = vmatprep.subr.bf16.mxu0 %v5737
    %6165 = vmatpush2.bf16.msra.mxu0 %v5736
    %6166 = vmatprep.subr.bf16.mxu0 %v5729
    %6167 = vmatpush2.bf16.msra.mxu0 %v5728
    %6168 = vmatprep.subr.bf16.mxu0 %v5721
    %6169 = vmatpush2.bf16.msra.mxu0 %v5720
    %6170 = vmatprep.subr.bf16.mxu0 %v5713
    %6171 = vmatpush2.bf16.msra.mxu0 %v5712
    %6172 = vmatprep.subr.bf16.mxu0 %v5705
    %6173 = vmatpush2.bf16.msra.mxu0 %v5704
    %6174 = vmatprep.subr.bf16.mxu0 %v5697
    %6175 = vmatpush2.bf16.msra.mxu0 %v5696
    %6176 = vmatprep.mubr.bf16.mxu0 %v1576
    %6177 = vmatmul.mubr.bf16.gmra.mxu0 %v1575
    %v6178 = vpop.f32.mrf.mxu0
    %v6179 = vadd.f32 %v4827, %v6178
    %v6180 = vpop.f32.mrf.mxu0
    %v6181 = vadd.f32 %v4831, %v6180
    %v6182 = vpop.f32.mrf.mxu0
    %v6183 = vpop.f32.mrf.mxu0
    %6184 = vdwg.mxu0
    %6185 = vmatprep.subr.bf16.mxu0 %v5817
    %6186 = vmatpush1.bf16.msra.mxu0 %v5816
    %6187 = vmatprep.subr.bf16.mxu0 %v5809
    %6188 = vmatpush1.bf16.msra.mxu0 %v5808
    %6189 = vmatprep.subr.bf16.mxu0 %v5801
    %6190 = vmatpush1.bf16.msra.mxu0 %v5800
    %6191 = vmatprep.subr.bf16.mxu0 %v5793
    %6192 = vmatpush1.bf16.msra.mxu0 %v5792
    %6193 = vmatprep.subr.bf16.mxu0 %v5785
    %6194 = vmatpush1.bf16.msra.mxu0 %v5784
    %6195 = vmatprep.subr.bf16.mxu0 %v5777
    %6196 = vmatpush1.bf16.msra.mxu0 %v5776
    %6197 = vmatprep.subr.bf16.mxu0 %v5769
    %6198 = vmatpush1.bf16.msra.mxu0 %v5768
    %6199 = vmatprep.subr.bf16.mxu0 %v5761
    %6200 = vmatpush1.bf16.msra.mxu0 %v5760
    %6201 = vmatprep.subr.bf16.mxu0 %v5881
    %6202 = vmatpush2.bf16.msra.mxu0 %v5880
    %6203 = vmatprep.subr.bf16.mxu0 %v5873
    %6204 = vmatpush2.bf16.msra.mxu0 %v5872
    %6205 = vmatprep.subr.bf16.mxu0 %v5865
    %6206 = vmatpush2.bf16.msra.mxu0 %v5864
    %6207 = vmatprep.subr.bf16.mxu0 %v5857
    %6208 = vmatpush2.bf16.msra.mxu0 %v5856
    %6209 = vmatprep.subr.bf16.mxu0 %v5849
    %6210 = vmatpush2.bf16.msra.mxu0 %v5848
    %6211 = vmatprep.subr.bf16.mxu0 %v5841
    %6212 = vmatpush2.bf16.msra.mxu0 %v5840
    %6213 = vmatprep.subr.bf16.mxu0 %v5833
    %6214 = vmatpush2.bf16.msra.mxu0 %v5832
    %6215 = vmatprep.subr.bf16.mxu0 %v5825
    %6216 = vmatpush2.bf16.msra.mxu0 %v5824
    %6217 = vmatprep.mubr.bf16.mxu0 %v1578
    %6218 = vmatmul.mubr.bf16.gmra.mxu0 %v1577
    %v6219 = vpop.f32.mrf.mxu0
    %v6220 = vadd.f32 %v6179, %v6219
    %v6221 = vpop.f32.mrf.mxu0
    %v6222 = vadd.f32 %v6181, %v6221
    %v6223 = vpop.f32.mrf.mxu0
    %v6224 = vpop.f32.mrf.mxu0
    %6225 = vdwg.mxu0
    %6226 = vmatprep.subr.bf16.mxu0 %v5691
    %6227 = vmatpush1.bf16.msra.mxu0 %v5690
    %6228 = vmatprep.subr.bf16.mxu0 %v5683
    %6229 = vmatpush1.bf16.msra.mxu0 %v5682
    %6230 = vmatprep.subr.bf16.mxu0 %v5675
    %6231 = vmatpush1.bf16.msra.mxu0 %v5674
    %6232 = vmatprep.subr.bf16.mxu0 %v5667
    %6233 = vmatpush1.bf16.msra.mxu0 %v5666
    %6234 = vmatprep.subr.bf16.mxu0 %v5659
    %6235 = vmatpush1.bf16.msra.mxu0 %v5658
    %6236 = vmatprep.subr.bf16.mxu0 %v5651
    %6237 = vmatpush1.bf16.msra.mxu0 %v5650
    %6238 = vmatprep.subr.bf16.mxu0 %v5643
    %6239 = vmatpush1.bf16.msra.mxu0 %v5642
    %6240 = vmatprep.subr.bf16.mxu0 %v5635
    %6241 = vmatpush1.bf16.msra.mxu0 %v5634
    %6242 = vmatprep.subr.bf16.mxu0 %v5755
    %6243 = vmatpush2.bf16.msra.mxu0 %v5754
    %6244 = vmatprep.subr.bf16.mxu0 %v5747
    %6245 = vmatpush2.bf16.msra.mxu0 %v5746
    %6246 = vmatprep.subr.bf16.mxu0 %v5739
    %6247 = vmatpush2.bf16.msra.mxu0 %v5738
    %6248 = vmatprep.subr.bf16.mxu0 %v5731
    %6249 = vmatpush2.bf16.msra.mxu0 %v5730
    %6250 = vmatprep.subr.bf16.mxu0 %v5723
    %6251 = vmatpush2.bf16.msra.mxu0 %v5722
    %6252 = vmatprep.subr.bf16.mxu0 %v5715
    %6253 = vmatpush2.bf16.msra.mxu0 %v5714
    %6254 = vmatprep.subr.bf16.mxu0 %v5707
    %6255 = vmatpush2.bf16.msra.mxu0 %v5706
    %6256 = vmatprep.subr.bf16.mxu0 %v5699
    %6257 = vmatpush2.bf16.msra.mxu0 %v5698
    %6258 = vmatprep.mubr.bf16.mxu0 %v1576
    %6259 = vmatmul.mubr.bf16.gmra.mxu0 %v1575
    %v6260 = vpop.f32.mrf.mxu0
    %v6261 = vadd.f32 %v4835, %v6260
    %v6262 = vpop.f32.mrf.mxu0
    %v6263 = vadd.f32 %v4839, %v6262
    %v6264 = vpop.f32.mrf.mxu0
    %v6265 = vpop.f32.mrf.mxu0
    %6266 = vdwg.mxu0
    %6267 = vmatprep.subr.bf16.mxu0 %v5819
    %6268 = vmatpush1.bf16.msra.mxu0 %v5818
    %6269 = vmatprep.subr.bf16.mxu0 %v5811
    %6270 = vmatpush1.bf16.msra.mxu0 %v5810
    %6271 = vmatprep.subr.bf16.mxu0 %v5803
    %6272 = vmatpush1.bf16.msra.mxu0 %v5802
    %6273 = vmatprep.subr.bf16.mxu0 %v5795
    %6274 = vmatpush1.bf16.msra.mxu0 %v5794
    %6275 = vmatprep.subr.bf16.mxu0 %v5787
    %6276 = vmatpush1.bf16.msra.mxu0 %v5786
    %6277 = vmatprep.subr.bf16.mxu0 %v5779
    %6278 = vmatpush1.bf16.msra.mxu0 %v5778
    %6279 = vmatprep.subr.bf16.mxu0 %v5771
    %6280 = vmatpush1.bf16.msra.mxu0 %v5770
    %6281 = vmatprep.subr.bf16.mxu0 %v5763
    %6282 = vmatpush1.bf16.msra.mxu0 %v5762
    %6283 = vmatprep.subr.bf16.mxu0 %v5883
    %6284 = vmatpush2.bf16.msra.mxu0 %v5882
    %6285 = vmatprep.subr.bf16.mxu0 %v5875
    %6286 = vmatpush2.bf16.msra.mxu0 %v5874
    %6287 = vmatprep.subr.bf16.mxu0 %v5867
    %6288 = vmatpush2.bf16.msra.mxu0 %v5866
    %6289 = vmatprep.subr.bf16.mxu0 %v5859
    %6290 = vmatpush2.bf16.msra.mxu0 %v5858
    %6291 = vmatprep.subr.bf16.mxu0 %v5851
    %6292 = vmatpush2.bf16.msra.mxu0 %v5850
    %6293 = vmatprep.subr.bf16.mxu0 %v5843
    %6294 = vmatpush2.bf16.msra.mxu0 %v5842
    %6295 = vmatprep.subr.bf16.mxu0 %v5835
    %6296 = vmatpush2.bf16.msra.mxu0 %v5834
    %6297 = vmatprep.subr.bf16.mxu0 %v5827
    %6298 = vmatpush2.bf16.msra.mxu0 %v5826
    %6299 = vmatprep.mubr.bf16.mxu0 %v1578
    %6300 = vmatmul.mubr.bf16.gmra.mxu0 %v1577
    %v6301 = vpop.f32.mrf.mxu0
    %v6302 = vadd.f32 %v6261, %v6301
    %v6303 = vpop.f32.mrf.mxu0
    %v6304 = vadd.f32 %v6263, %v6303
    %v6305 = vpop.f32.mrf.mxu0
    %v6306 = vpop.f32.mrf.mxu0
    %6307 = vdwg.mxu0
    %6308 = vmatprep.subr.bf16.mxu0 %v5693
    %6309 = vmatpush1.bf16.msra.mxu0 %v5692
    %6310 = vmatprep.subr.bf16.mxu0 %v5685
    %6311 = vmatpush1.bf16.msra.mxu0 %v5684
    %6312 = vmatprep.subr.bf16.mxu0 %v5677
    %6313 = vmatpush1.bf16.msra.mxu0 %v5676
    %6314 = vmatprep.subr.bf16.mxu0 %v5669
    %6315 = vmatpush1.bf16.msra.mxu0 %v5668
    %6316 = vmatprep.subr.bf16.mxu0 %v5661
    %6317 = vmatpush1.bf16.msra.mxu0 %v5660
    %6318 = vmatprep.subr.bf16.mxu0 %v5653
    %6319 = vmatpush1.bf16.msra.mxu0 %v5652
    %6320 = vmatprep.subr.bf16.mxu0 %v5645
    %6321 = vmatpush1.bf16.msra.mxu0 %v5644
    %6322 = vmatprep.subr.bf16.mxu0 %v5637
    %6323 = vmatpush1.bf16.msra.mxu0 %v5636
    %6324 = vmatprep.subr.bf16.mxu0 %v5757
    %6325 = vmatpush2.bf16.msra.mxu0 %v5756
    %6326 = vmatprep.subr.bf16.mxu0 %v5749
    %6327 = vmatpush2.bf16.msra.mxu0 %v5748
    %6328 = vmatprep.subr.bf16.mxu0 %v5741
    %6329 = vmatpush2.bf16.msra.mxu0 %v5740
    %6330 = vmatprep.subr.bf16.mxu0 %v5733
    %6331 = vmatpush2.bf16.msra.mxu0 %v5732
    %6332 = vmatprep.subr.bf16.mxu0 %v5725
    %6333 = vmatpush2.bf16.msra.mxu0 %v5724
    %6334 = vmatprep.subr.bf16.mxu0 %v5717
    %6335 = vmatpush2.bf16.msra.mxu0 %v5716
    %6336 = vmatprep.subr.bf16.mxu0 %v5709
    %6337 = vmatpush2.bf16.msra.mxu0 %v5708
    %6338 = vmatprep.subr.bf16.mxu0 %v5701
    %6339 = vmatpush2.bf16.msra.mxu0 %v5700
    %6340 = vmatprep.mubr.bf16.mxu0 %v1576
    %6341 = vmatmul.mubr.bf16.gmra.mxu0 %v1575
    %v6342 = vpop.f32.mrf.mxu0
    %v6343 = vadd.f32 %v4843, %v6342
    %v6344 = vpop.f32.mrf.mxu0
    %v6345 = vadd.f32 %v4847, %v6344
    %v6346 = vpop.f32.mrf.mxu0
    %v6347 = vpop.f32.mrf.mxu0
    %6348 = vdwg.mxu0
    %6349 = vmatprep.subr.bf16.mxu0 %v5821
    %6350 = vmatpush1.bf16.msra.mxu0 %v5820
    %6351 = vmatprep.subr.bf16.mxu0 %v5813
    %6352 = vmatpush1.bf16.msra.mxu0 %v5812
    %6353 = vmatprep.subr.bf16.mxu0 %v5805
    %6354 = vmatpush1.bf16.msra.mxu0 %v5804
    %6355 = vmatprep.subr.bf16.mxu0 %v5797
    %6356 = vmatpush1.bf16.msra.mxu0 %v5796
    %6357 = vmatprep.subr.bf16.mxu0 %v5789
    %6358 = vmatpush1.bf16.msra.mxu0 %v5788
    %6359 = vmatprep.subr.bf16.mxu0 %v5781
    %6360 = vmatpush1.bf16.msra.mxu0 %v5780
    %6361 = vmatprep.subr.bf16.mxu0 %v5773
    %6362 = vmatpush1.bf16.msra.mxu0 %v5772
    %6363 = vmatprep.subr.bf16.mxu0 %v5765
    %6364 = vmatpush1.bf16.msra.mxu0 %v5764
    %6365 = vmatprep.subr.bf16.mxu0 %v5885
    %6366 = vmatpush2.bf16.msra.mxu0 %v5884
    %6367 = vmatprep.subr.bf16.mxu0 %v5877
    %6368 = vmatpush2.bf16.msra.mxu0 %v5876
    %6369 = vmatprep.subr.bf16.mxu0 %v5869
    %6370 = vmatpush2.bf16.msra.mxu0 %v5868
    %6371 = vmatprep.subr.bf16.mxu0 %v5861
    %6372 = vmatpush2.bf16.msra.mxu0 %v5860
    %6373 = vmatprep.subr.bf16.mxu0 %v5853
    %6374 = vmatpush2.bf16.msra.mxu0 %v5852
    %6375 = vmatprep.subr.bf16.mxu0 %v5845
    %6376 = vmatpush2.bf16.msra.mxu0 %v5844
    %6377 = vmatprep.subr.bf16.mxu0 %v5837
    %6378 = vmatpush2.bf16.msra.mxu0 %v5836
    %6379 = vmatprep.subr.bf16.mxu0 %v5829
    %6380 = vmatpush2.bf16.msra.mxu0 %v5828
    %6381 = vmatprep.mubr.bf16.mxu0 %v1578
    %6382 = vmatmul.mubr.bf16.gmra.mxu0 %v1577
    %v6383 = vpop.f32.mrf.mxu0
    %v6384 = vadd.f32 %v6343, %v6383
    %v6385 = vpop.f32.mrf.mxu0
    %v6386 = vadd.f32 %v6345, %v6385
    %v6387 = vpop.f32.mrf.mxu0
    %v6388 = vpop.f32.mrf.mxu0
    %6389 = vdwg.mxu0
    %6390 = vmatprep.subr.bf16.mxu0 %v5695
    %6391 = vmatpush1.bf16.msra.mxu0 %v5694
    %6392 = vmatprep.subr.bf16.mxu0 %v5687
    %6393 = vmatpush1.bf16.msra.mxu0 %v5686
    %6394 = vmatprep.subr.bf16.mxu0 %v5679
    %6395 = vmatpush1.bf16.msra.mxu0 %v5678
    %6396 = vmatprep.subr.bf16.mxu0 %v5671
    %6397 = vmatpush1.bf16.msra.mxu0 %v5670
    %6398 = vmatprep.subr.bf16.mxu0 %v5663
    %6399 = vmatpush1.bf16.msra.mxu0 %v5662
    %6400 = vmatprep.subr.bf16.mxu0 %v5655
    %6401 = vmatpush1.bf16.msra.mxu0 %v5654
    %6402 = vmatprep.subr.bf16.mxu0 %v5647
    %6403 = vmatpush1.bf16.msra.mxu0 %v5646
    %6404 = vmatprep.subr.bf16.mxu0 %v5639
    %6405 = vmatpush1.bf16.msra.mxu0 %v5638
    %6406 = vmatprep.subr.bf16.mxu0 %v5759
    %6407 = vmatpush2.bf16.msra.mxu0 %v5758
    %6408 = vmatprep.subr.bf16.mxu0 %v5751
    %6409 = vmatpush2.bf16.msra.mxu0 %v5750
    %6410 = vmatprep.subr.bf16.mxu0 %v5743
    %6411 = vmatpush2.bf16.msra.mxu0 %v5742
    %6412 = vmatprep.subr.bf16.mxu0 %v5735
    %6413 = vmatpush2.bf16.msra.mxu0 %v5734
    %6414 = vmatprep.subr.bf16.mxu0 %v5727
    %6415 = vmatpush2.bf16.msra.mxu0 %v5726
    %6416 = vmatprep.subr.bf16.mxu0 %v5719
    %6417 = vmatpush2.bf16.msra.mxu0 %v5718
    %6418 = vmatprep.subr.bf16.mxu0 %v5711
    %6419 = vmatpush2.bf16.msra.mxu0 %v5710
    %6420 = vmatprep.subr.bf16.mxu0 %v5703
    %6421 = vmatpush2.bf16.msra.mxu0 %v5702
    %6422 = vmatprep.mubr.bf16.mxu0 %v1576
    %6423 = vmatmul.mubr.bf16.gmra.mxu0 %v1575
    %v6424 = vpop.f32.mrf.mxu0
    %v6425 = vadd.f32 %v4851, %v6424
    %v6426 = vpop.f32.mrf.mxu0
    %v6427 = vadd.f32 %v4855, %v6426
    %v6428 = vpop.f32.mrf.mxu0
    %v6429 = vpop.f32.mrf.mxu0
    %6430 = vdwg.mxu0
    %6431 = vmatprep.subr.bf16.mxu0 %v5823
    %6432 = vmatpush1.bf16.msra.mxu0 %v5822
    %6433 = vmatprep.subr.bf16.mxu0 %v5815
    %6434 = vmatpush1.bf16.msra.mxu0 %v5814
    %6435 = vmatprep.subr.bf16.mxu0 %v5807
    %6436 = vmatpush1.bf16.msra.mxu0 %v5806
    %6437 = vmatprep.subr.bf16.mxu0 %v5799
    %6438 = vmatpush1.bf16.msra.mxu0 %v5798
    %6439 = vmatprep.subr.bf16.mxu0 %v5791
    %6440 = vmatpush1.bf16.msra.mxu0 %v5790
    %6441 = vmatprep.subr.bf16.mxu0 %v5783
    %6442 = vmatpush1.bf16.msra.mxu0 %v5782
    %6443 = vmatprep.subr.bf16.mxu0 %v5775
    %6444 = vmatpush1.bf16.msra.mxu0 %v5774
    %6445 = vmatprep.subr.bf16.mxu0 %v5767
    %6446 = vmatpush1.bf16.msra.mxu0 %v5766
    %6447 = vmatprep.subr.bf16.mxu0 %v5887
    %6448 = vmatpush2.bf16.msra.mxu0 %v5886
    %6449 = vmatprep.subr.bf16.mxu0 %v5879
    %6450 = vmatpush2.bf16.msra.mxu0 %v5878
    %6451 = vmatprep.subr.bf16.mxu0 %v5871
    %6452 = vmatpush2.bf16.msra.mxu0 %v5870
    %6453 = vmatprep.subr.bf16.mxu0 %v5863
    %6454 = vmatpush2.bf16.msra.mxu0 %v5862
    %6455 = vmatprep.subr.bf16.mxu0 %v5855
    %6456 = vmatpush2.bf16.msra.mxu0 %v5854
    %6457 = vmatprep.subr.bf16.mxu0 %v5847
    %6458 = vmatpush2.bf16.msra.mxu0 %v5846
    %6459 = vmatprep.subr.bf16.mxu0 %v5839
    %6460 = vmatpush2.bf16.msra.mxu0 %v5838
    %6461 = vmatprep.subr.bf16.mxu0 %v5831
    %6462 = vmatpush2.bf16.msra.mxu0 %v5830
    %6463 = vmatprep.mubr.bf16.mxu0 %v1578
    %6464 = vmatmul.mubr.bf16.gmra.mxu0 %v1577
    %v6465 = vpop.f32.mrf.mxu0
    %v6466 = vadd.f32 %v6425, %v6465
    %v6467 = vpop.f32.mrf.mxu0
    %v6468 = vadd.f32 %v6427, %v6467
    %v6469 = vpop.f32.mrf.mxu0
    %v6470 = vpop.f32.mrf.mxu0
    %6471 = vdwg.mxu0
    %v6472 = vmul.f32 %v6220, %v6220
    %v6473 = vmul.f32 %v6222, %v6222
    %v6474 = vadd.f32 %v6472, %v6473
    %6475 = vadd.xlane.f32.xlu0 %v6474
    %v6476 = vpop.xlane.xlu0 %6475
    %v6477 = vmax.f32 %v6476, 1e-24
    %v6478 = vrsqrt.pop %v6477
    %v6479 = vmul.f32 %v6220, %v6478
    %v6480 = vmul.f32 %v6222, %v6478
    %v6481 = vmul.f32 %v6302, %v6302
    %v6482 = vmul.f32 %v6304, %v6304
    %v6483 = vadd.f32 %v6481, %v6482
    %6484 = vadd.xlane.f32.xlu0 %v6483
    %v6485 = vpop.xlane.xlu0 %6484
    %v6486 = vmax.f32 %v6485, 1e-24
    %v6487 = vrsqrt.pop %v6486
    %v6488 = vmul.f32 %v6302, %v6487
    %v6489 = vmul.f32 %v6304, %v6487
    %v6490 = vmul.f32 %v6384, %v6384
    %v6491 = vmul.f32 %v6386, %v6386
    %v6492 = vadd.f32 %v6490, %v6491
    %6493 = vadd.xlane.f32.xlu0 %v6492
    %v6494 = vpop.xlane.xlu0 %6493
    %v6495 = vmax.f32 %v6494, 1e-24
    %v6496 = vrsqrt.pop %v6495
    %v6497 = vmul.f32 %v6384, %v6496
    %v6498 = vmul.f32 %v6386, %v6496
    %v6499 = vmul.f32 %v6466, %v6466
    %v6500 = vmul.f32 %v6468, %v6468
    %v6501 = vadd.f32 %v6499, %v6500
    %6502 = vadd.xlane.f32.xlu0 %v6501
    %v6503 = vpop.xlane.xlu0 %6502
    %v6504 = vmax.f32 %v6503, 1e-24
    %v6505 = vrsqrt.pop %v6504
    %v6506 = vmul.f32 %v6466, %v6505
    %v6507 = vmul.f32 %v6468, %v6505
    %6508 = vst [vmem:[#allocation17] sm:$0xff] %v6479
    %6509 = vst [vmem:[#allocation17 + $0x8] sm:$0xff] %v6480
    %6510 = vst [vmem:[#allocation17 + $0x10] sm:$0xff] %v6488
    %6511 = vst [vmem:[#allocation17 + $0x18] sm:$0xff] %v6489
    %6512 = vst [vmem:[#allocation17 + $0x20] sm:$0xff] %v6497
    %6513 = vst [vmem:[#allocation17 + $0x28] sm:$0xff] %v6498
    %6514 = vst [vmem:[#allocation17 + $0x30] sm:$0xff] %v6506
    %6515 = vst [vmem:[#allocation17 + $0x38] sm:$0xff] %v6507
    %v6516 = vpack.c.bf16 %v6479, %v6479
    %v6517 = vpack.c.bf16 %v6480, %v6480
    %v6518 = vpack.c.bf16 %v6488, %v6488
    %v6519 = vpack.c.bf16 %v6489, %v6489
    %v6520 = vpack.c.bf16 %v6497, %v6497
    %v6521 = vpack.c.bf16 %v6498, %v6498
    %v6522 = vpack.c.bf16 %v6506, %v6506
    %v6523 = vpack.c.bf16 %v6507, %v6507
    %v6524 = vld [vmem:[#allocation11] sm:$0xff]
    %v6525 = vld [vmem:[#allocation11 + $0x8] sm:$0xf]
    %v6526 = vld [vmem:[#allocation11 + $0xc] sm:$0xff]
    %v6527 = vld [vmem:[#allocation11 + $0x14] sm:$0xf]
    %v6528 = vld [vmem:[#allocation11 + $0x18] sm:$0xff]
    %v6529 = vld [vmem:[#allocation11 + $0x20] sm:$0xf]
    %v6530 = vld [vmem:[#allocation11 + $0x24] sm:$0xff]
    %v6531 = vld [vmem:[#allocation11 + $0x2c] sm:$0xf]
    %v6532 = vld [vmem:[#allocation11 + $0x30] sm:$0xff]
    %v6533 = vld [vmem:[#allocation11 + $0x38] sm:$0xf]
    %v6534 = vld [vmem:[#allocation11 + $0x3c] sm:$0xff]
    %v6535 = vld [vmem:[#allocation11 + $0x44] sm:$0xf]
    %v6536 = vld [vmem:[#allocation11 + $0x48] sm:$0xff]
    %v6537 = vld [vmem:[#allocation11 + $0x50] sm:$0xf]
    %v6538 = vld [vmem:[#allocation11 + $0x54] sm:$0xff]
    %v6539 = vld [vmem:[#allocation11 + $0x5c] sm:$0xf]
    %v6540 = vld [vmem:[#allocation11 + $0x60] sm:$0xff]
    %v6541 = vld [vmem:[#allocation11 + $0x68] sm:$0xf]
    %v6542 = vld [vmem:[#allocation11 + $0x6c] sm:$0xff]
    %v6543 = vld [vmem:[#allocation11 + $0x74] sm:$0xf]
    %v6544 = vld [vmem:[#allocation11 + $0x78] sm:$0xff]
    %v6545 = vld [vmem:[#allocation11 + $0x80] sm:$0xf]
    %v6546 = vld [vmem:[#allocation11 + $0x84] sm:$0xff]
    %v6547 = vld [vmem:[#allocation11 + $0x8c] sm:$0xf]
    %v6548 = vld [vmem:[#allocation11 + $0x90] sm:$0xff]
    %v6549 = vld [vmem:[#allocation11 + $0x98] sm:$0xf]
    %v6550 = vld [vmem:[#allocation11 + $0x9c] sm:$0xff]
    %v6551 = vld [vmem:[#allocation11 + $0xa4] sm:$0xf]
    %v6552 = vld [vmem:[#allocation11 + $0xa8] sm:$0xff]
    %v6553 = vld [vmem:[#allocation11 + $0xb0] sm:$0xf]
    %v6554 = vld [vmem:[#allocation11 + $0xb4] sm:$0xff]
    %v6555 = vld [vmem:[#allocation11 + $0xbc] sm:$0xf]
    %v6556 = vld [vmem:[#allocation11 + $0xc0] sm:$0xff]
    %v6557 = vld [vmem:[#allocation11 + $0xc8] sm:$0xf]
    %v6558 = vld [vmem:[#allocation11 + $0xcc] sm:$0xff]
    %v6559 = vld [vmem:[#allocation11 + $0xd4] sm:$0xf]
    %v6560 = vld [vmem:[#allocation11 + $0xd8] sm:$0xff]
    %v6561 = vld [vmem:[#allocation11 + $0xe0] sm:$0xf]
    %v6562 = vld [vmem:[#allocation11 + $0xe4] sm:$0xff]
    %v6563 = vld [vmem:[#allocation11 + $0xec] sm:$0xf]
    %v6564 = vld [vmem:[#allocation11 + $0xf0] sm:$0xff]
    %v6565 = vld [vmem:[#allocation11 + $0xf8] sm:$0xf]
    %v6566 = vld [vmem:[#allocation11 + $0xfc] sm:$0xff]
    %v6567 = vld [vmem:[#allocation11 + $0x104] sm:$0xf]
    %v6568 = vld [vmem:[#allocation11 + $0x108] sm:$0xff]
    %v6569 = vld [vmem:[#allocation11 + $0x110] sm:$0xf]
    %v6570 = vld [vmem:[#allocation11 + $0x114] sm:$0xff]
    %v6571 = vld [vmem:[#allocation11 + $0x11c] sm:$0xf]
    %v6572 = vld [vmem:[#allocation11 + $0x120] sm:$0xff]
    %v6573 = vld [vmem:[#allocation11 + $0x128] sm:$0xf]
    %v6574 = vld [vmem:[#allocation11 + $0x12c] sm:$0xff]
    %v6575 = vld [vmem:[#allocation11 + $0x134] sm:$0xf]
    %v6576 = vld [vmem:[#allocation11 + $0x138] sm:$0xff]
    %v6577 = vld [vmem:[#allocation11 + $0x140] sm:$0xf]
    %v6578 = vld [vmem:[#allocation11 + $0x144] sm:$0xff]
    %v6579 = vld [vmem:[#allocation11 + $0x14c] sm:$0xf]
    %v6580 = vld [vmem:[#allocation11 + $0x150] sm:$0xff]
    %v6581 = vld [vmem:[#allocation11 + $0x158] sm:$0xf]
    %v6582 = vld [vmem:[#allocation11 + $0x15c] sm:$0xff]
    %v6583 = vld [vmem:[#allocation11 + $0x164] sm:$0xf]
    %v6584 = vld [vmem:[#allocation11 + $0x168] sm:$0xff]
    %v6585 = vld [vmem:[#allocation11 + $0x170] sm:$0xf]
    %v6586 = vld [vmem:[#allocation11 + $0x174] sm:$0xff]
    %v6587 = vld [vmem:[#allocation11 + $0x17c] sm:$0xf]
    %v6588 = vld [vmem:[#allocation11 + $0x180] sm:$0xff]
    %v6589 = vld [vmem:[#allocation11 + $0x188] sm:$0xf]
    %v6590 = vld [vmem:[#allocation11 + $0x18c] sm:$0xff]
    %v6591 = vld [vmem:[#allocation11 + $0x194] sm:$0xf]
    %v6592 = vld [vmem:[#allocation11 + $0x198] sm:$0xff]
    %v6593 = vld [vmem:[#allocation11 + $0x1a0] sm:$0xf]
    %v6594 = vld [vmem:[#allocation11 + $0x1a4] sm:$0xff]
    %v6595 = vld [vmem:[#allocation11 + $0x1ac] sm:$0xf]
    %v6596 = vld [vmem:[#allocation11 + $0x1b0] sm:$0xff]
    %v6597 = vld [vmem:[#allocation11 + $0x1b8] sm:$0xf]
    %v6598 = vld [vmem:[#allocation11 + $0x1bc] sm:$0xff]
    %v6599 = vld [vmem:[#allocation11 + $0x1c4] sm:$0xf]
    %v6600 = vld [vmem:[#allocation11 + $0x1c8] sm:$0xff]
    %v6601 = vld [vmem:[#allocation11 + $0x1d0] sm:$0xf]
    %v6602 = vld [vmem:[#allocation11 + $0x1d4] sm:$0xff]
    %v6603 = vld [vmem:[#allocation11 + $0x1dc] sm:$0xf]
    %v6604 = vld [vmem:[#allocation11 + $0x1e0] sm:$0xff]
    %v6605 = vld [vmem:[#allocation11 + $0x1e8] sm:$0xf]
    %v6606 = vld [vmem:[#allocation11 + $0x1ec] sm:$0xff]
    %v6607 = vld [vmem:[#allocation11 + $0x1f4] sm:$0xf]
    %v6608 = vld [vmem:[#allocation11 + $0x1f8] sm:$0xff]
    %v6609 = vld [vmem:[#allocation11 + $0x200] sm:$0xf]
    %v6610 = vld [vmem:[#allocation11 + $0x204] sm:$0xff]
    %v6611 = vld [vmem:[#allocation11 + $0x20c] sm:$0xf]
    %v6612 = vld [vmem:[#allocation11 + $0x210] sm:$0xff]
    %v6613 = vld [vmem:[#allocation11 + $0x218] sm:$0xf]
    %v6614 = vld [vmem:[#allocation11 + $0x21c] sm:$0xff]
    %v6615 = vld [vmem:[#allocation11 + $0x224] sm:$0xf]
    %v6616 = vld [vmem:[#allocation11 + $0x228] sm:$0xff]
    %v6617 = vld [vmem:[#allocation11 + $0x230] sm:$0xf]
    %v6618 = vld [vmem:[#allocation11 + $0x234] sm:$0xff]
    %v6619 = vld [vmem:[#allocation11 + $0x23c] sm:$0xf]
    %v6620 = vld [vmem:[#allocation11 + $0x240] sm:$0xff]
    %v6621 = vld [vmem:[#allocation11 + $0x248] sm:$0xf]
    %v6622 = vld [vmem:[#allocation11 + $0x24c] sm:$0xff]
    %v6623 = vld [vmem:[#allocation11 + $0x254] sm:$0xf]
    %v6624 = vld [vmem:[#allocation11 + $0x258] sm:$0xff]
    %v6625 = vld [vmem:[#allocation11 + $0x260] sm:$0xf]
    %v6626 = vld [vmem:[#allocation11 + $0x264] sm:$0xff]
    %v6627 = vld [vmem:[#allocation11 + $0x26c] sm:$0xf]
    %v6628 = vld [vmem:[#allocation11 + $0x270] sm:$0xff]
    %v6629 = vld [vmem:[#allocation11 + $0x278] sm:$0xf]
    %v6630 = vld [vmem:[#allocation11 + $0x27c] sm:$0xff]
    %v6631 = vld [vmem:[#allocation11 + $0x284] sm:$0xf]
    %v6632 = vld [vmem:[#allocation11 + $0x288] sm:$0xff]
    %v6633 = vld [vmem:[#allocation11 + $0x290] sm:$0xf]
    %v6634 = vld [vmem:[#allocation11 + $0x294] sm:$0xff]
    %v6635 = vld [vmem:[#allocation11 + $0x29c] sm:$0xf]
    %v6636 = vld [vmem:[#allocation11 + $0x2a0] sm:$0xff]
    %v6637 = vld [vmem:[#allocation11 + $0x2a8] sm:$0xf]
    %v6638 = vld [vmem:[#allocation11 + $0x2ac] sm:$0xff]
    %v6639 = vld [vmem:[#allocation11 + $0x2b4] sm:$0xf]
    %v6640 = vld [vmem:[#allocation11 + $0x2b8] sm:$0xff]
    %v6641 = vld [vmem:[#allocation11 + $0x2c0] sm:$0xf]
    %v6642 = vld [vmem:[#allocation11 + $0x2c4] sm:$0xff]
    %v6643 = vld [vmem:[#allocation11 + $0x2cc] sm:$0xf]
    %v6644 = vld [vmem:[#allocation11 + $0x2d0] sm:$0xff]
    %v6645 = vld [vmem:[#allocation11 + $0x2d8] sm:$0xf]
    %v6646 = vld [vmem:[#allocation11 + $0x2dc] sm:$0xff]
    %v6647 = vld [vmem:[#allocation11 + $0x2e4] sm:$0xf]
    %v6648 = vld [vmem:[#allocation11 + $0x2e8] sm:$0xff]
    %v6649 = vld [vmem:[#allocation11 + $0x2f0] sm:$0xf]
    %v6650 = vld [vmem:[#allocation11 + $0x2f4] sm:$0xff]
    %v6651 = vld [vmem:[#allocation11 + $0x2fc] sm:$0xf]
    %v6652 = vld [vmem:[#allocation11 + $0x300] sm:$0xff]
    %v6653 = vld [vmem:[#allocation11 + $0x308] sm:$0xf]
    %v6654 = vld [vmem:[#allocation11 + $0x30c] sm:$0xff]
    %v6655 = vld [vmem:[#allocation11 + $0x314] sm:$0xf]
    %v6656 = vld [vmem:[#allocation11 + $0x318] sm:$0xff]
    %v6657 = vld [vmem:[#allocation11 + $0x320] sm:$0xf]
    %v6658 = vld [vmem:[#allocation11 + $0x324] sm:$0xff]
    %v6659 = vld [vmem:[#allocation11 + $0x32c] sm:$0xf]
    %v6660 = vld [vmem:[#allocation11 + $0x330] sm:$0xff]
    %v6661 = vld [vmem:[#allocation11 + $0x338] sm:$0xf]
    %v6662 = vld [vmem:[#allocation11 + $0x33c] sm:$0xff]
    %v6663 = vld [vmem:[#allocation11 + $0x344] sm:$0xf]
    %v6664 = vld [vmem:[#allocation11 + $0x348] sm:$0xff]
    %v6665 = vld [vmem:[#allocation11 + $0x350] sm:$0xf]
    %v6666 = vld [vmem:[#allocation11 + $0x354] sm:$0xff]
    %v6667 = vld [vmem:[#allocation11 + $0x35c] sm:$0xf]
    %v6668 = vld [vmem:[#allocation11 + $0x360] sm:$0xff]
    %v6669 = vld [vmem:[#allocation11 + $0x368] sm:$0xf]
    %v6670 = vld [vmem:[#allocation11 + $0x36c] sm:$0xff]
    %v6671 = vld [vmem:[#allocation11 + $0x374] sm:$0xf]
    %v6672 = vld [vmem:[#allocation11 + $0x378] sm:$0xff]
    %v6673 = vld [vmem:[#allocation11 + $0x380] sm:$0xf]
    %v6674 = vld [vmem:[#allocation11 + $0x384] sm:$0xff]
    %v6675 = vld [vmem:[#allocation11 + $0x38c] sm:$0xf]
    %v6676 = vld [vmem:[#allocation11 + $0x390] sm:$0xff]
    %v6677 = vld [vmem:[#allocation11 + $0x398] sm:$0xf]
    %v6678 = vld [vmem:[#allocation11 + $0x39c] sm:$0xff]
    %v6679 = vld [vmem:[#allocation11 + $0x3a4] sm:$0xf]
    %v6680 = vld [vmem:[#allocation11 + $0x3a8] sm:$0xff]
    %v6681 = vld [vmem:[#allocation11 + $0x3b0] sm:$0xf]
    %v6682 = vld [vmem:[#allocation11 + $0x3b4] sm:$0xff]
    %v6683 = vld [vmem:[#allocation11 + $0x3bc] sm:$0xf]
    %v6684 = vld [vmem:[#allocation11 + $0x3c0] sm:$0xff]
    %v6685 = vld [vmem:[#allocation11 + $0x3c8] sm:$0xf]
    %v6686 = vld [vmem:[#allocation11 + $0x3cc] sm:$0xff]
    %v6687 = vld [vmem:[#allocation11 + $0x3d4] sm:$0xf]
    %v6688 = vld [vmem:[#allocation11 + $0x3d8] sm:$0xff]
    %v6689 = vld [vmem:[#allocation11 + $0x3e0] sm:$0xf]
    %v6690 = vld [vmem:[#allocation11 + $0x3e4] sm:$0xff]
    %v6691 = vld [vmem:[#allocation11 + $0x3ec] sm:$0xf]
    %v6692 = vld [vmem:[#allocation11 + $0x3f0] sm:$0xff]
    %v6693 = vld [vmem:[#allocation11 + $0x3f8] sm:$0xf]
    %v6694 = vld [vmem:[#allocation11 + $0x3fc] sm:$0xff]
    %v6695 = vld [vmem:[#allocation11 + $0x404] sm:$0xf]
    %v6696 = vld [vmem:[#allocation11 + $0x408] sm:$0xff]
    %v6697 = vld [vmem:[#allocation11 + $0x410] sm:$0xf]
    %v6698 = vld [vmem:[#allocation11 + $0x414] sm:$0xff]
    %v6699 = vld [vmem:[#allocation11 + $0x41c] sm:$0xf]
    %v6700 = vld [vmem:[#allocation11 + $0x420] sm:$0xff]
    %v6701 = vld [vmem:[#allocation11 + $0x428] sm:$0xf]
    %v6702 = vld [vmem:[#allocation11 + $0x42c] sm:$0xff]
    %v6703 = vld [vmem:[#allocation11 + $0x434] sm:$0xf]
    %v6704 = vld [vmem:[#allocation11 + $0x438] sm:$0xff]
    %v6705 = vld [vmem:[#allocation11 + $0x440] sm:$0xf]
    %v6706 = vld [vmem:[#allocation11 + $0x444] sm:$0xff]
    %v6707 = vld [vmem:[#allocation11 + $0x44c] sm:$0xf]
    %v6708 = vld [vmem:[#allocation11 + $0x450] sm:$0xff]
    %v6709 = vld [vmem:[#allocation11 + $0x458] sm:$0xf]
    %v6710 = vld [vmem:[#allocation11 + $0x45c] sm:$0xff]
    %v6711 = vld [vmem:[#allocation11 + $0x464] sm:$0xf]
    %v6712 = vld [vmem:[#allocation11 + $0x468] sm:$0xff]
    %v6713 = vld [vmem:[#allocation11 + $0x470] sm:$0xf]
    %v6714 = vld [vmem:[#allocation11 + $0x474] sm:$0xff]
    %v6715 = vld [vmem:[#allocation11 + $0x47c] sm:$0xf]
    %v6716 = vld [vmem:[#allocation11 + $0x480] sm:$0xff]
    %v6717 = vld [vmem:[#allocation11 + $0x488] sm:$0xf]
    %v6718 = vld [vmem:[#allocation11 + $0x48c] sm:$0xff]
    %v6719 = vld [vmem:[#allocation11 + $0x494] sm:$0xf]
    %v6720 = vld [vmem:[#allocation11 + $0x498] sm:$0xff]
    %v6721 = vld [vmem:[#allocation11 + $0x4a0] sm:$0xf]
    %v6722 = vld [vmem:[#allocation11 + $0x4a4] sm:$0xff]
    %v6723 = vld [vmem:[#allocation11 + $0x4ac] sm:$0xf]
    %v6724 = vld [vmem:[#allocation11 + $0x4b0] sm:$0xff]
    %v6725 = vld [vmem:[#allocation11 + $0x4b8] sm:$0xf]
    %v6726 = vld [vmem:[#allocation11 + $0x4bc] sm:$0xff]
    %v6727 = vld [vmem:[#allocation11 + $0x4c4] sm:$0xf]
    %v6728 = vld [vmem:[#allocation11 + $0x4c8] sm:$0xff]
    %v6729 = vld [vmem:[#allocation11 + $0x4d0] sm:$0xf]
    %v6730 = vld [vmem:[#allocation11 + $0x4d4] sm:$0xff]
    %v6731 = vld [vmem:[#allocation11 + $0x4dc] sm:$0xf]
    %v6732 = vld [vmem:[#allocation11 + $0x4e0] sm:$0xff]
    %v6733 = vld [vmem:[#allocation11 + $0x4e8] sm:$0xf]
    %v6734 = vld [vmem:[#allocation11 + $0x4ec] sm:$0xff]
    %v6735 = vld [vmem:[#allocation11 + $0x4f4] sm:$0xf]
    %v6736 = vld [vmem:[#allocation11 + $0x4f8] sm:$0xff]
    %v6737 = vld [vmem:[#allocation11 + $0x500] sm:$0xf]
    %v6738 = vld [vmem:[#allocation11 + $0x504] sm:$0xff]
    %v6739 = vld [vmem:[#allocation11 + $0x50c] sm:$0xf]
    %v6740 = vld [vmem:[#allocation11 + $0x510] sm:$0xff]
    %v6741 = vld [vmem:[#allocation11 + $0x518] sm:$0xf]
    %v6742 = vld [vmem:[#allocation11 + $0x51c] sm:$0xff]
    %v6743 = vld [vmem:[#allocation11 + $0x524] sm:$0xf]
    %v6744 = vld [vmem:[#allocation11 + $0x528] sm:$0xff]
    %v6745 = vld [vmem:[#allocation11 + $0x530] sm:$0xf]
    %v6746 = vld [vmem:[#allocation11 + $0x534] sm:$0xff]
    %v6747 = vld [vmem:[#allocation11 + $0x53c] sm:$0xf]
    %v6748 = vld [vmem:[#allocation11 + $0x540] sm:$0xff]
    %v6749 = vld [vmem:[#allocation11 + $0x548] sm:$0xf]
    %v6750 = vld [vmem:[#allocation11 + $0x54c] sm:$0xff]
    %v6751 = vld [vmem:[#allocation11 + $0x554] sm:$0xf]
    %v6752 = vld [vmem:[#allocation11 + $0x558] sm:$0xff]
    %v6753 = vld [vmem:[#allocation11 + $0x560] sm:$0xf]
    %v6754 = vld [vmem:[#allocation11 + $0x564] sm:$0xff]
    %v6755 = vld [vmem:[#allocation11 + $0x56c] sm:$0xf]
    %v6756 = vld [vmem:[#allocation11 + $0x570] sm:$0xff]
    %v6757 = vld [vmem:[#allocation11 + $0x578] sm:$0xf]
    %v6758 = vld [vmem:[#allocation11 + $0x57c] sm:$0xff]
    %v6759 = vld [vmem:[#allocation11 + $0x584] sm:$0xf]
    %v6760 = vld [vmem:[#allocation11 + $0x588] sm:$0xff]
    %v6761 = vld [vmem:[#allocation11 + $0x590] sm:$0xf]
    %v6762 = vld [vmem:[#allocation11 + $0x594] sm:$0xff]
    %v6763 = vld [vmem:[#allocation11 + $0x59c] sm:$0xf]
    %v6764 = vld [vmem:[#allocation11 + $0x5a0] sm:$0xff]
    %v6765 = vld [vmem:[#allocation11 + $0x5a8] sm:$0xf]
    %v6766 = vld [vmem:[#allocation11 + $0x5ac] sm:$0xff]
    %v6767 = vld [vmem:[#allocation11 + $0x5b4] sm:$0xf]
    %v6768 = vld [vmem:[#allocation11 + $0x5b8] sm:$0xff]
    %v6769 = vld [vmem:[#allocation11 + $0x5c0] sm:$0xf]
    %v6770 = vld [vmem:[#allocation11 + $0x5c4] sm:$0xff]
    %v6771 = vld [vmem:[#allocation11 + $0x5cc] sm:$0xf]
    %v6772 = vld [vmem:[#allocation11 + $0x5d0] sm:$0xff]
    %v6773 = vld [vmem:[#allocation11 + $0x5d8] sm:$0xf]
    %v6774 = vld [vmem:[#allocation11 + $0x5dc] sm:$0xff]
    %v6775 = vld [vmem:[#allocation11 + $0x5e4] sm:$0xf]
    %v6776 = vld [vmem:[#allocation11 + $0x5e8] sm:$0xff]
    %v6777 = vld [vmem:[#allocation11 + $0x5f0] sm:$0xf]
    %v6778 = vld [vmem:[#allocation11 + $0x5f4] sm:$0xff]
    %v6779 = vld [vmem:[#allocation11 + $0x5fc] sm:$0xf]
    %v7036 = vunpack.c.l.b16 %v6524
    %v7037 = vunpack.c.h.b16 %v6524
    %v7038 = vunpack.c.l.b16 %v6525
    %v7039 = vunpack.c.l.b16 %v6526
    %v7040 = vunpack.c.h.b16 %v6526
    %v7041 = vunpack.c.l.b16 %v6527
    %v7042 = vunpack.c.l.b16 %v6528
    %v7043 = vunpack.c.h.b16 %v6528
    %v7044 = vunpack.c.l.b16 %v6529
    %v7045 = vunpack.c.l.b16 %v6530
    %v7046 = vunpack.c.h.b16 %v6530
    %v7047 = vunpack.c.l.b16 %v6531
    %v7048 = vunpack.c.l.b16 %v6532
    %v7049 = vunpack.c.h.b16 %v6532
    %v7050 = vunpack.c.l.b16 %v6533
    %v7051 = vunpack.c.l.b16 %v6534
    %v7052 = vunpack.c.h.b16 %v6534
    %v7053 = vunpack.c.l.b16 %v6535
    %v7054 = vunpack.c.l.b16 %v6536
    %v7055 = vunpack.c.h.b16 %v6536
    %v7056 = vunpack.c.l.b16 %v6537
    %v7057 = vunpack.c.l.b16 %v6538
    %v7058 = vunpack.c.h.b16 %v6538
    %v7059 = vunpack.c.l.b16 %v6539
    %v7060 = vunpack.c.l.b16 %v6540
    %v7061 = vunpack.c.h.b16 %v6540
    %v7062 = vunpack.c.l.b16 %v6541
    %v7063 = vunpack.c.l.b16 %v6542
    %v7064 = vunpack.c.h.b16 %v6542
    %v7065 = vunpack.c.l.b16 %v6543
    %v7066 = vunpack.c.l.b16 %v6544
    %v7067 = vunpack.c.h.b16 %v6544
    %v7068 = vunpack.c.l.b16 %v6545
    %v7069 = vunpack.c.l.b16 %v6546
    %v7070 = vunpack.c.h.b16 %v6546
    %v7071 = vunpack.c.l.b16 %v6547
    %v7072 = vunpack.c.l.b16 %v6548
    %v7073 = vunpack.c.h.b16 %v6548
    %v7074 = vunpack.c.l.b16 %v6549
    %v7075 = vunpack.c.l.b16 %v6550
    %v7076 = vunpack.c.h.b16 %v6550
    %v7077 = vunpack.c.l.b16 %v6551
    %v7078 = vunpack.c.l.b16 %v6552
    %v7079 = vunpack.c.h.b16 %v6552
    %v7080 = vunpack.c.l.b16 %v6553
    %v7081 = vunpack.c.l.b16 %v6554
    %v7082 = vunpack.c.h.b16 %v6554
    %v7083 = vunpack.c.l.b16 %v6555
    %v7084 = vunpack.c.l.b16 %v6556
    %v7085 = vunpack.c.h.b16 %v6556
    %v7086 = vunpack.c.l.b16 %v6557
    %v7087 = vunpack.c.l.b16 %v6558
    %v7088 = vunpack.c.h.b16 %v6558
    %v7089 = vunpack.c.l.b16 %v6559
    %v7090 = vunpack.c.l.b16 %v6560
    %v7091 = vunpack.c.h.b16 %v6560
    %v7092 = vunpack.c.l.b16 %v6561
    %v7093 = vunpack.c.l.b16 %v6562
    %v7094 = vunpack.c.h.b16 %v6562
    %v7095 = vunpack.c.l.b16 %v6563
    %v7096 = vunpack.c.l.b16 %v6564
    %v7097 = vunpack.c.h.b16 %v6564
    %v7098 = vunpack.c.l.b16 %v6565
    %v7099 = vunpack.c.l.b16 %v6566
    %v7100 = vunpack.c.h.b16 %v6566
    %v7101 = vunpack.c.l.b16 %v6567
    %v7102 = vunpack.c.l.b16 %v6568
    %v7103 = vunpack.c.h.b16 %v6568
    %v7104 = vunpack.c.l.b16 %v6569
    %v7105 = vunpack.c.l.b16 %v6570
    %v7106 = vunpack.c.h.b16 %v6570
    %v7107 = vunpack.c.l.b16 %v6571
    %v7108 = vunpack.c.l.b16 %v6572
    %v7109 = vunpack.c.h.b16 %v6572
    %v7110 = vunpack.c.l.b16 %v6573
    %v7111 = vunpack.c.l.b16 %v6574
    %v7112 = vunpack.c.h.b16 %v6574
    %v7113 = vunpack.c.l.b16 %v6575
    %v7114 = vunpack.c.l.b16 %v6576
    %v7115 = vunpack.c.h.b16 %v6576
    %v7116 = vunpack.c.l.b16 %v6577
    %v7117 = vunpack.c.l.b16 %v6578
    %v7118 = vunpack.c.h.b16 %v6578
    %v7119 = vunpack.c.l.b16 %v6579
    %v7120 = vunpack.c.l.b16 %v6580
    %v7121 = vunpack.c.h.b16 %v6580
    %v7122 = vunpack.c.l.b16 %v6581
    %v7123 = vunpack.c.l.b16 %v6582
    %v7124 = vunpack.c.h.b16 %v6582
    %v7125 = vunpack.c.l.b16 %v6583
    %v7126 = vunpack.c.l.b16 %v6584
    %v7127 = vunpack.c.h.b16 %v6584
    %v7128 = vunpack.c.l.b16 %v6585
    %v7129 = vunpack.c.l.b16 %v6586
    %v7130 = vunpack.c.h.b16 %v6586
    %v7131 = vunpack.c.l.b16 %v6587
    %v7132 = vunpack.c.l.b16 %v6588
    %v7133 = vunpack.c.h.b16 %v6588
    %v7134 = vunpack.c.l.b16 %v6589
    %v7135 = vunpack.c.l.b16 %v6590
    %v7136 = vunpack.c.h.b16 %v6590
    %v7137 = vunpack.c.l.b16 %v6591
    %v7138 = vunpack.c.l.b16 %v6592
    %v7139 = vunpack.c.h.b16 %v6592
    %v7140 = vunpack.c.l.b16 %v6593
    %v7141 = vunpack.c.l.b16 %v6594
    %v7142 = vunpack.c.h.b16 %v6594
    %v7143 = vunpack.c.l.b16 %v6595
    %v7144 = vunpack.c.l.b16 %v6596
    %v7145 = vunpack.c.h.b16 %v6596
    %v7146 = vunpack.c.l.b16 %v6597
    %v7147 = vunpack.c.l.b16 %v6598
    %v7148 = vunpack.c.h.b16 %v6598
    %v7149 = vunpack.c.l.b16 %v6599
    %v7150 = vunpack.c.l.b16 %v6600
    %v7151 = vunpack.c.h.b16 %v6600
    %v7152 = vunpack.c.l.b16 %v6601
    %v7153 = vunpack.c.l.b16 %v6602
    %v7154 = vunpack.c.h.b16 %v6602
    %v7155 = vunpack.c.l.b16 %v6603
    %v7156 = vunpack.c.l.b16 %v6604
    %v7157 = vunpack.c.h.b16 %v6604
    %v7158 = vunpack.c.l.b16 %v6605
    %v7159 = vunpack.c.l.b16 %v6606
    %v7160 = vunpack.c.h.b16 %v6606
    %v7161 = vunpack.c.l.b16 %v6607
    %v7162 = vunpack.c.l.b16 %v6608
    %v7163 = vunpack.c.h.b16 %v6608
    %v7164 = vunpack.c.l.b16 %v6609
    %v7165 = vunpack.c.l.b16 %v6610
    %v7166 = vunpack.c.h.b16 %v6610
    %v7167 = vunpack.c.l.b16 %v6611
    %v7168 = vunpack.c.l.b16 %v6612
    %v7169 = vunpack.c.h.b16 %v6612
    %v7170 = vunpack.c.l.b16 %v6613
    %v7171 = vunpack.c.l.b16 %v6614
    %v7172 = vunpack.c.h.b16 %v6614
    %v7173 = vunpack.c.l.b16 %v6615
    %v7174 = vunpack.c.l.b16 %v6616
    %v7175 = vunpack.c.h.b16 %v6616
    %v7176 = vunpack.c.l.b16 %v6617
    %v7177 = vunpack.c.l.b16 %v6618
    %v7178 = vunpack.c.h.b16 %v6618
    %v7179 = vunpack.c.l.b16 %v6619
    %v7180 = vunpack.c.l.b16 %v6620
    %v7181 = vunpack.c.h.b16 %v6620
    %v7182 = vunpack.c.l.b16 %v6621
    %v7183 = vunpack.c.l.b16 %v6622
    %v7184 = vunpack.c.h.b16 %v6622
    %v7185 = vunpack.c.l.b16 %v6623
    %v7186 = vunpack.c.l.b16 %v6624
    %v7187 = vunpack.c.h.b16 %v6624
    %v7188 = vunpack.c.l.b16 %v6625
    %v7189 = vunpack.c.l.b16 %v6626
    %v7190 = vunpack.c.h.b16 %v6626
    %v7191 = vunpack.c.l.b16 %v6627
    %v7192 = vunpack.c.l.b16 %v6628
    %v7193 = vunpack.c.h.b16 %v6628
    %v7194 = vunpack.c.l.b16 %v6629
    %v7195 = vunpack.c.l.b16 %v6630
    %v7196 = vunpack.c.h.b16 %v6630
    %v7197 = vunpack.c.l.b16 %v6631
    %v7198 = vunpack.c.l.b16 %v6632
    %v7199 = vunpack.c.h.b16 %v6632
    %v7200 = vunpack.c.l.b16 %v6633
    %v7201 = vunpack.c.l.b16 %v6634
    %v7202 = vunpack.c.h.b16 %v6634
    %v7203 = vunpack.c.l.b16 %v6635
    %v7204 = vunpack.c.l.b16 %v6636
    %v7205 = vunpack.c.h.b16 %v6636
    %v7206 = vunpack.c.l.b16 %v6637
    %v7207 = vunpack.c.l.b16 %v6638
    %v7208 = vunpack.c.h.b16 %v6638
    %v7209 = vunpack.c.l.b16 %v6639
    %v7210 = vunpack.c.l.b16 %v6640
    %v7211 = vunpack.c.h.b16 %v6640
    %v7212 = vunpack.c.l.b16 %v6641
    %v7213 = vunpack.c.l.b16 %v6642
    %v7214 = vunpack.c.h.b16 %v6642
    %v7215 = vunpack.c.l.b16 %v6643
    %v7216 = vunpack.c.l.b16 %v6644
    %v7217 = vunpack.c.h.b16 %v6644
    %v7218 = vunpack.c.l.b16 %v6645
    %v7219 = vunpack.c.l.b16 %v6646
    %v7220 = vunpack.c.h.b16 %v6646
    %v7221 = vunpack.c.l.b16 %v6647
    %v7222 = vunpack.c.l.b16 %v6648
    %v7223 = vunpack.c.h.b16 %v6648
    %v7224 = vunpack.c.l.b16 %v6649
    %v7225 = vunpack.c.l.b16 %v6650
    %v7226 = vunpack.c.h.b16 %v6650
    %v7227 = vunpack.c.l.b16 %v6651
    %v7228 = vunpack.c.l.b16 %v6652
    %v7229 = vunpack.c.h.b16 %v6652
    %v7230 = vunpack.c.l.b16 %v6653
    %v7231 = vunpack.c.l.b16 %v6654
    %v7232 = vunpack.c.h.b16 %v6654
    %v7233 = vunpack.c.l.b16 %v6655
    %v7234 = vunpack.c.l.b16 %v6656
    %v7235 = vunpack.c.h.b16 %v6656
    %v7236 = vunpack.c.l.b16 %v6657
    %v7237 = vunpack.c.l.b16 %v6658
    %v7238 = vunpack.c.h.b16 %v6658
    %v7239 = vunpack.c.l.b16 %v6659
    %v7240 = vunpack.c.l.b16 %v6660
    %v7241 = vunpack.c.h.b16 %v6660
    %v7242 = vunpack.c.l.b16 %v6661
    %v7243 = vunpack.c.l.b16 %v6662
    %v7244 = vunpack.c.h.b16 %v6662
    %v7245 = vunpack.c.l.b16 %v6663
    %v7246 = vunpack.c.l.b16 %v6664
    %v7247 = vunpack.c.h.b16 %v6664
    %v7248 = vunpack.c.l.b16 %v6665
    %v7249 = vunpack.c.l.b16 %v6666
    %v7250 = vunpack.c.h.b16 %v6666
    %v7251 = vunpack.c.l.b16 %v6667
    %v7252 = vunpack.c.l.b16 %v6668
    %v7253 = vunpack.c.h.b16 %v6668
    %v7254 = vunpack.c.l.b16 %v6669
    %v7255 = vunpack.c.l.b16 %v6670
    %v7256 = vunpack.c.h.b16 %v6670
    %v7257 = vunpack.c.l.b16 %v6671
    %v7258 = vunpack.c.l.b16 %v6672
    %v7259 = vunpack.c.h.b16 %v6672
    %v7260 = vunpack.c.l.b16 %v6673
    %v7261 = vunpack.c.l.b16 %v6674
    %v7262 = vunpack.c.h.b16 %v6674
    %v7263 = vunpack.c.l.b16 %v6675
    %v7264 = vunpack.c.l.b16 %v6676
    %v7265 = vunpack.c.h.b16 %v6676
    %v7266 = vunpack.c.l.b16 %v6677
    %v7267 = vunpack.c.l.b16 %v6678
    %v7268 = vunpack.c.h.b16 %v6678
    %v7269 = vunpack.c.l.b16 %v6679
    %v7270 = vunpack.c.l.b16 %v6680
    %v7271 = vunpack.c.h.b16 %v6680
    %v7272 = vunpack.c.l.b16 %v6681
    %v7273 = vunpack.c.l.b16 %v6682
    %v7274 = vunpack.c.h.b16 %v6682
    %v7275 = vunpack.c.l.b16 %v6683
    %v7276 = vunpack.c.l.b16 %v6684
    %v7277 = vunpack.c.h.b16 %v6684
    %v7278 = vunpack.c.l.b16 %v6685
    %v7279 = vunpack.c.l.b16 %v6686
    %v7280 = vunpack.c.h.b16 %v6686
    %v7281 = vunpack.c.l.b16 %v6687
    %v7282 = vunpack.c.l.b16 %v6688
    %v7283 = vunpack.c.h.b16 %v6688
    %v7284 = vunpack.c.l.b16 %v6689
    %v7285 = vunpack.c.l.b16 %v6690
    %v7286 = vunpack.c.h.b16 %v6690
    %v7287 = vunpack.c.l.b16 %v6691
    %v7288 = vunpack.c.l.b16 %v6692
    %v7289 = vunpack.c.h.b16 %v6692
    %v7290 = vunpack.c.l.b16 %v6693
    %v7291 = vunpack.c.l.b16 %v6694
    %v7292 = vunpack.c.h.b16 %v6694
    %v7293 = vunpack.c.l.b16 %v6695
    %v7294 = vunpack.c.l.b16 %v6696
    %v7295 = vunpack.c.h.b16 %v6696
    %v7296 = vunpack.c.l.b16 %v6697
    %v7297 = vunpack.c.l.b16 %v6698
    %v7298 = vunpack.c.h.b16 %v6698
    %v7299 = vunpack.c.l.b16 %v6699
    %v7300 = vunpack.c.l.b16 %v6700
    %v7301 = vunpack.c.h.b16 %v6700
    %v7302 = vunpack.c.l.b16 %v6701
    %v7303 = vunpack.c.l.b16 %v6702
    %v7304 = vunpack.c.h.b16 %v6702
    %v7305 = vunpack.c.l.b16 %v6703
    %v7306 = vunpack.c.l.b16 %v6704
    %v7307 = vunpack.c.h.b16 %v6704
    %v7308 = vunpack.c.l.b16 %v6705
    %v7309 = vunpack.c.l.b16 %v6706
    %v7310 = vunpack.c.h.b16 %v6706
    %v7311 = vunpack.c.l.b16 %v6707
    %v7312 = vunpack.c.l.b16 %v6708
    %v7313 = vunpack.c.h.b16 %v6708
    %v7314 = vunpack.c.l.b16 %v6709
    %v7315 = vunpack.c.l.b16 %v6710
    %v7316 = vunpack.c.h.b16 %v6710
    %v7317 = vunpack.c.l.b16 %v6711
    %v7318 = vunpack.c.l.b16 %v6712
    %v7319 = vunpack.c.h.b16 %v6712
    %v7320 = vunpack.c.l.b16 %v6713
    %v7321 = vunpack.c.l.b16 %v6714
    %v7322 = vunpack.c.h.b16 %v6714
    %v7323 = vunpack.c.l.b16 %v6715
    %v7324 = vunpack.c.l.b16 %v6716
    %v7325 = vunpack.c.h.b16 %v6716
    %v7326 = vunpack.c.l.b16 %v6717
    %v7327 = vunpack.c.l.b16 %v6718
    %v7328 = vunpack.c.h.b16 %v6718
    %v7329 = vunpack.c.l.b16 %v6719
    %v7330 = vunpack.c.l.b16 %v6720
    %v7331 = vunpack.c.h.b16 %v6720
    %v7332 = vunpack.c.l.b16 %v6721
    %v7333 = vunpack.c.l.b16 %v6722
    %v7334 = vunpack.c.h.b16 %v6722
    %v7335 = vunpack.c.l.b16 %v6723
    %v7336 = vunpack.c.l.b16 %v6724
    %v7337 = vunpack.c.h.b16 %v6724
    %v7338 = vunpack.c.l.b16 %v6725
    %v7339 = vunpack.c.l.b16 %v6726
    %v7340 = vunpack.c.h.b16 %v6726
    %v7341 = vunpack.c.l.b16 %v6727
    %v7342 = vunpack.c.l.b16 %v6728
    %v7343 = vunpack.c.h.b16 %v6728
    %v7344 = vunpack.c.l.b16 %v6729
    %v7345 = vunpack.c.l.b16 %v6730
    %v7346 = vunpack.c.h.b16 %v6730
    %v7347 = vunpack.c.l.b16 %v6731
    %v7348 = vunpack.c.l.b16 %v6732
    %v7349 = vunpack.c.h.b16 %v6732
    %v7350 = vunpack.c.l.b16 %v6733
    %v7351 = vunpack.c.l.b16 %v6734
    %v7352 = vunpack.c.h.b16 %v6734
    %v7353 = vunpack.c.l.b16 %v6735
    %v7354 = vunpack.c.l.b16 %v6736
    %v7355 = vunpack.c.h.b16 %v6736
    %v7356 = vunpack.c.l.b16 %v6737
    %v7357 = vunpack.c.l.b16 %v6738
    %v7358 = vunpack.c.h.b16 %v6738
    %v7359 = vunpack.c.l.b16 %v6739
    %v7360 = vunpack.c.l.b16 %v6740
    %v7361 = vunpack.c.h.b16 %v6740
    %v7362 = vunpack.c.l.b16 %v6741
    %v7363 = vunpack.c.l.b16 %v6742
    %v7364 = vunpack.c.h.b16 %v6742
    %v7365 = vunpack.c.l.b16 %v6743
    %v7366 = vunpack.c.l.b16 %v6744
    %v7367 = vunpack.c.h.b16 %v6744
    %v7368 = vunpack.c.l.b16 %v6745
    %v7369 = vunpack.c.l.b16 %v6746
    %v7370 = vunpack.c.h.b16 %v6746
    %v7371 = vunpack.c.l.b16 %v6747
    %v7372 = vunpack.c.l.b16 %v6748
    %v7373 = vunpack.c.h.b16 %v6748
    %v7374 = vunpack.c.l.b16 %v6749
    %v7375 = vunpack.c.l.b16 %v6750
    %v7376 = vunpack.c.h.b16 %v6750
    %v7377 = vunpack.c.l.b16 %v6751
    %v7378 = vunpack.c.l.b16 %v6752
    %v7379 = vunpack.c.h.b16 %v6752
    %v7380 = vunpack.c.l.b16 %v6753
    %v7381 = vunpack.c.l.b16 %v6754
    %v7382 = vunpack.c.h.b16 %v6754
    %v7383 = vunpack.c.l.b16 %v6755
    %v7384 = vunpack.c.l.b16 %v6756
    %v7385 = vunpack.c.h.b16 %v6756
    %v7386 = vunpack.c.l.b16 %v6757
    %v7387 = vunpack.c.l.b16 %v6758
    %v7388 = vunpack.c.h.b16 %v6758
    %v7389 = vunpack.c.l.b16 %v6759
    %v7390 = vunpack.c.l.b16 %v6760
    %v7391 = vunpack.c.h.b16 %v6760
    %v7392 = vunpack.c.l.b16 %v6761
    %v7393 = vunpack.c.l.b16 %v6762
    %v7394 = vunpack.c.h.b16 %v6762
    %v7395 = vunpack.c.l.b16 %v6763
    %v7396 = vunpack.c.l.b16 %v6764
    %v7397 = vunpack.c.h.b16 %v6764
    %v7398 = vunpack.c.l.b16 %v6765
    %v7399 = vunpack.c.l.b16 %v6766
    %v7400 = vunpack.c.h.b16 %v6766
    %v7401 = vunpack.c.l.b16 %v6767
    %v7402 = vunpack.c.l.b16 %v6768
    %v7403 = vunpack.c.h.b16 %v6768
    %v7404 = vunpack.c.l.b16 %v6769
    %v7405 = vunpack.c.l.b16 %v6770
    %v7406 = vunpack.c.h.b16 %v6770
    %v7407 = vunpack.c.l.b16 %v6771
    %v7408 = vunpack.c.l.b16 %v6772
    %v7409 = vunpack.c.h.b16 %v6772
    %v7410 = vunpack.c.l.b16 %v6773
    %v7411 = vunpack.c.l.b16 %v6774
    %v7412 = vunpack.c.h.b16 %v6774
    %v7413 = vunpack.c.l.b16 %v6775
    %v7414 = vunpack.c.l.b16 %v6776
    %v7415 = vunpack.c.h.b16 %v6776
    %v7416 = vunpack.c.l.b16 %v6777
    %v7417 = vunpack.c.l.b16 %v6778
    %v7418 = vunpack.c.h.b16 %v6778
    %v7419 = vunpack.c.l.b16 %v6779
    %v7420 = vpack.c.b16 %v7039, %v7036
    %v7421 = vpack.c.b16 %v7040, %v7037
    %v7422 = vpack.c.b16 %v7041, %v7038
    %v7423 = vpack.c.b16 %v7045, %v7042
    %v7424 = vpack.c.b16 %v7046, %v7043
    %v7425 = vpack.c.b16 %v7047, %v7044
    %v7426 = vpack.c.b16 %v7051, %v7048
    %v7427 = vpack.c.b16 %v7052, %v7049
    %v7428 = vpack.c.b16 %v7053, %v7050
    %v7429 = vpack.c.b16 %v7057, %v7054
    %v7430 = vpack.c.b16 %v7058, %v7055
    %v7431 = vpack.c.b16 %v7059, %v7056
    %v7432 = vpack.c.b16 %v7063, %v7060
    %v7433 = vpack.c.b16 %v7064, %v7061
    %v7434 = vpack.c.b16 %v7065, %v7062
    %v7435 = vpack.c.b16 %v7069, %v7066
    %v7436 = vpack.c.b16 %v7070, %v7067
    %v7437 = vpack.c.b16 %v7071, %v7068
    %v7438 = vpack.c.b16 %v7075, %v7072
    %v7439 = vpack.c.b16 %v7076, %v7073
    %v7440 = vpack.c.b16 %v7077, %v7074
    %v7441 = vpack.c.b16 %v7081, %v7078
    %v7442 = vpack.c.b16 %v7082, %v7079
    %v7443 = vpack.c.b16 %v7083, %v7080
    %v7444 = vpack.c.b16 %v7087, %v7084
    %v7445 = vpack.c.b16 %v7088, %v7085
    %v7446 = vpack.c.b16 %v7089, %v7086
    %v7447 = vpack.c.b16 %v7093, %v7090
    %v7448 = vpack.c.b16 %v7094, %v7091
    %v7449 = vpack.c.b16 %v7095, %v7092
    %v7450 = vpack.c.b16 %v7099, %v7096
    %v7451 = vpack.c.b16 %v7100, %v7097
    %v7452 = vpack.c.b16 %v7101, %v7098
    %v7453 = vpack.c.b16 %v7105, %v7102
    %v7454 = vpack.c.b16 %v7106, %v7103
    %v7455 = vpack.c.b16 %v7107, %v7104
    %v7456 = vpack.c.b16 %v7111, %v7108
    %v7457 = vpack.c.b16 %v7112, %v7109
    %v7458 = vpack.c.b16 %v7113, %v7110
    %v7459 = vpack.c.b16 %v7117, %v7114
    %v7460 = vpack.c.b16 %v7118, %v7115
    %v7461 = vpack.c.b16 %v7119, %v7116
    %v7462 = vpack.c.b16 %v7123, %v7120
    %v7463 = vpack.c.b16 %v7124, %v7121
    %v7464 = vpack.c.b16 %v7125, %v7122
    %v7465 = vpack.c.b16 %v7129, %v7126
    %v7466 = vpack.c.b16 %v7130, %v7127
    %v7467 = vpack.c.b16 %v7131, %v7128
    %v7468 = vpack.c.b16 %v7135, %v7132
    %v7469 = vpack.c.b16 %v7136, %v7133
    %v7470 = vpack.c.b16 %v7137, %v7134
    %v7471 = vpack.c.b16 %v7141, %v7138
    %v7472 = vpack.c.b16 %v7142, %v7139
    %v7473 = vpack.c.b16 %v7143, %v7140
    %v7474 = vpack.c.b16 %v7147, %v7144
    %v7475 = vpack.c.b16 %v7148, %v7145
    %v7476 = vpack.c.b16 %v7149, %v7146
    %v7477 = vpack.c.b16 %v7153, %v7150
    %v7478 = vpack.c.b16 %v7154, %v7151
    %v7479 = vpack.c.b16 %v7155, %v7152
    %v7480 = vpack.c.b16 %v7159, %v7156
    %v7481 = vpack.c.b16 %v7160, %v7157
    %v7482 = vpack.c.b16 %v7161, %v7158
    %v7483 = vpack.c.b16 %v7165, %v7162
    %v7484 = vpack.c.b16 %v7166, %v7163
    %v7485 = vpack.c.b16 %v7167, %v7164
    %v7486 = vpack.c.b16 %v7171, %v7168
    %v7487 = vpack.c.b16 %v7172, %v7169
    %v7488 = vpack.c.b16 %v7173, %v7170
    %v7489 = vpack.c.b16 %v7177, %v7174
    %v7490 = vpack.c.b16 %v7178, %v7175
    %v7491 = vpack.c.b16 %v7179, %v7176
    %v7492 = vpack.c.b16 %v7183, %v7180
    %v7493 = vpack.c.b16 %v7184, %v7181
    %v7494 = vpack.c.b16 %v7185, %v7182
    %v7495 = vpack.c.b16 %v7189, %v7186
    %v7496 = vpack.c.b16 %v7190, %v7187
    %v7497 = vpack.c.b16 %v7191, %v7188
    %v7498 = vpack.c.b16 %v7195, %v7192
    %v7499 = vpack.c.b16 %v7196, %v7193
    %v7500 = vpack.c.b16 %v7197, %v7194
    %v7501 = vpack.c.b16 %v7201, %v7198
    %v7502 = vpack.c.b16 %v7202, %v7199
    %v7503 = vpack.c.b16 %v7203, %v7200
    %v7504 = vpack.c.b16 %v7207, %v7204
    %v7505 = vpack.c.b16 %v7208, %v7205
    %v7506 = vpack.c.b16 %v7209, %v7206
    %v7507 = vpack.c.b16 %v7213, %v7210
    %v7508 = vpack.c.b16 %v7214, %v7211
    %v7509 = vpack.c.b16 %v7215, %v7212
    %v7510 = vpack.c.b16 %v7219, %v7216
    %v7511 = vpack.c.b16 %v7220, %v7217
    %v7512 = vpack.c.b16 %v7221, %v7218
    %v7513 = vpack.c.b16 %v7225, %v7222
    %v7514 = vpack.c.b16 %v7226, %v7223
    %v7515 = vpack.c.b16 %v7227, %v7224
    %v7516 = vpack.c.b16 %v7231, %v7228
    %v7517 = vpack.c.b16 %v7232, %v7229
    %v7518 = vpack.c.b16 %v7233, %v7230
    %v7519 = vpack.c.b16 %v7237, %v7234
    %v7520 = vpack.c.b16 %v7238, %v7235
    %v7521 = vpack.c.b16 %v7239, %v7236
    %v7522 = vpack.c.b16 %v7243, %v7240
    %v7523 = vpack.c.b16 %v7244, %v7241
    %v7524 = vpack.c.b16 %v7245, %v7242
    %v7525 = vpack.c.b16 %v7249, %v7246
    %v7526 = vpack.c.b16 %v7250, %v7247
    %v7527 = vpack.c.b16 %v7251, %v7248
    %v7528 = vpack.c.b16 %v7255, %v7252
    %v7529 = vpack.c.b16 %v7256, %v7253
    %v7530 = vpack.c.b16 %v7257, %v7254
    %v7531 = vpack.c.b16 %v7261, %v7258
    %v7532 = vpack.c.b16 %v7262, %v7259
    %v7533 = vpack.c.b16 %v7263, %v7260
    %v7534 = vpack.c.b16 %v7267, %v7264
    %v7535 = vpack.c.b16 %v7268, %v7265
    %v7536 = vpack.c.b16 %v7269, %v7266
    %v7537 = vpack.c.b16 %v7273, %v7270
    %v7538 = vpack.c.b16 %v7274, %v7271
    %v7539 = vpack.c.b16 %v7275, %v7272
    %v7540 = vpack.c.b16 %v7279, %v7276
    %v7541 = vpack.c.b16 %v7280, %v7277
    %v7542 = vpack.c.b16 %v7281, %v7278
    %v7543 = vpack.c.b16 %v7285, %v7282
    %v7544 = vpack.c.b16 %v7286, %v7283
    %v7545 = vpack.c.b16 %v7287, %v7284
    %v7546 = vpack.c.b16 %v7291, %v7288
    %v7547 = vpack.c.b16 %v7292, %v7289
    %v7548 = vpack.c.b16 %v7293, %v7290
    %v7549 = vpack.c.b16 %v7297, %v7294
    %v7550 = vpack.c.b16 %v7298, %v7295
    %v7551 = vpack.c.b16 %v7299, %v7296
    %v7552 = vpack.c.b16 %v7303, %v7300
    %v7553 = vpack.c.b16 %v7304, %v7301
    %v7554 = vpack.c.b16 %v7305, %v7302
    %v7555 = vpack.c.b16 %v7309, %v7306
    %v7556 = vpack.c.b16 %v7310, %v7307
    %v7557 = vpack.c.b16 %v7311, %v7308
    %v7558 = vpack.c.b16 %v7315, %v7312
    %v7559 = vpack.c.b16 %v7316, %v7313
    %v7560 = vpack.c.b16 %v7317, %v7314
    %v7561 = vpack.c.b16 %v7321, %v7318
    %v7562 = vpack.c.b16 %v7322, %v7319
    %v7563 = vpack.c.b16 %v7323, %v7320
    %v7564 = vpack.c.b16 %v7327, %v7324
    %v7565 = vpack.c.b16 %v7328, %v7325
    %v7566 = vpack.c.b16 %v7329, %v7326
    %v7567 = vpack.c.b16 %v7333, %v7330
    %v7568 = vpack.c.b16 %v7334, %v7331
    %v7569 = vpack.c.b16 %v7335, %v7332
    %v7570 = vpack.c.b16 %v7339, %v7336
    %v7571 = vpack.c.b16 %v7340, %v7337
    %v7572 = vpack.c.b16 %v7341, %v7338
    %v7573 = vpack.c.b16 %v7345, %v7342
    %v7574 = vpack.c.b16 %v7346, %v7343
    %v7575 = vpack.c.b16 %v7347, %v7344
    %v7576 = vpack.c.b16 %v7351, %v7348
    %v7577 = vpack.c.b16 %v7352, %v7349
    %v7578 = vpack.c.b16 %v7353, %v7350
    %v7579 = vpack.c.b16 %v7357, %v7354
    %v7580 = vpack.c.b16 %v7358, %v7355
    %v7581 = vpack.c.b16 %v7359, %v7356
    %v7582 = vpack.c.b16 %v7363, %v7360
    %v7583 = vpack.c.b16 %v7364, %v7361
    %v7584 = vpack.c.b16 %v7365, %v7362
    %v7585 = vpack.c.b16 %v7369, %v7366
    %v7586 = vpack.c.b16 %v7370, %v7367
    %v7587 = vpack.c.b16 %v7371, %v7368
    %v7588 = vpack.c.b16 %v7375, %v7372
    %v7589 = vpack.c.b16 %v7376, %v7373
    %v7590 = vpack.c.b16 %v7377, %v7374
    %v7591 = vpack.c.b16 %v7381, %v7378
    %v7592 = vpack.c.b16 %v7382, %v7379
    %v7593 = vpack.c.b16 %v7383, %v7380
    %v7594 = vpack.c.b16 %v7387, %v7384
    %v7595 = vpack.c.b16 %v7388, %v7385
    %v7596 = vpack.c.b16 %v7389, %v7386
    %v7597 = vpack.c.b16 %v7393, %v7390
    %v7598 = vpack.c.b16 %v7394, %v7391
    %v7599 = vpack.c.b16 %v7395, %v7392
    %v7600 = vpack.c.b16 %v7399, %v7396
    %v7601 = vpack.c.b16 %v7400, %v7397
    %v7602 = vpack.c.b16 %v7401, %v7398
    %v7603 = vpack.c.b16 %v7405, %v7402
    %v7604 = vpack.c.b16 %v7406, %v7403
    %v7605 = vpack.c.b16 %v7407, %v7404
    %v7606 = vpack.c.b16 %v7411, %v7408
    %v7607 = vpack.c.b16 %v7412, %v7409
    %v7608 = vpack.c.b16 %v7413, %v7410
    %v7609 = vpack.c.b16 %v7417, %v7414
    %v7610 = vpack.c.b16 %v7418, %v7415
    %v7611 = vpack.c.b16 %v7419, %v7416
    %7804 = vmatprep.subr.bf16.mxu0 %v7442
    %7805 = vmatpush1.bf16.msra.mxu0 %v7441
    %7806 = vmatprep.subr.bf16.mxu0 %v7439
    %7807 = vmatpush1.bf16.msra.mxu0 %v7438
    %7808 = vmatprep.subr.bf16.mxu0 %v7436
    %7809 = vmatpush1.bf16.msra.mxu0 %v7435
    %7810 = vmatprep.subr.bf16.mxu0 %v7433
    %7811 = vmatpush1.bf16.msra.mxu0 %v7432
    %7812 = vmatprep.subr.bf16.mxu0 %v7430
    %7813 = vmatpush1.bf16.msra.mxu0 %v7429
    %7814 = vmatprep.subr.bf16.mxu0 %v7427
    %7815 = vmatpush1.bf16.msra.mxu0 %v7426
    %7816 = vmatprep.subr.bf16.mxu0 %v7424
    %7817 = vmatpush1.bf16.msra.mxu0 %v7423
    %7818 = vmatprep.subr.bf16.mxu0 %v7421
    %7819 = vmatpush1.bf16.msra.mxu0 %v7420
    %7820 = vmatprep.subr.bf16.mxu0 %v7466
    %7821 = vmatpush2.bf16.msra.mxu0 %v7465
    %7822 = vmatprep.subr.bf16.mxu0 %v7463
    %7823 = vmatpush2.bf16.msra.mxu0 %v7462
    %7824 = vmatprep.subr.bf16.mxu0 %v7460
    %7825 = vmatpush2.bf16.msra.mxu0 %v7459
    %7826 = vmatprep.subr.bf16.mxu0 %v7457
    %7827 = vmatpush2.bf16.msra.mxu0 %v7456
    %7828 = vmatprep.subr.bf16.mxu0 %v7454
    %7829 = vmatpush2.bf16.msra.mxu0 %v7453
    %7830 = vmatprep.subr.bf16.mxu0 %v7451
    %7831 = vmatpush2.bf16.msra.mxu0 %v7450
    %7832 = vmatprep.subr.bf16.mxu0 %v7448
    %7833 = vmatpush2.bf16.msra.mxu0 %v7447
    %7834 = vmatprep.subr.bf16.mxu0 %v7445
    %7835 = vmatpush2.bf16.msra.mxu0 %v7444
    %7836 = vmatprep.mubr.bf16.mxu0 %v6517
    %7837 = vmatmul.mubr.bf16.gmra.mxu0 %v6516
    %v7838 = vpop.f32.mrf.mxu0
    %v7839 = vadd.f32 0.0, %v7838
    %v7840 = vpop.f32.mrf.mxu0
    %v7841 = vadd.f32 0.0, %v7840
    %v7842 = vpop.f32.mrf.mxu0
    %v7843 = vpop.f32.mrf.mxu0
    %7844 = vdwg.mxu0
    %7845 = vmatprep.subr.bf16.mxu0 %v7490
    %7846 = vmatpush1.bf16.msra.mxu0 %v7489
    %7847 = vmatprep.subr.bf16.mxu0 %v7487
    %7848 = vmatpush1.bf16.msra.mxu0 %v7486
    %7849 = vmatprep.subr.bf16.mxu0 %v7484
    %7850 = vmatpush1.bf16.msra.mxu0 %v7483
    %7851 = vmatprep.subr.bf16.mxu0 %v7481
    %7852 = vmatpush1.bf16.msra.mxu0 %v7480
    %7853 = vmatprep.subr.bf16.mxu0 %v7478
    %7854 = vmatpush1.bf16.msra.mxu0 %v7477
    %7855 = vmatprep.subr.bf16.mxu0 %v7475
    %7856 = vmatpush1.bf16.msra.mxu0 %v7474
    %7857 = vmatprep.subr.bf16.mxu0 %v7472
    %7858 = vmatpush1.bf16.msra.mxu0 %v7471
    %7859 = vmatprep.subr.bf16.mxu0 %v7469
    %7860 = vmatpush1.bf16.msra.mxu0 %v7468
    %7861 = vmatprep.subr.bf16.mxu0 %v7514
    %7862 = vmatpush2.bf16.msra.mxu0 %v7513
    %7863 = vmatprep.subr.bf16.mxu0 %v7511
    %7864 = vmatpush2.bf16.msra.mxu0 %v7510
    %7865 = vmatprep.subr.bf16.mxu0 %v7508
    %7866 = vmatpush2.bf16.msra.mxu0 %v7507
    %7867 = vmatprep.subr.bf16.mxu0 %v7505
    %7868 = vmatpush2.bf16.msra.mxu0 %v7504
    %7869 = vmatprep.subr.bf16.mxu0 %v7502
    %7870 = vmatpush2.bf16.msra.mxu0 %v7501
    %7871 = vmatprep.subr.bf16.mxu0 %v7499
    %7872 = vmatpush2.bf16.msra.mxu0 %v7498
    %7873 = vmatprep.subr.bf16.mxu0 %v7496
    %7874 = vmatpush2.bf16.msra.mxu0 %v7495
    %7875 = vmatprep.subr.bf16.mxu0 %v7493
    %7876 = vmatpush2.bf16.msra.mxu0 %v7492
    %7877 = vmatprep.mubr.bf16.mxu0 %v6519
    %7878 = vmatmul.mubr.bf16.gmra.mxu0 %v6518
    %v7879 = vpop.f32.mrf.mxu0
    %v7880 = vadd.f32 %v7839, %v7879
    %v7881 = vpop.f32.mrf.mxu0
    %v7882 = vadd.f32 %v7841, %v7881
    %v7883 = vpop.f32.mrf.mxu0
    %v7884 = vpop.f32.mrf.mxu0
    %7885 = vdwg.mxu0
    %7886 = vmatprep.subr.bf16.mxu0 %v7538
    %7887 = vmatpush1.bf16.msra.mxu0 %v7537
    %7888 = vmatprep.subr.bf16.mxu0 %v7535
    %7889 = vmatpush1.bf16.msra.mxu0 %v7534
    %7890 = vmatprep.subr.bf16.mxu0 %v7532
    %7891 = vmatpush1.bf16.msra.mxu0 %v7531
    %7892 = vmatprep.subr.bf16.mxu0 %v7529
    %7893 = vmatpush1.bf16.msra.mxu0 %v7528
    %7894 = vmatprep.subr.bf16.mxu0 %v7526
    %7895 = vmatpush1.bf16.msra.mxu0 %v7525
    %7896 = vmatprep.subr.bf16.mxu0 %v7523
    %7897 = vmatpush1.bf16.msra.mxu0 %v7522
    %7898 = vmatprep.subr.bf16.mxu0 %v7520
    %7899 = vmatpush1.bf16.msra.mxu0 %v7519
    %7900 = vmatprep.subr.bf16.mxu0 %v7517
    %7901 = vmatpush1.bf16.msra.mxu0 %v7516
    %7902 = vmatprep.subr.bf16.mxu0 %v7562
    %7903 = vmatpush2.bf16.msra.mxu0 %v7561
    %7904 = vmatprep.subr.bf16.mxu0 %v7559
    %7905 = vmatpush2.bf16.msra.mxu0 %v7558
    %7906 = vmatprep.subr.bf16.mxu0 %v7556
    %7907 = vmatpush2.bf16.msra.mxu0 %v7555
    %7908 = vmatprep.subr.bf16.mxu0 %v7553
    %7909 = vmatpush2.bf16.msra.mxu0 %v7552
    %7910 = vmatprep.subr.bf16.mxu0 %v7550
    %7911 = vmatpush2.bf16.msra.mxu0 %v7549
    %7912 = vmatprep.subr.bf16.mxu0 %v7547
    %7913 = vmatpush2.bf16.msra.mxu0 %v7546
    %7914 = vmatprep.subr.bf16.mxu0 %v7544
    %7915 = vmatpush2.bf16.msra.mxu0 %v7543
    %7916 = vmatprep.subr.bf16.mxu0 %v7541
    %7917 = vmatpush2.bf16.msra.mxu0 %v7540
    %7918 = vmatprep.mubr.bf16.mxu0 %v6521
    %7919 = vmatmul.mubr.bf16.gmra.mxu0 %v6520
    %v7920 = vpop.f32.mrf.mxu0
    %v7921 = vadd.f32 %v7880, %v7920
    %v7922 = vpop.f32.mrf.mxu0
    %v7923 = vadd.f32 %v7882, %v7922
    %v7924 = vpop.f32.mrf.mxu0
    %v7925 = vpop.f32.mrf.mxu0
    %7926 = vdwg.mxu0
    %7927 = vmatprep.subr.bf16.mxu0 %v7586
    %7928 = vmatpush1.bf16.msra.mxu0 %v7585
    %7929 = vmatprep.subr.bf16.mxu0 %v7583
    %7930 = vmatpush1.bf16.msra.mxu0 %v7582
    %7931 = vmatprep.subr.bf16.mxu0 %v7580
    %7932 = vmatpush1.bf16.msra.mxu0 %v7579
    %7933 = vmatprep.subr.bf16.mxu0 %v7577
    %7934 = vmatpush1.bf16.msra.mxu0 %v7576
    %7935 = vmatprep.subr.bf16.mxu0 %v7574
    %7936 = vmatpush1.bf16.msra.mxu0 %v7573
    %7937 = vmatprep.subr.bf16.mxu0 %v7571
    %7938 = vmatpush1.bf16.msra.mxu0 %v7570
    %7939 = vmatprep.subr.bf16.mxu0 %v7568
    %7940 = vmatpush1.bf16.msra.mxu0 %v7567
    %7941 = vmatprep.subr.bf16.mxu0 %v7565
    %7942 = vmatpush1.bf16.msra.mxu0 %v7564
    %7943 = vmatprep.subr.bf16.mxu0 %v7610
    %7944 = vmatpush2.bf16.msra.mxu0 %v7609
    %7945 = vmatprep.subr.bf16.mxu0 %v7607
    %7946 = vmatpush2.bf16.msra.mxu0 %v7606
    %7947 = vmatprep.subr.bf16.mxu0 %v7604
    %7948 = vmatpush2.bf16.msra.mxu0 %v7603
    %7949 = vmatprep.subr.bf16.mxu0 %v7601
    %7950 = vmatpush2.bf16.msra.mxu0 %v7600
    %7951 = vmatprep.subr.bf16.mxu0 %v7598
    %7952 = vmatpush2.bf16.msra.mxu0 %v7597
    %7953 = vmatprep.subr.bf16.mxu0 %v7595
    %7954 = vmatpush2.bf16.msra.mxu0 %v7594
    %7955 = vmatprep.subr.bf16.mxu0 %v7592
    %7956 = vmatpush2.bf16.msra.mxu0 %v7591
    %7957 = vmatprep.subr.bf16.mxu0 %v7589
    %7958 = vmatpush2.bf16.msra.mxu0 %v7588
    %7959 = vmatprep.mubr.bf16.mxu0 %v6523
    %7960 = vmatmul.mubr.bf16.gmra.mxu0 %v6522
    %v7961 = vpop.f32.mrf.mxu0
    %v7962 = vadd.f32 %v7921, %v7961
    %v7963 = vpop.f32.mrf.mxu0
    %v7964 = vadd.f32 %v7923, %v7963
    %v7965 = vpop.f32.mrf.mxu0
    %v7966 = vpop.f32.mrf.mxu0
    %7967 = vdwg.mxu0
    %7968 = vmatprep.subr.bf16.mxu0 0
    %7969 = vmatpush1.bf16.msra.mxu0 %v7443
    %7970 = vmatprep.subr.bf16.mxu0 0
    %7971 = vmatpush1.bf16.msra.mxu0 %v7440
    %7972 = vmatprep.subr.bf16.mxu0 0
    %7973 = vmatpush1.bf16.msra.mxu0 %v7437
    %7974 = vmatprep.subr.bf16.mxu0 0
    %7975 = vmatpush1.bf16.msra.mxu0 %v7434
    %7976 = vmatprep.subr.bf16.mxu0 0
    %7977 = vmatpush1.bf16.msra.mxu0 %v7431
    %7978 = vmatprep.subr.bf16.mxu0 0
    %7979 = vmatpush1.bf16.msra.mxu0 %v7428
    %7980 = vmatprep.subr.bf16.mxu0 0
    %7981 = vmatpush1.bf16.msra.mxu0 %v7425
    %7982 = vmatprep.subr.bf16.mxu0 0
    %7983 = vmatpush1.bf16.msra.mxu0 %v7422
    %7984 = vmatprep.subr.bf16.mxu0 0
    %7985 = vmatpush2.bf16.msra.mxu0 %v7467
    %7986 = vmatprep.subr.bf16.mxu0 0
    %7987 = vmatpush2.bf16.msra.mxu0 %v7464
    %7988 = vmatprep.subr.bf16.mxu0 0
    %7989 = vmatpush2.bf16.msra.mxu0 %v7461
    %7990 = vmatprep.subr.bf16.mxu0 0
    %7991 = vmatpush2.bf16.msra.mxu0 %v7458
    %7992 = vmatprep.subr.bf16.mxu0 0
    %7993 = vmatpush2.bf16.msra.mxu0 %v7455
    %7994 = vmatprep.subr.bf16.mxu0 0
    %7995 = vmatpush2.bf16.msra.mxu0 %v7452
    %7996 = vmatprep.subr.bf16.mxu0 0
    %7997 = vmatpush2.bf16.msra.mxu0 %v7449
    %7998 = vmatprep.subr.bf16.mxu0 0
    %7999 = vmatpush2.bf16.msra.mxu0 %v7446
    %8000 = vmatprep.mubr.bf16.mxu0 %v6517
    %8001 = vmatmul.mubr.bf16.gmra.mxu0 %v6516
    %v8002 = vpop.f32.mrf.mxu0
    %v8003 = vadd.f32 0.0, %v8002
    %v8004 = vpop.f32.mrf.mxu0
    %v8005 = vpop.f32.mrf.mxu0
    %v8006 = vpop.f32.mrf.mxu0
    %8007 = vdwg.mxu0
    %8008 = vmatprep.subr.bf16.mxu0 0
    %8009 = vmatpush1.bf16.msra.mxu0 %v7491
    %8010 = vmatprep.subr.bf16.mxu0 0
    %8011 = vmatpush1.bf16.msra.mxu0 %v7488
    %8012 = vmatprep.subr.bf16.mxu0 0
    %8013 = vmatpush1.bf16.msra.mxu0 %v7485
    %8014 = vmatprep.subr.bf16.mxu0 0
    %8015 = vmatpush1.bf16.msra.mxu0 %v7482
    %8016 = vmatprep.subr.bf16.mxu0 0
    %8017 = vmatpush1.bf16.msra.mxu0 %v7479
    %8018 = vmatprep.subr.bf16.mxu0 0
    %8019 = vmatpush1.bf16.msra.mxu0 %v7476
    %8020 = vmatprep.subr.bf16.mxu0 0
    %8021 = vmatpush1.bf16.msra.mxu0 %v7473
    %8022 = vmatprep.subr.bf16.mxu0 0
    %8023 = vmatpush1.bf16.msra.mxu0 %v7470
    %8024 = vmatprep.subr.bf16.mxu0 0
    %8025 = vmatpush2.bf16.msra.mxu0 %v7515
    %8026 = vmatprep.subr.bf16.mxu0 0
    %8027 = vmatpush2.bf16.msra.mxu0 %v7512
    %8028 = vmatprep.subr.bf16.mxu0 0
    %8029 = vmatpush2.bf16.msra.mxu0 %v7509
    %8030 = vmatprep.subr.bf16.mxu0 0
    %8031 = vmatpush2.bf16.msra.mxu0 %v7506
    %8032 = vmatprep.subr.bf16.mxu0 0
    %8033 = vmatpush2.bf16.msra.mxu0 %v7503
    %8034 = vmatprep.subr.bf16.mxu0 0
    %8035 = vmatpush2.bf16.msra.mxu0 %v7500
    %8036 = vmatprep.subr.bf16.mxu0 0
    %8037 = vmatpush2.bf16.msra.mxu0 %v7497
    %8038 = vmatprep.subr.bf16.mxu0 0
    %8039 = vmatpush2.bf16.msra.mxu0 %v7494
    %8040 = vmatprep.mubr.bf16.mxu0 %v6519
    %8041 = vmatmul.mubr.bf16.gmra.mxu0 %v6518
    %v8042 = vpop.f32.mrf.mxu0
    %v8043 = vadd.f32 %v8003, %v8042
    %v8044 = vpop.f32.mrf.mxu0
    %v8045 = vpop.f32.mrf.mxu0
    %v8046 = vpop.f32.mrf.mxu0
    %8047 = vdwg.mxu0
    %8048 = vmatprep.subr.bf16.mxu0 0
    %8049 = vmatpush1.bf16.msra.mxu0 %v7539
    %8050 = vmatprep.subr.bf16.mxu0 0
    %8051 = vmatpush1.bf16.msra.mxu0 %v7536
    %8052 = vmatprep.subr.bf16.mxu0 0
    %8053 = vmatpush1.bf16.msra.mxu0 %v7533
    %8054 = vmatprep.subr.bf16.mxu0 0
    %8055 = vmatpush1.bf16.msra.mxu0 %v7530
    %8056 = vmatprep.subr.bf16.mxu0 0
    %8057 = vmatpush1.bf16.msra.mxu0 %v7527
    %8058 = vmatprep.subr.bf16.mxu0 0
    %8059 = vmatpush1.bf16.msra.mxu0 %v7524
    %8060 = vmatprep.subr.bf16.mxu0 0
    %8061 = vmatpush1.bf16.msra.mxu0 %v7521
    %8062 = vmatprep.subr.bf16.mxu0 0
    %8063 = vmatpush1.bf16.msra.mxu0 %v7518
    %8064 = vmatprep.subr.bf16.mxu0 0
    %8065 = vmatpush2.bf16.msra.mxu0 %v7563
    %8066 = vmatprep.subr.bf16.mxu0 0
    %8067 = vmatpush2.bf16.msra.mxu0 %v7560
    %8068 = vmatprep.subr.bf16.mxu0 0
    %8069 = vmatpush2.bf16.msra.mxu0 %v7557
    %8070 = vmatprep.subr.bf16.mxu0 0
    %8071 = vmatpush2.bf16.msra.mxu0 %v7554
    %8072 = vmatprep.subr.bf16.mxu0 0
    %8073 = vmatpush2.bf16.msra.mxu0 %v7551
    %8074 = vmatprep.subr.bf16.mxu0 0
    %8075 = vmatpush2.bf16.msra.mxu0 %v7548
    %8076 = vmatprep.subr.bf16.mxu0 0
    %8077 = vmatpush2.bf16.msra.mxu0 %v7545
    %8078 = vmatprep.subr.bf16.mxu0 0
    %8079 = vmatpush2.bf16.msra.mxu0 %v7542
    %8080 = vmatprep.mubr.bf16.mxu0 %v6521
    %8081 = vmatmul.mubr.bf16.gmra.mxu0 %v6520
    %v8082 = vpop.f32.mrf.mxu0
    %v8083 = vadd.f32 %v8043, %v8082
    %v8084 = vpop.f32.mrf.mxu0
    %v8085 = vpop.f32.mrf.mxu0
    %v8086 = vpop.f32.mrf.mxu0
    %8087 = vdwg.mxu0
    %8088 = vmatprep.subr.bf16.mxu0 0
    %8089 = vmatpush1.bf16.msra.mxu0 %v7587
    %8090 = vmatprep.subr.bf16.mxu0 0
    %8091 = vmatpush1.bf16.msra.mxu0 %v7584
    %8092 = vmatprep.subr.bf16.mxu0 0
    %8093 = vmatpush1.bf16.msra.mxu0 %v7581
    %8094 = vmatprep.subr.bf16.mxu0 0
    %8095 = vmatpush1.bf16.msra.mxu0 %v7578
    %8096 = vmatprep.subr.bf16.mxu0 0
    %8097 = vmatpush1.bf16.msra.mxu0 %v7575
    %8098 = vmatprep.subr.bf16.mxu0 0
    %8099 = vmatpush1.bf16.msra.mxu0 %v7572
    %8100 = vmatprep.subr.bf16.mxu0 0
    %8101 = vmatpush1.bf16.msra.mxu0 %v7569
    %8102 = vmatprep.subr.bf16.mxu0 0
    %8103 = vmatpush1.bf16.msra.mxu0 %v7566
    %8104 = vmatprep.subr.bf16.mxu0 0
    %8105 = vmatpush2.bf16.msra.mxu0 %v7611
    %8106 = vmatprep.subr.bf16.mxu0 0
    %8107 = vmatpush2.bf16.msra.mxu0 %v7608
    %8108 = vmatprep.subr.bf16.mxu0 0
    %8109 = vmatpush2.bf16.msra.mxu0 %v7605
    %8110 = vmatprep.subr.bf16.mxu0 0
    %8111 = vmatpush2.bf16.msra.mxu0 %v7602
    %8112 = vmatprep.subr.bf16.mxu0 0
    %8113 = vmatpush2.bf16.msra.mxu0 %v7599
    %8114 = vmatprep.subr.bf16.mxu0 0
    %8115 = vmatpush2.bf16.msra.mxu0 %v7596
    %8116 = vmatprep.subr.bf16.mxu0 0
    %8117 = vmatpush2.bf16.msra.mxu0 %v7593
    %8118 = vmatprep.subr.bf16.mxu0 0
    %8119 = vmatpush2.bf16.msra.mxu0 %v7590
    %8120 = vmatprep.mubr.bf16.mxu0 %v6523
    %8121 = vmatmul.mubr.bf16.gmra.mxu0 %v6522
    %v8122 = vpop.f32.mrf.mxu0
    %v8123 = vadd.f32 %v8083, %v8122
    %v8124 = vpop.f32.mrf.mxu0
    %v8125 = vpop.f32.mrf.mxu0
    %v8126 = vpop.f32.mrf.mxu0
    %8127 = vdwg.mxu0
    %8128 = vst [vmem:[%s14] sm:$0xff] %v7962
    %8129 = vst [vmem:[%s14 + $0x8] sm:$0xff] %v7964
    %8130 = vst [vmem:[%s14 + $0x10] sm:$0xff] %v8123
    // Predicated region
    $region66: #{multihead_bert_forward.1} parent=1 // pred_check
      _
    $region67: #{multihead_bert_forward.1} parent=1 // pred_check_branch
      %8132 = sbr.rel (0) target = $region69
    $region68: #{multihead_bert_forward.1} parent=1 // pred_region
      %s8134 = ssub.s32 512, 512
      %8135 = vsyncadd [#allocation4], %s8134
      %s8137 = sshll.u32 [#allocation13], 4
      %s8138 = int_to_ptr.vmem [resolvable:$true] %s8137
      %8140 = dma.vmem_to_hbm [thread:$0]  %s8138, 512, %s10, [#allocation4]
    $region69: #{multihead_bert_forward.1} parent=1 // pred_fallthru
      _
    // Predicated region
    $region70: #{multihead_bert_forward.1} parent=1 // pred_check
      _
    $region71: #{multihead_bert_forward.1} parent=1 // pred_check_branch
      %8142 = sbr.rel (0) target = $region73
    $region72: #{multihead_bert_forward.1} parent=1 // pred_region
      %s8144 = ssub.s32 128, 128
      %8145 = vsyncadd [#allocation15], %s8144
      %s8147 = sshll.u32 [#allocation14], 4
      %s8148 = int_to_ptr.vmem [resolvable:$true] %s8147
      %8150 = dma.vmem_to_hbm [thread:$0]  %s8148, 128, %s11, [#allocation15]
    $region73: #{multihead_bert_forward.1} parent=1 // pred_fallthru
      _
    // Predicated region
    $region74: #{multihead_bert_forward.1} parent=1 // pred_check
      _
    $region75: #{multihead_bert_forward.1} parent=1 // pred_check_branch
      %8152 = sbr.rel (0) target = $region77
    $region76: #{multihead_bert_forward.1} parent=1 // pred_region
      _
    $region77: #{multihead_bert_forward.1} parent=1 // pred_fallthru
      _
    // Predicated region
    $region78: #{multihead_bert_forward.1} parent=1 // pred_check
      _
    $region79: #{multihead_bert_forward.1} parent=1 // pred_check_branch
      %8154 = sbr.rel (0) target = $region81
    $region80: #{multihead_bert_forward.1} parent=1 // pred_region
      %s8156 = ssub.s32 1024, 1024
      %8157 = vsyncadd [#allocation15], %s8156
      %s8159 = sshll.u32 [#allocation16], 4
      %s8160 = int_to_ptr.vmem [resolvable:$true] %s8159
      %8162 = dma.vmem_to_hbm [thread:$0]  %s8160, 1024, %s13, [#allocation15]
    $region81: #{multihead_bert_forward.1} parent=1 // pred_fallthru
      _
    // Predicated region
    $region82: #{multihead_bert_forward.1} parent=1 // pred_check
      _
    $region83: #{multihead_bert_forward.1} parent=1 // pred_check_branch
      %8164 = sbr.rel (0) target = $region85
    $region84: #{multihead_bert_forward.1} parent=1 // pred_region
      _
    $region85: #{multihead_bert_forward.1} parent=1 // pred_fallthru
      _
    // Predicated region
    $region86: #{multihead_bert_forward.1} parent=1 // pred_check
      _
    $region87: #{multihead_bert_forward.1} parent=1 // pred_check_branch
      %8166 = sbr.rel (0) target = $region89
    $region88: #{multihead_bert_forward.1} parent=1 // pred_region
      %s8168 = ssub.s32 1024, 1024
      %8169 = vsyncadd [#allocation18], %s8168
      %s8171 = sshll.u32 [#allocation17], 4
      %s8172 = int_to_ptr.vmem [resolvable:$true] %s8171
      %8174 = dma.vmem_to_hbm [thread:$0]  %s8172, 1024, %s15, [#allocation18]
    $region89: #{multihead_bert_forward.1} parent=1 // pred_fallthru
      _
    // Predicated region
    $region90: #{multihead_bert_forward.1} parent=1 // pred_check
      _
    $region91: #{multihead_bert_forward.1} parent=1 // pred_check_branch
      %8176 = sbr.rel (0) target = $region93
    $region92: #{multihead_bert_forward.1} parent=1 // pred_region
      %8177 = dma.done [#allocation4], 512
    $region93: #{multihead_bert_forward.1} parent=1 // pred_fallthru
      _
    // Predicated region
    $region94: #{multihead_bert_forward.1} parent=1 // pred_check
      _
    $region95: #{multihead_bert_forward.1} parent=1 // pred_check_branch
      %8179 = sbr.rel (0) target = $region97
    $region96: #{multihead_bert_forward.1} parent=1 // pred_region
      %8180 = dma.done [#allocation15], 128
    $region97: #{multihead_bert_forward.1} parent=1 // pred_fallthru
      _
    // Predicated region
    $region98: #{multihead_bert_forward.1} parent=1 // pred_check
      _
    $region99: #{multihead_bert_forward.1} parent=1 // pred_check_branch
      %8182 = sbr.rel (0) target = $region101
    $region100: #{multihead_bert_forward.1} parent=1 // pred_region
      _
    $region101: #{multihead_bert_forward.1} parent=1 // pred_fallthru
      _
    // Predicated region
    $region102: #{multihead_bert_forward.1} parent=1 // pred_check
      _
    $region103: #{multihead_bert_forward.1} parent=1 // pred_check_branch
      %8184 = sbr.rel (0) target = $region105
    $region104: #{multihead_bert_forward.1} parent=1 // pred_region
      %8185 = dma.done [#allocation15], 1024
    $region105: #{multihead_bert_forward.1} parent=1 // pred_fallthru
      _
    // Predicated region
    $region106: #{multihead_bert_forward.1} parent=1 // pred_check
      _
    $region107: #{multihead_bert_forward.1} parent=1 // pred_check_branch
      %8187 = sbr.rel (0) target = $region109
    $region108: #{multihead_bert_forward.1} parent=1 // pred_region
      _
    $region109: #{multihead_bert_forward.1} parent=1 // pred_fallthru
      _
    // Predicated region
    $region110: #{multihead_bert_forward.1} parent=1 // pred_check
      _
    $region111: #{multihead_bert_forward.1} parent=1 // pred_check_branch
      %8189 = sbr.rel (0) target = $region113
    $region112: #{multihead_bert_forward.1} parent=1 // pred_region
      %8190 = dma.done [#allocation18], 1024
    $region113: #{multihead_bert_forward.1} parent=1 // pred_fallthru
      _
    %8191 = vsyncpa [#allocation3], 1
    %8192 = vsyncpa [#allocation6], 1
    %8193 = vsyncpa [#allocation9], 1
    %8194 = vsyncpa [#allocation12], 1
    %8195 = vsyncpa [#allocation4], 1
    %8196 = vsyncpa [#allocation15], 1
    %8197 = vsyncpa [#allocation18], 1

</llo_original>
